<compile_context>
chip_gen: v7x
topology: tpu7x:2x2x1
jax: 0.10.0
libtpu: 0.0.40
codegen_flags: <defaults>
</compile_context>

<pallas_src>
import functools

import jax
import jax.numpy as jnp
from jax.experimental import pallas as pl
from jax.experimental.pallas import tpu as pltpu

_COMPUTE_DTYPE = jnp.bfloat16        # MXU operand dtype (accumulation is f32)
_STREAM_DTYPE = jnp.bfloat16         # inter-sublayer activation dtype


def _round_up(x, m):
    return ((x + m - 1) // m) * m


def _default_vmem_limit():
    """Per-generation VMEM budget (v7x: 64 MiB physical, v5e/v6e: 128 MiB)."""
    cap = 64 * 1024 * 1024
    try:
        info = pltpu.get_tpu_info()
        for name in ("vmem_capacity_bytes", "vmem_size_bytes", "vmem_bytes"):
            val = getattr(info, name, None)
            if val:
                cap = int(val)
                break
    except Exception:
        pass
    return int(min(cap * 3 // 4, 96 * 1024 * 1024))   # leave headroom for scratch


_VMEM_LIMIT = _default_vmem_limit()


# ----------------------------------------------------------------------------
# In-kernel helpers
# ----------------------------------------------------------------------------

def _layernorm_f32(x, g, b, eps=1e-5):
    mean = jnp.mean(x, axis=-1, keepdims=True)
    var = jnp.mean((x - mean) ** 2, axis=-1, keepdims=True)
    return (x - mean) * jax.lax.rsqrt(var + eps) * g + b


# ----------------------------------------------------------------------------
# Pallas kernels
# ----------------------------------------------------------------------------

def _ff_block_kernel(x_ref, g_ref, b_ref, w1_ref, b1_ref, w2_ref, b2_ref, *rest,
                     res_scale, post_ln):
    """Fused: LN -> W1 -> Swish -> W2 -> residual (opt. trailing post-LN)."""
    if post_ln:
        pg_ref, pb_ref, o_ref = rest
    else:
        (o_ref,) = rest
    x = x_ref[...].astype(jnp.float32)                               # (bm, D)
    h = _layernorm_f32(x, g_ref[...], b_ref[...])
    h = jnp.dot(h.astype(w1_ref.dtype), w1_ref[...],
                preferred_element_type=jnp.float32) + b1_ref[...]
    h = h * jax.nn.sigmoid(h)                                        # Swish (f32)
    h = jnp.dot(h.astype(w2_ref.dtype), w2_ref[...],
                preferred_element_type=jnp.float32) + b2_ref[...]
    y = x + res_scale * h                                            # fused residual
    if post_ln:
        y = _layernorm_f32(y, pg_ref[...], pb_ref[...])
    o_ref[...] = y.astype(o_ref.dtype)


def _ln_qkv_kernel(x_ref, g_ref, b_ref, w_ref, q_ref, k_ref, v_ref,
                   *, heads, dim_head):
    """Fused LayerNorm -> single (D, 3*inner) QKV projection, head-major output."""
    x = x_ref[0].astype(jnp.float32)                                 # (N, D)
    h = _layernorm_f32(x, g_ref[...], b_ref[...])
    qkv = jnp.dot(h.astype(w_ref.dtype), w_ref[...],
                  preferred_element_type=jnp.float32)                # (N, 3*inner)
    inner = heads * dim_head
    for hh in range(heads):                                          # static unroll
        lo = hh * dim_head
        q_ref[0, hh] = qkv[:, lo:lo + dim_head].astype(q_ref.dtype)
        k_ref[0, hh] = qkv[:, inner + lo:inner + lo + dim_head].astype(k_ref.dtype)
        v_ref[0, hh] = qkv[:, 2 * inner + lo:2 * inner + lo + dim_head].astype(v_ref.dtype)


def _attention_kernel(q_ref, k_ref, v_ref, rel_ref, wo_ref, bo_ref, xres_ref,
                      o_ref, attn_ref, *, heads, scale):
    """Per-batch attention (all heads) with fused Shaw rel-pos bias, Wo + residual."""
    n = q_ref.shape[2]
    lpad = rel_ref.shape[1]                      # 2N-1 rounded up to 128 (zero-padded)
    shift = (lpad - (n - 1)) % lpad
    heads_out = []
    for h in range(heads):                                           # static unroll
        q = q_ref[0, h]                                              # (N, Dh) bf16
        k = k_ref[0, h]
        v = v_ref[0, h]
        # TODO(synk): K could arrive pre-transposed (Dh, N) to drop the implicit
        # transpose inside this dot_general.
        s = jax.lax.dot_general(q, k, (((1,), (1,)), ((), ())),
                                preferred_element_type=jnp.float32)  # (N, N)
        # Shaw rel-pos bias, fully in-kernel: q @ rel_t (MXU) then a skew via a
        # per-row lane rotation (row i rotates by shift + i).  Padding lanes of
        # rel_t are never selected by the skewed window.
        qr = jnp.dot(q, rel_ref[...], preferred_element_type=jnp.float32)  # (N, Lpad)
        qr = pltpu.roll(qr, shift, 1, stride=1, stride_axis=0)
        s = (s + qr[:, :n]) * scale
        s = s - jnp.max(s, axis=-1, keepdims=True)
        e = jnp.exp(s)
        p = e * pl.reciprocal(jnp.sum(e, axis=-1, keepdims=True), approx=True)
        attn_ref[0, h] = p.astype(attn_ref.dtype)                    # bf16 attn weights
        heads_out.append(jnp.dot(p.astype(v.dtype), v,
                                 preferred_element_type=jnp.float32))  # (N, Dh)
    # Lane-concat the head outputs and run ONE K=inner Wo matmul (full MXU depth).
    o_cat = jnp.concatenate(heads_out, axis=-1).astype(wo_ref.dtype)  # (N, inner)
    proj = jnp.dot(o_cat, wo_ref[...], preferred_element_type=jnp.float32) + bo_ref[...]
    o_ref[0] = (xres_ref[0].astype(jnp.float32) + proj).astype(o_ref.dtype)


def _conv_module_kernel(x_ref, g_ref, b_ref, w1_ref, b1_ref, dw_ref, db_ref,
                        bns_ref, bnb_ref, w2_ref, b2_ref, o_ref, pad_ref,
                        *, ksize, pad_l):
    """Fused conv module: LN -> pw1+GLU -> depthwise -> BN(eval) -> Swish -> pw2 -> +x."""
    n = x_ref.shape[1]
    x = x_ref[0].astype(jnp.float32)                                 # (N, D)
    h = _layernorm_f32(x, g_ref[...], b_ref[...])
    h = jnp.dot(h.astype(w1_ref.dtype), w1_ref[...],
                preferred_element_type=jnp.float32) + b1_ref[...]    # (N, 2*CI)
    ci = h.shape[-1] // 2
    h = h[:, :ci] * jax.nn.sigmoid(h[:, ci:])                        # GLU (f32)

    # Depthwise "same" conv via a halo scratch; only the halo rows are zeroed.
    pad_r = ksize - 1 - pad_l
    if pad_l > 0:
        pad_ref[0:pad_l, :] = jnp.zeros((pad_l, ci), jnp.float32)
    if pad_r > 0:
        pad_ref[pad_l + n:pad_l + n + pad_r, :] = jnp.zeros((pad_r, ci), jnp.float32)
    pad_ref[pad_l:pad_l + n, :] = h
    dw = dw_ref[...]                                                 # (K, CI) hoisted
    acc = jnp.zeros((n, ci), jnp.float32)
    # TODO(synk): taps could use pltpu.roll-shifted vreg copies / sequence tiling
    # with a (K-1)-row halo instead of sublane-offset reloads of pad_ref.
    for k in range(ksize):                                           # static unroll
        acc = acc + pad_ref[k:k + n, :] * dw[k:k + 1, :]
    y = acc + db_ref[...]
    y = y * bns_ref[...] + bnb_ref[...]                              # BatchNorm1d (eval)
    y = y * jax.nn.sigmoid(y)                                        # Swish
    out = jnp.dot(y.astype(w2_ref.dtype), w2_ref[...],
                  preferred_element_type=jnp.float32) + b2_ref[...]
    o_ref[0] = (x + out).astype(o_ref.dtype)                         # fused residual


def _linear_kernel(x_ref, w_ref, b_ref, o_ref):
    y = jnp.dot(x_ref[...].astype(jnp.float32), w_ref[...].astype(jnp.float32),
                preferred_element_type=jnp.float32) + b_ref[...]
    o_ref[...] = y.astype(o_ref.dtype)


# ----------------------------------------------------------------------------
# Pallas wrappers
# ----------------------------------------------------------------------------

def _row_spec(bm, ncol):
    return pl.BlockSpec((bm, ncol), lambda i: (i, 0))


def _full_spec(shape):
    rank = len(shape)
    return pl.BlockSpec(shape, lambda i, _r=rank: (0,) * _r)


def _row_tile(m, max_tile=1024):
    """Largest row tile <= max_tile while keeping >= 2 grid steps (v7x: 2 TCs)."""
    if m <= 8:
        return m
    half = _round_up(pl.cdiv(m, 2), 8)
    return min(max_tile, half)


def pallas_ff_block(x2d, ln_g, ln_b, w1, b1, w2, b2, res_scale,
                    post_ln_g=None, post_ln_b=None):
    m, d = x2d.shape
    ffh = w1.shape[1]
    bm = _row_tile(m)
    post_ln = post_ln_g is not None
    in_specs = [_row_spec(bm, d),
                _full_spec((1, d)), _full_spec((1, d)),
                _full_spec((d, ffh)), _full_spec((1, ffh)),
                _full_spec((ffh, d)), _full_spec((1, d))]
    inputs = [x2d, ln_g, ln_b, w1, b1, w2, b2]
    if post_ln:
        in_specs += [_full_spec((1, d)), _full_spec((1, d))]
        inputs += [post_ln_g, post_ln_b]
    return pl.pallas_call(
        functools.partial(_ff_block_kernel, res_scale=res_scale, post_ln=post_ln),
        grid=(pl.cdiv(m, bm),),
        in_specs=in_specs,
        out_specs=_row_spec(bm, d),
        out_shape=jax.ShapeDtypeStruct((m, d), _STREAM_DTYPE),
        compiler_params=pltpu.CompilerParams(
            dimension_semantics=("parallel",), vmem_limit_bytes=_VMEM_LIMIT),
    )(*inputs)


def pallas_ln_qkv_heads(x, ln_g, ln_b, wqkv, heads, dim_head):
    bsz, n, d = x.shape
    out_sd = jax.ShapeDtypeStruct((bsz, heads, n, dim_head), _COMPUTE_DTYPE)
    head_spec = pl.BlockSpec((1, heads, n, dim_head), lambda i: (i, 0, 0, 0))
    q, k, v = pl.pallas_call(
        functools.partial(_ln_qkv_kernel, heads=heads, dim_head=dim_head),
        grid=(bsz,),
        in_specs=[pl.BlockSpec((1, n, d), lambda i: (i, 0, 0)),
                  _full_spec((1, d)), _full_spec((1, d)),
                  _full_spec((d, wqkv.shape[1]))],
        out_specs=(head_spec, head_spec, head_spec),
        out_shape=(out_sd, out_sd, out_sd),
        compiler_params=pltpu.CompilerParams(
            dimension_semantics=("parallel",), vmem_limit_bytes=_VMEM_LIMIT),
    )(x, ln_g, ln_b, wqkv)
    return q, k, v


def pallas_attention(q, k, v, rel_t, wo, bo, x_res, heads, dim_head):
    bsz, _, n, _ = q.shape
    d = x_res.shape[-1]
    scale = float(dim_head) ** -0.5
    head_spec = pl.BlockSpec((1, heads, n, dim_head), lambda i: (i, 0, 0, 0))
    # TODO(synk): for very long sequences, add a query-row grid axis (flash-style
    # tiling) to keep the per-step attention block VMEM-flat on v7x.
    out, attn = pl.pallas_call(
        functools.partial(_attention_kernel, heads=heads, scale=scale),
        grid=(bsz,),
        in_specs=[head_spec, head_spec, head_spec,
                  _full_spec(rel_t.shape),
                  _full_spec((heads * dim_head, d)),
                  _full_spec((1, d)),
                  pl.BlockSpec((1, n, d), lambda i: (i, 0, 0))],
        out_specs=(pl.BlockSpec((1, n, d), lambda i: (i, 0, 0)),
                   pl.BlockSpec((1, heads, n, n), lambda i: (i, 0, 0, 0))),
        out_shape=(jax.ShapeDtypeStruct((bsz, n, d), _STREAM_DTYPE),
                   jax.ShapeDtypeStruct((bsz, heads, n, n), _STREAM_DTYPE)),
        compiler_params=pltpu.CompilerParams(
            dimension_semantics=("parallel",), vmem_limit_bytes=_VMEM_LIMIT),
    )(q, k, v, rel_t, wo, bo, x_res)
    return out, attn


def pallas_conv_module(x, ln_g, ln_b, pw1_w, pw1_b, dw_w, dw_b, bn_scale, bn_shift,
                       pw2_w, pw2_b, kernel_size):
    bsz, n, d = x.shape
    ci = dw_w.shape[1]
    pad_l = kernel_size // 2
    # TODO(synk): tile over the sequence with a (K-1)-row halo for very long N.
    return pl.pallas_call(
        functools.partial(_conv_module_kernel, ksize=kernel_size, pad_l=pad_l),
        grid=(bsz,),
        in_specs=[
            pl.BlockSpec((1, n, d), lambda i: (i, 0, 0)),
            _full_spec((1, d)), _full_spec((1, d)),
            _full_spec((d, 2 * ci)), _full_spec((1, 2 * ci)),
            _full_spec((kernel_size, ci)), _full_spec((1, ci)),
            _full_spec((1, ci)), _full_spec((1, ci)),
            _full_spec((ci, d)), _full_spec((1, d)),
        ],
        out_specs=pl.BlockSpec((1, n, d), lambda i: (i, 0, 0)),
        out_shape=jax.ShapeDtypeStruct((bsz, n, d), _STREAM_DTYPE),
        scratch_shapes=[pltpu.VMEM((n + kernel_size - 1, ci), jnp.float32)],
        compiler_params=pltpu.CompilerParams(
            dimension_semantics=("parallel",), vmem_limit_bytes=_VMEM_LIMIT),
    )(x, ln_g, ln_b, pw1_w, pw1_b, dw_w, dw_b, bn_scale, bn_shift, pw2_w, pw2_b)


def pallas_linear(x2d, w, b):
    m = x2d.shape[0]
    n = w.shape[1]
    vmem = pl.BlockSpec(memory_space=pltpu.MemorySpace.VMEM)
    return pl.pallas_call(
        _linear_kernel,
        in_specs=[vmem, vmem, vmem],
        out_specs=vmem,
        out_shape=jax.ShapeDtypeStruct((m, n), jnp.float32),
    )(x2d, w, b)


# ----------------------------------------------------------------------------
# Parameters (deterministic synthetic init, matching module shapes)
# ----------------------------------------------------------------------------

def sinusoidal_embedding(n_channels, dim):
    p = jnp.arange(n_channels, dtype=jnp.float32)[:, None]
    i = jnp.arange(dim)[None, :]
    angle = p / jnp.power(10000.0, (2 * (i // 2)).astype(jnp.float32) / dim)
    pe = jnp.where(i % 2 == 0, jnp.sin(angle), jnp.cos(angle))
    return pe[None].astype(jnp.float32)          # (1, n_channels, dim)


def init_params(key, dim=128, heads=4, ff_mult=4, exp_fac=2, kernel_size=16,
                n_encoders=1, max_pos_emb=512):
    dim_head = dim // heads
    inner = dim_head * heads
    ff_hid = dim * ff_mult
    conv_inner = dim * exp_fac
    keys = jax.random.split(key, 4 + n_encoders)

    def dense(k, shape, scale=0.02, dtype=_COMPUTE_DTYPE):
        return (jax.random.normal(k, shape, jnp.float32) * scale).astype(dtype)

    params = {
        "pos_emb": sinusoidal_embedding(10000, dim),
        "class_token": jax.random.uniform(keys[0], (1, dim), jnp.float32),
        "fc5_w": dense(keys[1], (dim, 2), dtype=jnp.float32),
        "fc5_b": jnp.zeros((1, 2), jnp.float32),
        "blocks": [],
    }
    for e in range(n_encoders):
        bk = jax.random.split(keys[4 + e], 16)
        blk = {
            "ff1_ln_g": jnp.ones((1, dim)), "ff1_ln_b": jnp.zeros((1, dim)),
            "ff1_w1": dense(bk[0], (dim, ff_hid)), "ff1_b1": jnp.zeros((1, ff_hid)),
            "ff1_w2": dense(bk[1], (ff_hid, dim)), "ff1_b2": jnp.zeros((1, dim)),
            "attn_ln_g": jnp.ones((1, dim)), "attn_ln_b": jnp.zeros((1, dim)),
            "wqkv": dense(bk[2], (dim, 3 * inner)),        # fused [Wq | Wk | Wv], no bias
            "wo": dense(bk[4], (inner, dim)), "bo": jnp.zeros((1, dim)),
            "rel_emb": dense(bk[5], (2 * max_pos_emb + 1, dim_head), dtype=jnp.float32),
            "conv_ln_g": jnp.ones((1, dim)), "conv_ln_b": jnp.zeros((1, dim)),
            "pw1_w": dense(bk[6], (dim, 2 * conv_inner)),
            "pw1_b": jnp.zeros((1, 2 * conv_inner)),
            "dw_w": dense(bk[7], (kernel_size, conv_inner), dtype=jnp.float32),
            "dw_b": jnp.zeros((1, conv_inner)),
            "bn_g": jnp.ones((1, conv_inner)), "bn_b": jnp.zeros((1, conv_inner)),
            "bn_rm": jnp.zeros((1, conv_inner)), "bn_rv": jnp.ones((1, conv_inner)),
            "pw2_w": dense(bk[8], (conv_inner, dim)), "pw2_b": jnp.zeros((1, dim)),
            "ff2_ln_g": jnp.ones((1, dim)), "ff2_ln_b": jnp.zeros((1, dim)),
            "ff2_w1": dense(bk[9], (dim, ff_hid)), "ff2_b1": jnp.zeros((1, ff_hid)),
            "ff2_w2": dense(bk[10], (ff_hid, dim)), "ff2_b2": jnp.zeros((1, dim)),
            "post_ln_g": jnp.ones((1, dim)), "post_ln_b": jnp.zeros((1, dim)),
        }
        params["blocks"].append(blk)
    return params


# ----------------------------------------------------------------------------
# Forward pass (one fused pallas_call per sublayer; tiny glue stays in XLA)
# ----------------------------------------------------------------------------

def _make_rel_table(rel_emb, n, dim_head, max_pos_emb):
    """(Dh, Lpad) Shaw rel-pos table: column r holds emb[clip((n-1)-r,-P,P)+P]."""
    r = jnp.arange(2 * n - 1)
    idx = jnp.clip((n - 1) - r, -max_pos_emb, max_pos_emb) + max_pos_emb
    rel = rel_emb[idx]                                     # (2n-1, Dh) f32
    lpad = _round_up(2 * n - 1, 128)                       # lane-aligned skew axis
    rel = jnp.pad(rel, ((0, lpad - (2 * n - 1)), (0, 0)))
    return rel.T.astype(_COMPUTE_DTYPE)                    # (Dh, Lpad)


def conformer_block_forward(x, blk, heads, dim_head, kernel_size, max_pos_emb=512):
    bsz, n, d = x.shape
    m = bsz * n
    flat = lambda a: a.reshape(m, -1)
    unflat = lambda a: a.reshape(bsz, n, -1)

    # --- FF1 (fused LN + MLP + 0.5 residual) ---
    x = unflat(pallas_ff_block(flat(x), blk["ff1_ln_g"], blk["ff1_ln_b"],
                               blk["ff1_w1"], blk["ff1_b1"],
                               blk["ff1_w2"], blk["ff1_b2"], 0.5))

    # --- Attention: fused LN + QKV projection (head-major layout) ---
    q, k, v = pallas_ln_qkv_heads(x, blk["attn_ln_g"], blk["attn_ln_b"],
                                  blk["wqkv"], heads, dim_head)
    rel_t = _make_rel_table(blk["rel_emb"], n, dim_head, max_pos_emb)
    x, attn_w = pallas_attention(q, k, v, rel_t, blk["wo"], blk["bo"], x,
                                 heads, dim_head)

    # --- Convolution module (fully fused) ---
    # TODO(synk): BatchNorm1d is inference-mode (running stats); training-mode batch
    # statistics are not reproduced.
    eps = 1e-5
    bn_scale = blk["bn_g"] / jnp.sqrt(blk["bn_rv"] + eps)
    bn_shift = blk["bn_b"] - blk["bn_rm"] * bn_scale
    x = pallas_conv_module(x, blk["conv_ln_g"], blk["conv_ln_b"],
                           blk["pw1_w"], blk["pw1_b"], blk["dw_w"], blk["dw_b"],
                           bn_scale, bn_shift, blk["pw2_w"], blk["pw2_b"],
                           kernel_size)

    # --- FF2 (fused, includes the trailing post-LayerNorm) ---
    x = unflat(pallas_ff_block(flat(x), blk["ff2_ln_g"], blk["ff2_ln_b"],
                               blk["ff2_w1"], blk["ff2_b1"],
                               blk["ff2_w2"], blk["ff2_b2"], 0.5,
                               blk["post_ln_g"], blk["post_ln_b"]))
    return x, attn_w


def my_conformer_forward(params, x, heads=4, kernel_size=16):
    bsz, t, d = x.shape
    dim_head = d // heads
    x = x + params["pos_emb"][:, :t, :]
    cls = jnp.broadcast_to(params["class_token"][None], (bsz, 1, d))
    x = jnp.concatenate([cls, x], axis=1)                  # prepend class token
    attn_list = []
    for blk in params["blocks"]:
        x, aw = conformer_block_forward(x, blk, heads, dim_head, kernel_size)
        attn_list.append(aw)
    embedding = x[:, 0, :]
    out = pallas_linear(embedding, params["fc5_w"], params["fc5_b"])
    return out, attn_list


# ----------------------------------------------------------------------------

if __name__ == "__main__":
    key = jax.random.PRNGKey(0)
    pkey, xkey = jax.random.split(key)

    DIM, HEADS, FFM, EXP, KSZ, NENC = 128, 4, 4, 2, 16, 1
    B, T = 2, 8

    params = init_params(pkey, dim=DIM, heads=HEADS, ff_mult=FFM, exp_fac=EXP,
                         kernel_size=KSZ, n_encoders=NENC)
    x = jax.random.normal(xkey, (B, T, DIM), jnp.float32)

    fwd = jax.jit(functools.partial(my_conformer_forward, heads=HEADS,
                                    kernel_size=KSZ))
    out, attn_list = fwd(params, x)
    out = jax.block_until_ready(out)
    attn_list = [jax.block_until_ready(a) for a in attn_list]

    assert out.shape == (B, 2)
    assert len(attn_list) == NENC
    assert attn_list[0].shape == (B, HEADS, T + 1, T + 1)
    print("KERNEL_OK")
</pallas_src>

<mosaic_0001>
module attributes {stable_mosaic.version = 11 : i64} {
  func.func @_ff_block_kernel(%arg0: i32, %arg1: memref<16x128xf32, #tpu.memory_space<vmem>>, %arg2: memref<1x128xf32, #tpu.memory_space<vmem>>, %arg3: memref<1x128xf32, #tpu.memory_space<vmem>>, %arg4: memref<128x512xbf16, #tpu.memory_space<vmem>>, %arg5: memref<1x512xf32, #tpu.memory_space<vmem>>, %arg6: memref<512x128xbf16, #tpu.memory_space<vmem>>, %arg7: memref<1x128xf32, #tpu.memory_space<vmem>>, %arg8: memref<16x128xbf16, #tpu.memory_space<vmem>>) attributes {dimension_semantics = [#tpu.dimension_semantics<parallel>], iteration_bounds = array<i64: 2>, scalar_prefetch = 0 : i64, scratch_operands = 0 : i64, tpu.core_type = #tpu.core_type<tc>, window_params = [{transform_indices = @transform_0, window_bounds = array<i64: 16, 128>}, {pipeline_mode = #tpu.pipeline_mode<synchronous>, transform_indices = @transform_1, window_bounds = array<i64: 1, 128>}, {pipeline_mode = #tpu.pipeline_mode<synchronous>, transform_indices = @transform_2, window_bounds = array<i64: 1, 128>}, {pipeline_mode = #tpu.pipeline_mode<synchronous>, transform_indices = @transform_3, window_bounds = array<i64: 128, 512>}, {pipeline_mode = #tpu.pipeline_mode<synchronous>, transform_indices = @transform_4, window_bounds = array<i64: 1, 512>}, {pipeline_mode = #tpu.pipeline_mode<synchronous>, transform_indices = @transform_5, window_bounds = array<i64: 512, 128>}, {pipeline_mode = #tpu.pipeline_mode<synchronous>, transform_indices = @transform_6, window_bounds = array<i64: 1, 128>}, {transform_indices = @transform_7, window_bounds = array<i64: 16, 128>}]} {
    %c0 = arith.constant 0 : index
    %c0_0 = arith.constant 0 : index
    %0 = vector.load %arg1[%c0, %c0_0] : memref<16x128xf32, #tpu.memory_space<vmem>>, vector<16x128xf32>
    %c0_1 = arith.constant 0 : index
    %c0_2 = arith.constant 0 : index
    %1 = vector.load %arg2[%c0_1, %c0_2] : memref<1x128xf32, #tpu.memory_space<vmem>>, vector<1x128xf32>
    %c0_3 = arith.constant 0 : index
    %c0_4 = arith.constant 0 : index
    %2 = vector.load %arg3[%c0_3, %c0_4] : memref<1x128xf32, #tpu.memory_space<vmem>>, vector<1x128xf32>
    %cst = arith.constant dense<0.000000e+00> : vector<16xf32>
    %3 = vector.multi_reduction <add>, %0, %cst [1] : vector<16x128xf32> to vector<16xf32>
    %4 = vector.shape_cast %3 : vector<16xf32> to vector<16x1xf32>
    %cst_5 = arith.constant 1.280000e+02 : f32
    %5 = vector.broadcast %cst_5 : f32 to vector<16x1xf32>
    %6 = arith.divf %4, %5 : vector<16x1xf32>
    %7 = vector.broadcast %6 : vector<16x1xf32> to vector<16x128xf32>
    %8 = arith.subf %0, %7 : vector<16x128xf32>
    %9 = arith.mulf %8, %8 : vector<16x128xf32>
    %cst_6 = arith.constant dense<0.000000e+00> : vector<16xf32>
    %10 = vector.multi_reduction <add>, %9, %cst_6 [1] : vector<16x128xf32> to vector<16xf32>
    %11 = vector.shape_cast %10 : vector<16xf32> to vector<16x1xf32>
    %cst_7 = arith.constant 1.280000e+02 : f32
    %12 = vector.broadcast %cst_7 : f32 to vector<16x1xf32>
    %13 = arith.divf %11, %12 : vector<16x1xf32>
    %14 = vector.broadcast %6 : vector<16x1xf32> to vector<16x128xf32>
    %15 = arith.subf %0, %14 : vector<16x128xf32>
    %cst_8 = arith.constant 9.99999974E-6 : f32
    %16 = vector.broadcast %cst_8 : f32 to vector<16x1xf32>
    %17 = arith.addf %13, %16 : vector<16x1xf32>
    %18 = math.rsqrt %17 : vector<16x1xf32>
    %19 = vector.broadcast %18 : vector<16x1xf32> to vector<16x128xf32>
    %20 = arith.mulf %15, %19 : vector<16x128xf32>
    %21 = vector.broadcast %1 : vector<1x128xf32> to vector<16x128xf32>
    %22 = arith.mulf %20, %21 : vector<16x128xf32>
    %23 = vector.broadcast %2 : vector<1x128xf32> to vector<16x128xf32>
    %24 = arith.addf %22, %23 : vector<16x128xf32>
    %25 = arith.truncf %24 : vector<16x128xf32> to vector<16x128xbf16>
    %c0_9 = arith.constant 0 : index
    %c0_10 = arith.constant 0 : index
    %26 = vector.load %arg4[%c0_9, %c0_10] : memref<128x512xbf16, #tpu.memory_space<vmem>>, vector<128x512xbf16>
    %cst_11 = arith.constant dense<0.000000e+00> : vector<16x512xf32>
    %27 = tpu.matmul %25, %26, %cst_11 {dimension_numbers = #tpu.dot_dimension_numbers<[1], [0], [0], [1], [0, 0, 1, 1], [], []>} : vector<16x128xbf16>, vector<128x512xbf16>, vector<16x512xf32> -> vector<16x512xf32>
    %c0_12 = arith.constant 0 : index
    %c0_13 = arith.constant 0 : index
    %28 = vector.load %arg5[%c0_12, %c0_13] : memref<1x512xf32, #tpu.memory_space<vmem>>, vector<1x512xf32>
    %29 = vector.broadcast %28 : vector<1x512xf32> to vector<16x512xf32>
    %30 = arith.addf %27, %29 : vector<16x512xf32>
    %31 = arith.negf %30 : vector<16x512xf32>
    %32 = math.exp %31 : vector<16x512xf32>
    %cst_14 = arith.constant 1.000000e+00 : f32
    %33 = vector.broadcast %cst_14 : f32 to vector<16x512xf32>
    %34 = arith.addf %33, %32 : vector<16x512xf32>
    %35 = arith.divf %33, %34 : vector<16x512xf32>
    %36 = arith.mulf %30, %35 : vector<16x512xf32>
    %37 = arith.truncf %36 : vector<16x512xf32> to vector<16x512xbf16>
    %c0_15 = arith.constant 0 : index
    %c0_16 = arith.constant 0 : index
    %38 = vector.load %arg6[%c0_15, %c0_16] : memref<512x128xbf16, #tpu.memory_space<vmem>>, vector<512x128xbf16>
    %cst_17 = arith.constant dense<0.000000e+00> : vector<16x128xf32>
    %39 = tpu.matmul %37, %38, %cst_17 {dimension_numbers = #tpu.dot_dimension_numbers<[1], [0], [0], [1], [0, 0, 1, 1], [], []>} : vector<16x512xbf16>, vector<512x128xbf16>, vector<16x128xf32> -> vector<16x128xf32>
    %c0_18 = arith.constant 0 : index
    %c0_19 = arith.constant 0 : index
    %40 = vector.load %arg7[%c0_18, %c0_19] : memref<1x128xf32, #tpu.memory_space<vmem>>, vector<1x128xf32>
    %41 = vector.broadcast %40 : vector<1x128xf32> to vector<16x128xf32>
    %42 = arith.addf %39, %41 : vector<16x128xf32>
    %cst_20 = arith.constant 5.000000e-01 : f32
    %43 = vector.broadcast %cst_20 : f32 to vector<16x128xf32>
    %44 = arith.mulf %43, %42 : vector<16x128xf32>
    %45 = arith.addf %0, %44 : vector<16x128xf32>
    %46 = arith.truncf %45 : vector<16x128xf32> to vector<16x128xbf16>
    %c0_21 = arith.constant 0 : index
    %c0_22 = arith.constant 0 : index
    %47 = vector.load %arg8[%c0_21, %c0_22] : memref<16x128xbf16, #tpu.memory_space<vmem>>, vector<16x128xbf16>
    tpu.vector_store %arg8[%c0_21, %c0_22], %46 {strides = array<i32>} : memref<16x128xbf16, #tpu.memory_space<vmem>>, vector<16x128xbf16>,
    return
  }
  func.func @transform_0(%arg0: i32) -> (i32, i32) {
    %c0_i32 = arith.constant 0 : i32
    %c0_i32_0 = arith.constant 0 : i32
    return %arg0, %c0_i32 : i32, i32
  }
  func.func @transform_1(%arg0: i32) -> (i32, i32) {
    %c0_i32 = arith.constant 0 : i32
    %c0_i32_0 = arith.constant 0 : i32
    %c0_i32_1 = arith.constant 0 : i32
    return %c0_i32, %c0_i32_0 : i32, i32
  }
  func.func @transform_2(%arg0: i32) -> (i32, i32) {
    %c0_i32 = arith.constant 0 : i32
    %c0_i32_0 = arith.constant 0 : i32
    %c0_i32_1 = arith.constant 0 : i32
    return %c0_i32, %c0_i32_0 : i32, i32
  }
  func.func @transform_3(%arg0: i32) -> (i32, i32) {
    %c0_i32 = arith.constant 0 : i32
    %c0_i32_0 = arith.constant 0 : i32
    %c0_i32_1 = arith.constant 0 : i32
    return %c0_i32, %c0_i32_0 : i32, i32
  }
  func.func @transform_4(%arg0: i32) -> (i32, i32) {
    %c0_i32 = arith.constant 0 : i32
    %c0_i32_0 = arith.constant 0 : i32
    %c0_i32_1 = arith.constant 0 : i32
    return %c0_i32, %c0_i32_0 : i32, i32
  }
  func.func @transform_5(%arg0: i32) -> (i32, i32) {
    %c0_i32 = arith.constant 0 : i32
    %c0_i32_0 = arith.constant 0 : i32
    %c0_i32_1 = arith.constant 0 : i32
    return %c0_i32, %c0_i32_0 : i32, i32
  }
  func.func @transform_6(%arg0: i32) -> (i32, i32) {
    %c0_i32 = arith.constant 0 : i32
    %c0_i32_0 = arith.constant 0 : i32
    %c0_i32_1 = arith.constant 0 : i32
    return %c0_i32, %c0_i32_0 : i32, i32
  }
  func.func @transform_7(%arg0: i32) -> (i32, i32) {
    %c0_i32 = arith.constant 0 : i32
    %c0_i32_0 = arith.constant 0 : i32
    return %arg0, %c0_i32 : i32, i32
  }
}

module attributes {stable_mosaic.version = 11 : i64} {
  func.func @_ln_qkv_kernel(%arg0: i32, %arg1: memref<1x9x128xbf16, #tpu.memory_space<vmem>>, %arg2: memref<1x128xf32, #tpu.memory_space<vmem>>, %arg3: memref<1x128xf32, #tpu.memory_space<vmem>>, %arg4: memref<128x384xbf16, #tpu.memory_space<vmem>>, %arg5: memref<1x4x9x32xbf16, #tpu.memory_space<vmem>>, %arg6: memref<1x4x9x32xbf16, #tpu.memory_space<vmem>>, %arg7: memref<1x4x9x32xbf16, #tpu.memory_space<vmem>>) attributes {dimension_semantics = [#tpu.dimension_semantics<parallel>], iteration_bounds = array<i64: 2>, scalar_prefetch = 0 : i64, scratch_operands = 0 : i64, tpu.core_type = #tpu.core_type<tc>, window_params = [{transform_indices = @transform_0, window_bounds = array<i64: 1, 9, 128>}, {pipeline_mode = #tpu.pipeline_mode<synchronous>, transform_indices = @transform_1, window_bounds = array<i64: 1, 128>}, {pipeline_mode = #tpu.pipeline_mode<synchronous>, transform_indices = @transform_2, window_bounds = array<i64: 1, 128>}, {pipeline_mode = #tpu.pipeline_mode<synchronous>, transform_indices = @transform_3, window_bounds = array<i64: 128, 384>}, {transform_indices = @transform_4, window_bounds = array<i64: 1, 4, 9, 32>}, {transform_indices = @transform_5, window_bounds = array<i64: 1, 4, 9, 32>}, {transform_indices = @transform_6, window_bounds = array<i64: 1, 4, 9, 32>}]} {
    %c0 = arith.constant 0 : index
    %c0_0 = arith.constant 0 : index
    %c0_1 = arith.constant 0 : index
    %0 = vector.load %arg1[%c0, %c0_0, %c0_1] : memref<1x9x128xbf16, #tpu.memory_space<vmem>>, vector<1x9x128xbf16>
    %1 = vector.shape_cast %0 : vector<1x9x128xbf16> to vector<9x128xbf16>
    %2 = arith.extf %1 : vector<9x128xbf16> to vector<9x128xf32>
    %c0_2 = arith.constant 0 : index
    %c0_3 = arith.constant 0 : index
    %3 = vector.load %arg2[%c0_2, %c0_3] : memref<1x128xf32, #tpu.memory_space<vmem>>, vector<1x128xf32>
    %c0_4 = arith.constant 0 : index
    %c0_5 = arith.constant 0 : index
    %4 = vector.load %arg3[%c0_4, %c0_5] : memref<1x128xf32, #tpu.memory_space<vmem>>, vector<1x128xf32>
    %cst = arith.constant dense<0.000000e+00> : vector<9xf32>
    %5 = vector.multi_reduction <add>, %2, %cst [1] : vector<9x128xf32> to vector<9xf32>
    %6 = vector.shape_cast %5 : vector<9xf32> to vector<9x1xf32>
    %cst_6 = arith.constant 1.280000e+02 : f32
    %7 = vector.broadcast %cst_6 : f32 to vector<9x1xf32>
    %8 = arith.divf %6, %7 : vector<9x1xf32>
    %9 = vector.broadcast %8 : vector<9x1xf32> to vector<9x128xf32>
    %10 = arith.subf %2, %9 : vector<9x128xf32>
    %11 = arith.mulf %10, %10 : vector<9x128xf32>
    %cst_7 = arith.constant dense<0.000000e+00> : vector<9xf32>
    %12 = vector.multi_reduction <add>, %11, %cst_7 [1] : vector<9x128xf32> to vector<9xf32>
    %13 = vector.shape_cast %12 : vector<9xf32> to vector<9x1xf32>
    %cst_8 = arith.constant 1.280000e+02 : f32
    %14 = vector.broadcast %cst_8 : f32 to vector<9x1xf32>
    %15 = arith.divf %13, %14 : vector<9x1xf32>
    %16 = vector.broadcast %8 : vector<9x1xf32> to vector<9x128xf32>
    %17 = arith.subf %2, %16 : vector<9x128xf32>
    %cst_9 = arith.constant 9.99999974E-6 : f32
    %18 = vector.broadcast %cst_9 : f32 to vector<9x1xf32>
    %19 = arith.addf %15, %18 : vector<9x1xf32>
    %20 = math.rsqrt %19 : vector<9x1xf32>
    %21 = vector.broadcast %20 : vector<9x1xf32> to vector<9x128xf32>
    %22 = arith.mulf %17, %21 : vector<9x128xf32>
    %23 = vector.broadcast %3 : vector<1x128xf32> to vector<9x128xf32>
    %24 = arith.mulf %22, %23 : vector<9x128xf32>
    %25 = vector.broadcast %4 : vector<1x128xf32> to vector<9x128xf32>
    %26 = arith.addf %24, %25 : vector<9x128xf32>
    %27 = arith.truncf %26 : vector<9x128xf32> to vector<9x128xbf16>
    %c0_10 = arith.constant 0 : index
    %c0_11 = arith.constant 0 : index
    %28 = vector.load %arg4[%c0_10, %c0_11] : memref<128x384xbf16, #tpu.memory_space<vmem>>, vector<128x384xbf16>
    %cst_12 = arith.constant dense<0.000000e+00> : vector<9x384xf32>
    %29 = tpu.matmul %27, %28, %cst_12 {dimension_numbers = #tpu.dot_dimension_numbers<[1], [0], [0], [1], [0, 0, 1, 1], [], []>} : vector<9x128xbf16>, vector<128x384xbf16>, vector<9x384xf32> -> vector<9x384xf32>
    %30 = vector.extract_strided_slice %29 {offsets = [0, 0], sizes = [9, 32], strides = [1, 1]} : vector<9x384xf32> to vector<9x32xf32>
    %31 = arith.truncf %30 : vector<9x32xf32> to vector<9x32xbf16>
    %c0_13 = arith.constant 0 : index
    %c0_14 = arith.constant 0 : index
    %c0_15 = arith.constant 0 : index
    %c0_16 = arith.constant 0 : index
    %32 = vector.load %arg5[%c0_13, %c0_14, %c0_15, %c0_16] : memref<1x4x9x32xbf16, #tpu.memory_space<vmem>>, vector<1x1x9x32xbf16>
    %33 = vector.shape_cast %32 : vector<1x1x9x32xbf16> to vector<9x32xbf16>
    %34 = vector.shape_cast %31 : vector<9x32xbf16> to vector<1x1x9x32xbf16>
    tpu.vector_store %arg5[%c0_13, %c0_14, %c0_15, %c0_16], %34 {strides = array<i32>} : memref<1x4x9x32xbf16, #tpu.memory_space<vmem>>, vector<1x1x9x32xbf16>,
    %35 = vector.extract_strided_slice %29 {offsets = [0, 128], sizes = [9, 32], strides = [1, 1]} : vector<9x384xf32> to vector<9x32xf32>
    %36 = arith.truncf %35 : vector<9x32xf32> to vector<9x32xbf16>
    %c0_17 = arith.constant 0 : index
    %c0_18 = arith.constant 0 : index
    %c0_19 = arith.constant 0 : index
    %c0_20 = arith.constant 0 : index
    %37 = vector.load %arg6[%c0_17, %c0_18, %c0_19, %c0_20] : memref<1x4x9x32xbf16, #tpu.memory_space<vmem>>, vector<1x1x9x32xbf16>
    %38 = vector.shape_cast %37 : vector<1x1x9x32xbf16> to vector<9x32xbf16>
    %39 = vector.shape_cast %36 : vector<9x32xbf16> to vector<1x1x9x32xbf16>
    tpu.vector_store %arg6[%c0_17, %c0_18, %c0_19, %c0_20], %39 {strides = array<i32>} : memref<1x4x9x32xbf16, #tpu.memory_space<vmem>>, vector<1x1x9x32xbf16>,
    %40 = vector.extract_strided_slice %29 {offsets = [0, 256], sizes = [9, 32], strides = [1, 1]} : vector<9x384xf32> to vector<9x32xf32>
    %41 = arith.truncf %40 : vector<9x32xf32> to vector<9x32xbf16>
    %c0_21 = arith.constant 0 : index
    %c0_22 = arith.constant 0 : index
    %c0_23 = arith.constant 0 : index
    %c0_24 = arith.constant 0 : index
    %42 = vector.load %arg7[%c0_21, %c0_22, %c0_23, %c0_24] : memref<1x4x9x32xbf16, #tpu.memory_space<vmem>>, vector<1x1x9x32xbf16>
    %43 = vector.shape_cast %42 : vector<1x1x9x32xbf16> to vector<9x32xbf16>
    %44 = vector.shape_cast %41 : vector<9x32xbf16> to vector<1x1x9x32xbf16>
    tpu.vector_store %arg7[%c0_21, %c0_22, %c0_23, %c0_24], %44 {strides = array<i32>} : memref<1x4x9x32xbf16, #tpu.memory_space<vmem>>, vector<1x1x9x32xbf16>,
    %45 = vector.extract_strided_slice %29 {offsets = [0, 32], sizes = [9, 32], strides = [1, 1]} : vector<9x384xf32> to vector<9x32xf32>
    %46 = arith.truncf %45 : vector<9x32xf32> to vector<9x32xbf16>
    %c0_25 = arith.constant 0 : index
    %c1 = arith.constant 1 : index
    %c0_26 = arith.constant 0 : index
    %c0_27 = arith.constant 0 : index
    %47 = vector.load %arg5[%c0_25, %c1, %c0_26, %c0_27] : memref<1x4x9x32xbf16, #tpu.memory_space<vmem>>, vector<1x1x9x32xbf16>
    %48 = vector.shape_cast %47 : vector<1x1x9x32xbf16> to vector<9x32xbf16>
    %49 = vector.shape_cast %46 : vector<9x32xbf16> to vector<1x1x9x32xbf16>
    tpu.vector_store %arg5[%c0_25, %c1, %c0_26, %c0_27], %49 {strides = array<i32>} : memref<1x4x9x32xbf16, #tpu.memory_space<vmem>>, vector<1x1x9x32xbf16>,
    %50 = vector.extract_strided_slice %29 {offsets = [0, 160], sizes = [9, 32], strides = [1, 1]} : vector<9x384xf32> to vector<9x32xf32>
    %51 = arith.truncf %50 : vector<9x32xf32> to vector<9x32xbf16>
    %c0_28 = arith.constant 0 : index
    %c1_29 = arith.constant 1 : index
    %c0_30 = arith.constant 0 : index
    %c0_31 = arith.constant 0 : index
    %52 = vector.load %arg6[%c0_28, %c1_29, %c0_30, %c0_31] : memref<1x4x9x32xbf16, #tpu.memory_space<vmem>>, vector<1x1x9x32xbf16>
    %53 = vector.shape_cast %52 : vector<1x1x9x32xbf16> to vector<9x32xbf16>
    %54 = vector.shape_cast %51 : vector<9x32xbf16> to vector<1x1x9x32xbf16>
    tpu.vector_store %arg6[%c0_28, %c1_29, %c0_30, %c0_31], %54 {strides = array<i32>} : memref<1x4x9x32xbf16, #tpu.memory_space<vmem>>, vector<1x1x9x32xbf16>,
    %55 = vector.extract_strided_slice %29 {offsets = [0, 288], sizes = [9, 32], strides = [1, 1]} : vector<9x384xf32> to vector<9x32xf32>
    %56 = arith.truncf %55 : vector<9x32xf32> to vector<9x32xbf16>
    %c0_32 = arith.constant 0 : index
    %c1_33 = arith.constant 1 : index
    %c0_34 = arith.constant 0 : index
    %c0_35 = arith.constant 0 : index
    %57 = vector.load %arg7[%c0_32, %c1_33, %c0_34, %c0_35] : memref<1x4x9x32xbf16, #tpu.memory_space<vmem>>, vector<1x1x9x32xbf16>
    %58 = vector.shape_cast %57 : vector<1x1x9x32xbf16> to vector<9x32xbf16>
    %59 = vector.shape_cast %56 : vector<9x32xbf16> to vector<1x1x9x32xbf16>
    tpu.vector_store %arg7[%c0_32, %c1_33, %c0_34, %c0_35], %59 {strides = array<i32>} : memref<1x4x9x32xbf16, #tpu.memory_space<vmem>>, vector<1x1x9x32xbf16>,
    %60 = vector.extract_strided_slice %29 {offsets = [0, 64], sizes = [9, 32], strides = [1, 1]} : vector<9x384xf32> to vector<9x32xf32>
    %61 = arith.truncf %60 : vector<9x32xf32> to vector<9x32xbf16>
    %c0_36 = arith.constant 0 : index
    %c2 = arith.constant 2 : index
    %c0_37 = arith.constant 0 : index
    %c0_38 = arith.constant 0 : index
    %62 = vector.load %arg5[%c0_36, %c2, %c0_37, %c0_38] : memref<1x4x9x32xbf16, #tpu.memory_space<vmem>>, vector<1x1x9x32xbf16>
    %63 = vector.shape_cast %62 : vector<1x1x9x32xbf16> to vector<9x32xbf16>
    %64 = vector.shape_cast %61 : vector<9x32xbf16> to vector<1x1x9x32xbf16>
    tpu.vector_store %arg5[%c0_36, %c2, %c0_37, %c0_38], %64 {strides = array<i32>} : memref<1x4x9x32xbf16, #tpu.memory_space<vmem>>, vector<1x1x9x32xbf16>,
    %65 = vector.extract_strided_slice %29 {offsets = [0, 192], sizes = [9, 32], strides = [1, 1]} : vector<9x384xf32> to vector<9x32xf32>
    %66 = arith.truncf %65 : vector<9x32xf32> to vector<9x32xbf16>
    %c0_39 = arith.constant 0 : index
    %c2_40 = arith.constant 2 : index
    %c0_41 = arith.constant 0 : index
    %c0_42 = arith.constant 0 : index
    %67 = vector.load %arg6[%c0_39, %c2_40, %c0_41, %c0_42] : memref<1x4x9x32xbf16, #tpu.memory_space<vmem>>, vector<1x1x9x32xbf16>
    %68 = vector.shape_cast %67 : vector<1x1x9x32xbf16> to vector<9x32xbf16>
    %69 = vector.shape_cast %66 : vector<9x32xbf16> to vector<1x1x9x32xbf16>
    tpu.vector_store %arg6[%c0_39, %c2_40, %c0_41, %c0_42], %69 {strides = array<i32>} : memref<1x4x9x32xbf16, #tpu.memory_space<vmem>>, vector<1x1x9x32xbf16>,
    %70 = vector.extract_strided_slice %29 {offsets = [0, 320], sizes = [9, 32], strides = [1, 1]} : vector<9x384xf32> to vector<9x32xf32>
    %71 = arith.truncf %70 : vector<9x32xf32> to vector<9x32xbf16>
    %c0_43 = arith.constant 0 : index
    %c2_44 = arith.constant 2 : index
    %c0_45 = arith.constant 0 : index
    %c0_46 = arith.constant 0 : index
    %72 = vector.load %arg7[%c0_43, %c2_44, %c0_45, %c0_46] : memref<1x4x9x32xbf16, #tpu.memory_space<vmem>>, vector<1x1x9x32xbf16>
    %73 = vector.shape_cast %72 : vector<1x1x9x32xbf16> to vector<9x32xbf16>
    %74 = vector.shape_cast %71 : vector<9x32xbf16> to vector<1x1x9x32xbf16>
    tpu.vector_store %arg7[%c0_43, %c2_44, %c0_45, %c0_46], %74 {strides = array<i32>} : memref<1x4x9x32xbf16, #tpu.memory_space<vmem>>, vector<1x1x9x32xbf16>,
    %75 = vector.extract_strided_slice %29 {offsets = [0, 96], sizes = [9, 32], strides = [1, 1]} : vector<9x384xf32> to vector<9x32xf32>
    %76 = arith.truncf %75 : vector<9x32xf32> to vector<9x32xbf16>
    %c0_47 = arith.constant 0 : index
    %c3 = arith.constant 3 : index
    %c0_48 = arith.constant 0 : index
    %c0_49 = arith.constant 0 : index
    %77 = vector.load %arg5[%c0_47, %c3, %c0_48, %c0_49] : memref<1x4x9x32xbf16, #tpu.memory_space<vmem>>, vector<1x1x9x32xbf16>
    %78 = vector.shape_cast %77 : vector<1x1x9x32xbf16> to vector<9x32xbf16>
    %79 = vector.shape_cast %76 : vector<9x32xbf16> to vector<1x1x9x32xbf16>
    tpu.vector_store %arg5[%c0_47, %c3, %c0_48, %c0_49], %79 {strides = array<i32>} : memref<1x4x9x32xbf16, #tpu.memory_space<vmem>>, vector<1x1x9x32xbf16>,
    %80 = vector.extract_strided_slice %29 {offsets = [0, 224], sizes = [9, 32], strides = [1, 1]} : vector<9x384xf32> to vector<9x32xf32>
    %81 = arith.truncf %80 : vector<9x32xf32> to vector<9x32xbf16>
    %c0_50 = arith.constant 0 : index
    %c3_51 = arith.constant 3 : index
    %c0_52 = arith.constant 0 : index
    %c0_53 = arith.constant 0 : index
    %82 = vector.load %arg6[%c0_50, %c3_51, %c0_52, %c0_53] : memref<1x4x9x32xbf16, #tpu.memory_space<vmem>>, vector<1x1x9x32xbf16>
    %83 = vector.shape_cast %82 : vector<1x1x9x32xbf16> to vector<9x32xbf16>
    %84 = vector.shape_cast %81 : vector<9x32xbf16> to vector<1x1x9x32xbf16>
    tpu.vector_store %arg6[%c0_50, %c3_51, %c0_52, %c0_53], %84 {strides = array<i32>} : memref<1x4x9x32xbf16, #tpu.memory_space<vmem>>, vector<1x1x9x32xbf16>,
    %85 = vector.extract_strided_slice %29 {offsets = [0, 352], sizes = [9, 32], strides = [1, 1]} : vector<9x384xf32> to vector<9x32xf32>
    %86 = arith.truncf %85 : vector<9x32xf32> to vector<9x32xbf16>
    %c0_54 = arith.constant 0 : index
    %c3_55 = arith.constant 3 : index
    %c0_56 = arith.constant 0 : index
    %c0_57 = arith.constant 0 : index
    %87 = vector.load %arg7[%c0_54, %c3_55, %c0_56, %c0_57] : memref<1x4x9x32xbf16, #tpu.memory_space<vmem>>, vector<1x1x9x32xbf16>
    %88 = vector.shape_cast %87 : vector<1x1x9x32xbf16> to vector<9x32xbf16>
    %89 = vector.shape_cast %86 : vector<9x32xbf16> to vector<1x1x9x32xbf16>
    tpu.vector_store %arg7[%c0_54, %c3_55, %c0_56, %c0_57], %89 {strides = array<i32>} : memref<1x4x9x32xbf16, #tpu.memory_space<vmem>>, vector<1x1x9x32xbf16>,
    return
  }
  func.func @transform_0(%arg0: i32) -> (i32, i32, i32) {
    %c0_i32 = arith.constant 0 : i32
    %c0_i32_0 = arith.constant 0 : i32
    %c0_i32_1 = arith.constant 0 : i32
    return %arg0, %c0_i32, %c0_i32_0 : i32, i32, i32
  }
  func.func @transform_1(%arg0: i32) -> (i32, i32) {
    %c0_i32 = arith.constant 0 : i32
    %c0_i32_0 = arith.constant 0 : i32
    %c0_i32_1 = arith.constant 0 : i32
    return %c0_i32, %c0_i32_0 : i32, i32
  }
  func.func @transform_2(%arg0: i32) -> (i32, i32) {
    %c0_i32 = arith.constant 0 : i32
    %c0_i32_0 = arith.constant 0 : i32
    %c0_i32_1 = arith.constant 0 : i32
    return %c0_i32, %c0_i32_0 : i32, i32
  }
  func.func @transform_3(%arg0: i32) -> (i32, i32) {
    %c0_i32 = arith.constant 0 : i32
    %c0_i32_0 = arith.constant 0 : i32
    %c0_i32_1 = arith.constant 0 : i32
    return %c0_i32, %c0_i32_0 : i32, i32
  }
  func.func @transform_4(%arg0: i32) -> (i32, i32, i32, i32) {
    %c0_i32 = arith.constant 0 : i32
    %c0_i32_0 = arith.constant 0 : i32
    %c0_i32_1 = arith.constant 0 : i32
    %c0_i32_2 = arith.constant 0 : i32
    return %arg0, %c0_i32, %c0_i32_0, %c0_i32_1 : i32, i32, i32, i32
  }
  func.func @transform_5(%arg0: i32) -> (i32, i32, i32, i32) {
    %c0_i32 = arith.constant 0 : i32
    %c0_i32_0 = arith.constant 0 : i32
    %c0_i32_1 = arith.constant 0 : i32
    %c0_i32_2 = arith.constant 0 : i32
    return %arg0, %c0_i32, %c0_i32_0, %c0_i32_1 : i32, i32, i32, i32
  }
  func.func @transform_6(%arg0: i32) -> (i32, i32, i32, i32) {
    %c0_i32 = arith.constant 0 : i32
    %c0_i32_0 = arith.constant 0 : i32
    %c0_i32_1 = arith.constant 0 : i32
    %c0_i32_2 = arith.constant 0 : i32
    return %arg0, %c0_i32, %c0_i32_0, %c0_i32_1 : i32, i32, i32, i32
  }
}

module attributes {stable_mosaic.version = 11 : i64} {
  func.func @_attention_kernel(%arg0: i32, %arg1: memref<1x4x9x32xbf16, #tpu.memory_space<vmem>>, %arg2: memref<1x4x9x32xbf16, #tpu.memory_space<vmem>>, %arg3: memref<1x4x9x32xbf16, #tpu.memory_space<vmem>>, %arg4: memref<32x128xbf16, #tpu.memory_space<vmem>>, %arg5: memref<128x128xbf16, #tpu.memory_space<vmem>>, %arg6: memref<1x128xf32, #tpu.memory_space<vmem>>, %arg7: memref<1x9x128xbf16, #tpu.memory_space<vmem>>, %arg8: memref<1x9x128xbf16, #tpu.memory_space<vmem>>, %arg9: memref<1x4x9x9xbf16, #tpu.memory_space<vmem>>) attributes {dimension_semantics = [#tpu.dimension_semantics<parallel>], iteration_bounds = array<i64: 2>, scalar_prefetch = 0 : i64, scratch_operands = 0 : i64, tpu.core_type = #tpu.core_type<tc>, window_params = [{transform_indices = @transform_0, window_bounds = array<i64: 1, 4, 9, 32>}, {transform_indices = @transform_1, window_bounds = array<i64: 1, 4, 9, 32>}, {transform_indices = @transform_2, window_bounds = array<i64: 1, 4, 9, 32>}, {pipeline_mode = #tpu.pipeline_mode<synchronous>, transform_indices = @transform_3, window_bounds = array<i64: 32, 128>}, {pipeline_mode = #tpu.pipeline_mode<synchronous>, transform_indices = @transform_4, window_bounds = array<i64: 128, 128>}, {pipeline_mode = #tpu.pipeline_mode<synchronous>, transform_indices = @transform_5, window_bounds = array<i64: 1, 128>}, {transform_indices = @transform_6, window_bounds = array<i64: 1, 9, 128>}, {transform_indices = @transform_7, window_bounds = array<i64: 1, 9, 128>}, {transform_indices = @transform_8, window_bounds = array<i64: 1, 4, 9, 9>}]} {
    %c0 = arith.constant 0 : index
    %c0_0 = arith.constant 0 : index
    %c0_1 = arith.constant 0 : index
    %c0_2 = arith.constant 0 : index
    %0 = vector.load %arg1[%c0, %c0_0, %c0_1, %c0_2] : memref<1x4x9x32xbf16, #tpu.memory_space<vmem>>, vector<1x1x9x32xbf16>
    %1 = vector.shape_cast %0 : vector<1x1x9x32xbf16> to vector<9x32xbf16>
    %c0_3 = arith.constant 0 : index
    %c0_4 = arith.constant 0 : index
    %c0_5 = arith.constant 0 : index
    %c0_6 = arith.constant 0 : index
    %2 = vector.load %arg2[%c0_3, %c0_4, %c0_5, %c0_6] : memref<1x4x9x32xbf16, #tpu.memory_space<vmem>>, vector<1x1x9x32xbf16>
    %3 = vector.shape_cast %2 : vector<1x1x9x32xbf16> to vector<9x32xbf16>
    %c0_7 = arith.constant 0 : index
    %c0_8 = arith.constant 0 : index
    %c0_9 = arith.constant 0 : index
    %c0_10 = arith.constant 0 : index
    %4 = vector.load %arg3[%c0_7, %c0_8, %c0_9, %c0_10] : memref<1x4x9x32xbf16, #tpu.memory_space<vmem>>, vector<1x1x9x32xbf16>
    %5 = vector.shape_cast %4 : vector<1x1x9x32xbf16> to vector<9x32xbf16>
    %cst = arith.constant dense<0.000000e+00> : vector<9x9xf32>
    %6 = tpu.matmul %1, %3, %cst {dimension_numbers = #tpu.dot_dimension_numbers<[1], [1], [0], [0], [0, 0, 1, 0], [], []>} : vector<9x32xbf16>, vector<9x32xbf16>, vector<9x9xf32> -> vector<9x9xf32>
    %c0_11 = arith.constant 0 : index
    %c0_12 = arith.constant 0 : index
    %7 = vector.load %arg4[%c0_11, %c0_12] : memref<32x128xbf16, #tpu.memory_space<vmem>>, vector<32x128xbf16>
    %cst_13 = arith.constant dense<0.000000e+00> : vector<9x128xf32>
    %8 = tpu.matmul %1, %7, %cst_13 {dimension_numbers = #tpu.dot_dimension_numbers<[1], [0], [0], [1], [0, 0, 1, 1], [], []>} : vector<9x32xbf16>, vector<32x128xbf16>, vector<9x128xf32> -> vector<9x128xf32>
    %c120_i32 = arith.constant 120 : i32
    %9 = tpu.dynamic_rotate %8 by %c120_i32 dim 1 {stride = 1 : si32, stride_dimension = 0 : si32} : vector<9x128xf32>, i32 -> vector<9x128xf32>
    %10 = vector.extract_strided_slice %9 {offsets = [0, 0], sizes = [9, 9], strides = [1, 1]} : vector<9x128xf32> to vector<9x9xf32>
    %11 = arith.addf %6, %10 : vector<9x9xf32>
    %cst_14 = arith.constant 0.176776692 : f32
    %12 = vector.broadcast %cst_14 : f32 to vector<9x9xf32>
    %13 = arith.mulf %11, %12 : vector<9x9xf32>
    %cst_15 = arith.constant dense<0xFF800000> : vector<9xf32>
    %14 = vector.multi_reduction <maximumf>, %13, %cst_15 [1] : vector<9x9xf32> to vector<9xf32>
    %15 = vector.shape_cast %14 : vector<9xf32> to vector<9x1xf32>
    %16 = vector.broadcast %15 : vector<9x1xf32> to vector<9x9xf32>
    %17 = arith.subf %13, %16 : vector<9x9xf32>
    %18 = math.exp %17 : vector<9x9xf32>
    %cst_16 = arith.constant dense<0.000000e+00> : vector<9xf32>
    %19 = vector.multi_reduction <add>, %18, %cst_16 [1] : vector<9x9xf32> to vector<9xf32>
    %20 = vector.shape_cast %19 : vector<9xf32> to vector<9x1xf32>
    %21 = tpu.reciprocal %20 {approx = true} : vector<9x1xf32> -> vector<9x1xf32>
    %22 = vector.broadcast %21 : vector<9x1xf32> to vector<9x9xf32>
    %23 = arith.mulf %18, %22 : vector<9x9xf32>
    %24 = arith.truncf %23 : vector<9x9xf32> to vector<9x9xbf16>
    %c0_17 = arith.constant 0 : index
    %c0_18 = arith.constant 0 : index
    %c0_19 = arith.constant 0 : index
    %c0_20 = arith.constant 0 : index
    %25 = vector.load %arg9[%c0_17, %c0_18, %c0_19, %c0_20] : memref<1x4x9x9xbf16, #tpu.memory_space<vmem>>, vector<1x1x9x9xbf16>
    %26 = vector.shape_cast %25 : vector<1x1x9x9xbf16> to vector<9x9xbf16>
    %27 = vector.shape_cast %24 : vector<9x9xbf16> to vector<1x1x9x9xbf16>
    tpu.vector_store %arg9[%c0_17, %c0_18, %c0_19, %c0_20], %27 {strides = array<i32>} : memref<1x4x9x9xbf16, #tpu.memory_space<vmem>>, vector<1x1x9x9xbf16>,
    %28 = arith.truncf %23 : vector<9x9xf32> to vector<9x9xbf16>
    %cst_21 = arith.constant dense<0.000000e+00> : vector<9x32xf32>
    %29 = tpu.matmul %28, %5, %cst_21 {dimension_numbers = #tpu.dot_dimension_numbers<[1], [0], [0], [1], [0, 0, 1, 1], [], []>} : vector<9x9xbf16>, vector<9x32xbf16>, vector<9x32xf32> -> vector<9x32xf32>
    %c0_22 = arith.constant 0 : index
    %c1 = arith.constant 1 : index
    %c0_23 = arith.constant 0 : index
    %c0_24 = arith.constant 0 : index
    %30 = vector.load %arg1[%c0_22, %c1, %c0_23, %c0_24] : memref<1x4x9x32xbf16, #tpu.memory_space<vmem>>, vector<1x1x9x32xbf16>
    %31 = vector.shape_cast %30 : vector<1x1x9x32xbf16> to vector<9x32xbf16>
    %c0_25 = arith.constant 0 : index
    %c1_26 = arith.constant 1 : index
    %c0_27 = arith.constant 0 : index
    %c0_28 = arith.constant 0 : index
    %32 = vector.load %arg2[%c0_25, %c1_26, %c0_27, %c0_28] : memref<1x4x9x32xbf16, #tpu.memory_space<vmem>>, vector<1x1x9x32xbf16>
    %33 = vector.shape_cast %32 : vector<1x1x9x32xbf16> to vector<9x32xbf16>
    %c0_29 = arith.constant 0 : index
    %c1_30 = arith.constant 1 : index
    %c0_31 = arith.constant 0 : index
    %c0_32 = arith.constant 0 : index
    %34 = vector.load %arg3[%c0_29, %c1_30, %c0_31, %c0_32] : memref<1x4x9x32xbf16, #tpu.memory_space<vmem>>, vector<1x1x9x32xbf16>
    %35 = vector.shape_cast %34 : vector<1x1x9x32xbf16> to vector<9x32xbf16>
    %cst_33 = arith.constant dense<0.000000e+00> : vector<9x9xf32>
    %36 = tpu.matmul %31, %33, %cst_33 {dimension_numbers = #tpu.dot_dimension_numbers<[1], [1], [0], [0], [0, 0, 1, 0], [], []>} : vector<9x32xbf16>, vector<9x32xbf16>, vector<9x9xf32> -> vector<9x9xf32>
    %c0_34 = arith.constant 0 : index
    %c0_35 = arith.constant 0 : index
    %37 = vector.load %arg4[%c0_34, %c0_35] : memref<32x128xbf16, #tpu.memory_space<vmem>>, vector<32x128xbf16>
    %cst_36 = arith.constant dense<0.000000e+00> : vector<9x128xf32>
    %38 = tpu.matmul %31, %37, %cst_36 {dimension_numbers = #tpu.dot_dimension_numbers<[1], [0], [0], [1], [0, 0, 1, 1], [], []>} : vector<9x32xbf16>, vector<32x128xbf16>, vector<9x128xf32> -> vector<9x128xf32>
    %c120_i32_37 = arith.constant 120 : i32
    %39 = tpu.dynamic_rotate %38 by %c120_i32_37 dim 1 {stride = 1 : si32, stride_dimension = 0 : si32} : vector<9x128xf32>, i32 -> vector<9x128xf32>
    %40 = vector.extract_strided_slice %39 {offsets = [0, 0], sizes = [9, 9], strides = [1, 1]} : vector<9x128xf32> to vector<9x9xf32>
    %41 = arith.addf %36, %40 : vector<9x9xf32>
    %cst_38 = arith.constant 0.176776692 : f32
    %42 = vector.broadcast %cst_38 : f32 to vector<9x9xf32>
    %43 = arith.mulf %41, %42 : vector<9x9xf32>
    %cst_39 = arith.constant dense<0xFF800000> : vector<9xf32>
    %44 = vector.multi_reduction <maximumf>, %43, %cst_39 [1] : vector<9x9xf32> to vector<9xf32>
    %45 = vector.shape_cast %44 : vector<9xf32> to vector<9x1xf32>
    %46 = vector.broadcast %45 : vector<9x1xf32> to vector<9x9xf32>
    %47 = arith.subf %43, %46 : vector<9x9xf32>
    %48 = math.exp %47 : vector<9x9xf32>
    %cst_40 = arith.constant dense<0.000000e+00> : vector<9xf32>
    %49 = vector.multi_reduction <add>, %48, %cst_40 [1] : vector<9x9xf32> to vector<9xf32>
    %50 = vector.shape_cast %49 : vector<9xf32> to vector<9x1xf32>
    %51 = tpu.reciprocal %50 {approx = true} : vector<9x1xf32> -> vector<9x1xf32>
    %52 = vector.broadcast %51 : vector<9x1xf32> to vector<9x9xf32>
    %53 = arith.mulf %48, %52 : vector<9x9xf32>
    %54 = arith.truncf %53 : vector<9x9xf32> to vector<9x9xbf16>
    %c0_41 = arith.constant 0 : index
    %c1_42 = arith.constant 1 : index
    %c0_43 = arith.constant 0 : index
    %c0_44 = arith.constant 0 : index
    %55 = vector.load %arg9[%c0_41, %c1_42, %c0_43, %c0_44] : memref<1x4x9x9xbf16, #tpu.memory_space<vmem>>, vector<1x1x9x9xbf16>
    %56 = vector.shape_cast %55 : vector<1x1x9x9xbf16> to vector<9x9xbf16>
    %57 = vector.shape_cast %54 : vector<9x9xbf16> to vector<1x1x9x9xbf16>
    tpu.vector_store %arg9[%c0_41, %c1_42, %c0_43, %c0_44], %57 {strides = array<i32>} : memref<1x4x9x9xbf16, #tpu.memory_space<vmem>>, vector<1x1x9x9xbf16>,
    %58 = arith.truncf %53 : vector<9x9xf32> to vector<9x9xbf16>
    %cst_45 = arith.constant dense<0.000000e+00> : vector<9x32xf32>
    %59 = tpu.matmul %58, %35, %cst_45 {dimension_numbers = #tpu.dot_dimension_numbers<[1], [0], [0], [1], [0, 0, 1, 1], [], []>} : vector<9x9xbf16>, vector<9x32xbf16>, vector<9x32xf32> -> vector<9x32xf32>
    %c0_46 = arith.constant 0 : index
    %c2 = arith.constant 2 : index
    %c0_47 = arith.constant 0 : index
    %c0_48 = arith.constant 0 : index
    %60 = vector.load %arg1[%c0_46, %c2, %c0_47, %c0_48] : memref<1x4x9x32xbf16, #tpu.memory_space<vmem>>, vector<1x1x9x32xbf16>
    %61 = vector.shape_cast %60 : vector<1x1x9x32xbf16> to vector<9x32xbf16>
    %c0_49 = arith.constant 0 : index
    %c2_50 = arith.constant 2 : index
    %c0_51 = arith.constant 0 : index
    %c0_52 = arith.constant 0 : index
    %62 = vector.load %arg2[%c0_49, %c2_50, %c0_51, %c0_52] : memref<1x4x9x32xbf16, #tpu.memory_space<vmem>>, vector<1x1x9x32xbf16>
    %63 = vector.shape_cast %62 : vector<1x1x9x32xbf16> to vector<9x32xbf16>
    %c0_53 = arith.constant 0 : index
    %c2_54 = arith.constant 2 : index
    %c0_55 = arith.constant 0 : index
    %c0_56 = arith.constant 0 : index
    %64 = vector.load %arg3[%c0_53, %c2_54, %c0_55, %c0_56] : memref<1x4x9x32xbf16, #tpu.memory_space<vmem>>, vector<1x1x9x32xbf16>
    %65 = vector.shape_cast %64 : vector<1x1x9x32xbf16> to vector<9x32xbf16>
    %cst_57 = arith.constant dense<0.000000e+00> : vector<9x9xf32>
    %66 = tpu.matmul %61, %63, %cst_57 {dimension_numbers = #tpu.dot_dimension_numbers<[1], [1], [0], [0], [0, 0, 1, 0], [], []>} : vector<9x32xbf16>, vector<9x32xbf16>, vector<9x9xf32> -> vector<9x9xf32>
    %c0_58 = arith.constant 0 : index
    %c0_59 = arith.constant 0 : index
    %67 = vector.load %arg4[%c0_58, %c0_59] : memref<32x128xbf16, #tpu.memory_space<vmem>>, vector<32x128xbf16>
    %cst_60 = arith.constant dense<0.000000e+00> : vector<9x128xf32>
    %68 = tpu.matmul %61, %67, %cst_60 {dimension_numbers = #tpu.dot_dimension_numbers<[1], [0], [0], [1], [0, 0, 1, 1], [], []>} : vector<9x32xbf16>, vector<32x128xbf16>, vector<9x128xf32> -> vector<9x128xf32>
    %c120_i32_61 = arith.constant 120 : i32
    %69 = tpu.dynamic_rotate %68 by %c120_i32_61 dim 1 {stride = 1 : si32, stride_dimension = 0 : si32} : vector<9x128xf32>, i32 -> vector<9x128xf32>
    %70 = vector.extract_strided_slice %69 {offsets = [0, 0], sizes = [9, 9], strides = [1, 1]} : vector<9x128xf32> to vector<9x9xf32>
    %71 = arith.addf %66, %70 : vector<9x9xf32>
    %cst_62 = arith.constant 0.176776692 : f32
    %72 = vector.broadcast %cst_62 : f32 to vector<9x9xf32>
    %73 = arith.mulf %71, %72 : vector<9x9xf32>
    %cst_63 = arith.constant dense<0xFF800000> : vector<9xf32>
    %74 = vector.multi_reduction <maximumf>, %73, %cst_63 [1] : vector<9x9xf32> to vector<9xf32>
    %75 = vector.shape_cast %74 : vector<9xf32> to vector<9x1xf32>
    %76 = vector.broadcast %75 : vector<9x1xf32> to vector<9x9xf32>
    %77 = arith.subf %73, %76 : vector<9x9xf32>
    %78 = math.exp %77 : vector<9x9xf32>
    %cst_64 = arith.constant dense<0.000000e+00> : vector<9xf32>
    %79 = vector.multi_reduction <add>, %78, %cst_64 [1] : vector<9x9xf32> to vector<9xf32>
    %80 = vector.shape_cast %79 : vector<9xf32> to vector<9x1xf32>
    %81 = tpu.reciprocal %80 {approx = true} : vector<9x1xf32> -> vector<9x1xf32>
    %82 = vector.broadcast %81 : vector<9x1xf32> to vector<9x9xf32>
    %83 = arith.mulf %78, %82 : vector<9x9xf32>
    %84 = arith.truncf %83 : vector<9x9xf32> to vector<9x9xbf16>
    %c0_65 = arith.constant 0 : index
    %c2_66 = arith.constant 2 : index
    %c0_67 = arith.constant 0 : index
    %c0_68 = arith.constant 0 : index
    %85 = vector.load %arg9[%c0_65, %c2_66, %c0_67, %c0_68] : memref<1x4x9x9xbf16, #tpu.memory_space<vmem>>, vector<1x1x9x9xbf16>
    %86 = vector.shape_cast %85 : vector<1x1x9x9xbf16> to vector<9x9xbf16>
    %87 = vector.shape_cast %84 : vector<9x9xbf16> to vector<1x1x9x9xbf16>
    tpu.vector_store %arg9[%c0_65, %c2_66, %c0_67, %c0_68], %87 {strides = array<i32>} : memref<1x4x9x9xbf16, #tpu.memory_space<vmem>>, vector<1x1x9x9xbf16>,
    %88 = arith.truncf %83 : vector<9x9xf32> to vector<9x9xbf16>
    %cst_69 = arith.constant dense<0.000000e+00> : vector<9x32xf32>
    %89 = tpu.matmul %88, %65, %cst_69 {dimension_numbers = #tpu.dot_dimension_numbers<[1], [0], [0], [1], [0, 0, 1, 1], [], []>} : vector<9x9xbf16>, vector<9x32xbf16>, vector<9x32xf32> -> vector<9x32xf32>
    %c0_70 = arith.constant 0 : index
    %c3 = arith.constant 3 : index
    %c0_71 = arith.constant 0 : index
    %c0_72 = arith.constant 0 : index
    %90 = vector.load %arg1[%c0_70, %c3, %c0_71, %c0_72] : memref<1x4x9x32xbf16, #tpu.memory_space<vmem>>, vector<1x1x9x32xbf16>
    %91 = vector.shape_cast %90 : vector<1x1x9x32xbf16> to vector<9x32xbf16>
    %c0_73 = arith.constant 0 : index
    %c3_74 = arith.constant 3 : index
    %c0_75 = arith.constant 0 : index
    %c0_76 = arith.constant 0 : index
    %92 = vector.load %arg2[%c0_73, %c3_74, %c0_75, %c0_76] : memref<1x4x9x32xbf16, #tpu.memory_space<vmem>>, vector<1x1x9x32xbf16>
    %93 = vector.shape_cast %92 : vector<1x1x9x32xbf16> to vector<9x32xbf16>
    %c0_77 = arith.constant 0 : index
    %c3_78 = arith.constant 3 : index
    %c0_79 = arith.constant 0 : index
    %c0_80 = arith.constant 0 : index
    %94 = vector.load %arg3[%c0_77, %c3_78, %c0_79, %c0_80] : memref<1x4x9x32xbf16, #tpu.memory_space<vmem>>, vector<1x1x9x32xbf16>
    %95 = vector.shape_cast %94 : vector<1x1x9x32xbf16> to vector<9x32xbf16>
    %cst_81 = arith.constant dense<0.000000e+00> : vector<9x9xf32>
    %96 = tpu.matmul %91, %93, %cst_81 {dimension_numbers = #tpu.dot_dimension_numbers<[1], [1], [0], [0], [0, 0, 1, 0], [], []>} : vector<9x32xbf16>, vector<9x32xbf16>, vector<9x9xf32> -> vector<9x9xf32>
    %c0_82 = arith.constant 0 : index
    %c0_83 = arith.constant 0 : index
    %97 = vector.load %arg4[%c0_82, %c0_83] : memref<32x128xbf16, #tpu.memory_space<vmem>>, vector<32x128xbf16>
    %cst_84 = arith.constant dense<0.000000e+00> : vector<9x128xf32>
    %98 = tpu.matmul %91, %97, %cst_84 {dimension_numbers = #tpu.dot_dimension_numbers<[1], [0], [0], [1], [0, 0, 1, 1], [], []>} : vector<9x32xbf16>, vector<32x128xbf16>, vector<9x128xf32> -> vector<9x128xf32>
    %c120_i32_85 = arith.constant 120 : i32
    %99 = tpu.dynamic_rotate %98 by %c120_i32_85 dim 1 {stride = 1 : si32, stride_dimension = 0 : si32} : vector<9x128xf32>, i32 -> vector<9x128xf32>
    %100 = vector.extract_strided_slice %99 {offsets = [0, 0], sizes = [9, 9], strides = [1, 1]} : vector<9x128xf32> to vector<9x9xf32>
    %101 = arith.addf %96, %100 : vector<9x9xf32>
    %cst_86 = arith.constant 0.176776692 : f32
    %102 = vector.broadcast %cst_86 : f32 to vector<9x9xf32>
    %103 = arith.mulf %101, %102 : vector<9x9xf32>
    %cst_87 = arith.constant dense<0xFF800000> : vector<9xf32>
    %104 = vector.multi_reduction <maximumf>, %103, %cst_87 [1] : vector<9x9xf32> to vector<9xf32>
    %105 = vector.shape_cast %104 : vector<9xf32> to vector<9x1xf32>
    %106 = vector.broadcast %105 : vector<9x1xf32> to vector<9x9xf32>
    %107 = arith.subf %103, %106 : vector<9x9xf32>
    %108 = math.exp %107 : vector<9x9xf32>
    %cst_88 = arith.constant dense<0.000000e+00> : vector<9xf32>
    %109 = vector.multi_reduction <add>, %108, %cst_88 [1] : vector<9x9xf32> to vector<9xf32>
    %110 = vector.shape_cast %109 : vector<9xf32> to vector<9x1xf32>
    %111 = tpu.reciprocal %110 {approx = true} : vector<9x1xf32> -> vector<9x1xf32>
    %112 = vector.broadcast %111 : vector<9x1xf32> to vector<9x9xf32>
    %113 = arith.mulf %108, %112 : vector<9x9xf32>
    %114 = arith.truncf %113 : vector<9x9xf32> to vector<9x9xbf16>
    %c0_89 = arith.constant 0 : index
    %c3_90 = arith.constant 3 : index
    %c0_91 = arith.constant 0 : index
    %c0_92 = arith.constant 0 : index
    %115 = vector.load %arg9[%c0_89, %c3_90, %c0_91, %c0_92] : memref<1x4x9x9xbf16, #tpu.memory_space<vmem>>, vector<1x1x9x9xbf16>
    %116 = vector.shape_cast %115 : vector<1x1x9x9xbf16> to vector<9x9xbf16>
    %117 = vector.shape_cast %114 : vector<9x9xbf16> to vector<1x1x9x9xbf16>
    tpu.vector_store %arg9[%c0_89, %c3_90, %c0_91, %c0_92], %117 {strides = array<i32>} : memref<1x4x9x9xbf16, #tpu.memory_space<vmem>>, vector<1x1x9x9xbf16>,
    %118 = arith.truncf %113 : vector<9x9xf32> to vector<9x9xbf16>
    %cst_93 = arith.constant dense<0.000000e+00> : vector<9x32xf32>
    %119 = tpu.matmul %118, %95, %cst_93 {dimension_numbers = #tpu.dot_dimension_numbers<[1], [0], [0], [1], [0, 0, 1, 1], [], []>} : vector<9x9xbf16>, vector<9x32xbf16>, vector<9x32xf32> -> vector<9x32xf32>
    %120 = tpu.concatenate %29, %59, %89, %119 in 1 : vector<9x32xf32>, vector<9x32xf32>, vector<9x32xf32>, vector<9x32xf32> -> vector<9x128xf32>
    %121 = arith.truncf %120 : vector<9x128xf32> to vector<9x128xbf16>
    %c0_94 = arith.constant 0 : index
    %c0_95 = arith.constant 0 : index
    %122 = vector.load %arg5[%c0_94, %c0_95] : memref<128x128xbf16, #tpu.memory_space<vmem>>, vector<128x128xbf16>
    %cst_96 = arith.constant dense<0.000000e+00> : vector<9x128xf32>
    %123 = tpu.matmul %121, %122, %cst_96 {dimension_numbers = #tpu.dot_dimension_numbers<[1], [0], [0], [1], [0, 0, 1, 1], [], []>} : vector<9x128xbf16>, vector<128x128xbf16>, vector<9x128xf32> -> vector<9x128xf32>
    %c0_97 = arith.constant 0 : index
    %c0_98 = arith.constant 0 : index
    %124 = vector.load %arg6[%c0_97, %c0_98] : memref<1x128xf32, #tpu.memory_space<vmem>>, vector<1x128xf32>
    %125 = vector.broadcast %124 : vector<1x128xf32> to vector<9x128xf32>
    %126 = arith.addf %123, %125 : vector<9x128xf32>
    %c0_99 = arith.constant 0 : index
    %c0_100 = arith.constant 0 : index
    %c0_101 = arith.constant 0 : index
    %127 = vector.load %arg7[%c0_99, %c0_100, %c0_101] : memref<1x9x128xbf16, #tpu.memory_space<vmem>>, vector<1x9x128xbf16>
    %128 = vector.shape_cast %127 : vector<1x9x128xbf16> to vector<9x128xbf16>
    %129 = arith.extf %128 : vector<9x128xbf16> to vector<9x128xf32>
    %130 = arith.addf %129, %126 : vector<9x128xf32>
    %131 = arith.truncf %130 : vector<9x128xf32> to vector<9x128xbf16>
    %c0_102 = arith.constant 0 : index
    %c0_103 = arith.constant 0 : index
    %c0_104 = arith.constant 0 : index
    %132 = vector.load %arg8[%c0_102, %c0_103, %c0_104] : memref<1x9x128xbf16, #tpu.memory_space<vmem>>, vector<1x9x128xbf16>
    %133 = vector.shape_cast %132 : vector<1x9x128xbf16> to vector<9x128xbf16>
    %134 = vector.shape_cast %131 : vector<9x128xbf16> to vector<1x9x128xbf16>
    tpu.vector_store %arg8[%c0_102, %c0_103, %c0_104], %134 {strides = array<i32>} : memref<1x9x128xbf16, #tpu.memory_space<vmem>>, vector<1x9x128xbf16>,
    return
  }
  func.func @transform_0(%arg0: i32) -> (i32, i32, i32, i32) {
    %c0_i32 = arith.constant 0 : i32
    %c0_i32_0 = arith.constant 0 : i32
    %c0_i32_1 = arith.constant 0 : i32
    %c0_i32_2 = arith.constant 0 : i32
    return %arg0, %c0_i32, %c0_i32_0, %c0_i32_1 : i32, i32, i32, i32
  }
  func.func @transform_1(%arg0: i32) -> (i32, i32, i32, i32) {
    %c0_i32 = arith.constant 0 : i32
    %c0_i32_0 = arith.constant 0 : i32
    %c0_i32_1 = arith.constant 0 : i32
    %c0_i32_2 = arith.constant 0 : i32
    return %arg0, %c0_i32, %c0_i32_0, %c0_i32_1 : i32, i32, i32, i32
  }
  func.func @transform_2(%arg0: i32) -> (i32, i32, i32, i32) {
    %c0_i32 = arith.constant 0 : i32
    %c0_i32_0 = arith.constant 0 : i32
    %c0_i32_1 = arith.constant 0 : i32
    %c0_i32_2 = arith.constant 0 : i32
    return %arg0, %c0_i32, %c0_i32_0, %c0_i32_1 : i32, i32, i32, i32
  }
  func.func @transform_3(%arg0: i32) -> (i32, i32) {
    %c0_i32 = arith.constant 0 : i32
    %c0_i32_0 = arith.constant 0 : i32
    %c0_i32_1 = arith.constant 0 : i32
    return %c0_i32, %c0_i32_0 : i32, i32
  }
  func.func @transform_4(%arg0: i32) -> (i32, i32) {
    %c0_i32 = arith.constant 0 : i32
    %c0_i32_0 = arith.constant 0 : i32
    %c0_i32_1 = arith.constant 0 : i32
    return %c0_i32, %c0_i32_0 : i32, i32
  }
  func.func @transform_5(%arg0: i32) -> (i32, i32) {
    %c0_i32 = arith.constant 0 : i32
    %c0_i32_0 = arith.constant 0 : i32
    %c0_i32_1 = arith.constant 0 : i32
    return %c0_i32, %c0_i32_0 : i32, i32
  }
  func.func @transform_6(%arg0: i32) -> (i32, i32, i32) {
    %c0_i32 = arith.constant 0 : i32
    %c0_i32_0 = arith.constant 0 : i32
    %c0_i32_1 = arith.constant 0 : i32
    return %arg0, %c0_i32, %c0_i32_0 : i32, i32, i32
  }
  func.func @transform_7(%arg0: i32) -> (i32, i32, i32) {
    %c0_i32 = arith.constant 0 : i32
    %c0_i32_0 = arith.constant 0 : i32
    %c0_i32_1 = arith.constant 0 : i32
    return %arg0, %c0_i32, %c0_i32_0 : i32, i32, i32
  }
  func.func @transform_8(%arg0: i32) -> (i32, i32, i32, i32) {
    %c0_i32 = arith.constant 0 : i32
    %c0_i32_0 = arith.constant 0 : i32
    %c0_i32_1 = arith.constant 0 : i32
    %c0_i32_2 = arith.constant 0 : i32
    return %arg0, %c0_i32, %c0_i32_0, %c0_i32_1 : i32, i32, i32, i32
  }
}

module attributes {stable_mosaic.version = 11 : i64} {
  func.func @_conv_module_kernel(%arg0: i32, %arg1: memref<1x9x128xbf16, #tpu.memory_space<vmem>>, %arg2: memref<1x128xf32, #tpu.memory_space<vmem>>, %arg3: memref<1x128xf32, #tpu.memory_space<vmem>>, %arg4: memref<128x512xbf16, #tpu.memory_space<vmem>>, %arg5: memref<1x512xf32, #tpu.memory_space<vmem>>, %arg6: memref<16x256xf32, #tpu.memory_space<vmem>>, %arg7: memref<1x256xf32, #tpu.memory_space<vmem>>, %arg8: memref<1x256xf32, #tpu.memory_space<vmem>>, %arg9: memref<1x256xf32, #tpu.memory_space<vmem>>, %arg10: memref<256x128xbf16, #tpu.memory_space<vmem>>, %arg11: memref<1x128xf32, #tpu.memory_space<vmem>>, %arg12: memref<1x9x128xbf16, #tpu.memory_space<vmem>>, %arg13: memref<24x256xf32, #tpu.memory_space<vmem>>) attributes {dimension_semantics = [#tpu.dimension_semantics<parallel>], iteration_bounds = array<i64: 2>, scalar_prefetch = 0 : i64, scratch_operands = 1 : i64, tpu.core_type = #tpu.core_type<tc>, window_params = [{transform_indices = @transform_0, window_bounds = array<i64: 1, 9, 128>}, {pipeline_mode = #tpu.pipeline_mode<synchronous>, transform_indices = @transform_1, window_bounds = array<i64: 1, 128>}, {pipeline_mode = #tpu.pipeline_mode<synchronous>, transform_indices = @transform_2, window_bounds = array<i64: 1, 128>}, {pipeline_mode = #tpu.pipeline_mode<synchronous>, transform_indices = @transform_3, window_bounds = array<i64: 128, 512>}, {pipeline_mode = #tpu.pipeline_mode<synchronous>, transform_indices = @transform_4, window_bounds = array<i64: 1, 512>}, {pipeline_mode = #tpu.pipeline_mode<synchronous>, transform_indices = @transform_5, window_bounds = array<i64: 16, 256>}, {pipeline_mode = #tpu.pipeline_mode<synchronous>, transform_indices = @transform_6, window_bounds = array<i64: 1, 256>}, {pipeline_mode = #tpu.pipeline_mode<synchronous>, transform_indices = @transform_7, window_bounds = array<i64: 1, 256>}, {pipeline_mode = #tpu.pipeline_mode<synchronous>, transform_indices = @transform_8, window_bounds = array<i64: 1, 256>}, {pipeline_mode = #tpu.pipeline_mode<synchronous>, transform_indices = @transform_9, window_bounds = array<i64: 256, 128>}, {pipeline_mode = #tpu.pipeline_mode<synchronous>, transform_indices = @transform_10, window_bounds = array<i64: 1, 128>}, {transform_indices = @transform_11, window_bounds = array<i64: 1, 9, 128>}]} {
    %c0 = arith.constant 0 : index
    %c0_0 = arith.constant 0 : index
    %c0_1 = arith.constant 0 : index
    %0 = vector.load %arg1[%c0, %c0_0, %c0_1] : memref<1x9x128xbf16, #tpu.memory_space<vmem>>, vector<1x9x128xbf16>
    %1 = vector.shape_cast %0 : vector<1x9x128xbf16> to vector<9x128xbf16>
    %2 = arith.extf %1 : vector<9x128xbf16> to vector<9x128xf32>
    %c0_2 = arith.constant 0 : index
    %c0_3 = arith.constant 0 : index
    %3 = vector.load %arg2[%c0_2, %c0_3] : memref<1x128xf32, #tpu.memory_space<vmem>>, vector<1x128xf32>
    %c0_4 = arith.constant 0 : index
    %c0_5 = arith.constant 0 : index
    %4 = vector.load %arg3[%c0_4, %c0_5] : memref<1x128xf32, #tpu.memory_space<vmem>>, vector<1x128xf32>
    %cst = arith.constant dense<0.000000e+00> : vector<9xf32>
    %5 = vector.multi_reduction <add>, %2, %cst [1] : vector<9x128xf32> to vector<9xf32>
    %6 = vector.shape_cast %5 : vector<9xf32> to vector<9x1xf32>
    %cst_6 = arith.constant 1.280000e+02 : f32
    %7 = vector.broadcast %cst_6 : f32 to vector<9x1xf32>
    %8 = arith.divf %6, %7 : vector<9x1xf32>
    %9 = vector.broadcast %8 : vector<9x1xf32> to vector<9x128xf32>
    %10 = arith.subf %2, %9 : vector<9x128xf32>
    %11 = arith.mulf %10, %10 : vector<9x128xf32>
    %cst_7 = arith.constant dense<0.000000e+00> : vector<9xf32>
    %12 = vector.multi_reduction <add>, %11, %cst_7 [1] : vector<9x128xf32> to vector<9xf32>
    %13 = vector.shape_cast %12 : vector<9xf32> to vector<9x1xf32>
    %cst_8 = arith.constant 1.280000e+02 : f32
    %14 = vector.broadcast %cst_8 : f32 to vector<9x1xf32>
    %15 = arith.divf %13, %14 : vector<9x1xf32>
    %16 = vector.broadcast %8 : vector<9x1xf32> to vector<9x128xf32>
    %17 = arith.subf %2, %16 : vector<9x128xf32>
    %cst_9 = arith.constant 9.99999974E-6 : f32
    %18 = vector.broadcast %cst_9 : f32 to vector<9x1xf32>
    %19 = arith.addf %15, %18 : vector<9x1xf32>
    %20 = math.rsqrt %19 : vector<9x1xf32>
    %21 = vector.broadcast %20 : vector<9x1xf32> to vector<9x128xf32>
    %22 = arith.mulf %17, %21 : vector<9x128xf32>
    %23 = vector.broadcast %3 : vector<1x128xf32> to vector<9x128xf32>
    %24 = arith.mulf %22, %23 : vector<9x128xf32>
    %25 = vector.broadcast %4 : vector<1x128xf32> to vector<9x128xf32>
    %26 = arith.addf %24, %25 : vector<9x128xf32>
    %27 = arith.truncf %26 : vector<9x128xf32> to vector<9x128xbf16>
    %c0_10 = arith.constant 0 : index
    %c0_11 = arith.constant 0 : index
    %28 = vector.load %arg4[%c0_10, %c0_11] : memref<128x512xbf16, #tpu.memory_space<vmem>>, vector<128x512xbf16>
    %cst_12 = arith.constant dense<0.000000e+00> : vector<9x512xf32>
    %29 = tpu.matmul %27, %28, %cst_12 {dimension_numbers = #tpu.dot_dimension_numbers<[1], [0], [0], [1], [0, 0, 1, 1], [], []>} : vector<9x128xbf16>, vector<128x512xbf16>, vector<9x512xf32> -> vector<9x512xf32>
    %c0_13 = arith.constant 0 : index
    %c0_14 = arith.constant 0 : index
    %30 = vector.load %arg5[%c0_13, %c0_14] : memref<1x512xf32, #tpu.memory_space<vmem>>, vector<1x512xf32>
    %31 = vector.broadcast %30 : vector<1x512xf32> to vector<9x512xf32>
    %32 = arith.addf %29, %31 : vector<9x512xf32>
    %33 = vector.extract_strided_slice %32 {offsets = [0, 0], sizes = [9, 256], strides = [1, 1]} : vector<9x512xf32> to vector<9x256xf32>
    %34 = vector.extract_strided_slice %32 {offsets = [0, 256], sizes = [9, 256], strides = [1, 1]} : vector<9x512xf32> to vector<9x256xf32>
    %35 = arith.negf %34 : vector<9x256xf32>
    %36 = math.exp %35 : vector<9x256xf32>
    %cst_15 = arith.constant 1.000000e+00 : f32
    %37 = vector.broadcast %cst_15 : f32 to vector<9x256xf32>
    %38 = arith.addf %37, %36 : vector<9x256xf32>
    %39 = arith.divf %37, %38 : vector<9x256xf32>
    %40 = arith.mulf %33, %39 : vector<9x256xf32>
    %cst_16 = arith.constant 0.000000e+00 : f32
    %41 = vector.broadcast %cst_16 : f32 to vector<8x256xf32>
    %c0_17 = arith.constant 0 : index
    %c0_18 = arith.constant 0 : index
    %42 = vector.load %arg13[%c0_17, %c0_18] : memref<24x256xf32, #tpu.memory_space<vmem>>, vector<8x256xf32>
    tpu.vector_store %arg13[%c0_17, %c0_18], %41 {strides = array<i32>} : memref<24x256xf32, #tpu.memory_space<vmem>>, vector<8x256xf32>,
    %cst_19 = arith.constant 0.000000e+00 : f32
    %43 = vector.broadcast %cst_19 : f32 to vector<7x256xf32>
    %c17 = arith.constant 17 : index
    %c0_20 = arith.constant 0 : index
    %44 = vector.load %arg13[%c17, %c0_20] : memref<24x256xf32, #tpu.memory_space<vmem>>, vector<7x256xf32>
    tpu.vector_store %arg13[%c17, %c0_20], %43 {strides = array<i32>} : memref<24x256xf32, #tpu.memory_space<vmem>>, vector<7x256xf32>,
    %c8 = arith.constant 8 : index
    %c0_21 = arith.constant 0 : index
    %45 = vector.load %arg13[%c8, %c0_21] : memref<24x256xf32, #tpu.memory_space<vmem>>, vector<9x256xf32>
    tpu.vector_store %arg13[%c8, %c0_21], %40 {strides = array<i32>} : memref<24x256xf32, #tpu.memory_space<vmem>>, vector<9x256xf32>,
    %c0_22 = arith.constant 0 : index
    %c0_23 = arith.constant 0 : index
    %46 = vector.load %arg6[%c0_22, %c0_23] : memref<16x256xf32, #tpu.memory_space<vmem>>, vector<16x256xf32>
    %cst_24 = arith.constant 0.000000e+00 : f32
    %47 = vector.broadcast %cst_24 : f32 to vector<9x256xf32>
    %c0_25 = arith.constant 0 : index
    %c0_26 = arith.constant 0 : index
    %48 = vector.load %arg13[%c0_25, %c0_26] : memref<24x256xf32, #tpu.memory_space<vmem>>, vector<9x256xf32>
    %49 = vector.extract_strided_slice %46 {offsets = [0, 0], sizes = [1, 256], strides = [1, 1]} : vector<16x256xf32> to vector<1x256xf32>
    %50 = vector.broadcast %49 : vector<1x256xf32> to vector<9x256xf32>
    %51 = arith.mulf %48, %50 : vector<9x256xf32>
    %52 = arith.addf %47, %51 : vector<9x256xf32>
    %c1 = arith.constant 1 : index
    %c0_27 = arith.constant 0 : index
    %53 = vector.load %arg13[%c1, %c0_27] : memref<24x256xf32, #tpu.memory_space<vmem>>, vector<9x256xf32>
    %54 = vector.extract_strided_slice %46 {offsets = [1, 0], sizes = [1, 256], strides = [1, 1]} : vector<16x256xf32> to vector<1x256xf32>
    %55 = vector.broadcast %54 : vector<1x256xf32> to vector<9x256xf32>
    %56 = arith.mulf %53, %55 : vector<9x256xf32>
    %57 = arith.addf %52, %56 : vector<9x256xf32>
    %c2 = arith.constant 2 : index
    %c0_28 = arith.constant 0 : index
    %58 = vector.load %arg13[%c2, %c0_28] : memref<24x256xf32, #tpu.memory_space<vmem>>, vector<9x256xf32>
    %59 = vector.extract_strided_slice %46 {offsets = [2, 0], sizes = [1, 256], strides = [1, 1]} : vector<16x256xf32> to vector<1x256xf32>
    %60 = vector.broadcast %59 : vector<1x256xf32> to vector<9x256xf32>
    %61 = arith.mulf %58, %60 : vector<9x256xf32>
    %62 = arith.addf %57, %61 : vector<9x256xf32>
    %c3 = arith.constant 3 : index
    %c0_29 = arith.constant 0 : index
    %63 = vector.load %arg13[%c3, %c0_29] : memref<24x256xf32, #tpu.memory_space<vmem>>, vector<9x256xf32>
    %64 = vector.extract_strided_slice %46 {offsets = [3, 0], sizes = [1, 256], strides = [1, 1]} : vector<16x256xf32> to vector<1x256xf32>
    %65 = vector.broadcast %64 : vector<1x256xf32> to vector<9x256xf32>
    %66 = arith.mulf %63, %65 : vector<9x256xf32>
    %67 = arith.addf %62, %66 : vector<9x256xf32>
    %c4 = arith.constant 4 : index
    %c0_30 = arith.constant 0 : index
    %68 = vector.load %arg13[%c4, %c0_30] : memref<24x256xf32, #tpu.memory_space<vmem>>, vector<9x256xf32>
    %69 = vector.extract_strided_slice %46 {offsets = [4, 0], sizes = [1, 256], strides = [1, 1]} : vector<16x256xf32> to vector<1x256xf32>
    %70 = vector.broadcast %69 : vector<1x256xf32> to vector<9x256xf32>
    %71 = arith.mulf %68, %70 : vector<9x256xf32>
    %72 = arith.addf %67, %71 : vector<9x256xf32>
    %c5 = arith.constant 5 : index
    %c0_31 = arith.constant 0 : index
    %73 = vector.load %arg13[%c5, %c0_31] : memref<24x256xf32, #tpu.memory_space<vmem>>, vector<9x256xf32>
    %74 = vector.extract_strided_slice %46 {offsets = [5, 0], sizes = [1, 256], strides = [1, 1]} : vector<16x256xf32> to vector<1x256xf32>
    %75 = vector.broadcast %74 : vector<1x256xf32> to vector<9x256xf32>
    %76 = arith.mulf %73, %75 : vector<9x256xf32>
    %77 = arith.addf %72, %76 : vector<9x256xf32>
    %c6 = arith.constant 6 : index
    %c0_32 = arith.constant 0 : index
    %78 = vector.load %arg13[%c6, %c0_32] : memref<24x256xf32, #tpu.memory_space<vmem>>, vector<9x256xf32>
    %79 = vector.extract_strided_slice %46 {offsets = [6, 0], sizes = [1, 256], strides = [1, 1]} : vector<16x256xf32> to vector<1x256xf32>
    %80 = vector.broadcast %79 : vector<1x256xf32> to vector<9x256xf32>
    %81 = arith.mulf %78, %80 : vector<9x256xf32>
    %82 = arith.addf %77, %81 : vector<9x256xf32>
    %c7 = arith.constant 7 : index
    %c0_33 = arith.constant 0 : index
    %83 = vector.load %arg13[%c7, %c0_33] : memref<24x256xf32, #tpu.memory_space<vmem>>, vector<9x256xf32>
    %84 = vector.extract_strided_slice %46 {offsets = [7, 0], sizes = [1, 256], strides = [1, 1]} : vector<16x256xf32> to vector<1x256xf32>
    %85 = vector.broadcast %84 : vector<1x256xf32> to vector<9x256xf32>
    %86 = arith.mulf %83, %85 : vector<9x256xf32>
    %87 = arith.addf %82, %86 : vector<9x256xf32>
    %c8_34 = arith.constant 8 : index
    %c0_35 = arith.constant 0 : index
    %88 = vector.load %arg13[%c8_34, %c0_35] : memref<24x256xf32, #tpu.memory_space<vmem>>, vector<9x256xf32>
    %89 = vector.extract_strided_slice %46 {offsets = [8, 0], sizes = [1, 256], strides = [1, 1]} : vector<16x256xf32> to vector<1x256xf32>
    %90 = vector.broadcast %89 : vector<1x256xf32> to vector<9x256xf32>
    %91 = arith.mulf %88, %90 : vector<9x256xf32>
    %92 = arith.addf %87, %91 : vector<9x256xf32>
    %c9 = arith.constant 9 : index
    %c0_36 = arith.constant 0 : index
    %93 = vector.load %arg13[%c9, %c0_36] : memref<24x256xf32, #tpu.memory_space<vmem>>, vector<9x256xf32>
    %94 = vector.extract_strided_slice %46 {offsets = [9, 0], sizes = [1, 256], strides = [1, 1]} : vector<16x256xf32> to vector<1x256xf32>
    %95 = vector.broadcast %94 : vector<1x256xf32> to vector<9x256xf32>
    %96 = arith.mulf %93, %95 : vector<9x256xf32>
    %97 = arith.addf %92, %96 : vector<9x256xf32>
    %c10 = arith.constant 10 : index
    %c0_37 = arith.constant 0 : index
    %98 = vector.load %arg13[%c10, %c0_37] : memref<24x256xf32, #tpu.memory_space<vmem>>, vector<9x256xf32>
    %99 = vector.extract_strided_slice %46 {offsets = [10, 0], sizes = [1, 256], strides = [1, 1]} : vector<16x256xf32> to vector<1x256xf32>
    %100 = vector.broadcast %99 : vector<1x256xf32> to vector<9x256xf32>
    %101 = arith.mulf %98, %100 : vector<9x256xf32>
    %102 = arith.addf %97, %101 : vector<9x256xf32>
    %c11 = arith.constant 11 : index
    %c0_38 = arith.constant 0 : index
    %103 = vector.load %arg13[%c11, %c0_38] : memref<24x256xf32, #tpu.memory_space<vmem>>, vector<9x256xf32>
    %104 = vector.extract_strided_slice %46 {offsets = [11, 0], sizes = [1, 256], strides = [1, 1]} : vector<16x256xf32> to vector<1x256xf32>
    %105 = vector.broadcast %104 : vector<1x256xf32> to vector<9x256xf32>
    %106 = arith.mulf %103, %105 : vector<9x256xf32>
    %107 = arith.addf %102, %106 : vector<9x256xf32>
    %c12 = arith.constant 12 : index
    %c0_39 = arith.constant 0 : index
    %108 = vector.load %arg13[%c12, %c0_39] : memref<24x256xf32, #tpu.memory_space<vmem>>, vector<9x256xf32>
    %109 = vector.extract_strided_slice %46 {offsets = [12, 0], sizes = [1, 256], strides = [1, 1]} : vector<16x256xf32> to vector<1x256xf32>
    %110 = vector.broadcast %109 : vector<1x256xf32> to vector<9x256xf32>
    %111 = arith.mulf %108, %110 : vector<9x256xf32>
    %112 = arith.addf %107, %111 : vector<9x256xf32>
    %c13 = arith.constant 13 : index
    %c0_40 = arith.constant 0 : index
    %113 = vector.load %arg13[%c13, %c0_40] : memref<24x256xf32, #tpu.memory_space<vmem>>, vector<9x256xf32>
    %114 = vector.extract_strided_slice %46 {offsets = [13, 0], sizes = [1, 256], strides = [1, 1]} : vector<16x256xf32> to vector<1x256xf32>
    %115 = vector.broadcast %114 : vector<1x256xf32> to vector<9x256xf32>
    %116 = arith.mulf %113, %115 : vector<9x256xf32>
    %117 = arith.addf %112, %116 : vector<9x256xf32>
    %c14 = arith.constant 14 : index
    %c0_41 = arith.constant 0 : index
    %118 = vector.load %arg13[%c14, %c0_41] : memref<24x256xf32, #tpu.memory_space<vmem>>, vector<9x256xf32>
    %119 = vector.extract_strided_slice %46 {offsets = [14, 0], sizes = [1, 256], strides = [1, 1]} : vector<16x256xf32> to vector<1x256xf32>
    %120 = vector.broadcast %119 : vector<1x256xf32> to vector<9x256xf32>
    %121 = arith.mulf %118, %120 : vector<9x256xf32>
    %122 = arith.addf %117, %121 : vector<9x256xf32>
    %c15 = arith.constant 15 : index
    %c0_42 = arith.constant 0 : index
    %123 = vector.load %arg13[%c15, %c0_42] : memref<24x256xf32, #tpu.memory_space<vmem>>, vector<9x256xf32>
    %124 = vector.extract_strided_slice %46 {offsets = [15, 0], sizes = [1, 256], strides = [1, 1]} : vector<16x256xf32> to vector<1x256xf32>
    %125 = vector.broadcast %124 : vector<1x256xf32> to vector<9x256xf32>
    %126 = arith.mulf %123, %125 : vector<9x256xf32>
    %127 = arith.addf %122, %126 : vector<9x256xf32>
    %c0_43 = arith.constant 0 : index
    %c0_44 = arith.constant 0 : index
    %128 = vector.load %arg7[%c0_43, %c0_44] : memref<1x256xf32, #tpu.memory_space<vmem>>, vector<1x256xf32>
    %129 = vector.broadcast %128 : vector<1x256xf32> to vector<9x256xf32>
    %130 = arith.addf %127, %129 : vector<9x256xf32>
    %c0_45 = arith.constant 0 : index
    %c0_46 = arith.constant 0 : index
    %131 = vector.load %arg8[%c0_45, %c0_46] : memref<1x256xf32, #tpu.memory_space<vmem>>, vector<1x256xf32>
    %132 = vector.broadcast %131 : vector<1x256xf32> to vector<9x256xf32>
    %133 = arith.mulf %130, %132 : vector<9x256xf32>
    %c0_47 = arith.constant 0 : index
    %c0_48 = arith.constant 0 : index
    %134 = vector.load %arg9[%c0_47, %c0_48] : memref<1x256xf32, #tpu.memory_space<vmem>>, vector<1x256xf32>
    %135 = vector.broadcast %134 : vector<1x256xf32> to vector<9x256xf32>
    %136 = arith.addf %133, %135 : vector<9x256xf32>
    %137 = arith.negf %136 : vector<9x256xf32>
    %138 = math.exp %137 : vector<9x256xf32>
    %cst_49 = arith.constant 1.000000e+00 : f32
    %139 = vector.broadcast %cst_49 : f32 to vector<9x256xf32>
    %140 = arith.addf %139, %138 : vector<9x256xf32>
    %141 = arith.divf %139, %140 : vector<9x256xf32>
    %142 = arith.mulf %136, %141 : vector<9x256xf32>
    %143 = arith.truncf %142 : vector<9x256xf32> to vector<9x256xbf16>
    %c0_50 = arith.constant 0 : index
    %c0_51 = arith.constant 0 : index
    %144 = vector.load %arg10[%c0_50, %c0_51] : memref<256x128xbf16, #tpu.memory_space<vmem>>, vector<256x128xbf16>
    %cst_52 = arith.constant dense<0.000000e+00> : vector<9x128xf32>
    %145 = tpu.matmul %143, %144, %cst_52 {dimension_numbers = #tpu.dot_dimension_numbers<[1], [0], [0], [1], [0, 0, 1, 1], [], []>} : vector<9x256xbf16>, vector<256x128xbf16>, vector<9x128xf32> -> vector<9x128xf32>
    %c0_53 = arith.constant 0 : index
    %c0_54 = arith.constant 0 : index
    %146 = vector.load %arg11[%c0_53, %c0_54] : memref<1x128xf32, #tpu.memory_space<vmem>>, vector<1x128xf32>
    %147 = vector.broadcast %146 : vector<1x128xf32> to vector<9x128xf32>
    %148 = arith.addf %145, %147 : vector<9x128xf32>
    %149 = arith.addf %2, %148 : vector<9x128xf32>
    %150 = arith.truncf %149 : vector<9x128xf32> to vector<9x128xbf16>
    %c0_55 = arith.constant 0 : index
    %c0_56 = arith.constant 0 : index
    %c0_57 = arith.constant 0 : index
    %151 = vector.load %arg12[%c0_55, %c0_56, %c0_57] : memref<1x9x128xbf16, #tpu.memory_space<vmem>>, vector<1x9x128xbf16>
    %152 = vector.shape_cast %151 : vector<1x9x128xbf16> to vector<9x128xbf16>
    %153 = vector.shape_cast %150 : vector<9x128xbf16> to vector<1x9x128xbf16>
    tpu.vector_store %arg12[%c0_55, %c0_56, %c0_57], %153 {strides = array<i32>} : memref<1x9x128xbf16, #tpu.memory_space<vmem>>, vector<1x9x128xbf16>,
    return
  }
  func.func @transform_0(%arg0: i32) -> (i32, i32, i32) {
    %c0_i32 = arith.constant 0 : i32
    %c0_i32_0 = arith.constant 0 : i32
    %c0_i32_1 = arith.constant 0 : i32
    return %arg0, %c0_i32, %c0_i32_0 : i32, i32, i32
  }
  func.func @transform_1(%arg0: i32) -> (i32, i32) {
    %c0_i32 = arith.constant 0 : i32
    %c0_i32_0 = arith.constant 0 : i32
    %c0_i32_1 = arith.constant 0 : i32
    return %c0_i32, %c0_i32_0 : i32, i32
  }
  func.func @transform_2(%arg0: i32) -> (i32, i32) {
    %c0_i32 = arith.constant 0 : i32
    %c0_i32_0 = arith.constant 0 : i32
    %c0_i32_1 = arith.constant 0 : i32
    return %c0_i32, %c0_i32_0 : i32, i32
  }
  func.func @transform_3(%arg0: i32) -> (i32, i32) {
    %c0_i32 = arith.constant 0 : i32
    %c0_i32_0 = arith.constant 0 : i32
    %c0_i32_1 = arith.constant 0 : i32
    return %c0_i32, %c0_i32_0 : i32, i32
  }
  func.func @transform_4(%arg0: i32) -> (i32, i32) {
    %c0_i32 = arith.constant 0 : i32
    %c0_i32_0 = arith.constant 0 : i32
    %c0_i32_1 = arith.constant 0 : i32
    return %c0_i32, %c0_i32_0 : i32, i32
  }
  func.func @transform_5(%arg0: i32) -> (i32, i32) {
    %c0_i32 = arith.constant 0 : i32
    %c0_i32_0 = arith.constant 0 : i32
    %c0_i32_1 = arith.constant 0 : i32
    return %c0_i32, %c0_i32_0 : i32, i32
  }
  func.func @transform_6(%arg0: i32) -> (i32, i32) {
    %c0_i32 = arith.constant 0 : i32
    %c0_i32_0 = arith.constant 0 : i32
    %c0_i32_1 = arith.constant 0 : i32
    return %c0_i32, %c0_i32_0 : i32, i32
  }
  func.func @transform_7(%arg0: i32) -> (i32, i32) {
    %c0_i32 = arith.constant 0 : i32
    %c0_i32_0 = arith.constant 0 : i32
    %c0_i32_1 = arith.constant 0 : i32
    return %c0_i32, %c0_i32_0 : i32, i32
  }
  func.func @transform_8(%arg0: i32) -> (i32, i32) {
    %c0_i32 = arith.constant 0 : i32
    %c0_i32_0 = arith.constant 0 : i32
    %c0_i32_1 = arith.constant 0 : i32
    return %c0_i32, %c0_i32_0 : i32, i32
  }
  func.func @transform_9(%arg0: i32) -> (i32, i32) {
    %c0_i32 = arith.constant 0 : i32
    %c0_i32_0 = arith.constant 0 : i32
    %c0_i32_1 = arith.constant 0 : i32
    return %c0_i32, %c0_i32_0 : i32, i32
  }
  func.func @transform_10(%arg0: i32) -> (i32, i32) {
    %c0_i32 = arith.constant 0 : i32
    %c0_i32_0 = arith.constant 0 : i32
    %c0_i32_1 = arith.constant 0 : i32
    return %c0_i32, %c0_i32_0 : i32, i32
  }
  func.func @transform_11(%arg0: i32) -> (i32, i32, i32) {
    %c0_i32 = arith.constant 0 : i32
    %c0_i32_0 = arith.constant 0 : i32
    %c0_i32_1 = arith.constant 0 : i32
    return %arg0, %c0_i32, %c0_i32_0 : i32, i32, i32
  }
}

module attributes {stable_mosaic.version = 11 : i64} {
  func.func @_ff_block_kernel(%arg0: i32, %arg1: memref<16x128xbf16, #tpu.memory_space<vmem>>, %arg2: memref<1x128xf32, #tpu.memory_space<vmem>>, %arg3: memref<1x128xf32, #tpu.memory_space<vmem>>, %arg4: memref<128x512xbf16, #tpu.memory_space<vmem>>, %arg5: memref<1x512xf32, #tpu.memory_space<vmem>>, %arg6: memref<512x128xbf16, #tpu.memory_space<vmem>>, %arg7: memref<1x128xf32, #tpu.memory_space<vmem>>, %arg8: memref<1x128xf32, #tpu.memory_space<vmem>>, %arg9: memref<1x128xf32, #tpu.memory_space<vmem>>, %arg10: memref<16x128xbf16, #tpu.memory_space<vmem>>) attributes {dimension_semantics = [#tpu.dimension_semantics<parallel>], iteration_bounds = array<i64: 2>, scalar_prefetch = 0 : i64, scratch_operands = 0 : i64, tpu.core_type = #tpu.core_type<tc>, window_params = [{transform_indices = @transform_0, window_bounds = array<i64: 16, 128>}, {pipeline_mode = #tpu.pipeline_mode<synchronous>, transform_indices = @transform_1, window_bounds = array<i64: 1, 128>}, {pipeline_mode = #tpu.pipeline_mode<synchronous>, transform_indices = @transform_2, window_bounds = array<i64: 1, 128>}, {pipeline_mode = #tpu.pipeline_mode<synchronous>, transform_indices = @transform_3, window_bounds = array<i64: 128, 512>}, {pipeline_mode = #tpu.pipeline_mode<synchronous>, transform_indices = @transform_4, window_bounds = array<i64: 1, 512>}, {pipeline_mode = #tpu.pipeline_mode<synchronous>, transform_indices = @transform_5, window_bounds = array<i64: 512, 128>}, {pipeline_mode = #tpu.pipeline_mode<synchronous>, transform_indices = @transform_6, window_bounds = array<i64: 1, 128>}, {pipeline_mode = #tpu.pipeline_mode<synchronous>, transform_indices = @transform_7, window_bounds = array<i64: 1, 128>}, {pipeline_mode = #tpu.pipeline_mode<synchronous>, transform_indices = @transform_8, window_bounds = array<i64: 1, 128>}, {transform_indices = @transform_9, window_bounds = array<i64: 16, 128>}]} {
    %c0 = arith.constant 0 : index
    %c0_0 = arith.constant 0 : index
    %0 = vector.load %arg1[%c0, %c0_0] : memref<16x128xbf16, #tpu.memory_space<vmem>>, vector<16x128xbf16>
    %1 = arith.extf %0 : vector<16x128xbf16> to vector<16x128xf32>
    %c0_1 = arith.constant 0 : index
    %c0_2 = arith.constant 0 : index
    %2 = vector.load %arg2[%c0_1, %c0_2] : memref<1x128xf32, #tpu.memory_space<vmem>>, vector<1x128xf32>
    %c0_3 = arith.constant 0 : index
    %c0_4 = arith.constant 0 : index
    %3 = vector.load %arg3[%c0_3, %c0_4] : memref<1x128xf32, #tpu.memory_space<vmem>>, vector<1x128xf32>
    %cst = arith.constant dense<0.000000e+00> : vector<16xf32>
    %4 = vector.multi_reduction <add>, %1, %cst [1] : vector<16x128xf32> to vector<16xf32>
    %5 = vector.shape_cast %4 : vector<16xf32> to vector<16x1xf32>
    %cst_5 = arith.constant 1.280000e+02 : f32
    %6 = vector.broadcast %cst_5 : f32 to vector<16x1xf32>
    %7 = arith.divf %5, %6 : vector<16x1xf32>
    %8 = vector.broadcast %7 : vector<16x1xf32> to vector<16x128xf32>
    %9 = arith.subf %1, %8 : vector<16x128xf32>
    %10 = arith.mulf %9, %9 : vector<16x128xf32>
    %cst_6 = arith.constant dense<0.000000e+00> : vector<16xf32>
    %11 = vector.multi_reduction <add>, %10, %cst_6 [1] : vector<16x128xf32> to vector<16xf32>
    %12 = vector.shape_cast %11 : vector<16xf32> to vector<16x1xf32>
    %cst_7 = arith.constant 1.280000e+02 : f32
    %13 = vector.broadcast %cst_7 : f32 to vector<16x1xf32>
    %14 = arith.divf %12, %13 : vector<16x1xf32>
    %15 = vector.broadcast %7 : vector<16x1xf32> to vector<16x128xf32>
    %16 = arith.subf %1, %15 : vector<16x128xf32>
    %cst_8 = arith.constant 9.99999974E-6 : f32
    %17 = vector.broadcast %cst_8 : f32 to vector<16x1xf32>
    %18 = arith.addf %14, %17 : vector<16x1xf32>
    %19 = math.rsqrt %18 : vector<16x1xf32>
    %20 = vector.broadcast %19 : vector<16x1xf32> to vector<16x128xf32>
    %21 = arith.mulf %16, %20 : vector<16x128xf32>
    %22 = vector.broadcast %2 : vector<1x128xf32> to vector<16x128xf32>
    %23 = arith.mulf %21, %22 : vector<16x128xf32>
    %24 = vector.broadcast %3 : vector<1x128xf32> to vector<16x128xf32>
    %25 = arith.addf %23, %24 : vector<16x128xf32>
    %26 = arith.truncf %25 : vector<16x128xf32> to vector<16x128xbf16>
    %c0_9 = arith.constant 0 : index
    %c0_10 = arith.constant 0 : index
    %27 = vector.load %arg4[%c0_9, %c0_10] : memref<128x512xbf16, #tpu.memory_space<vmem>>, vector<128x512xbf16>
    %cst_11 = arith.constant dense<0.000000e+00> : vector<16x512xf32>
    %28 = tpu.matmul %26, %27, %cst_11 {dimension_numbers = #tpu.dot_dimension_numbers<[1], [0], [0], [1], [0, 0, 1, 1], [], []>} : vector<16x128xbf16>, vector<128x512xbf16>, vector<16x512xf32> -> vector<16x512xf32>
    %c0_12 = arith.constant 0 : index
    %c0_13 = arith.constant 0 : index
    %29 = vector.load %arg5[%c0_12, %c0_13] : memref<1x512xf32, #tpu.memory_space<vmem>>, vector<1x512xf32>
    %30 = vector.broadcast %29 : vector<1x512xf32> to vector<16x512xf32>
    %31 = arith.addf %28, %30 : vector<16x512xf32>
    %32 = arith.negf %31 : vector<16x512xf32>
    %33 = math.exp %32 : vector<16x512xf32>
    %cst_14 = arith.constant 1.000000e+00 : f32
    %34 = vector.broadcast %cst_14 : f32 to vector<16x512xf32>
    %35 = arith.addf %34, %33 : vector<16x512xf32>
    %36 = arith.divf %34, %35 : vector<16x512xf32>
    %37 = arith.mulf %31, %36 : vector<16x512xf32>
    %38 = arith.truncf %37 : vector<16x512xf32> to vector<16x512xbf16>
    %c0_15 = arith.constant 0 : index
    %c0_16 = arith.constant 0 : index
    %39 = vector.load %arg6[%c0_15, %c0_16] : memref<512x128xbf16, #tpu.memory_space<vmem>>, vector<512x128xbf16>
    %cst_17 = arith.constant dense<0.000000e+00> : vector<16x128xf32>
    %40 = tpu.matmul %38, %39, %cst_17 {dimension_numbers = #tpu.dot_dimension_numbers<[1], [0], [0], [1], [0, 0, 1, 1], [], []>} : vector<16x512xbf16>, vector<512x128xbf16>, vector<16x128xf32> -> vector<16x128xf32>
    %c0_18 = arith.constant 0 : index
    %c0_19 = arith.constant 0 : index
    %41 = vector.load %arg7[%c0_18, %c0_19] : memref<1x128xf32, #tpu.memory_space<vmem>>, vector<1x128xf32>
    %42 = vector.broadcast %41 : vector<1x128xf32> to vector<16x128xf32>
    %43 = arith.addf %40, %42 : vector<16x128xf32>
    %cst_20 = arith.constant 5.000000e-01 : f32
    %44 = vector.broadcast %cst_20 : f32 to vector<16x128xf32>
    %45 = arith.mulf %44, %43 : vector<16x128xf32>
    %46 = arith.addf %1, %45 : vector<16x128xf32>
    %c0_21 = arith.constant 0 : index
    %c0_22 = arith.constant 0 : index
    %47 = vector.load %arg8[%c0_21, %c0_22] : memref<1x128xf32, #tpu.memory_space<vmem>>, vector<1x128xf32>
    %c0_23 = arith.constant 0 : index
    %c0_24 = arith.constant 0 : index
    %48 = vector.load %arg9[%c0_23, %c0_24] : memref<1x128xf32, #tpu.memory_space<vmem>>, vector<1x128xf32>
    %cst_25 = arith.constant dense<0.000000e+00> : vector<16xf32>
    %49 = vector.multi_reduction <add>, %46, %cst_25 [1] : vector<16x128xf32> to vector<16xf32>
    %50 = vector.shape_cast %49 : vector<16xf32> to vector<16x1xf32>
    %cst_26 = arith.constant 1.280000e+02 : f32
    %51 = vector.broadcast %cst_26 : f32 to vector<16x1xf32>
    %52 = arith.divf %50, %51 : vector<16x1xf32>
    %53 = vector.broadcast %52 : vector<16x1xf32> to vector<16x128xf32>
    %54 = arith.subf %46, %53 : vector<16x128xf32>
    %55 = arith.mulf %54, %54 : vector<16x128xf32>
    %cst_27 = arith.constant dense<0.000000e+00> : vector<16xf32>
    %56 = vector.multi_reduction <add>, %55, %cst_27 [1] : vector<16x128xf32> to vector<16xf32>
    %57 = vector.shape_cast %56 : vector<16xf32> to vector<16x1xf32>
    %cst_28 = arith.constant 1.280000e+02 : f32
    %58 = vector.broadcast %cst_28 : f32 to vector<16x1xf32>
    %59 = arith.divf %57, %58 : vector<16x1xf32>
    %60 = vector.broadcast %52 : vector<16x1xf32> to vector<16x128xf32>
    %61 = arith.subf %46, %60 : vector<16x128xf32>
    %cst_29 = arith.constant 9.99999974E-6 : f32
    %62 = vector.broadcast %cst_29 : f32 to vector<16x1xf32>
    %63 = arith.addf %59, %62 : vector<16x1xf32>
    %64 = math.rsqrt %63 : vector<16x1xf32>
    %65 = vector.broadcast %64 : vector<16x1xf32> to vector<16x128xf32>
    %66 = arith.mulf %61, %65 : vector<16x128xf32>
    %67 = vector.broadcast %47 : vector<1x128xf32> to vector<16x128xf32>
    %68 = arith.mulf %66, %67 : vector<16x128xf32>
    %69 = vector.broadcast %48 : vector<1x128xf32> to vector<16x128xf32>
    %70 = arith.addf %68, %69 : vector<16x128xf32>
    %71 = arith.truncf %70 : vector<16x128xf32> to vector<16x128xbf16>
    %c0_30 = arith.constant 0 : index
    %c0_31 = arith.constant 0 : index
    %72 = vector.load %arg10[%c0_30, %c0_31] : memref<16x128xbf16, #tpu.memory_space<vmem>>, vector<16x128xbf16>
    tpu.vector_store %arg10[%c0_30, %c0_31], %71 {strides = array<i32>} : memref<16x128xbf16, #tpu.memory_space<vmem>>, vector<16x128xbf16>,
    return
  }
  func.func @transform_0(%arg0: i32) -> (i32, i32) {
    %c0_i32 = arith.constant 0 : i32
    %c0_i32_0 = arith.constant 0 : i32
    return %arg0, %c0_i32 : i32, i32
  }
  func.func @transform_1(%arg0: i32) -> (i32, i32) {
    %c0_i32 = arith.constant 0 : i32
    %c0_i32_0 = arith.constant 0 : i32
    %c0_i32_1 = arith.constant 0 : i32
    return %c0_i32, %c0_i32_0 : i32, i32
  }
  func.func @transform_2(%arg0: i32) -> (i32, i32) {
    %c0_i32 = arith.constant 0 : i32
    %c0_i32_0 = arith.constant 0 : i32
    %c0_i32_1 = arith.constant 0 : i32
    return %c0_i32, %c0_i32_0 : i32, i32
  }
  func.func @transform_3(%arg0: i32) -> (i32, i32) {
    %c0_i32 = arith.constant 0 : i32
    %c0_i32_0 = arith.constant 0 : i32
    %c0_i32_1 = arith.constant 0 : i32
    return %c0_i32, %c0_i32_0 : i32, i32
  }
  func.func @transform_4(%arg0: i32) -> (i32, i32) {
    %c0_i32 = arith.constant 0 : i32
    %c0_i32_0 = arith.constant 0 : i32
    %c0_i32_1 = arith.constant 0 : i32
    return %c0_i32, %c0_i32_0 : i32, i32
  }
  func.func @transform_5(%arg0: i32) -> (i32, i32) {
    %c0_i32 = arith.constant 0 : i32
    %c0_i32_0 = arith.constant 0 : i32
    %c0_i32_1 = arith.constant 0 : i32
    return %c0_i32, %c0_i32_0 : i32, i32
  }
  func.func @transform_6(%arg0: i32) -> (i32, i32) {
    %c0_i32 = arith.constant 0 : i32
    %c0_i32_0 = arith.constant 0 : i32
    %c0_i32_1 = arith.constant 0 : i32
    return %c0_i32, %c0_i32_0 : i32, i32
  }
  func.func @transform_7(%arg0: i32) -> (i32, i32) {
    %c0_i32 = arith.constant 0 : i32
    %c0_i32_0 = arith.constant 0 : i32
    %c0_i32_1 = arith.constant 0 : i32
    return %c0_i32, %c0_i32_0 : i32, i32
  }
  func.func @transform_8(%arg0: i32) -> (i32, i32) {
    %c0_i32 = arith.constant 0 : i32
    %c0_i32_0 = arith.constant 0 : i32
    %c0_i32_1 = arith.constant 0 : i32
    return %c0_i32, %c0_i32_0 : i32, i32
  }
  func.func @transform_9(%arg0: i32) -> (i32, i32) {
    %c0_i32 = arith.constant 0 : i32
    %c0_i32_0 = arith.constant 0 : i32
    return %arg0, %c0_i32 : i32, i32
  }
}

module attributes {stable_mosaic.version = 11 : i64} {
  func.func @_linear_kernel(%arg0: memref<2x128xbf16, #tpu.memory_space<vmem>>, %arg1: memref<128x2xf32, #tpu.memory_space<vmem>>, %arg2: memref<1x2xf32, #tpu.memory_space<vmem>>, %arg3: memref<2x2xf32, #tpu.memory_space<vmem>>) attributes {dimension_semantics = [], scalar_prefetch = 0 : i64, scratch_operands = 0 : i64, tpu.core_type = #tpu.core_type<tc>} {
    %c0 = arith.constant 0 : index
    %c0_0 = arith.constant 0 : index
    %0 = vector.load %arg0[%c0, %c0_0] : memref<2x128xbf16, #tpu.memory_space<vmem>>, vector<2x128xbf16>
    %1 = arith.extf %0 : vector<2x128xbf16> to vector<2x128xf32>
    %c0_1 = arith.constant 0 : index
    %c0_2 = arith.constant 0 : index
    %2 = vector.load %arg1[%c0_1, %c0_2] : memref<128x2xf32, #tpu.memory_space<vmem>>, vector<128x2xf32>
    %cst = arith.constant dense<0.000000e+00> : vector<2x2xf32>
    %3 = tpu.matmul %1, %2, %cst {dimension_numbers = #tpu.dot_dimension_numbers<[1], [0], [0], [1], [0, 0, 1, 1], [], []>} : vector<2x128xf32>, vector<128x2xf32>, vector<2x2xf32> -> vector<2x2xf32>
    %c0_3 = arith.constant 0 : index
    %c0_4 = arith.constant 0 : index
    %4 = vector.load %arg2[%c0_3, %c0_4] : memref<1x2xf32, #tpu.memory_space<vmem>>, vector<1x2xf32>
    %5 = vector.broadcast %4 : vector<1x2xf32> to vector<2x2xf32>
    %6 = arith.addf %3, %5 : vector<2x2xf32>
    %c0_5 = arith.constant 0 : index
    %c0_6 = arith.constant 0 : index
    %7 = vector.load %arg3[%c0_5, %c0_6] : memref<2x2xf32, #tpu.memory_space<vmem>>, vector<2x2xf32>
    tpu.vector_store %arg3[%c0_5, %c0_6], %6 {strides = array<i32>} : memref<2x2xf32, #tpu.memory_space<vmem>>, vector<2x2xf32>,
    return
  }
}

</mosaic_0001>

<llo_original>
// kernel: my_conformer_forward.7
$region0: #{my_conformer_forward.7}
  #allocation0 [shape = 'u32[]', space=smem, size = 0x4, offset = 0x4, fixed_abs, tag = 'smem constant byte address 0x4 - core index']
  #allocation1 [shape = 'u32[144,128]{1,0:T(1,128)}', space=vmem, size = 0x12000, scoped, tag = 'internal scratch']
  %s0 = inlined_call_operand.vmem [shape: bf16[2,9,128], index: 0, kind: input, shape index: {}]
  %s1 = inlined_call_operand.hbm [shape: f32[1,128], index: 1, kind: input, shape index: {}]
  %s2 = inlined_call_operand.hbm [shape: f32[1,128], index: 2, kind: input, shape index: {}]
  %s3 = inlined_call_operand.hbm [shape: bf16[128,384], index: 3, kind: input, shape index: {}]
  %s4 = inlined_call_operand.vmem [shape: bf16[2,4,9,32], index: 4, kind: output, shape index: {0}]
  %s5 = inlined_call_operand.vmem [shape: bf16[2,4,9,32], index: 5, kind: output, shape index: {1}]
  %s6 = inlined_call_operand.vmem [shape: bf16[2,4,9,32], index: 6, kind: output, shape index: {2}]
  %7 = xla_tuple %s4, %s5, %s6
  %s8 = sld [smem:[#allocation0]]
  $region77: #{my_conformer_forward.7} parent=0
    _
  %s10 = ssub.s32 1, %s8
  %s11 = scalar_select 0, %s10, %s8
  $region1: #{my_conformer_forward.7} parent=0
    #allocation2 [shape = 'u8[512]{0}', space=vmem, size = 0x400, scoped, tag = 'input window, operand 1, single buffered']
    #allocation3 [shape = 's32[2]{0}', space=sflag, size = 0x8, scoped, tag = 'scoped memory for my_conformer_forward.7']
    #allocation4 [shape = 'u8[512]{0}', space=vmem, size = 0x400, scoped, tag = 'input window, operand 2, single buffered']
    #allocation5 [shape = 's32[1]{0}', space=sflag, size = 0x4, scoped, tag = 'scoped memory for my_conformer_forward.7']
    #allocation6 [shape = 'u8[98304]{0}', space=vmem, size = 0x18000, scoped, tag = 'input window, operand 3, single buffered']
    %12 = vsyncpa [#allocation3], 0
    %13 = vsyncpa [#allocation5], 0
    loop: start=0, step=1, limit=4
    $region2: #{my_conformer_forward.7} parent=1 // loop_pre_header
      _
    $region3: #{my_conformer_forward.7} parent=1 // loop_header
      %s15 = sphi 0, %s19
      %p16 = scmp.ge.s32.totalorder %s15, 4
      %s25 = sphi 0, %s27
      %s28 = sphi 0, %s25
      %s29 = sphi 0, %s28
      %s45 = sphi 0, %s29
      %s49 = sphi 0, %s49
      %s51 = sphi 0, %s49
      %s52 = sphi 0, %s51
      %s66 = sphi 0, %s52
      %s70 = sphi 0, %s70
      %s72 = sphi 0, %s70
      %s73 = sphi 0, %s72
      %s87 = sphi 0, %s73
      %s91 = sphi 0, %s91
      %s93 = sphi 0, %s91
      %s94 = sphi 0, %s93
      %s108 = sphi 0, %s94
      %s114 = sphi 0, %s116
      %s117 = sphi 0, %s114
      %s118 = sphi 0, %s117
      %s134 = sphi 0, %s118
      %s140 = sphi 0, %s142
      %s143 = sphi 0, %s140
      %s144 = sphi 0, %s143
      %s160 = sphi 0, %s144
      %s166 = sphi 0, %s168
      %s169 = sphi 0, %s166
      %s170 = sphi 0, %s169
      %s186 = sphi 0, %s170
    $region4: #{my_conformer_forward.7} parent=1 // loop_header_branch
      %18 = sbr.rel (%p16) target = $region8
    $region5: #{my_conformer_forward.7} parent=1 // loop_body
      %s20 = ssub.s32 %s15, 1
      %s21 = ssub.s32 %s15, 2
      %s22 = sadd.s32 %s15, 1
      %s23 = ssub.s32 %s15, %s22
      %p24 = scmp.eq.s32.totalorder %s23, 0
      %s26 = sadd.s32 %s25, 1
      %s27 = scalar_select %p24, %s25, %s26
      %p30 = pneg %p24
      %p31 = scmp.eq.s32.totalorder %s15, 1
      %p32 = por %p30, %p31
      %p33 = scmp.ne.s32.totalorder %s25, %s28
      %p34 = scmp.eq.s32.totalorder %s15, 0
      %p35 = por %p33, %p34
      %p36 = scmp.ne.s32.totalorder %s25, %s28
      %p37 = scmp.eq.s32.totalorder %s20, 1
      %p38 = por %p36, %p37
      %p39 = scmp.ne.s32.totalorder %s28, %s29
      %p40 = scmp.eq.s32.totalorder %s20, 0
      %p41 = por %p39, %p40
      %p42 = scmp.ne.s32.totalorder %s28, %s29
      %p43 = scmp.eq.s32.totalorder %s21, 1
      %p44 = por %p42, %p43
      %p46 = scmp.ne.s32.totalorder %s29, %s45
      %p47 = scmp.eq.s32.totalorder %s21, 0
      %p48 = por %p46, %p47
      %s50 = sadd.s32 %s49, 1
      %p53 = scmp.eq.s32.totalorder %s15, 1
      %p54 = scmp.ne.s32.totalorder %s49, %s51
      %p55 = scmp.eq.s32.totalorder %s15, 0
      %p56 = por %p54, %p55
      %p57 = scmp.ne.s32.totalorder %s49, %s51
      %p58 = scmp.eq.s32.totalorder %s20, 1
      %p59 = por %p57, %p58
      %p60 = scmp.ne.s32.totalorder %s51, %s52
      %p61 = scmp.eq.s32.totalorder %s20, 0
      %p62 = por %p60, %p61
      %p63 = scmp.ne.s32.totalorder %s51, %s52
      %p64 = scmp.eq.s32.totalorder %s21, 1
      %p65 = por %p63, %p64
      %p67 = scmp.ne.s32.totalorder %s52, %s66
      %p68 = scmp.eq.s32.totalorder %s21, 0
      %p69 = por %p67, %p68
      %s71 = sadd.s32 %s70, 1
      %p74 = scmp.eq.s32.totalorder %s15, 1
      %p75 = scmp.ne.s32.totalorder %s70, %s72
      %p76 = scmp.eq.s32.totalorder %s15, 0
      %p77 = por %p75, %p76
      %p78 = scmp.ne.s32.totalorder %s70, %s72
      %p79 = scmp.eq.s32.totalorder %s20, 1
      %p80 = por %p78, %p79
      %p81 = scmp.ne.s32.totalorder %s72, %s73
      %p82 = scmp.eq.s32.totalorder %s20, 0
      %p83 = por %p81, %p82
      %p84 = scmp.ne.s32.totalorder %s72, %s73
      %p85 = scmp.eq.s32.totalorder %s21, 1
      %p86 = por %p84, %p85
      %p88 = scmp.ne.s32.totalorder %s73, %s87
      %p89 = scmp.eq.s32.totalorder %s21, 0
      %p90 = por %p88, %p89
      %s92 = sadd.s32 %s91, 1
      %p95 = scmp.eq.s32.totalorder %s15, 1
      %p96 = scmp.ne.s32.totalorder %s91, %s93
      %p97 = scmp.eq.s32.totalorder %s15, 0
      %p98 = por %p96, %p97
      %p99 = scmp.ne.s32.totalorder %s91, %s93
      %p100 = scmp.eq.s32.totalorder %s20, 1
      %p101 = por %p99, %p100
      %p102 = scmp.ne.s32.totalorder %s93, %s94
      %p103 = scmp.eq.s32.totalorder %s20, 0
      %p104 = por %p102, %p103
      %p105 = scmp.ne.s32.totalorder %s93, %s94
      %p106 = scmp.eq.s32.totalorder %s21, 1
      %p107 = por %p105, %p106
      %p109 = scmp.ne.s32.totalorder %s94, %s108
      %p110 = scmp.eq.s32.totalorder %s21, 0
      %p111 = por %p109, %p110
      %s112 = ssub.s32 %s15, %s22
      %p113 = scmp.eq.s32.totalorder %s112, 0
      %s115 = sadd.s32 %s114, 1
      %s116 = scalar_select %p113, %s114, %s115
      %p119 = pneg %p113
      %p120 = scmp.eq.s32.totalorder %s15, 1
      %p121 = por %p119, %p120
      %p122 = scmp.ne.s32.totalorder %s114, %s117
      %p123 = scmp.eq.s32.totalorder %s15, 0
      %p124 = por %p122, %p123
      %p125 = scmp.ne.s32.totalorder %s114, %s117
      %p126 = scmp.eq.s32.totalorder %s20, 1
      %p127 = por %p125, %p126
      %p128 = scmp.ne.s32.totalorder %s117, %s118
      %p129 = scmp.eq.s32.totalorder %s20, 0
      %p130 = por %p128, %p129
      %p131 = scmp.ne.s32.totalorder %s117, %s118
      %p132 = scmp.eq.s32.totalorder %s21, 1
      %p133 = por %p131, %p132
      %p135 = scmp.ne.s32.totalorder %s118, %s134
      %p136 = scmp.eq.s32.totalorder %s21, 0
      %p137 = por %p135, %p136
      %s138 = ssub.s32 %s15, %s22
      %p139 = scmp.eq.s32.totalorder %s138, 0
      %s141 = sadd.s32 %s140, 1
      %s142 = scalar_select %p139, %s140, %s141
      %p145 = pneg %p139
      %p146 = scmp.eq.s32.totalorder %s15, 1
      %p147 = por %p145, %p146
      %p148 = scmp.ne.s32.totalorder %s140, %s143
      %p149 = scmp.eq.s32.totalorder %s15, 0
      %p150 = por %p148, %p149
      %p151 = scmp.ne.s32.totalorder %s140, %s143
      %p152 = scmp.eq.s32.totalorder %s20, 1
      %p153 = por %p151, %p152
      %p154 = scmp.ne.s32.totalorder %s143, %s144
      %p155 = scmp.eq.s32.totalorder %s20, 0
      %p156 = por %p154, %p155
      %p157 = scmp.ne.s32.totalorder %s143, %s144
      %p158 = scmp.eq.s32.totalorder %s21, 1
      %p159 = por %p157, %p158
      %p161 = scmp.ne.s32.totalorder %s144, %s160
      %p162 = scmp.eq.s32.totalorder %s21, 0
      %p163 = por %p161, %p162
      %s164 = ssub.s32 %s15, %s22
      %p165 = scmp.eq.s32.totalorder %s164, 0
      %s167 = sadd.s32 %s166, 1
      %s168 = scalar_select %p165, %s166, %s167
      %p171 = pneg %p165
      %p172 = scmp.eq.s32.totalorder %s15, 1
      %p173 = por %p171, %p172
      %p174 = scmp.ne.s32.totalorder %s166, %s169
      %p175 = scmp.eq.s32.totalorder %s15, 0
      %p176 = por %p174, %p175
      %p177 = scmp.ne.s32.totalorder %s166, %s169
      %p178 = scmp.eq.s32.totalorder %s20, 1
      %p179 = por %p177, %p178
      %p180 = scmp.ne.s32.totalorder %s169, %s170
      %p181 = scmp.eq.s32.totalorder %s20, 0
      %p182 = por %p180, %p181
      %p183 = scmp.ne.s32.totalorder %s169, %s170
      %p184 = scmp.eq.s32.totalorder %s21, 1
      %p185 = por %p183, %p184
      %p187 = scmp.ne.s32.totalorder %s170, %s186
      %p188 = scmp.eq.s32.totalorder %s21, 0
      %p189 = por %p187, %p188
      %p190 = scmp.le.s32.totalorder 1, %s15
      %p191 = scmp.lt.s32.totalorder %s15, 3
      %p192 = pnand %p190, %p191
      %p193 = pneg %p192
      // Predicated region
      $region9: #{my_conformer_forward.7} parent=5 // pred_check
        _
      $region10: #{my_conformer_forward.7} parent=5 // pred_check_branch
        %195 = sbr.rel (%p192) target = $region12
      $region11: #{my_conformer_forward.7} parent=5 // pred_region
        %s196 = ssub.s32 %s15, 1
        // Predicated region
        $region13: #{my_conformer_forward.7} parent=11 // pred_check
          %p197 = pneg %p62
        $region14: #{my_conformer_forward.7} parent=11 // pred_check_branch
          %199 = sbr.rel (%p197) target = $region16
        $region15: #{my_conformer_forward.7} parent=11 // pred_region
          %s201 = ssub.s32 16, 16
          %202 = vsyncadd [#allocation3], %s201
          %s204 = sshll.u32 [#allocation2], 4
          %s205 = int_to_ptr.vmem [resolvable:$true] %s204
          %207 = dma.hbm_to_vmem [thread:$0]  %s1, 16, %s205, [#allocation3]
        $region16: #{my_conformer_forward.7} parent=11 // pred_fallthru
          _
        // Predicated region
        $region17: #{my_conformer_forward.7} parent=11 // pred_check
          %p208 = pneg %p83
        $region18: #{my_conformer_forward.7} parent=11 // pred_check_branch
          %210 = sbr.rel (%p208) target = $region20
        $region19: #{my_conformer_forward.7} parent=11 // pred_region
          %s212 = ssub.s32 16, 16
          %213 = vsyncadd [#allocation5], %s212
          %s215 = sshll.u32 [#allocation4], 4
          %s216 = int_to_ptr.vmem [resolvable:$true] %s215
          %218 = dma.hbm_to_vmem [thread:$0]  %s2, 16, %s216, [#allocation5]
        $region20: #{my_conformer_forward.7} parent=11 // pred_fallthru
          _
        // Predicated region
        $region21: #{my_conformer_forward.7} parent=11 // pred_check
          %p219 = pneg %p104
        $region22: #{my_conformer_forward.7} parent=11 // pred_check_branch
          %221 = sbr.rel (%p219) target = $region24
        $region23: #{my_conformer_forward.7} parent=11 // pred_region
          %s223 = ssub.s32 3072, 3072
          %224 = vsyncadd [#allocation5], %s223
          %s225 = sshll.u32 [#allocation6], 4
          %s226 = int_to_ptr.vmem [resolvable:$true] %s225
          %231 = dma.hbm_to_vmem [thread:$0]  %s3, 3072, %s226, [#allocation5], 192, 192, 12
        $region24: #{my_conformer_forward.7} parent=11 // pred_fallthru
          _
      $region12: #{my_conformer_forward.7} parent=5 // pred_fallthru
        _
      %p232 = scmp.lt.s32.totalorder %s15, 2
      // Predicated region
      $region25: #{my_conformer_forward.7} parent=5 // pred_check
        %p233 = pneg %p232
      $region26: #{my_conformer_forward.7} parent=5 // pred_check_branch
        %235 = sbr.rel (%p233) target = $region28
      $region27: #{my_conformer_forward.7} parent=5 // pred_region
        // Predicated region
        $region29: #{my_conformer_forward.7} parent=27 // pred_check
          %p236 = pneg %p35
        $region30: #{my_conformer_forward.7} parent=27 // pred_check_branch
          %238 = sbr.rel (%p236) target = $region32
        $region31: #{my_conformer_forward.7} parent=27 // pred_region
          %p239 = scmp.lt.s32.totalorder %s15, 1
          %s240 = scalar_select %p239, %s15, 1
          %s241 = smul.addr %s240, 2
          %s242 = smul.addr %s241, 4
          %s243 = scalar_lea.vmem %s0, %s242
        $region32: #{my_conformer_forward.7} parent=27 // pred_fallthru
          _
      $region28: #{my_conformer_forward.7} parent=5 // pred_fallthru
        _
      %p244 = scmp.le.s32.totalorder 1, %s15
      %p245 = scmp.lt.s32.totalorder %s15, 3
      %p246 = pnand %p244, %p245
      %p247 = pneg %p246
      // Predicated region
      $region33: #{my_conformer_forward.7} parent=5 // pred_check
        _
      $region34: #{my_conformer_forward.7} parent=5 // pred_check_branch
        %249 = sbr.rel (%p246) target = $region36
      $region35: #{my_conformer_forward.7} parent=5 // pred_region
        %s250 = ssub.s32 %s15, 1
        // Predicated region
        $region37: #{my_conformer_forward.7} parent=35 // pred_check
          %p251 = pneg %p62
        $region38: #{my_conformer_forward.7} parent=35 // pred_check_branch
          %253 = sbr.rel (%p251) target = $region40
        $region39: #{my_conformer_forward.7} parent=35 // pred_region
          %254 = dma.done [#allocation3], 16
        $region40: #{my_conformer_forward.7} parent=35 // pred_fallthru
          _
        // Predicated region
        $region41: #{my_conformer_forward.7} parent=35 // pred_check
          %p255 = pneg %p83
        $region42: #{my_conformer_forward.7} parent=35 // pred_check_branch
          %257 = sbr.rel (%p255) target = $region44
        $region43: #{my_conformer_forward.7} parent=35 // pred_region
          %258 = dma.done [#allocation5], 16
        $region44: #{my_conformer_forward.7} parent=35 // pred_fallthru
          _
        // Predicated region
        $region45: #{my_conformer_forward.7} parent=35 // pred_check
          %p259 = pneg %p104
        $region46: #{my_conformer_forward.7} parent=35 // pred_check_branch
          %261 = sbr.rel (%p259) target = $region48
        $region47: #{my_conformer_forward.7} parent=35 // pred_region
          %262 = dma.done [#allocation5], 3072
        $region48: #{my_conformer_forward.7} parent=35 // pred_fallthru
          _
        %p263 = scmp.lt.s32.totalorder %s20, 1
        %s264 = scalar_select %p263, %s20, 1
        %s265 = smul.addr %s264, 2
        %s266 = smul.addr %s265, 4
        %s267 = scalar_lea.vmem %s0, %s266
        %p268 = pneg %p41
        %p269 = pneg %p38
        %p270 = pneg %p62
        %p271 = pneg %p59
        %p272 = pneg %p83
        %p273 = pneg %p80
        %p274 = pneg %p104
        %p275 = pneg %p101
        %p276 = pneg %p130
        %p277 = pneg %p127
        %p278 = scmp.lt.s32.totalorder %s20, 1
        %s279 = scalar_select %p278, %s20, 1
        %s280 = smul.addr %s279, 8
        %s281 = smul.addr %s280, 4
        %s282 = scalar_lea.vmem %s4, %s281
        %p283 = pneg %p156
        %p284 = pneg %p153
        %p285 = scmp.lt.s32.totalorder %s20, 1
        %s286 = scalar_select %p285, %s20, 1
        %s287 = smul.addr %s286, 8
        %s288 = smul.addr %s287, 4
        %s289 = scalar_lea.vmem %s5, %s288
        %p290 = pneg %p182
        %p291 = pneg %p179
        %p292 = scmp.lt.s32.totalorder %s20, 1
        %s293 = scalar_select %p292, %s20, 1
        %s294 = smul.addr %s293, 8
        %s295 = smul.addr %s294, 4
        %s296 = scalar_lea.vmem %s6, %s295
        %p297 = scmp.lt.s32.totalorder %s20, 1
        %s298 = scalar_select %p297, %s20, 1
        %s299 = smul.addr %s298, 2
        %s300 = smul.addr %s299, 4
        %s301 = scalar_lea.vmem %s0, %s300
        %p302 = scmp.lt.s32.totalorder %s20, 1
        %s303 = scalar_select %p302, %s20, 1
        %s304 = smul.addr %s303, 8
        %s305 = smul.addr %s304, 4
        %s306 = scalar_lea.vmem %s4, %s305
        %p307 = scmp.lt.s32.totalorder %s20, 1
        %s308 = scalar_select %p307, %s20, 1
        %s309 = smul.addr %s308, 8
        %s310 = smul.addr %s309, 4
        %s311 = scalar_lea.vmem %s5, %s310
        %p312 = scmp.lt.s32.totalorder %s20, 1
        %s313 = scalar_select %p312, %s20, 1
        %s314 = smul.addr %s313, 8
        %s315 = smul.addr %s314, 4
        %s316 = scalar_lea.vmem %s6, %s315
        %v318 = vld [vmem:[%s301] sm:$0xf]
        %v319 = vld [vmem:[%s301 + $0x4] sm:$0x1]
        %v320 = vunpack.c.l.bf16 %v318
        %v321 = vunpack.c.l.bf16 %v319
        %v322 = vld [vmem:[#allocation2] sm:$0x1]
        %v323 = vld [vmem:[#allocation4] sm:$0x1]
        %324 = vadd.xlane.f32.xlu0 %v320
        %v325 = vpop.xlane.xlu0 %324
        %vm326 = vcmask 1040384
        %v327 = vsel %vm326, %v321, 0.0
        %328 = vadd.xlane.f32.xlu0 %v327
        %v329 = vpop.xlane.xlu0 %328
        %v330 = vrcp.pop 128.0
        %v331 = vmul.f32 %v325, %v330
        %v332 = vmul.f32 %v329, %v330
        %v333 = vsub.f32 %v320, %v331
        %v334 = vsub.f32 %v321, %v332
        %v335 = vmul.f32 %v333, %v333
        %v336 = vmul.f32 %v334, %v334
        %337 = vadd.xlane.f32.xlu0 %v335
        %v338 = vpop.xlane.xlu0 %337
        %v339 = vsel %vm326, %v336, 0.0
        %340 = vadd.xlane.f32.xlu0 %v339
        %v341 = vpop.xlane.xlu0 %340
        %v342 = vmul.f32 %v338, %v330
        %v343 = vmul.f32 %v341, %v330
        %v344 = vadd.f32 %v342, 1e-05
        %v345 = vadd.f32 %v343, 1e-05
        %v346 = vrsqrt.pop %v344
        %v347 = vrsqrt.pop %v345
        %v348 = vmul.f32 %v333, %v346
        %v349 = vmul.f32 %v334, %v347
        %v351 = vlaneseq
        %v352 = vshrl.u32 %v351, 7
        %v353 = vsub.s32 0, %v352
        %v354 = vrot.slane %v322, %v353
        %v356 = vmul.f32 %v348, %v354
        %v357 = vmul.f32 %v349, %v354
        %v359 = vlaneseq
        %v360 = vshrl.u32 %v359, 7
        %v361 = vsub.s32 0, %v360
        %v362 = vrot.slane %v323, %v361
        %v364 = vadd.f32 %v356, %v362
        %v365 = vadd.f32 %v357, %v362
        %v366 = vpack.c.bf16 %v365, %v364
        %v367 = vld [vmem:[#allocation6] sm:$0xff]
        %v368 = vld [vmem:[#allocation6 + $0x8] sm:$0xf]
        %v369 = vld [vmem:[#allocation6 + $0xc] sm:$0xff]
        %v370 = vld [vmem:[#allocation6 + $0x14] sm:$0xf]
        %v371 = vld [vmem:[#allocation6 + $0x18] sm:$0xff]
        %v372 = vld [vmem:[#allocation6 + $0x20] sm:$0xf]
        %v373 = vld [vmem:[#allocation6 + $0x24] sm:$0xff]
        %v374 = vld [vmem:[#allocation6 + $0x2c] sm:$0xf]
        %v375 = vld [vmem:[#allocation6 + $0x30] sm:$0xff]
        %v376 = vld [vmem:[#allocation6 + $0x38] sm:$0xf]
        %v377 = vld [vmem:[#allocation6 + $0x3c] sm:$0xff]
        %v378 = vld [vmem:[#allocation6 + $0x44] sm:$0xf]
        %v379 = vld [vmem:[#allocation6 + $0x48] sm:$0xff]
        %v380 = vld [vmem:[#allocation6 + $0x50] sm:$0xf]
        %v381 = vld [vmem:[#allocation6 + $0x54] sm:$0xff]
        %v382 = vld [vmem:[#allocation6 + $0x5c] sm:$0xf]
        %v383 = vld [vmem:[#allocation6 + $0x60] sm:$0xff]
        %v384 = vld [vmem:[#allocation6 + $0x68] sm:$0xf]
        %v385 = vld [vmem:[#allocation6 + $0x6c] sm:$0xff]
        %v386 = vld [vmem:[#allocation6 + $0x74] sm:$0xf]
        %v387 = vld [vmem:[#allocation6 + $0x78] sm:$0xff]
        %v388 = vld [vmem:[#allocation6 + $0x80] sm:$0xf]
        %v389 = vld [vmem:[#allocation6 + $0x84] sm:$0xff]
        %v390 = vld [vmem:[#allocation6 + $0x8c] sm:$0xf]
        %v391 = vld [vmem:[#allocation6 + $0x90] sm:$0xff]
        %v392 = vld [vmem:[#allocation6 + $0x98] sm:$0xf]
        %v393 = vld [vmem:[#allocation6 + $0x9c] sm:$0xff]
        %v394 = vld [vmem:[#allocation6 + $0xa4] sm:$0xf]
        %v395 = vld [vmem:[#allocation6 + $0xa8] sm:$0xff]
        %v396 = vld [vmem:[#allocation6 + $0xb0] sm:$0xf]
        %v397 = vld [vmem:[#allocation6 + $0xb4] sm:$0xff]
        %v398 = vld [vmem:[#allocation6 + $0xbc] sm:$0xf]
        %v431 = vunpack.c.l.b16 %v367
        %v432 = vunpack.c.h.b16 %v367
        %v433 = vunpack.c.l.b16 %v368
        %v434 = vunpack.c.l.b16 %v369
        %v435 = vunpack.c.h.b16 %v369
        %v436 = vunpack.c.l.b16 %v370
        %v437 = vunpack.c.l.b16 %v371
        %v438 = vunpack.c.h.b16 %v371
        %v439 = vunpack.c.l.b16 %v372
        %v440 = vunpack.c.l.b16 %v373
        %v441 = vunpack.c.h.b16 %v373
        %v442 = vunpack.c.l.b16 %v374
        %v443 = vunpack.c.l.b16 %v375
        %v444 = vunpack.c.h.b16 %v375
        %v445 = vunpack.c.l.b16 %v376
        %v446 = vunpack.c.l.b16 %v377
        %v447 = vunpack.c.h.b16 %v377
        %v448 = vunpack.c.l.b16 %v378
        %v449 = vunpack.c.l.b16 %v379
        %v450 = vunpack.c.h.b16 %v379
        %v451 = vunpack.c.l.b16 %v380
        %v452 = vunpack.c.l.b16 %v381
        %v453 = vunpack.c.h.b16 %v381
        %v454 = vunpack.c.l.b16 %v382
        %v455 = vunpack.c.l.b16 %v383
        %v456 = vunpack.c.h.b16 %v383
        %v457 = vunpack.c.l.b16 %v384
        %v458 = vunpack.c.l.b16 %v385
        %v459 = vunpack.c.h.b16 %v385
        %v460 = vunpack.c.l.b16 %v386
        %v461 = vunpack.c.l.b16 %v387
        %v462 = vunpack.c.h.b16 %v387
        %v463 = vunpack.c.l.b16 %v388
        %v464 = vunpack.c.l.b16 %v389
        %v465 = vunpack.c.h.b16 %v389
        %v466 = vunpack.c.l.b16 %v390
        %v467 = vunpack.c.l.b16 %v391
        %v468 = vunpack.c.h.b16 %v391
        %v469 = vunpack.c.l.b16 %v392
        %v470 = vunpack.c.l.b16 %v393
        %v471 = vunpack.c.h.b16 %v393
        %v472 = vunpack.c.l.b16 %v394
        %v473 = vunpack.c.l.b16 %v395
        %v474 = vunpack.c.h.b16 %v395
        %v475 = vunpack.c.l.b16 %v396
        %v476 = vunpack.c.l.b16 %v397
        %v477 = vunpack.c.h.b16 %v397
        %v478 = vunpack.c.l.b16 %v398
        %v479 = vpack.c.b16 %v434, %v431
        %v480 = vpack.c.b16 %v435, %v432
        %v481 = vpack.c.b16 %v436, %v433
        %v482 = vpack.c.b16 %v440, %v437
        %v483 = vpack.c.b16 %v441, %v438
        %v484 = vpack.c.b16 %v442, %v439
        %v485 = vpack.c.b16 %v446, %v443
        %v486 = vpack.c.b16 %v447, %v444
        %v487 = vpack.c.b16 %v448, %v445
        %v488 = vpack.c.b16 %v452, %v449
        %v489 = vpack.c.b16 %v453, %v450
        %v490 = vpack.c.b16 %v454, %v451
        %v491 = vpack.c.b16 %v458, %v455
        %v492 = vpack.c.b16 %v459, %v456
        %v493 = vpack.c.b16 %v460, %v457
        %v494 = vpack.c.b16 %v464, %v461
        %v495 = vpack.c.b16 %v465, %v462
        %v496 = vpack.c.b16 %v466, %v463
        %v497 = vpack.c.b16 %v470, %v467
        %v498 = vpack.c.b16 %v471, %v468
        %v499 = vpack.c.b16 %v472, %v469
        %v500 = vpack.c.b16 %v476, %v473
        %v501 = vpack.c.b16 %v477, %v474
        %v502 = vpack.c.b16 %v478, %v475
        %527 = vmatprep.subr.bf16.mxu0 %v480
        %528 = vmatpush1.bf16.msra.mxu0 %v479
        %529 = vmatprep.subr.bf16.mxu0 %v483
        %530 = vmatpush1.bf16.msra.mxu0 %v482
        %531 = vmatprep.subr.bf16.mxu0 %v486
        %532 = vmatpush1.bf16.msra.mxu0 %v485
        %533 = vmatprep.subr.bf16.mxu0 %v489
        %534 = vmatpush1.bf16.msra.mxu0 %v488
        %535 = vmatprep.subr.bf16.mxu0 %v492
        %536 = vmatpush1.bf16.msra.mxu0 %v491
        %537 = vmatprep.subr.bf16.mxu0 %v495
        %538 = vmatpush1.bf16.msra.mxu0 %v494
        %539 = vmatprep.subr.bf16.mxu0 %v498
        %540 = vmatpush1.bf16.msra.mxu0 %v497
        %541 = vmatprep.subr.bf16.mxu0 %v501
        %542 = vmatpush1.bf16.msra.mxu0 %v500
        %543 = vmatprep.subr.bf16.mxu0 0
        %544 = vmatpush1.bf16.msra.mxu0 0
        %545 = vmatprep.subr.bf16.mxu0 0
        %546 = vmatpush1.bf16.msra.mxu0 0
        %547 = vmatprep.subr.bf16.mxu0 0
        %548 = vmatpush1.bf16.msra.mxu0 0
        %549 = vmatprep.subr.bf16.mxu0 0
        %550 = vmatpush1.bf16.msra.mxu0 0
        %551 = vmatprep.subr.bf16.mxu0 0
        %552 = vmatpush1.bf16.msra.mxu0 0
        %553 = vmatprep.subr.bf16.mxu0 0
        %554 = vmatpush1.bf16.msra.mxu0 0
        %555 = vmatprep.subr.bf16.mxu0 0
        %556 = vmatpush1.bf16.msra.mxu0 0
        %557 = vmatprep.subr.bf16.mxu0 0
        %558 = vmatpush1.bf16.msra.mxu0 0
        %559 = vmatprep.mubr.bf16.mxu0 0
        %560 = vmatmul.mubr.bf16.gmra.mrb[0].mxu0 %v366
        %v561 = vpop.f32.mrb[0].mxu0
        %v562 = vadd.f32 0.0, %v561
        %v563 = vpop.f32.mrb[0].mxu0
        %v564 = vadd.f32 0.0, %v563
        %v565 = vpop.f32.mrb[0].mxu0
        %v566 = vadd.f32 0.0, %v565
        %v567 = vpop.f32.mrb[0].mxu0
        %v568 = vadd.f32 0.0, %v567
        %569 = vdwg.mxu0
        %570 = vmatprep.subr.bf16.mxu0 0
        %571 = vmatpush1.bf16.msra.mxu0 %v481
        %572 = vmatprep.subr.bf16.mxu0 0
        %573 = vmatpush1.bf16.msra.mxu0 %v484
        %574 = vmatprep.subr.bf16.mxu0 0
        %575 = vmatpush1.bf16.msra.mxu0 %v487
        %576 = vmatprep.subr.bf16.mxu0 0
        %577 = vmatpush1.bf16.msra.mxu0 %v490
        %578 = vmatprep.subr.bf16.mxu0 0
        %579 = vmatpush1.bf16.msra.mxu0 %v493
        %580 = vmatprep.subr.bf16.mxu0 0
        %581 = vmatpush1.bf16.msra.mxu0 %v496
        %582 = vmatprep.subr.bf16.mxu0 0
        %583 = vmatpush1.bf16.msra.mxu0 %v499
        %584 = vmatprep.subr.bf16.mxu0 0
        %585 = vmatpush1.bf16.msra.mxu0 %v502
        %586 = vmatprep.subr.bf16.mxu0 0
        %587 = vmatpush1.bf16.msra.mxu0 0
        %588 = vmatprep.subr.bf16.mxu0 0
        %589 = vmatpush1.bf16.msra.mxu0 0
        %590 = vmatprep.subr.bf16.mxu0 0
        %591 = vmatpush1.bf16.msra.mxu0 0
        %592 = vmatprep.subr.bf16.mxu0 0
        %593 = vmatpush1.bf16.msra.mxu0 0
        %594 = vmatprep.subr.bf16.mxu0 0
        %595 = vmatpush1.bf16.msra.mxu0 0
        %596 = vmatprep.subr.bf16.mxu0 0
        %597 = vmatpush1.bf16.msra.mxu0 0
        %598 = vmatprep.subr.bf16.mxu0 0
        %599 = vmatpush1.bf16.msra.mxu0 0
        %600 = vmatprep.subr.bf16.mxu0 0
        %601 = vmatpush1.bf16.msra.mxu0 0
        %602 = vmatprep.mubr.bf16.mxu0 0
        %603 = vmatmul.mubr.bf16.gmra.mrb[0].mxu0 %v366
        %v604 = vpop.f32.mrb[0].mxu0
        %v605 = vadd.f32 0.0, %v604
        %v606 = vpop.f32.mrb[0].mxu0
        %v607 = vpop.f32.mrb[0].mxu0
        %v608 = vadd.f32 0.0, %v607
        %v609 = vpop.f32.mrb[0].mxu0
        %610 = vdwg.mxu0
        %v611 = vpack.c.bf16 %v566, %v562
        %v613 = vunpack.c.l.b16 %v611
        %v614 = vunpack.c.h.b16 %v611
        %v615 = vpack.c.b16 %v613, %v613
        %v616 = vpack.c.b16 %v614, %v614
        %vm619 = vcmask 257024
        %620 = vst.msk [vmem:[%s306] sm:$0xf] %vm619, %v615
        %vm621 = vcmask 253952
        %vm622 = vsmask.f32 256
        %vm623 = vmand %vm621, %vm622
        %v624 = vld [vmem:[%s306 + $0x4] sm:$0x1]
        %v625 = vsel %vm623, %v616, %v624
        %626 = vst [vmem:[%s306 + $0x4] sm:$0x1] %v625
        %v627 = vpack.c.bf16 %v568, %v564
        %v629 = vunpack.c.l.b16 %v627
        %v630 = vunpack.c.h.b16 %v627
        %v631 = vpack.c.b16 %v629, %v629
        %v632 = vpack.c.b16 %v630, %v630
        %635 = vst.msk [vmem:[%s311] sm:$0xf] %vm619, %v631
        %v636 = vld [vmem:[%s311 + $0x4] sm:$0x1]
        %v637 = vsel %vm623, %v632, %v636
        %638 = vst [vmem:[%s311 + $0x4] sm:$0x1] %v637
        %v639 = vpack.c.bf16 %v608, %v605
        %v641 = vunpack.c.l.b16 %v639
        %v642 = vunpack.c.h.b16 %v639
        %v643 = vpack.c.b16 %v641, %v641
        %v644 = vpack.c.b16 %v642, %v642
        %647 = vst.msk [vmem:[%s316] sm:$0xf] %vm619, %v643
        %v648 = vld [vmem:[%s316 + $0x4] sm:$0x1]
        %v649 = vsel %vm623, %v644, %v648
        %650 = vst [vmem:[%s316 + $0x4] sm:$0x1] %v649
        %651 = vrot.lane.b32.xlu0 %v615, 96
        %v652 = vpop.permute.xlu0 %651
        %653 = vrot.lane.b32.xlu0 %v616, 96
        %v654 = vpop.permute.xlu0 %653
        %s657 = scalar_lea.vmem %s306, 8
        %658 = vst.msk [vmem:[%s657] sm:$0xf] %vm619, %v652
        %v659 = vld [vmem:[%s657 + $0x4] sm:$0x1]
        %v660 = vsel %vm623, %v654, %v659
        %661 = vst [vmem:[%s657 + $0x4] sm:$0x1] %v660
        %662 = vrot.lane.b32.xlu0 %v631, 96
        %v663 = vpop.permute.xlu0 %662
        %664 = vrot.lane.b32.xlu0 %v632, 96
        %v665 = vpop.permute.xlu0 %664
        %s668 = scalar_lea.vmem %s311, 8
        %669 = vst.msk [vmem:[%s668] sm:$0xf] %vm619, %v663
        %v670 = vld [vmem:[%s668 + $0x4] sm:$0x1]
        %v671 = vsel %vm623, %v665, %v670
        %672 = vst [vmem:[%s668 + $0x4] sm:$0x1] %v671
        %673 = vrot.lane.b32.xlu0 %v643, 96
        %v674 = vpop.permute.xlu0 %673
        %675 = vrot.lane.b32.xlu0 %v644, 96
        %v676 = vpop.permute.xlu0 %675
        %s679 = scalar_lea.vmem %s316, 8
        %680 = vst.msk [vmem:[%s679] sm:$0xf] %vm619, %v674
        %v681 = vld [vmem:[%s679 + $0x4] sm:$0x1]
        %v682 = vsel %vm623, %v676, %v681
        %683 = vst [vmem:[%s679 + $0x4] sm:$0x1] %v682
        %684 = vrot.lane.b32.xlu0 %v615, 64
        %v685 = vpop.permute.xlu0 %684
        %686 = vrot.lane.b32.xlu0 %v616, 64
        %v687 = vpop.permute.xlu0 %686
        %s690 = scalar_lea.vmem %s306, 16
        %691 = vst.msk [vmem:[%s690] sm:$0xf] %vm619, %v685
        %v692 = vld [vmem:[%s690 + $0x4] sm:$0x1]
        %v693 = vsel %vm623, %v687, %v692
        %694 = vst [vmem:[%s690 + $0x4] sm:$0x1] %v693
        %695 = vrot.lane.b32.xlu0 %v631, 64
        %v696 = vpop.permute.xlu0 %695
        %697 = vrot.lane.b32.xlu0 %v632, 64
        %v698 = vpop.permute.xlu0 %697
        %s701 = scalar_lea.vmem %s311, 16
        %702 = vst.msk [vmem:[%s701] sm:$0xf] %vm619, %v696
        %v703 = vld [vmem:[%s701 + $0x4] sm:$0x1]
        %v704 = vsel %vm623, %v698, %v703
        %705 = vst [vmem:[%s701 + $0x4] sm:$0x1] %v704
        %706 = vrot.lane.b32.xlu0 %v643, 64
        %v707 = vpop.permute.xlu0 %706
        %708 = vrot.lane.b32.xlu0 %v644, 64
        %v709 = vpop.permute.xlu0 %708
        %s712 = scalar_lea.vmem %s316, 16
        %713 = vst.msk [vmem:[%s712] sm:$0xf] %vm619, %v707
        %v714 = vld [vmem:[%s712 + $0x4] sm:$0x1]
        %v715 = vsel %vm623, %v709, %v714
        %716 = vst [vmem:[%s712 + $0x4] sm:$0x1] %v715
        %717 = vrot.lane.b32.xlu0 %v615, 32
        %v718 = vpop.permute.xlu0 %717
        %719 = vrot.lane.b32.xlu0 %v616, 32
        %v720 = vpop.permute.xlu0 %719
        %s723 = scalar_lea.vmem %s306, 24
        %724 = vst.msk [vmem:[%s723] sm:$0xf] %vm619, %v718
        %v725 = vld [vmem:[%s723 + $0x4] sm:$0x1]
        %v726 = vsel %vm623, %v720, %v725
        %727 = vst [vmem:[%s723 + $0x4] sm:$0x1] %v726
        %728 = vrot.lane.b32.xlu0 %v631, 32
        %v729 = vpop.permute.xlu0 %728
        %730 = vrot.lane.b32.xlu0 %v632, 32
        %v731 = vpop.permute.xlu0 %730
        %s734 = scalar_lea.vmem %s311, 24
        %735 = vst.msk [vmem:[%s734] sm:$0xf] %vm619, %v729
        %v736 = vld [vmem:[%s734 + $0x4] sm:$0x1]
        %v737 = vsel %vm623, %v731, %v736
        %738 = vst [vmem:[%s734 + $0x4] sm:$0x1] %v737
        %739 = vrot.lane.b32.xlu0 %v643, 32
        %v740 = vpop.permute.xlu0 %739
        %741 = vrot.lane.b32.xlu0 %v644, 32
        %v742 = vpop.permute.xlu0 %741
        %s745 = scalar_lea.vmem %s316, 24
        %746 = vst.msk [vmem:[%s745] sm:$0xf] %vm619, %v740
        %v747 = vld [vmem:[%s745 + $0x4] sm:$0x1]
        %v748 = vsel %vm623, %v742, %v747
        %749 = vst [vmem:[%s745 + $0x4] sm:$0x1] %v748
        %p750 = scmp.lt.s32.totalorder %s20, 1
        %s751 = scalar_select %p750, %s20, 1
        %s752 = smul.addr %s751, 8
        %s753 = smul.addr %s752, 4
        %s754 = scalar_lea.vmem %s4, %s753
        %p755 = scmp.lt.s32.totalorder %s20, 1
        %s756 = scalar_select %p755, %s20, 1
        %s757 = smul.addr %s756, 8
        %s758 = smul.addr %s757, 4
        %s759 = scalar_lea.vmem %s5, %s758
        %p760 = scmp.lt.s32.totalorder %s20, 1
        %s761 = scalar_select %p760, %s20, 1
        %s762 = smul.addr %s761, 8
        %s763 = smul.addr %s762, 4
        %s764 = scalar_lea.vmem %s6, %s763
        // Predicated region
        $region49: #{my_conformer_forward.7} parent=35 // pred_check
          %p765 = pneg %p127
        $region50: #{my_conformer_forward.7} parent=35 // pred_check_branch
          %767 = sbr.rel (%p765) target = $region52
        $region51: #{my_conformer_forward.7} parent=35 // pred_region
          _
        $region52: #{my_conformer_forward.7} parent=35 // pred_fallthru
          _
        // Predicated region
        $region53: #{my_conformer_forward.7} parent=35 // pred_check
          %p768 = pneg %p153
        $region54: #{my_conformer_forward.7} parent=35 // pred_check_branch
          %770 = sbr.rel (%p768) target = $region56
        $region55: #{my_conformer_forward.7} parent=35 // pred_region
          _
        $region56: #{my_conformer_forward.7} parent=35 // pred_fallthru
          _
        // Predicated region
        $region57: #{my_conformer_forward.7} parent=35 // pred_check
          %p771 = pneg %p179
        $region58: #{my_conformer_forward.7} parent=35 // pred_check_branch
          %773 = sbr.rel (%p771) target = $region60
        $region59: #{my_conformer_forward.7} parent=35 // pred_region
          _
        $region60: #{my_conformer_forward.7} parent=35 // pred_fallthru
          _
      $region36: #{my_conformer_forward.7} parent=5 // pred_fallthru
        _
      %p774 = scmp.le.s32.totalorder 2, %s15
      // Predicated region
      $region61: #{my_conformer_forward.7} parent=5 // pred_check
        %p775 = pneg %p774
      $region62: #{my_conformer_forward.7} parent=5 // pred_check_branch
        %777 = sbr.rel (%p775) target = $region64
      $region63: #{my_conformer_forward.7} parent=5 // pred_region
        %s778 = ssub.s32 %s15, 2
        // Predicated region
        $region65: #{my_conformer_forward.7} parent=63 // pred_check
          %p779 = pneg %p133
        $region66: #{my_conformer_forward.7} parent=63 // pred_check_branch
          %781 = sbr.rel (%p779) target = $region68
        $region67: #{my_conformer_forward.7} parent=63 // pred_region
          %p782 = scmp.lt.s32.totalorder %s21, 1
          %s783 = scalar_select %p782, %s21, 1
          %s784 = smul.addr %s783, 8
          %s785 = smul.addr %s784, 4
          %s786 = scalar_lea.vmem %s4, %s785
        $region68: #{my_conformer_forward.7} parent=63 // pred_fallthru
          _
        // Predicated region
        $region69: #{my_conformer_forward.7} parent=63 // pred_check
          %p787 = pneg %p159
        $region70: #{my_conformer_forward.7} parent=63 // pred_check_branch
          %789 = sbr.rel (%p787) target = $region72
        $region71: #{my_conformer_forward.7} parent=63 // pred_region
          %p790 = scmp.lt.s32.totalorder %s21, 1
          %s791 = scalar_select %p790, %s21, 1
          %s792 = smul.addr %s791, 8
          %s793 = smul.addr %s792, 4
          %s794 = scalar_lea.vmem %s5, %s793
        $region72: #{my_conformer_forward.7} parent=63 // pred_fallthru
          _
        // Predicated region
        $region73: #{my_conformer_forward.7} parent=63 // pred_check
          %p795 = pneg %p185
        $region74: #{my_conformer_forward.7} parent=63 // pred_check_branch
          %797 = sbr.rel (%p795) target = $region76
        $region75: #{my_conformer_forward.7} parent=63 // pred_region
          %p798 = scmp.lt.s32.totalorder %s21, 1
          %s799 = scalar_select %p798, %s21, 1
          %s800 = smul.addr %s799, 8
          %s801 = smul.addr %s800, 4
          %s802 = scalar_lea.vmem %s6, %s801
        $region76: #{my_conformer_forward.7} parent=63 // pred_fallthru
          _
      $region64: #{my_conformer_forward.7} parent=5 // pred_fallthru
        _
    $region6: #{my_conformer_forward.7} parent=1 // loop_footer
      %s19 = sadd.s32 1, %s15
    $region7: #{my_conformer_forward.7} parent=1 // loop_footer_branch
      %14 = sbr.rel target = $region3
    $region8: #{my_conformer_forward.7} parent=1 // loop_exit
      _
    %803 = vsyncpa [#allocation3], 1
    %s804 = scalar_lea.sflag [#allocation3], 1
    %805 = vsyncpa %s804, 1
    %806 = vsyncpa [#allocation5], 1

// kernel: my_conformer_forward.6
$region0: #{my_conformer_forward.6}
  #allocation0 [shape = 'u32[]', space=smem, size = 0x4, offset = 0x4, fixed_abs, tag = 'smem constant byte address 0x4 - core index']
  #allocation1 [shape = 'u32[144,128]{1,0:T(1,128)}', space=vmem, size = 0x12000, scoped, tag = 'internal scratch']
  %s0 = inlined_call_operand.vmem [shape: f32[18,128], index: 0, kind: input, shape index: {}]
  %s1 = inlined_call_operand.hbm [shape: f32[1,128], index: 1, kind: input, shape index: {}]
  %s2 = inlined_call_operand.hbm [shape: f32[1,128], index: 2, kind: input, shape index: {}]
  %s3 = inlined_call_operand.hbm [shape: bf16[128,512], index: 3, kind: input, shape index: {}]
  %s4 = inlined_call_operand.hbm [shape: f32[1,512], index: 4, kind: input, shape index: {}]
  %s5 = inlined_call_operand.hbm [shape: bf16[512,128], index: 5, kind: input, shape index: {}]
  %s6 = inlined_call_operand.hbm [shape: f32[1,128], index: 6, kind: input, shape index: {}]
  %s7 = inlined_call_operand.vmem [shape: bf16[18,128], index: 7, kind: output, shape index: {}]
  %s8 = sld [smem:[#allocation0]]
  $region129: #{my_conformer_forward.6} parent=0
    _
  %s10 = ssub.s32 1, %s8
  %s11 = scalar_select 0, %s10, %s8
  $region1: #{my_conformer_forward.6} parent=0
    #allocation2 [shape = 'u8[512]{0}', space=vmem, size = 0x400, scoped, tag = 'input window, operand 1, single buffered']
    #allocation3 [shape = 's32[2]{0}', space=sflag, size = 0x8, scoped, tag = 'scoped memory for my_conformer_forward.6']
    #allocation4 [shape = 'u8[512]{0}', space=vmem, size = 0x400, scoped, tag = 'input window, operand 2, single buffered']
    #allocation5 [shape = 's32[1]{0}', space=sflag, size = 0x4, scoped, tag = 'scoped memory for my_conformer_forward.6']
    #allocation6 [shape = 'u8[131072]{0}', space=vmem, size = 0x20000, scoped, tag = 'input window, operand 3, single buffered']
    #allocation7 [shape = 'u8[2048]{0}', space=vmem, size = 0x800, scoped, tag = 'input window, operand 4, single buffered']
    #allocation8 [shape = 's32[1]{0}', space=sflag, size = 0x4, scoped, tag = 'scoped memory for my_conformer_forward.6']
    #allocation9 [shape = 'u8[131072]{0}', space=vmem, size = 0x20000, scoped, tag = 'input window, operand 5, single buffered']
    #allocation10 [shape = 'u8[512]{0}', space=vmem, size = 0x400, scoped, tag = 'input window, operand 6, single buffered']
    #allocation11 [shape = 's32[1]{0}', space=sflag, size = 0x4, scoped, tag = 'scoped memory for my_conformer_forward.6']
    #allocation12 [shape = 'u8[8192]{0}', space=vmem, size = 0x2000, scoped, tag = 'output window, operand 0']
    %12 = vsyncpa [#allocation3], 0
    %13 = vsyncpa [#allocation5], 0
    %14 = vsyncpa [#allocation8], 0
    %15 = vsyncpa [#allocation11], 0
    loop: start=0, step=1, limit=4
    $region2: #{my_conformer_forward.6} parent=1 // loop_pre_header
      _
    $region3: #{my_conformer_forward.6} parent=1 // loop_header
      %s17 = sphi 0, %s21
      %p18 = scmp.ge.s32.totalorder %s17, 4
      %s27 = sphi 0, %s29
      %s30 = sphi 0, %s27
      %s31 = sphi 0, %s30
      %s47 = sphi 0, %s31
      %s51 = sphi 0, %s51
      %s53 = sphi 0, %s51
      %s54 = sphi 0, %s53
      %s68 = sphi 0, %s54
      %s72 = sphi 0, %s72
      %s74 = sphi 0, %s72
      %s75 = sphi 0, %s74
      %s89 = sphi 0, %s75
      %s93 = sphi 0, %s93
      %s95 = sphi 0, %s93
      %s96 = sphi 0, %s95
      %s110 = sphi 0, %s96
      %s114 = sphi 0, %s114
      %s116 = sphi 0, %s114
      %s117 = sphi 0, %s116
      %s131 = sphi 0, %s117
      %s135 = sphi 0, %s135
      %s137 = sphi 0, %s135
      %s138 = sphi 0, %s137
      %s152 = sphi 0, %s138
      %s156 = sphi 0, %s156
      %s158 = sphi 0, %s156
      %s159 = sphi 0, %s158
      %s173 = sphi 0, %s159
      %s179 = sphi 0, %s181
      %s182 = sphi 0, %s179
      %s183 = sphi 0, %s182
      %s199 = sphi 0, %s183
    $region4: #{my_conformer_forward.6} parent=1 // loop_header_branch
      %20 = sbr.rel (%p18) target = $region8
    $region5: #{my_conformer_forward.6} parent=1 // loop_body
      %s22 = ssub.s32 %s17, 1
      %s23 = ssub.s32 %s17, 2
      %s24 = sadd.s32 %s17, 1
      %s25 = ssub.s32 %s17, %s24
      %p26 = scmp.eq.s32.totalorder %s25, 0
      %s28 = sadd.s32 %s27, 1
      %s29 = scalar_select %p26, %s27, %s28
      %p32 = pneg %p26
      %p33 = scmp.eq.s32.totalorder %s17, 1
      %p34 = por %p32, %p33
      %p35 = scmp.ne.s32.totalorder %s27, %s30
      %p36 = scmp.eq.s32.totalorder %s17, 0
      %p37 = por %p35, %p36
      %p38 = scmp.ne.s32.totalorder %s27, %s30
      %p39 = scmp.eq.s32.totalorder %s22, 1
      %p40 = por %p38, %p39
      %p41 = scmp.ne.s32.totalorder %s30, %s31
      %p42 = scmp.eq.s32.totalorder %s22, 0
      %p43 = por %p41, %p42
      %p44 = scmp.ne.s32.totalorder %s30, %s31
      %p45 = scmp.eq.s32.totalorder %s23, 1
      %p46 = por %p44, %p45
      %p48 = scmp.ne.s32.totalorder %s31, %s47
      %p49 = scmp.eq.s32.totalorder %s23, 0
      %p50 = por %p48, %p49
      %s52 = sadd.s32 %s51, 1
      %p55 = scmp.eq.s32.totalorder %s17, 1
      %p56 = scmp.ne.s32.totalorder %s51, %s53
      %p57 = scmp.eq.s32.totalorder %s17, 0
      %p58 = por %p56, %p57
      %p59 = scmp.ne.s32.totalorder %s51, %s53
      %p60 = scmp.eq.s32.totalorder %s22, 1
      %p61 = por %p59, %p60
      %p62 = scmp.ne.s32.totalorder %s53, %s54
      %p63 = scmp.eq.s32.totalorder %s22, 0
      %p64 = por %p62, %p63
      %p65 = scmp.ne.s32.totalorder %s53, %s54
      %p66 = scmp.eq.s32.totalorder %s23, 1
      %p67 = por %p65, %p66
      %p69 = scmp.ne.s32.totalorder %s54, %s68
      %p70 = scmp.eq.s32.totalorder %s23, 0
      %p71 = por %p69, %p70
      %s73 = sadd.s32 %s72, 1
      %p76 = scmp.eq.s32.totalorder %s17, 1
      %p77 = scmp.ne.s32.totalorder %s72, %s74
      %p78 = scmp.eq.s32.totalorder %s17, 0
      %p79 = por %p77, %p78
      %p80 = scmp.ne.s32.totalorder %s72, %s74
      %p81 = scmp.eq.s32.totalorder %s22, 1
      %p82 = por %p80, %p81
      %p83 = scmp.ne.s32.totalorder %s74, %s75
      %p84 = scmp.eq.s32.totalorder %s22, 0
      %p85 = por %p83, %p84
      %p86 = scmp.ne.s32.totalorder %s74, %s75
      %p87 = scmp.eq.s32.totalorder %s23, 1
      %p88 = por %p86, %p87
      %p90 = scmp.ne.s32.totalorder %s75, %s89
      %p91 = scmp.eq.s32.totalorder %s23, 0
      %p92 = por %p90, %p91
      %s94 = sadd.s32 %s93, 1
      %p97 = scmp.eq.s32.totalorder %s17, 1
      %p98 = scmp.ne.s32.totalorder %s93, %s95
      %p99 = scmp.eq.s32.totalorder %s17, 0
      %p100 = por %p98, %p99
      %p101 = scmp.ne.s32.totalorder %s93, %s95
      %p102 = scmp.eq.s32.totalorder %s22, 1
      %p103 = por %p101, %p102
      %p104 = scmp.ne.s32.totalorder %s95, %s96
      %p105 = scmp.eq.s32.totalorder %s22, 0
      %p106 = por %p104, %p105
      %p107 = scmp.ne.s32.totalorder %s95, %s96
      %p108 = scmp.eq.s32.totalorder %s23, 1
      %p109 = por %p107, %p108
      %p111 = scmp.ne.s32.totalorder %s96, %s110
      %p112 = scmp.eq.s32.totalorder %s23, 0
      %p113 = por %p111, %p112
      %s115 = sadd.s32 %s114, 1
      %p118 = scmp.eq.s32.totalorder %s17, 1
      %p119 = scmp.ne.s32.totalorder %s114, %s116
      %p120 = scmp.eq.s32.totalorder %s17, 0
      %p121 = por %p119, %p120
      %p122 = scmp.ne.s32.totalorder %s114, %s116
      %p123 = scmp.eq.s32.totalorder %s22, 1
      %p124 = por %p122, %p123
      %p125 = scmp.ne.s32.totalorder %s116, %s117
      %p126 = scmp.eq.s32.totalorder %s22, 0
      %p127 = por %p125, %p126
      %p128 = scmp.ne.s32.totalorder %s116, %s117
      %p129 = scmp.eq.s32.totalorder %s23, 1
      %p130 = por %p128, %p129
      %p132 = scmp.ne.s32.totalorder %s117, %s131
      %p133 = scmp.eq.s32.totalorder %s23, 0
      %p134 = por %p132, %p133
      %s136 = sadd.s32 %s135, 1
      %p139 = scmp.eq.s32.totalorder %s17, 1
      %p140 = scmp.ne.s32.totalorder %s135, %s137
      %p141 = scmp.eq.s32.totalorder %s17, 0
      %p142 = por %p140, %p141
      %p143 = scmp.ne.s32.totalorder %s135, %s137
      %p144 = scmp.eq.s32.totalorder %s22, 1
      %p145 = por %p143, %p144
      %p146 = scmp.ne.s32.totalorder %s137, %s138
      %p147 = scmp.eq.s32.totalorder %s22, 0
      %p148 = por %p146, %p147
      %p149 = scmp.ne.s32.totalorder %s137, %s138
      %p150 = scmp.eq.s32.totalorder %s23, 1
      %p151 = por %p149, %p150
      %p153 = scmp.ne.s32.totalorder %s138, %s152
      %p154 = scmp.eq.s32.totalorder %s23, 0
      %p155 = por %p153, %p154
      %s157 = sadd.s32 %s156, 1
      %p160 = scmp.eq.s32.totalorder %s17, 1
      %p161 = scmp.ne.s32.totalorder %s156, %s158
      %p162 = scmp.eq.s32.totalorder %s17, 0
      %p163 = por %p161, %p162
      %p164 = scmp.ne.s32.totalorder %s156, %s158
      %p165 = scmp.eq.s32.totalorder %s22, 1
      %p166 = por %p164, %p165
      %p167 = scmp.ne.s32.totalorder %s158, %s159
      %p168 = scmp.eq.s32.totalorder %s22, 0
      %p169 = por %p167, %p168
      %p170 = scmp.ne.s32.totalorder %s158, %s159
      %p171 = scmp.eq.s32.totalorder %s23, 1
      %p172 = por %p170, %p171
      %p174 = scmp.ne.s32.totalorder %s159, %s173
      %p175 = scmp.eq.s32.totalorder %s23, 0
      %p176 = por %p174, %p175
      %s177 = ssub.s32 %s17, %s24
      %p178 = scmp.eq.s32.totalorder %s177, 0
      %s180 = sadd.s32 %s179, 1
      %s181 = scalar_select %p178, %s179, %s180
      %p184 = pneg %p178
      %p185 = scmp.eq.s32.totalorder %s17, 1
      %p186 = por %p184, %p185
      %p187 = scmp.ne.s32.totalorder %s179, %s182
      %p188 = scmp.eq.s32.totalorder %s17, 0
      %p189 = por %p187, %p188
      %p190 = scmp.ne.s32.totalorder %s179, %s182
      %p191 = scmp.eq.s32.totalorder %s22, 1
      %p192 = por %p190, %p191
      %p193 = scmp.ne.s32.totalorder %s182, %s183
      %p194 = scmp.eq.s32.totalorder %s22, 0
      %p195 = por %p193, %p194
      %p196 = scmp.ne.s32.totalorder %s182, %s183
      %p197 = scmp.eq.s32.totalorder %s23, 1
      %p198 = por %p196, %p197
      %p200 = scmp.ne.s32.totalorder %s183, %s199
      %p201 = scmp.eq.s32.totalorder %s23, 0
      %p202 = por %p200, %p201
      %p203 = scmp.le.s32.totalorder 1, %s17
      %p204 = scmp.lt.s32.totalorder %s17, 3
      %p205 = pnand %p203, %p204
      %p206 = pneg %p205
      // Predicated region
      $region9: #{my_conformer_forward.6} parent=5 // pred_check
        _
      $region10: #{my_conformer_forward.6} parent=5 // pred_check_branch
        %208 = sbr.rel (%p205) target = $region12
      $region11: #{my_conformer_forward.6} parent=5 // pred_region
        %s209 = ssub.s32 %s17, 1
        // Predicated region
        $region13: #{my_conformer_forward.6} parent=11 // pred_check
          %p210 = pneg %p64
        $region14: #{my_conformer_forward.6} parent=11 // pred_check_branch
          %212 = sbr.rel (%p210) target = $region16
        $region15: #{my_conformer_forward.6} parent=11 // pred_region
          %s214 = ssub.s32 16, 16
          %215 = vsyncadd [#allocation3], %s214
          %s217 = sshll.u32 [#allocation2], 4
          %s218 = int_to_ptr.vmem [resolvable:$true] %s217
          %220 = dma.hbm_to_vmem [thread:$0]  %s1, 16, %s218, [#allocation3]
        $region16: #{my_conformer_forward.6} parent=11 // pred_fallthru
          _
        // Predicated region
        $region17: #{my_conformer_forward.6} parent=11 // pred_check
          %p221 = pneg %p85
        $region18: #{my_conformer_forward.6} parent=11 // pred_check_branch
          %223 = sbr.rel (%p221) target = $region20
        $region19: #{my_conformer_forward.6} parent=11 // pred_region
          %s225 = ssub.s32 16, 16
          %226 = vsyncadd [#allocation5], %s225
          %s228 = sshll.u32 [#allocation4], 4
          %s229 = int_to_ptr.vmem [resolvable:$true] %s228
          %231 = dma.hbm_to_vmem [thread:$0]  %s2, 16, %s229, [#allocation5]
        $region20: #{my_conformer_forward.6} parent=11 // pred_fallthru
          _
        // Predicated region
        $region21: #{my_conformer_forward.6} parent=11 // pred_check
          %p232 = pneg %p106
        $region22: #{my_conformer_forward.6} parent=11 // pred_check_branch
          %234 = sbr.rel (%p232) target = $region24
        $region23: #{my_conformer_forward.6} parent=11 // pred_region
          %s236 = ssub.s32 4096, 4096
          %237 = vsyncadd [#allocation5], %s236
          %s238 = sshll.u32 [#allocation6], 4
          %s239 = int_to_ptr.vmem [resolvable:$true] %s238
          %244 = dma.hbm_to_vmem [thread:$0]  %s3, 4096, %s239, [#allocation5], 256, 256, 16
        $region24: #{my_conformer_forward.6} parent=11 // pred_fallthru
          _
        // Predicated region
        $region25: #{my_conformer_forward.6} parent=11 // pred_check
          %p245 = pneg %p127
        $region26: #{my_conformer_forward.6} parent=11 // pred_check_branch
          %247 = sbr.rel (%p245) target = $region28
        $region27: #{my_conformer_forward.6} parent=11 // pred_region
          %s249 = ssub.s32 64, 64
          %250 = vsyncadd [#allocation8], %s249
          %s252 = sshll.u32 [#allocation7], 4
          %s253 = int_to_ptr.vmem [resolvable:$true] %s252
          %255 = dma.hbm_to_vmem [thread:$0]  %s4, 64, %s253, [#allocation8]
        $region28: #{my_conformer_forward.6} parent=11 // pred_fallthru
          _
        // Predicated region
        $region29: #{my_conformer_forward.6} parent=11 // pred_check
          %p256 = pneg %p148
        $region30: #{my_conformer_forward.6} parent=11 // pred_check_branch
          %258 = sbr.rel (%p256) target = $region32
        $region31: #{my_conformer_forward.6} parent=11 // pred_region
          %s260 = ssub.s32 4096, 4096
          %261 = vsyncadd [#allocation8], %s260
          %s262 = sshll.u32 [#allocation9], 4
          %s263 = int_to_ptr.vmem [resolvable:$true] %s262
          %268 = dma.hbm_to_vmem [thread:$0]  %s5, 4096, %s263, [#allocation8], 64, 64, 4
        $region32: #{my_conformer_forward.6} parent=11 // pred_fallthru
          _
        // Predicated region
        $region33: #{my_conformer_forward.6} parent=11 // pred_check
          %p269 = pneg %p169
        $region34: #{my_conformer_forward.6} parent=11 // pred_check_branch
          %271 = sbr.rel (%p269) target = $region36
        $region35: #{my_conformer_forward.6} parent=11 // pred_region
          %s273 = ssub.s32 16, 16
          %274 = vsyncadd [#allocation11], %s273
          %s276 = sshll.u32 [#allocation10], 4
          %s277 = int_to_ptr.vmem [resolvable:$true] %s276
          %279 = dma.hbm_to_vmem [thread:$0]  %s6, 16, %s277, [#allocation11]
        $region36: #{my_conformer_forward.6} parent=11 // pred_fallthru
          _
      $region12: #{my_conformer_forward.6} parent=5 // pred_fallthru
        _
      %p280 = scmp.lt.s32.totalorder %s17, 2
      // Predicated region
      $region37: #{my_conformer_forward.6} parent=5 // pred_check
        %p281 = pneg %p280
      $region38: #{my_conformer_forward.6} parent=5 // pred_check_branch
        %283 = sbr.rel (%p281) target = $region40
      $region39: #{my_conformer_forward.6} parent=5 // pred_region
        // Predicated region
        $region41: #{my_conformer_forward.6} parent=39 // pred_check
          %p284 = pneg %p37
        $region42: #{my_conformer_forward.6} parent=39 // pred_check_branch
          %286 = sbr.rel (%p284) target = $region44
        $region43: #{my_conformer_forward.6} parent=39 // pred_region
          %s287 = smul.u32 2, %s17
          %s288 = ssub.s32 3, %s287
          %p289 = scmp.lt.s32.totalorder %s288, 2
          %s290 = scalar_select %p289, %s288, 2
          %s291 = smul.u32 128, %s290
          %p292 = scmp.lt.s32.totalorder %s287, 2
          %s293 = scalar_select %p292, %s287, 2
          %s294 = smul.addr %s293, 8
          %s295 = scalar_lea.vmem %s0, %s294
          %s296 = smul.u32 2, %s17
          %s297 = ssub.s32 3, %s296
          %p298 = scmp.lt.s32.totalorder %s297, 2
          %s299 = scalar_select %p298, %s297, 2
          %s300 = smul.u32 128, %s299
        $region44: #{my_conformer_forward.6} parent=39 // pred_fallthru
          _
      $region40: #{my_conformer_forward.6} parent=5 // pred_fallthru
        _
      %p301 = scmp.le.s32.totalorder 1, %s17
      %p302 = scmp.lt.s32.totalorder %s17, 3
      %p303 = pnand %p301, %p302
      %p304 = pneg %p303
      // Predicated region
      $region45: #{my_conformer_forward.6} parent=5 // pred_check
        _
      $region46: #{my_conformer_forward.6} parent=5 // pred_check_branch
        %306 = sbr.rel (%p303) target = $region48
      $region47: #{my_conformer_forward.6} parent=5 // pred_region
        %s307 = ssub.s32 %s17, 1
        // Predicated region
        $region49: #{my_conformer_forward.6} parent=47 // pred_check
          %p308 = pneg %p64
        $region50: #{my_conformer_forward.6} parent=47 // pred_check_branch
          %310 = sbr.rel (%p308) target = $region52
        $region51: #{my_conformer_forward.6} parent=47 // pred_region
          %311 = dma.done [#allocation3], 16
        $region52: #{my_conformer_forward.6} parent=47 // pred_fallthru
          _
        // Predicated region
        $region53: #{my_conformer_forward.6} parent=47 // pred_check
          %p312 = pneg %p85
        $region54: #{my_conformer_forward.6} parent=47 // pred_check_branch
          %314 = sbr.rel (%p312) target = $region56
        $region55: #{my_conformer_forward.6} parent=47 // pred_region
          %315 = dma.done [#allocation5], 16
        $region56: #{my_conformer_forward.6} parent=47 // pred_fallthru
          _
        // Predicated region
        $region57: #{my_conformer_forward.6} parent=47 // pred_check
          %p316 = pneg %p106
        $region58: #{my_conformer_forward.6} parent=47 // pred_check_branch
          %318 = sbr.rel (%p316) target = $region60
        $region59: #{my_conformer_forward.6} parent=47 // pred_region
          %319 = dma.done [#allocation5], 4096
        $region60: #{my_conformer_forward.6} parent=47 // pred_fallthru
          _
        // Predicated region
        $region61: #{my_conformer_forward.6} parent=47 // pred_check
          %p320 = pneg %p127
        $region62: #{my_conformer_forward.6} parent=47 // pred_check_branch
          %322 = sbr.rel (%p320) target = $region64
        $region63: #{my_conformer_forward.6} parent=47 // pred_region
          %323 = dma.done [#allocation8], 64
        $region64: #{my_conformer_forward.6} parent=47 // pred_fallthru
          _
        // Predicated region
        $region65: #{my_conformer_forward.6} parent=47 // pred_check
          %p324 = pneg %p148
        $region66: #{my_conformer_forward.6} parent=47 // pred_check_branch
          %326 = sbr.rel (%p324) target = $region68
        $region67: #{my_conformer_forward.6} parent=47 // pred_region
          %327 = dma.done [#allocation8], 4096
        $region68: #{my_conformer_forward.6} parent=47 // pred_fallthru
          _
        // Predicated region
        $region69: #{my_conformer_forward.6} parent=47 // pred_check
          %p328 = pneg %p169
        $region70: #{my_conformer_forward.6} parent=47 // pred_check_branch
          %330 = sbr.rel (%p328) target = $region72
        $region71: #{my_conformer_forward.6} parent=47 // pred_region
          %331 = dma.done [#allocation11], 16
        $region72: #{my_conformer_forward.6} parent=47 // pred_fallthru
          _
        %s332 = smul.u32 2, %s22
        %s333 = ssub.s32 3, %s332
        %p334 = scmp.lt.s32.totalorder %s333, 2
        %s335 = scalar_select %p334, %s333, 2
        %s336 = smul.u32 128, %s335
        %p337 = scmp.lt.s32.totalorder %s332, 2
        %s338 = scalar_select %p337, %s332, 2
        %s339 = smul.addr %s338, 8
        %s340 = scalar_lea.vmem %s0, %s339
        %p341 = pneg %p43
        %p342 = pneg %p40
        %p343 = pneg %p64
        %p344 = pneg %p61
        %p345 = pneg %p85
        %p346 = pneg %p82
        %p347 = pneg %p106
        %p348 = pneg %p103
        %p349 = pneg %p127
        %p350 = pneg %p124
        %p351 = pneg %p148
        %p352 = pneg %p145
        %p353 = pneg %p169
        %p354 = pneg %p166
        %p355 = pneg %p195
        %p356 = pneg %p192
        %s357 = sand.u32 %s182, 1
        %s358 = sand.u32 %s182, 1
        %s359 = smul.addr %s358, 8
        %s360 = scalar_lea.vmem [#allocation12], %s359
        %s361 = smul.u32 2, %s22
        %s362 = ssub.s32 3, %s361
        %p363 = scmp.lt.s32.totalorder %s362, 2
        %s364 = scalar_select %p363, %s362, 2
        %s365 = smul.u32 128, %s364
        %p366 = scmp.lt.s32.totalorder %s361, 2
        %s367 = scalar_select %p366, %s361, 2
        %s368 = smul.addr %s367, 8
        %s369 = scalar_lea.vmem %s0, %s368
        %s370 = smul.u32 2, %s22
        %s371 = ssub.s32 3, %s370
        %p372 = scmp.lt.s32.totalorder %s371, 2
        %s373 = scalar_select %p372, %s371, 2
        %s374 = smul.u32 128, %s373
        %s375 = smul.u32 2, %s22
        %s376 = ssub.s32 3, %s375
        %p377 = scmp.lt.s32.totalorder %s376, 2
        %s378 = scalar_select %p377, %s376, 2
        %s379 = smul.u32 64, %s378
        %v381 = vld [vmem:[%s369] sm:$0xff]
        %v382 = vld [vmem:[%s369 + $0x8] sm:$0xff]
        %v383 = vld [vmem:[#allocation2] sm:$0x1]
        %v384 = vld [vmem:[#allocation4] sm:$0x1]
        %385 = vadd.xlane.f32.xlu0 %v381
        %v386 = vpop.xlane.xlu0 %385
        %387 = vadd.xlane.f32.xlu0 %v382
        %v388 = vpop.xlane.xlu0 %387
        %v389 = vrcp.pop 128.0
        %v390 = vmul.f32 %v386, %v389
        %v391 = vmul.f32 %v388, %v389
        %v392 = vsub.f32 %v381, %v390
        %v393 = vsub.f32 %v382, %v391
        %v394 = vmul.f32 %v392, %v392
        %v395 = vmul.f32 %v393, %v393
        %396 = vadd.xlane.f32.xlu0 %v394
        %v397 = vpop.xlane.xlu0 %396
        %398 = vadd.xlane.f32.xlu0 %v395
        %v399 = vpop.xlane.xlu0 %398
        %v400 = vmul.f32 %v397, %v389
        %v401 = vmul.f32 %v399, %v389
        %v402 = vadd.f32 %v400, 1e-05
        %v403 = vadd.f32 %v401, 1e-05
        %v404 = vrsqrt.pop %v402
        %v405 = vrsqrt.pop %v403
        %v406 = vmul.f32 %v392, %v404
        %v407 = vmul.f32 %v393, %v405
        %v409 = vlaneseq
        %v410 = vshrl.u32 %v409, 7
        %v411 = vsub.s32 0, %v410
        %v412 = vrot.slane %v383, %v411
        %v414 = vmul.f32 %v406, %v412
        %v415 = vmul.f32 %v407, %v412
        %v417 = vlaneseq
        %v418 = vshrl.u32 %v417, 7
        %v419 = vsub.s32 0, %v418
        %v420 = vrot.slane %v384, %v419
        %v422 = vadd.f32 %v414, %v420
        %v423 = vadd.f32 %v415, %v420
        %v424 = vpack.c.bf16 %v423, %v422
        %v425 = vld [vmem:[#allocation6] sm:$0xff]
        %v426 = vld [vmem:[#allocation6 + $0x8] sm:$0xff]
        %v427 = vld [vmem:[#allocation6 + $0x10] sm:$0xff]
        %v428 = vld [vmem:[#allocation6 + $0x18] sm:$0xff]
        %v429 = vld [vmem:[#allocation6 + $0x20] sm:$0xff]
        %v430 = vld [vmem:[#allocation6 + $0x28] sm:$0xff]
        %v431 = vld [vmem:[#allocation6 + $0x30] sm:$0xff]
        %v432 = vld [vmem:[#allocation6 + $0x38] sm:$0xff]
        %v433 = vld [vmem:[#allocation6 + $0x40] sm:$0xff]
        %v434 = vld [vmem:[#allocation6 + $0x48] sm:$0xff]
        %v435 = vld [vmem:[#allocation6 + $0x50] sm:$0xff]
        %v436 = vld [vmem:[#allocation6 + $0x58] sm:$0xff]
        %v437 = vld [vmem:[#allocation6 + $0x60] sm:$0xff]
        %v438 = vld [vmem:[#allocation6 + $0x68] sm:$0xff]
        %v439 = vld [vmem:[#allocation6 + $0x70] sm:$0xff]
        %v440 = vld [vmem:[#allocation6 + $0x78] sm:$0xff]
        %v441 = vld [vmem:[#allocation6 + $0x80] sm:$0xff]
        %v442 = vld [vmem:[#allocation6 + $0x88] sm:$0xff]
        %v443 = vld [vmem:[#allocation6 + $0x90] sm:$0xff]
        %v444 = vld [vmem:[#allocation6 + $0x98] sm:$0xff]
        %v445 = vld [vmem:[#allocation6 + $0xa0] sm:$0xff]
        %v446 = vld [vmem:[#allocation6 + $0xa8] sm:$0xff]
        %v447 = vld [vmem:[#allocation6 + $0xb0] sm:$0xff]
        %v448 = vld [vmem:[#allocation6 + $0xb8] sm:$0xff]
        %v449 = vld [vmem:[#allocation6 + $0xc0] sm:$0xff]
        %v450 = vld [vmem:[#allocation6 + $0xc8] sm:$0xff]
        %v451 = vld [vmem:[#allocation6 + $0xd0] sm:$0xff]
        %v452 = vld [vmem:[#allocation6 + $0xd8] sm:$0xff]
        %v453 = vld [vmem:[#allocation6 + $0xe0] sm:$0xff]
        %v454 = vld [vmem:[#allocation6 + $0xe8] sm:$0xff]
        %v455 = vld [vmem:[#allocation6 + $0xf0] sm:$0xff]
        %v456 = vld [vmem:[#allocation6 + $0xf8] sm:$0xff]
        %v457 = vld [vmem:[#allocation7] sm:$0xf]
        %v459 = vlaneseq
        %v460 = vshrl.u32 %v459, 7
        %v461 = vsub.s32 0, %v460
        %v462 = vrot.slane %v457, %v461
        %v463 = vlaneseq
        %v464 = vshrl.u32 %v463, 7
        %v465 = vsub.s32 1, %v464
        %v466 = vrot.slane %v457, %v465
        %v467 = vlaneseq
        %v468 = vshrl.u32 %v467, 7
        %v469 = vsub.s32 2, %v468
        %v470 = vrot.slane %v457, %v469
        %v471 = vlaneseq
        %v472 = vshrl.u32 %v471, 7
        %v473 = vsub.s32 3, %v472
        %v474 = vrot.slane %v457, %v473
        %v511 = vunpack.c.l.b16 %v425
        %v512 = vunpack.c.h.b16 %v425
        %v513 = vunpack.c.l.b16 %v426
        %v514 = vunpack.c.h.b16 %v426
        %v515 = vunpack.c.l.b16 %v427
        %v516 = vunpack.c.h.b16 %v427
        %v517 = vunpack.c.l.b16 %v428
        %v518 = vunpack.c.h.b16 %v428
        %v519 = vunpack.c.l.b16 %v429
        %v520 = vunpack.c.h.b16 %v429
        %v521 = vunpack.c.l.b16 %v430
        %v522 = vunpack.c.h.b16 %v430
        %v523 = vunpack.c.l.b16 %v431
        %v524 = vunpack.c.h.b16 %v431
        %v525 = vunpack.c.l.b16 %v432
        %v526 = vunpack.c.h.b16 %v432
        %v527 = vunpack.c.l.b16 %v433
        %v528 = vunpack.c.h.b16 %v433
        %v529 = vunpack.c.l.b16 %v434
        %v530 = vunpack.c.h.b16 %v434
        %v531 = vunpack.c.l.b16 %v435
        %v532 = vunpack.c.h.b16 %v435
        %v533 = vunpack.c.l.b16 %v436
        %v534 = vunpack.c.h.b16 %v436
        %v535 = vunpack.c.l.b16 %v437
        %v536 = vunpack.c.h.b16 %v437
        %v537 = vunpack.c.l.b16 %v438
        %v538 = vunpack.c.h.b16 %v438
        %v539 = vunpack.c.l.b16 %v439
        %v540 = vunpack.c.h.b16 %v439
        %v541 = vunpack.c.l.b16 %v440
        %v542 = vunpack.c.h.b16 %v440
        %v543 = vunpack.c.l.b16 %v441
        %v544 = vunpack.c.h.b16 %v441
        %v545 = vunpack.c.l.b16 %v442
        %v546 = vunpack.c.h.b16 %v442
        %v547 = vunpack.c.l.b16 %v443
        %v548 = vunpack.c.h.b16 %v443
        %v549 = vunpack.c.l.b16 %v444
        %v550 = vunpack.c.h.b16 %v444
        %v551 = vunpack.c.l.b16 %v445
        %v552 = vunpack.c.h.b16 %v445
        %v553 = vunpack.c.l.b16 %v446
        %v554 = vunpack.c.h.b16 %v446
        %v555 = vunpack.c.l.b16 %v447
        %v556 = vunpack.c.h.b16 %v447
        %v557 = vunpack.c.l.b16 %v448
        %v558 = vunpack.c.h.b16 %v448
        %v559 = vunpack.c.l.b16 %v449
        %v560 = vunpack.c.h.b16 %v449
        %v561 = vunpack.c.l.b16 %v450
        %v562 = vunpack.c.h.b16 %v450
        %v563 = vunpack.c.l.b16 %v451
        %v564 = vunpack.c.h.b16 %v451
        %v565 = vunpack.c.l.b16 %v452
        %v566 = vunpack.c.h.b16 %v452
        %v567 = vunpack.c.l.b16 %v453
        %v568 = vunpack.c.h.b16 %v453
        %v569 = vunpack.c.l.b16 %v454
        %v570 = vunpack.c.h.b16 %v454
        %v571 = vunpack.c.l.b16 %v455
        %v572 = vunpack.c.h.b16 %v455
        %v573 = vunpack.c.l.b16 %v456
        %v574 = vunpack.c.h.b16 %v456
        %v575 = vpack.c.b16 %v515, %v511
        %v576 = vpack.c.b16 %v516, %v512
        %v577 = vpack.c.b16 %v517, %v513
        %v578 = vpack.c.b16 %v518, %v514
        %v579 = vpack.c.b16 %v523, %v519
        %v580 = vpack.c.b16 %v524, %v520
        %v581 = vpack.c.b16 %v525, %v521
        %v582 = vpack.c.b16 %v526, %v522
        %v583 = vpack.c.b16 %v531, %v527
        %v584 = vpack.c.b16 %v532, %v528
        %v585 = vpack.c.b16 %v533, %v529
        %v586 = vpack.c.b16 %v534, %v530
        %v587 = vpack.c.b16 %v539, %v535
        %v588 = vpack.c.b16 %v540, %v536
        %v589 = vpack.c.b16 %v541, %v537
        %v590 = vpack.c.b16 %v542, %v538
        %v591 = vpack.c.b16 %v547, %v543
        %v592 = vpack.c.b16 %v548, %v544
        %v593 = vpack.c.b16 %v549, %v545
        %v594 = vpack.c.b16 %v550, %v546
        %v595 = vpack.c.b16 %v555, %v551
        %v596 = vpack.c.b16 %v556, %v552
        %v597 = vpack.c.b16 %v557, %v553
        %v598 = vpack.c.b16 %v558, %v554
        %v599 = vpack.c.b16 %v563, %v559
        %v600 = vpack.c.b16 %v564, %v560
        %v601 = vpack.c.b16 %v565, %v561
        %v602 = vpack.c.b16 %v566, %v562
        %v603 = vpack.c.b16 %v571, %v567
        %v604 = vpack.c.b16 %v572, %v568
        %v605 = vpack.c.b16 %v573, %v569
        %v606 = vpack.c.b16 %v574, %v570
        %639 = vmatprep.subr.bf16.mxu0 %v576
        %640 = vmatpush1.bf16.msra.mxu0 %v575
        %641 = vmatprep.subr.bf16.mxu0 %v580
        %642 = vmatpush1.bf16.msra.mxu0 %v579
        %643 = vmatprep.subr.bf16.mxu0 %v584
        %644 = vmatpush1.bf16.msra.mxu0 %v583
        %645 = vmatprep.subr.bf16.mxu0 %v588
        %646 = vmatpush1.bf16.msra.mxu0 %v587
        %647 = vmatprep.subr.bf16.mxu0 %v592
        %648 = vmatpush1.bf16.msra.mxu0 %v591
        %649 = vmatprep.subr.bf16.mxu0 %v596
        %650 = vmatpush1.bf16.msra.mxu0 %v595
        %651 = vmatprep.subr.bf16.mxu0 %v600
        %652 = vmatpush1.bf16.msra.mxu0 %v599
        %653 = vmatprep.subr.bf16.mxu0 %v604
        %654 = vmatpush1.bf16.msra.mxu0 %v603
        %655 = vmatprep.subr.bf16.mxu0 0
        %656 = vmatpush1.bf16.msra.mxu0 0
        %657 = vmatprep.subr.bf16.mxu0 0
        %658 = vmatpush1.bf16.msra.mxu0 0
        %659 = vmatprep.subr.bf16.mxu0 0
        %660 = vmatpush1.bf16.msra.mxu0 0
        %661 = vmatprep.subr.bf16.mxu0 0
        %662 = vmatpush1.bf16.msra.mxu0 0
        %663 = vmatprep.subr.bf16.mxu0 0
        %664 = vmatpush1.bf16.msra.mxu0 0
        %665 = vmatprep.subr.bf16.mxu0 0
        %666 = vmatpush1.bf16.msra.mxu0 0
        %667 = vmatprep.subr.bf16.mxu0 0
        %668 = vmatpush1.bf16.msra.mxu0 0
        %669 = vmatprep.subr.bf16.mxu0 0
        %670 = vmatpush1.bf16.msra.mxu0 0
        %671 = vmatprep.mubr.bf16.mxu0 0
        %672 = vmatmul.mubr.bf16.gmra.mrb[0].mxu0 %v424
        %v673 = vpop.f32.mrb[0].mxu0
        %v674 = vadd.f32 %v462, %v673
        %v675 = vpop.f32.mrb[0].mxu0
        %v676 = vadd.f32 %v466, %v675
        %v677 = vpop.f32.mrb[0].mxu0
        %v678 = vadd.f32 %v462, %v677
        %v679 = vpop.f32.mrb[0].mxu0
        %v680 = vadd.f32 %v466, %v679
        %681 = vdwg.mxu0
        %682 = vmatprep.subr.bf16.mxu0 %v578
        %683 = vmatpush1.bf16.msra.mxu0 %v577
        %684 = vmatprep.subr.bf16.mxu0 %v582
        %685 = vmatpush1.bf16.msra.mxu0 %v581
        %686 = vmatprep.subr.bf16.mxu0 %v586
        %687 = vmatpush1.bf16.msra.mxu0 %v585
        %688 = vmatprep.subr.bf16.mxu0 %v590
        %689 = vmatpush1.bf16.msra.mxu0 %v589
        %690 = vmatprep.subr.bf16.mxu0 %v594
        %691 = vmatpush1.bf16.msra.mxu0 %v593
        %692 = vmatprep.subr.bf16.mxu0 %v598
        %693 = vmatpush1.bf16.msra.mxu0 %v597
        %694 = vmatprep.subr.bf16.mxu0 %v602
        %695 = vmatpush1.bf16.msra.mxu0 %v601
        %696 = vmatprep.subr.bf16.mxu0 %v606
        %697 = vmatpush1.bf16.msra.mxu0 %v605
        %698 = vmatprep.subr.bf16.mxu0 0
        %699 = vmatpush1.bf16.msra.mxu0 0
        %700 = vmatprep.subr.bf16.mxu0 0
        %701 = vmatpush1.bf16.msra.mxu0 0
        %702 = vmatprep.subr.bf16.mxu0 0
        %703 = vmatpush1.bf16.msra.mxu0 0
        %704 = vmatprep.subr.bf16.mxu0 0
        %705 = vmatpush1.bf16.msra.mxu0 0
        %706 = vmatprep.subr.bf16.mxu0 0
        %707 = vmatpush1.bf16.msra.mxu0 0
        %708 = vmatprep.subr.bf16.mxu0 0
        %709 = vmatpush1.bf16.msra.mxu0 0
        %710 = vmatprep.subr.bf16.mxu0 0
        %711 = vmatpush1.bf16.msra.mxu0 0
        %712 = vmatprep.subr.bf16.mxu0 0
        %713 = vmatpush1.bf16.msra.mxu0 0
        %714 = vmatprep.mubr.bf16.mxu0 0
        %715 = vmatmul.mubr.bf16.gmra.mrb[0].mxu0 %v424
        %v716 = vpop.f32.mrb[0].mxu0
        %v717 = vadd.f32 %v470, %v716
        %v718 = vpop.f32.mrb[0].mxu0
        %v719 = vadd.f32 %v474, %v718
        %v720 = vpop.f32.mrb[0].mxu0
        %v721 = vadd.f32 %v470, %v720
        %v722 = vpop.f32.mrb[0].mxu0
        %v723 = vadd.f32 %v474, %v722
        %724 = vdwg.mxu0
        %v725 = vxor.u32 %v674, 2147483648
        %v726 = vxor.u32 %v676, 2147483648
        %v727 = vxor.u32 %v717, 2147483648
        %v728 = vxor.u32 %v719, 2147483648
        %v729 = vxor.u32 %v678, 2147483648
        %v730 = vxor.u32 %v680, 2147483648
        %v731 = vxor.u32 %v721, 2147483648
        %v732 = vxor.u32 %v723, 2147483648
        %v733 = vmul.f32 %v725, 1.442695
        %v734 = vpow.pop %v733
        %v735 = vmul.f32 %v726, 1.442695
        %v736 = vpow.pop %v735
        %v737 = vmul.f32 %v727, 1.442695
        %v738 = vpow.pop %v737
        %v739 = vmul.f32 %v728, 1.442695
        %v740 = vpow.pop %v739
        %v741 = vmul.f32 %v729, 1.442695
        %v742 = vpow.pop %v741
        %v743 = vmul.f32 %v730, 1.442695
        %v744 = vpow.pop %v743
        %v745 = vmul.f32 %v731, 1.442695
        %v746 = vpow.pop %v745
        %v747 = vmul.f32 %v732, 1.442695
        %v748 = vpow.pop %v747
        %v749 = vadd.f32 %v734, 1.0
        %v750 = vadd.f32 %v736, 1.0
        %v751 = vadd.f32 %v738, 1.0
        %v752 = vadd.f32 %v740, 1.0
        %v753 = vadd.f32 %v742, 1.0
        %v754 = vadd.f32 %v744, 1.0
        %v755 = vadd.f32 %v746, 1.0
        %v756 = vadd.f32 %v748, 1.0
        %v757 = vrcp.pop %v749
        %v758 = vmul.f32 1.0, %v757
        %v759 = vrcp.pop %v750
        %v760 = vmul.f32 1.0, %v759
        %v761 = vrcp.pop %v751
        %v762 = vmul.f32 1.0, %v761
        %v763 = vrcp.pop %v752
        %v764 = vmul.f32 1.0, %v763
        %v765 = vrcp.pop %v753
        %v766 = vmul.f32 1.0, %v765
        %v767 = vrcp.pop %v754
        %v768 = vmul.f32 1.0, %v767
        %v769 = vrcp.pop %v755
        %v770 = vmul.f32 1.0, %v769
        %v771 = vrcp.pop %v756
        %v772 = vmul.f32 1.0, %v771
        %v773 = vmul.f32 %v674, %v758
        %v774 = vmul.f32 %v676, %v760
        %v775 = vmul.f32 %v717, %v762
        %v776 = vmul.f32 %v719, %v764
        %v777 = vmul.f32 %v678, %v766
        %v778 = vmul.f32 %v680, %v768
        %v779 = vmul.f32 %v721, %v770
        %v780 = vmul.f32 %v723, %v772
        %v781 = vpack.c.bf16 %v777, %v773
        %v782 = vpack.c.bf16 %v778, %v774
        %v783 = vpack.c.bf16 %v779, %v775
        %v784 = vpack.c.bf16 %v780, %v776
        %v785 = vld [vmem:[#allocation9] sm:$0xf]
        %v786 = vld [vmem:[#allocation9 + $0x4] sm:$0xf]
        %v787 = vld [vmem:[#allocation9 + $0x8] sm:$0xf]
        %v788 = vld [vmem:[#allocation9 + $0xc] sm:$0xf]
        %v789 = vld [vmem:[#allocation9 + $0x10] sm:$0xf]
        %v790 = vld [vmem:[#allocation9 + $0x14] sm:$0xf]
        %v791 = vld [vmem:[#allocation9 + $0x18] sm:$0xf]
        %v792 = vld [vmem:[#allocation9 + $0x1c] sm:$0xf]
        %v793 = vld [vmem:[#allocation9 + $0x20] sm:$0xf]
        %v794 = vld [vmem:[#allocation9 + $0x24] sm:$0xf]
        %v795 = vld [vmem:[#allocation9 + $0x28] sm:$0xf]
        %v796 = vld [vmem:[#allocation9 + $0x2c] sm:$0xf]
        %v797 = vld [vmem:[#allocation9 + $0x30] sm:$0xf]
        %v798 = vld [vmem:[#allocation9 + $0x34] sm:$0xf]
        %v799 = vld [vmem:[#allocation9 + $0x38] sm:$0xf]
        %v800 = vld [vmem:[#allocation9 + $0x3c] sm:$0xf]
        %v801 = vld [vmem:[#allocation9 + $0x40] sm:$0xf]
        %v802 = vld [vmem:[#allocation9 + $0x44] sm:$0xf]
        %v803 = vld [vmem:[#allocation9 + $0x48] sm:$0xf]
        %v804 = vld [vmem:[#allocation9 + $0x4c] sm:$0xf]
        %v805 = vld [vmem:[#allocation9 + $0x50] sm:$0xf]
        %v806 = vld [vmem:[#allocation9 + $0x54] sm:$0xf]
        %v807 = vld [vmem:[#allocation9 + $0x58] sm:$0xf]
        %v808 = vld [vmem:[#allocation9 + $0x5c] sm:$0xf]
        %v809 = vld [vmem:[#allocation9 + $0x60] sm:$0xf]
        %v810 = vld [vmem:[#allocation9 + $0x64] sm:$0xf]
        %v811 = vld [vmem:[#allocation9 + $0x68] sm:$0xf]
        %v812 = vld [vmem:[#allocation9 + $0x6c] sm:$0xf]
        %v813 = vld [vmem:[#allocation9 + $0x70] sm:$0xf]
        %v814 = vld [vmem:[#allocation9 + $0x74] sm:$0xf]
        %v815 = vld [vmem:[#allocation9 + $0x78] sm:$0xf]
        %v816 = vld [vmem:[#allocation9 + $0x7c] sm:$0xf]
        %v817 = vld [vmem:[#allocation9 + $0x80] sm:$0xf]
        %v818 = vld [vmem:[#allocation9 + $0x84] sm:$0xf]
        %v819 = vld [vmem:[#allocation9 + $0x88] sm:$0xf]
        %v820 = vld [vmem:[#allocation9 + $0x8c] sm:$0xf]
        %v821 = vld [vmem:[#allocation9 + $0x90] sm:$0xf]
        %v822 = vld [vmem:[#allocation9 + $0x94] sm:$0xf]
        %v823 = vld [vmem:[#allocation9 + $0x98] sm:$0xf]
        %v824 = vld [vmem:[#allocation9 + $0x9c] sm:$0xf]
        %v825 = vld [vmem:[#allocation9 + $0xa0] sm:$0xf]
        %v826 = vld [vmem:[#allocation9 + $0xa4] sm:$0xf]
        %v827 = vld [vmem:[#allocation9 + $0xa8] sm:$0xf]
        %v828 = vld [vmem:[#allocation9 + $0xac] sm:$0xf]
        %v829 = vld [vmem:[#allocation9 + $0xb0] sm:$0xf]
        %v830 = vld [vmem:[#allocation9 + $0xb4] sm:$0xf]
        %v831 = vld [vmem:[#allocation9 + $0xb8] sm:$0xf]
        %v832 = vld [vmem:[#allocation9 + $0xbc] sm:$0xf]
        %v833 = vld [vmem:[#allocation9 + $0xc0] sm:$0xf]
        %v834 = vld [vmem:[#allocation9 + $0xc4] sm:$0xf]
        %v835 = vld [vmem:[#allocation9 + $0xc8] sm:$0xf]
        %v836 = vld [vmem:[#allocation9 + $0xcc] sm:$0xf]
        %v837 = vld [vmem:[#allocation9 + $0xd0] sm:$0xf]
        %v838 = vld [vmem:[#allocation9 + $0xd4] sm:$0xf]
        %v839 = vld [vmem:[#allocation9 + $0xd8] sm:$0xf]
        %v840 = vld [vmem:[#allocation9 + $0xdc] sm:$0xf]
        %v841 = vld [vmem:[#allocation9 + $0xe0] sm:$0xf]
        %v842 = vld [vmem:[#allocation9 + $0xe4] sm:$0xf]
        %v843 = vld [vmem:[#allocation9 + $0xe8] sm:$0xf]
        %v844 = vld [vmem:[#allocation9 + $0xec] sm:$0xf]
        %v845 = vld [vmem:[#allocation9 + $0xf0] sm:$0xf]
        %v846 = vld [vmem:[#allocation9 + $0xf4] sm:$0xf]
        %v847 = vld [vmem:[#allocation9 + $0xf8] sm:$0xf]
        %v848 = vld [vmem:[#allocation9 + $0xfc] sm:$0xf]
        %v849 = vld [vmem:[#allocation10] sm:$0x1]
        %v851 = vlaneseq
        %v852 = vshrl.u32 %v851, 7
        %v853 = vsub.s32 0, %v852
        %v854 = vrot.slane %v849, %v853
        %v920 = vunpack.c.l.b16 %v785
        %v921 = vunpack.c.l.b16 %v786
        %v922 = vunpack.c.l.b16 %v787
        %v923 = vunpack.c.l.b16 %v788
        %v924 = vunpack.c.l.b16 %v789
        %v925 = vunpack.c.l.b16 %v790
        %v926 = vunpack.c.l.b16 %v791
        %v927 = vunpack.c.l.b16 %v792
        %v928 = vunpack.c.l.b16 %v793
        %v929 = vunpack.c.l.b16 %v794
        %v930 = vunpack.c.l.b16 %v795
        %v931 = vunpack.c.l.b16 %v796
        %v932 = vunpack.c.l.b16 %v797
        %v933 = vunpack.c.l.b16 %v798
        %v934 = vunpack.c.l.b16 %v799
        %v935 = vunpack.c.l.b16 %v800
        %v936 = vunpack.c.l.b16 %v801
        %v937 = vunpack.c.l.b16 %v802
        %v938 = vunpack.c.l.b16 %v803
        %v939 = vunpack.c.l.b16 %v804
        %v940 = vunpack.c.l.b16 %v805
        %v941 = vunpack.c.l.b16 %v806
        %v942 = vunpack.c.l.b16 %v807
        %v943 = vunpack.c.l.b16 %v808
        %v944 = vunpack.c.l.b16 %v809
        %v945 = vunpack.c.l.b16 %v810
        %v946 = vunpack.c.l.b16 %v811
        %v947 = vunpack.c.l.b16 %v812
        %v948 = vunpack.c.l.b16 %v813
        %v949 = vunpack.c.l.b16 %v814
        %v950 = vunpack.c.l.b16 %v815
        %v951 = vunpack.c.l.b16 %v816
        %v952 = vunpack.c.l.b16 %v817
        %v953 = vunpack.c.l.b16 %v818
        %v954 = vunpack.c.l.b16 %v819
        %v955 = vunpack.c.l.b16 %v820
        %v956 = vunpack.c.l.b16 %v821
        %v957 = vunpack.c.l.b16 %v822
        %v958 = vunpack.c.l.b16 %v823
        %v959 = vunpack.c.l.b16 %v824
        %v960 = vunpack.c.l.b16 %v825
        %v961 = vunpack.c.l.b16 %v826
        %v962 = vunpack.c.l.b16 %v827
        %v963 = vunpack.c.l.b16 %v828
        %v964 = vunpack.c.l.b16 %v829
        %v965 = vunpack.c.l.b16 %v830
        %v966 = vunpack.c.l.b16 %v831
        %v967 = vunpack.c.l.b16 %v832
        %v968 = vunpack.c.l.b16 %v833
        %v969 = vunpack.c.l.b16 %v834
        %v970 = vunpack.c.l.b16 %v835
        %v971 = vunpack.c.l.b16 %v836
        %v972 = vunpack.c.l.b16 %v837
        %v973 = vunpack.c.l.b16 %v838
        %v974 = vunpack.c.l.b16 %v839
        %v975 = vunpack.c.l.b16 %v840
        %v976 = vunpack.c.l.b16 %v841
        %v977 = vunpack.c.l.b16 %v842
        %v978 = vunpack.c.l.b16 %v843
        %v979 = vunpack.c.l.b16 %v844
        %v980 = vunpack.c.l.b16 %v845
        %v981 = vunpack.c.l.b16 %v846
        %v982 = vunpack.c.l.b16 %v847
        %v983 = vunpack.c.l.b16 %v848
        %v984 = vpack.c.b16 %v921, %v920
        %v985 = vpack.c.b16 %v923, %v922
        %v986 = vpack.c.b16 %v925, %v924
        %v987 = vpack.c.b16 %v927, %v926
        %v988 = vpack.c.b16 %v929, %v928
        %v989 = vpack.c.b16 %v931, %v930
        %v990 = vpack.c.b16 %v933, %v932
        %v991 = vpack.c.b16 %v935, %v934
        %v992 = vpack.c.b16 %v937, %v936
        %v993 = vpack.c.b16 %v939, %v938
        %v994 = vpack.c.b16 %v941, %v940
        %v995 = vpack.c.b16 %v943, %v942
        %v996 = vpack.c.b16 %v945, %v944
        %v997 = vpack.c.b16 %v947, %v946
        %v998 = vpack.c.b16 %v949, %v948
        %v999 = vpack.c.b16 %v951, %v950
        %v1000 = vpack.c.b16 %v953, %v952
        %v1001 = vpack.c.b16 %v955, %v954
        %v1002 = vpack.c.b16 %v957, %v956
        %v1003 = vpack.c.b16 %v959, %v958
        %v1004 = vpack.c.b16 %v961, %v960
        %v1005 = vpack.c.b16 %v963, %v962
        %v1006 = vpack.c.b16 %v965, %v964
        %v1007 = vpack.c.b16 %v967, %v966
        %v1008 = vpack.c.b16 %v969, %v968
        %v1009 = vpack.c.b16 %v971, %v970
        %v1010 = vpack.c.b16 %v973, %v972
        %v1011 = vpack.c.b16 %v975, %v974
        %v1012 = vpack.c.b16 %v977, %v976
        %v1013 = vpack.c.b16 %v979, %v978
        %v1014 = vpack.c.b16 %v981, %v980
        %v1015 = vpack.c.b16 %v983, %v982
        %1048 = vmatprep.subr.bf16.mxu0 0
        %1049 = vmatpush1.bf16.msra.mxu0 %v984
        %1050 = vmatprep.subr.bf16.mxu0 0
        %1051 = vmatpush1.bf16.msra.mxu0 %v985
        %1052 = vmatprep.subr.bf16.mxu0 0
        %1053 = vmatpush1.bf16.msra.mxu0 %v986
        %1054 = vmatprep.subr.bf16.mxu0 0
        %1055 = vmatpush1.bf16.msra.mxu0 %v987
        %1056 = vmatprep.subr.bf16.mxu0 0
        %1057 = vmatpush1.bf16.msra.mxu0 %v988
        %1058 = vmatprep.subr.bf16.mxu0 0
        %1059 = vmatpush1.bf16.msra.mxu0 %v989
        %1060 = vmatprep.subr.bf16.mxu0 0
        %1061 = vmatpush1.bf16.msra.mxu0 %v990
        %1062 = vmatprep.subr.bf16.mxu0 0
        %1063 = vmatpush1.bf16.msra.mxu0 %v991
        %1064 = vmatprep.subr.bf16.mxu0 0
        %1065 = vmatpush1.bf16.msra.mxu0 %v992
        %1066 = vmatprep.subr.bf16.mxu0 0
        %1067 = vmatpush1.bf16.msra.mxu0 %v993
        %1068 = vmatprep.subr.bf16.mxu0 0
        %1069 = vmatpush1.bf16.msra.mxu0 %v994
        %1070 = vmatprep.subr.bf16.mxu0 0
        %1071 = vmatpush1.bf16.msra.mxu0 %v995
        %1072 = vmatprep.subr.bf16.mxu0 0
        %1073 = vmatpush1.bf16.msra.mxu0 %v996
        %1074 = vmatprep.subr.bf16.mxu0 0
        %1075 = vmatpush1.bf16.msra.mxu0 %v997
        %1076 = vmatprep.subr.bf16.mxu0 0
        %1077 = vmatpush1.bf16.msra.mxu0 %v998
        %1078 = vmatprep.subr.bf16.mxu0 0
        %1079 = vmatpush1.bf16.msra.mxu0 %v999
        %1080 = vmatprep.mubr.bf16.mxu0 %v782
        %1081 = vmatmul.mubr.bf16.gmra.mrb[0].mxu0 %v781
        %v1082 = vpop.f32.mrb[0].mxu0
        %v1083 = vadd.f32 %v854, %v1082
        %v1084 = vpop.f32.mrb[0].mxu0
        %v1085 = vpop.f32.mrb[0].mxu0
        %v1086 = vadd.f32 %v854, %v1085
        %v1087 = vpop.f32.mrb[0].mxu0
        %1088 = vdwg.mxu0
        %1089 = vmatprep.subr.bf16.mxu0 0
        %1090 = vmatpush1.bf16.msra.mxu0 %v1000
        %1091 = vmatprep.subr.bf16.mxu0 0
        %1092 = vmatpush1.bf16.msra.mxu0 %v1001
        %1093 = vmatprep.subr.bf16.mxu0 0
        %1094 = vmatpush1.bf16.msra.mxu0 %v1002
        %1095 = vmatprep.subr.bf16.mxu0 0
        %1096 = vmatpush1.bf16.msra.mxu0 %v1003
        %1097 = vmatprep.subr.bf16.mxu0 0
        %1098 = vmatpush1.bf16.msra.mxu0 %v1004
        %1099 = vmatprep.subr.bf16.mxu0 0
        %1100 = vmatpush1.bf16.msra.mxu0 %v1005
        %1101 = vmatprep.subr.bf16.mxu0 0
        %1102 = vmatpush1.bf16.msra.mxu0 %v1006
        %1103 = vmatprep.subr.bf16.mxu0 0
        %1104 = vmatpush1.bf16.msra.mxu0 %v1007
        %1105 = vmatprep.subr.bf16.mxu0 0
        %1106 = vmatpush1.bf16.msra.mxu0 %v1008
        %1107 = vmatprep.subr.bf16.mxu0 0
        %1108 = vmatpush1.bf16.msra.mxu0 %v1009
        %1109 = vmatprep.subr.bf16.mxu0 0
        %1110 = vmatpush1.bf16.msra.mxu0 %v1010
        %1111 = vmatprep.subr.bf16.mxu0 0
        %1112 = vmatpush1.bf16.msra.mxu0 %v1011
        %1113 = vmatprep.subr.bf16.mxu0 0
        %1114 = vmatpush1.bf16.msra.mxu0 %v1012
        %1115 = vmatprep.subr.bf16.mxu0 0
        %1116 = vmatpush1.bf16.msra.mxu0 %v1013
        %1117 = vmatprep.subr.bf16.mxu0 0
        %1118 = vmatpush1.bf16.msra.mxu0 %v1014
        %1119 = vmatprep.subr.bf16.mxu0 0
        %1120 = vmatpush1.bf16.msra.mxu0 %v1015
        %1121 = vmatprep.mubr.bf16.mxu0 %v784
        %1122 = vmatmul.mubr.bf16.gmra.mrb[0].mxu0 %v783
        %v1123 = vpop.f32.mrb[0].mxu0
        %v1124 = vadd.f32 %v1083, %v1123
        %v1125 = vpop.f32.mrb[0].mxu0
        %v1126 = vpop.f32.mrb[0].mxu0
        %v1127 = vadd.f32 %v1086, %v1126
        %v1128 = vpop.f32.mrb[0].mxu0
        %1129 = vdwg.mxu0
        %v1130 = vmul.f32 %v1124, 0.5
        %v1131 = vmul.f32 %v1127, 0.5
        %v1132 = vadd.f32 %v381, %v1130
        %v1133 = vadd.f32 %v382, %v1131
        %v1134 = vpack.c.bf16 %v1133, %v1132
        %v1136 = vunpack.c.l.b16 %v1134
        %v1137 = vunpack.c.h.b16 %v1134
        %v1138 = vpack.c.b16 %v1136, %v1136
        %v1139 = vpack.c.b16 %v1137, %v1137
        %1142 = vst [vmem:[%s360] sm:$0xf] %v1138
        %1143 = vst [vmem:[%s360 + $0x4] sm:$0xf] %v1139
        %s1144 = sand.u32 %s182, 1
        %s1145 = sand.u32 %s182, 1
        %s1146 = smul.addr %s1145, 8
        %s1147 = scalar_lea.vmem [#allocation12], %s1146
        // Predicated region
        $region73: #{my_conformer_forward.6} parent=47 // pred_check
          %p1148 = pneg %p192
        $region74: #{my_conformer_forward.6} parent=47 // pred_check_branch
          %1150 = sbr.rel (%p1148) target = $region76
        $region75: #{my_conformer_forward.6} parent=47 // pred_region
          %s1151 = smul.u32 2, %s22
          %s1152 = ssub.s32 3, %s1151
          %p1153 = scmp.lt.s32.totalorder %s1152, 2
          %s1154 = scalar_select %p1153, %s1152, 2
          %s1155 = smul.u32 64, %s1154
          %p1156 = scmp.ne.s32.totalorder 0, %s1155
          %s1157 = smul.addr %s1151, 4
          %s1158 = scalar_lea.vmem %s7, %s1157
          // Predicated region
          $region77: #{my_conformer_forward.6} parent=75 // pred_check
            %p1159 = pneg %p1156
          $region78: #{my_conformer_forward.6} parent=75 // pred_check_branch
            %1161 = sbr.rel (%p1159) target = $region80
          $region79: #{my_conformer_forward.6} parent=75 // pred_region
            // Predicated region
            $region81: #{my_conformer_forward.6} parent=79 // pred_check
              _
            $region82: #{my_conformer_forward.6} parent=79 // pred_check_branch
              %1163 = sbr.rel target = $region84
            $region83: #{my_conformer_forward.6} parent=79 // pred_region
              // Predicated region
              $region103: #{my_conformer_forward.6} parent=83 // pred_check
                _
              $region104: #{my_conformer_forward.6} parent=83 // pred_check_branch
                %1214 = sbr.rel (0) target = $region106
              $region105: #{my_conformer_forward.6} parent=83 // pred_region
                %s1216 = sshrl.u32 %s1154, 1
                // While loop
                $region107: #{my_conformer_forward.6} parent=105 // loop_pre_header
                  _
                $region108: #{my_conformer_forward.6} parent=105 // loop_header
                  %s1218 = sphi 0, %s1220
                  %p1219 = scmp.ge.s32.totalorder %s1218, %s1216
                  %s1223 = sphi 0, %s1232
                  %s1224 = sphi %s1147, %s1235
                  %s1225 = sphi %s1158, %s1236
                $region109: #{my_conformer_forward.6} parent=105 // loop_header_branch
                  %1222 = sbr.rel (%p1219) target = $region113
                $region110: #{my_conformer_forward.6} parent=105 // loop_body
                  %v1226 = vld [vmem:[%s1224] sm:$0xf]
                  %1227 = vst [vmem:[%s1225] sm:$0xf] %v1226
                  %v1228 = vld [vmem:[%s1224 + $0x4] sm:$0xf]
                  %1229 = vst [vmem:[%s1225 + $0x4] sm:$0xf] %v1228
                  %s1230 = sadd.s32 1, %s1223
                  %p1231 = scmp.ge.s32.totalorder %s1230, %s1216
                  %s1232 = scalar_select %p1231, 0, %s1230
                  %s1233 = smul.u32 %s1232, 8
                  %s1234 = smul.u32 %s1232, 8
                  %s1235 = scalar_lea.vmem %s1147, %s1233 [#allocation12]
                  %s1236 = scalar_lea.vmem %s1158, %s1234
                $region111: #{my_conformer_forward.6} parent=105 // loop_footer
                  %s1220 = sadd.s32 %s1218, 1
                $region112: #{my_conformer_forward.6} parent=105 // loop_footer_branch
                  %1217 = sbr.rel target = $region108
                $region113: #{my_conformer_forward.6} parent=105 // loop_exit
                  _
                %s1237 = sshrl.u32 %s1154, 1
                %s1238 = sand.u32 %s1154, 1
                %s1239 = smul.u32 %s1237, 2
                %s1240 = smul.u32 4, %s1239
                %s1241 = scalar_lea.vmem %s1147, %s1240 [#allocation12]
                %s1242 = smul.u32 4, %s1239
                %s1243 = scalar_lea.vmem %s1158, %s1242
                // While loop
                $region114: #{my_conformer_forward.6} parent=105 // loop_pre_header
                  _
                $region115: #{my_conformer_forward.6} parent=105 // loop_header
                  %s1245 = sphi 0, %s1247
                  %p1246 = scmp.ge.s32.totalorder %s1245, %s1238
                  %s1250 = sphi 0, %s1257
                  %s1251 = sphi %s1241, %s1260
                  %s1252 = sphi %s1243, %s1261
                $region116: #{my_conformer_forward.6} parent=105 // loop_header_branch
                  %1249 = sbr.rel (%p1246) target = $region120
                $region117: #{my_conformer_forward.6} parent=105 // loop_body
                  %v1253 = vld [vmem:[%s1251] sm:$0xf]
                  %1254 = vst [vmem:[%s1252] sm:$0xf] %v1253
                  %s1255 = sadd.s32 1, %s1250
                  %p1256 = scmp.ge.s32.totalorder %s1255, %s1238
                  %s1257 = scalar_select %p1256, 0, %s1255
                  %s1258 = smul.u32 %s1257, 4
                  %s1259 = smul.u32 %s1257, 4
                  %s1260 = scalar_lea.vmem %s1241, %s1258 [#allocation12]
                  %s1261 = scalar_lea.vmem %s1243, %s1259
                $region118: #{my_conformer_forward.6} parent=105 // loop_footer
                  %s1247 = sadd.s32 %s1245, 1
                $region119: #{my_conformer_forward.6} parent=105 // loop_footer_branch
                  %1244 = sbr.rel target = $region115
                $region120: #{my_conformer_forward.6} parent=105 // loop_exit
                  _
              $region106: #{my_conformer_forward.6} parent=83 // pred_fallthru
                _
            $region84: #{my_conformer_forward.6} parent=79 // pred_fallthru
              _
            // Predicated region
            $region85: #{my_conformer_forward.6} parent=79 // pred_check
              _
            $region86: #{my_conformer_forward.6} parent=79 // pred_check_branch
              %1165 = sbr.rel (0) target = $region88
            $region87: #{my_conformer_forward.6} parent=79 // pred_region
              %s1167 = sshrl.u32 %s1154, 1
              // While loop
              $region89: #{my_conformer_forward.6} parent=87 // loop_pre_header
                _
              $region90: #{my_conformer_forward.6} parent=87 // loop_header
                %s1169 = sphi 0, %s1171
                %p1170 = scmp.ge.s32.totalorder %s1169, %s1167
                %s1174 = sphi 0, %s1183
                %s1175 = sphi %s1147, %s1186
                %s1176 = sphi %s1158, %s1187
              $region91: #{my_conformer_forward.6} parent=87 // loop_header_branch
                %1173 = sbr.rel (%p1170) target = $region95
              $region92: #{my_conformer_forward.6} parent=87 // loop_body
                %v1177 = vld [vmem:[%s1175] sm:$0xf]
                %1178 = vst [vmem:[%s1176] sm:$0xf] %v1177
                %v1179 = vld [vmem:[%s1175 + $0x4] sm:$0xf]
                %1180 = vst [vmem:[%s1176 + $0x4] sm:$0xf] %v1179
                %s1181 = sadd.s32 1, %s1174
                %p1182 = scmp.ge.s32.totalorder %s1181, %s1167
                %s1183 = scalar_select %p1182, 0, %s1181
                %s1184 = smul.u32 %s1183, 8
                %s1185 = smul.u32 %s1183, 8
                %s1186 = scalar_lea.vmem %s1147, %s1184 [#allocation12]
                %s1187 = scalar_lea.vmem %s1158, %s1185
              $region93: #{my_conformer_forward.6} parent=87 // loop_footer
                %s1171 = sadd.s32 %s1169, 1
              $region94: #{my_conformer_forward.6} parent=87 // loop_footer_branch
                %1168 = sbr.rel target = $region90
              $region95: #{my_conformer_forward.6} parent=87 // loop_exit
                _
              %s1188 = sshrl.u32 %s1154, 1
              %s1189 = sand.u32 %s1154, 1
              %s1190 = smul.u32 %s1188, 2
              %s1191 = smul.u32 4, %s1190
              %s1192 = scalar_lea.vmem %s1147, %s1191 [#allocation12]
              %s1193 = smul.u32 4, %s1190
              %s1194 = scalar_lea.vmem %s1158, %s1193
              // While loop
              $region96: #{my_conformer_forward.6} parent=87 // loop_pre_header
                _
              $region97: #{my_conformer_forward.6} parent=87 // loop_header
                %s1196 = sphi 0, %s1198
                %p1197 = scmp.ge.s32.totalorder %s1196, %s1189
                %s1201 = sphi 0, %s1208
                %s1202 = sphi %s1192, %s1211
                %s1203 = sphi %s1194, %s1212
              $region98: #{my_conformer_forward.6} parent=87 // loop_header_branch
                %1200 = sbr.rel (%p1197) target = $region102
              $region99: #{my_conformer_forward.6} parent=87 // loop_body
                %v1204 = vld [vmem:[%s1202] sm:$0xf]
                %1205 = vst [vmem:[%s1203] sm:$0xf] %v1204
                %s1206 = sadd.s32 1, %s1201
                %p1207 = scmp.ge.s32.totalorder %s1206, %s1189
                %s1208 = scalar_select %p1207, 0, %s1206
                %s1209 = smul.u32 %s1208, 4
                %s1210 = smul.u32 %s1208, 4
                %s1211 = scalar_lea.vmem %s1192, %s1209 [#allocation12]
                %s1212 = scalar_lea.vmem %s1194, %s1210
              $region100: #{my_conformer_forward.6} parent=87 // loop_footer
                %s1198 = sadd.s32 %s1196, 1
              $region101: #{my_conformer_forward.6} parent=87 // loop_footer_branch
                %1195 = sbr.rel target = $region97
              $region102: #{my_conformer_forward.6} parent=87 // loop_exit
                _
            $region88: #{my_conformer_forward.6} parent=79 // pred_fallthru
              _
          $region80: #{my_conformer_forward.6} parent=75 // pred_fallthru
            _
          %1262 = vnop
        $region76: #{my_conformer_forward.6} parent=47 // pred_fallthru
          _
      $region48: #{my_conformer_forward.6} parent=5 // pred_fallthru
        _
      %p1263 = scmp.le.s32.totalorder 2, %s17
      // Predicated region
      $region121: #{my_conformer_forward.6} parent=5 // pred_check
        %p1264 = pneg %p1263
      $region122: #{my_conformer_forward.6} parent=5 // pred_check_branch
        %1266 = sbr.rel (%p1264) target = $region124
      $region123: #{my_conformer_forward.6} parent=5 // pred_region
        %s1267 = ssub.s32 %s17, 2
        // Predicated region
        $region125: #{my_conformer_forward.6} parent=123 // pred_check
          %p1268 = pneg %p198
        $region126: #{my_conformer_forward.6} parent=123 // pred_check_branch
          %1270 = sbr.rel (%p1268) target = $region128
        $region127: #{my_conformer_forward.6} parent=123 // pred_region
          %s1271 = sand.u32 %s183, 1
          %s1272 = sand.u32 %s183, 1
          %s1273 = smul.addr %s1272, 8
          %s1274 = scalar_lea.vmem [#allocation12], %s1273
        $region128: #{my_conformer_forward.6} parent=123 // pred_fallthru
          _
      $region124: #{my_conformer_forward.6} parent=5 // pred_fallthru
        _
    $region6: #{my_conformer_forward.6} parent=1 // loop_footer
      %s21 = sadd.s32 1, %s17
    $region7: #{my_conformer_forward.6} parent=1 // loop_footer_branch
      %16 = sbr.rel target = $region3
    $region8: #{my_conformer_forward.6} parent=1 // loop_exit
      _
    %1275 = vsyncpa [#allocation3], 1
    %s1276 = scalar_lea.sflag [#allocation3], 1
    %1277 = vsyncpa %s1276, 1
    %1278 = vsyncpa [#allocation5], 1
    %1279 = vsyncpa [#allocation8], 1
    %1280 = vsyncpa [#allocation11], 1

// kernel: my_conformer_forward.8
$region0: #{my_conformer_forward.8}
  #allocation0 [shape = 'u32[]', space=smem, size = 0x4, offset = 0x4, fixed_abs, tag = 'smem constant byte address 0x4 - core index']
  #allocation1 [shape = 'u32[144,128]{1,0:T(1,128)}', space=vmem, size = 0x12000, scoped, tag = 'internal scratch']
  %s0 = inlined_call_operand.vmem [shape: bf16[2,4,9,32], index: 0, kind: input, shape index: {}]
  %s1 = inlined_call_operand.vmem [shape: bf16[2,4,9,32], index: 1, kind: input, shape index: {}]
  %s2 = inlined_call_operand.vmem [shape: bf16[2,4,9,32], index: 2, kind: input, shape index: {}]
  %s3 = inlined_call_operand.vmem [shape: bf16[32,128], index: 3, kind: input, shape index: {}]
  %s4 = inlined_call_operand.hbm [shape: bf16[128,128], index: 4, kind: input, shape index: {}]
  %s5 = inlined_call_operand.hbm [shape: f32[1,128], index: 5, kind: input, shape index: {}]
  %s6 = inlined_call_operand.vmem [shape: bf16[2,9,128], index: 6, kind: input, shape index: {}]
  %s7 = inlined_call_operand.vmem [shape: bf16[2,9,128], index: 7, kind: output, shape index: {0}]
  %s8 = inlined_call_operand.vmem [shape: bf16[2,4,9,9], index: 8, kind: output, shape index: {1}]
  %9 = xla_tuple %s7, %s8
  %s10 = sld [smem:[#allocation0]]
  $region77: #{my_conformer_forward.8} parent=0
    _
  %s12 = ssub.s32 1, %s10
  %s13 = scalar_select 0, %s12, %s10
  $region1: #{my_conformer_forward.8} parent=0
    #allocation2 [shape = 'u8[32768]{0}', space=vmem, size = 0x8000, scoped, tag = 'input window, operand 4, single buffered']
    #allocation3 [shape = 's32[2]{0}', space=sflag, size = 0x8, scoped, tag = 'scoped memory for my_conformer_forward.8']
    #allocation4 [shape = 'u8[512]{0}', space=vmem, size = 0x400, scoped, tag = 'input window, operand 5, single buffered']
    #allocation5 [shape = 's32[1]{0}', space=sflag, size = 0x4, scoped, tag = 'scoped memory for my_conformer_forward.8']
    %14 = vsyncpa [#allocation3], 0
    %15 = vsyncpa [#allocation5], 0
    loop: start=0, step=1, limit=4
    $region2: #{my_conformer_forward.8} parent=1 // loop_pre_header
      _
    $region3: #{my_conformer_forward.8} parent=1 // loop_header
      %s17 = sphi 0, %s21
      %p18 = scmp.ge.s32.totalorder %s17, 4
      %s27 = sphi 0, %s29
      %s30 = sphi 0, %s27
      %s31 = sphi 0, %s30
      %s47 = sphi 0, %s31
      %s53 = sphi 0, %s55
      %s56 = sphi 0, %s53
      %s57 = sphi 0, %s56
      %s73 = sphi 0, %s57
      %s79 = sphi 0, %s81
      %s82 = sphi 0, %s79
      %s83 = sphi 0, %s82
      %s99 = sphi 0, %s83
      %s103 = sphi 0, %s103
      %s105 = sphi 0, %s103
      %s106 = sphi 0, %s105
      %s120 = sphi 0, %s106
      %s124 = sphi 0, %s124
      %s126 = sphi 0, %s124
      %s127 = sphi 0, %s126
      %s141 = sphi 0, %s127
      %s145 = sphi 0, %s145
      %s147 = sphi 0, %s145
      %s148 = sphi 0, %s147
      %s162 = sphi 0, %s148
      %s168 = sphi 0, %s170
      %s171 = sphi 0, %s168
      %s172 = sphi 0, %s171
      %s188 = sphi 0, %s172
      %s194 = sphi 0, %s196
      %s197 = sphi 0, %s194
      %s198 = sphi 0, %s197
      %s214 = sphi 0, %s198
      %s220 = sphi 0, %s222
      %s223 = sphi 0, %s220
      %s224 = sphi 0, %s223
      %s240 = sphi 0, %s224
    $region4: #{my_conformer_forward.8} parent=1 // loop_header_branch
      %20 = sbr.rel (%p18) target = $region8
    $region5: #{my_conformer_forward.8} parent=1 // loop_body
      %s22 = ssub.s32 %s17, 1
      %s23 = ssub.s32 %s17, 2
      %s24 = sadd.s32 %s17, 1
      %s25 = ssub.s32 %s17, %s24
      %p26 = scmp.eq.s32.totalorder %s25, 0
      %s28 = sadd.s32 %s27, 1
      %s29 = scalar_select %p26, %s27, %s28
      %p32 = pneg %p26
      %p33 = scmp.eq.s32.totalorder %s17, 1
      %p34 = por %p32, %p33
      %p35 = scmp.ne.s32.totalorder %s27, %s30
      %p36 = scmp.eq.s32.totalorder %s17, 0
      %p37 = por %p35, %p36
      %p38 = scmp.ne.s32.totalorder %s27, %s30
      %p39 = scmp.eq.s32.totalorder %s22, 1
      %p40 = por %p38, %p39
      %p41 = scmp.ne.s32.totalorder %s30, %s31
      %p42 = scmp.eq.s32.totalorder %s22, 0
      %p43 = por %p41, %p42
      %p44 = scmp.ne.s32.totalorder %s30, %s31
      %p45 = scmp.eq.s32.totalorder %s23, 1
      %p46 = por %p44, %p45
      %p48 = scmp.ne.s32.totalorder %s31, %s47
      %p49 = scmp.eq.s32.totalorder %s23, 0
      %p50 = por %p48, %p49
      %s51 = ssub.s32 %s17, %s24
      %p52 = scmp.eq.s32.totalorder %s51, 0
      %s54 = sadd.s32 %s53, 1
      %s55 = scalar_select %p52, %s53, %s54
      %p58 = pneg %p52
      %p59 = scmp.eq.s32.totalorder %s17, 1
      %p60 = por %p58, %p59
      %p61 = scmp.ne.s32.totalorder %s53, %s56
      %p62 = scmp.eq.s32.totalorder %s17, 0
      %p63 = por %p61, %p62
      %p64 = scmp.ne.s32.totalorder %s53, %s56
      %p65 = scmp.eq.s32.totalorder %s22, 1
      %p66 = por %p64, %p65
      %p67 = scmp.ne.s32.totalorder %s56, %s57
      %p68 = scmp.eq.s32.totalorder %s22, 0
      %p69 = por %p67, %p68
      %p70 = scmp.ne.s32.totalorder %s56, %s57
      %p71 = scmp.eq.s32.totalorder %s23, 1
      %p72 = por %p70, %p71
      %p74 = scmp.ne.s32.totalorder %s57, %s73
      %p75 = scmp.eq.s32.totalorder %s23, 0
      %p76 = por %p74, %p75
      %s77 = ssub.s32 %s17, %s24
      %p78 = scmp.eq.s32.totalorder %s77, 0
      %s80 = sadd.s32 %s79, 1
      %s81 = scalar_select %p78, %s79, %s80
      %p84 = pneg %p78
      %p85 = scmp.eq.s32.totalorder %s17, 1
      %p86 = por %p84, %p85
      %p87 = scmp.ne.s32.totalorder %s79, %s82
      %p88 = scmp.eq.s32.totalorder %s17, 0
      %p89 = por %p87, %p88
      %p90 = scmp.ne.s32.totalorder %s79, %s82
      %p91 = scmp.eq.s32.totalorder %s22, 1
      %p92 = por %p90, %p91
      %p93 = scmp.ne.s32.totalorder %s82, %s83
      %p94 = scmp.eq.s32.totalorder %s22, 0
      %p95 = por %p93, %p94
      %p96 = scmp.ne.s32.totalorder %s82, %s83
      %p97 = scmp.eq.s32.totalorder %s23, 1
      %p98 = por %p96, %p97
      %p100 = scmp.ne.s32.totalorder %s83, %s99
      %p101 = scmp.eq.s32.totalorder %s23, 0
      %p102 = por %p100, %p101
      %s104 = sadd.s32 %s103, 1
      %p107 = scmp.eq.s32.totalorder %s17, 1
      %p108 = scmp.ne.s32.totalorder %s103, %s105
      %p109 = scmp.eq.s32.totalorder %s17, 0
      %p110 = por %p108, %p109
      %p111 = scmp.ne.s32.totalorder %s103, %s105
      %p112 = scmp.eq.s32.totalorder %s22, 1
      %p113 = por %p111, %p112
      %p114 = scmp.ne.s32.totalorder %s105, %s106
      %p115 = scmp.eq.s32.totalorder %s22, 0
      %p116 = por %p114, %p115
      %p117 = scmp.ne.s32.totalorder %s105, %s106
      %p118 = scmp.eq.s32.totalorder %s23, 1
      %p119 = por %p117, %p118
      %p121 = scmp.ne.s32.totalorder %s106, %s120
      %p122 = scmp.eq.s32.totalorder %s23, 0
      %p123 = por %p121, %p122
      %s125 = sadd.s32 %s124, 1
      %p128 = scmp.eq.s32.totalorder %s17, 1
      %p129 = scmp.ne.s32.totalorder %s124, %s126
      %p130 = scmp.eq.s32.totalorder %s17, 0
      %p131 = por %p129, %p130
      %p132 = scmp.ne.s32.totalorder %s124, %s126
      %p133 = scmp.eq.s32.totalorder %s22, 1
      %p134 = por %p132, %p133
      %p135 = scmp.ne.s32.totalorder %s126, %s127
      %p136 = scmp.eq.s32.totalorder %s22, 0
      %p137 = por %p135, %p136
      %p138 = scmp.ne.s32.totalorder %s126, %s127
      %p139 = scmp.eq.s32.totalorder %s23, 1
      %p140 = por %p138, %p139
      %p142 = scmp.ne.s32.totalorder %s127, %s141
      %p143 = scmp.eq.s32.totalorder %s23, 0
      %p144 = por %p142, %p143
      %s146 = sadd.s32 %s145, 1
      %p149 = scmp.eq.s32.totalorder %s17, 1
      %p150 = scmp.ne.s32.totalorder %s145, %s147
      %p151 = scmp.eq.s32.totalorder %s17, 0
      %p152 = por %p150, %p151
      %p153 = scmp.ne.s32.totalorder %s145, %s147
      %p154 = scmp.eq.s32.totalorder %s22, 1
      %p155 = por %p153, %p154
      %p156 = scmp.ne.s32.totalorder %s147, %s148
      %p157 = scmp.eq.s32.totalorder %s22, 0
      %p158 = por %p156, %p157
      %p159 = scmp.ne.s32.totalorder %s147, %s148
      %p160 = scmp.eq.s32.totalorder %s23, 1
      %p161 = por %p159, %p160
      %p163 = scmp.ne.s32.totalorder %s148, %s162
      %p164 = scmp.eq.s32.totalorder %s23, 0
      %p165 = por %p163, %p164
      %s166 = ssub.s32 %s17, %s24
      %p167 = scmp.eq.s32.totalorder %s166, 0
      %s169 = sadd.s32 %s168, 1
      %s170 = scalar_select %p167, %s168, %s169
      %p173 = pneg %p167
      %p174 = scmp.eq.s32.totalorder %s17, 1
      %p175 = por %p173, %p174
      %p176 = scmp.ne.s32.totalorder %s168, %s171
      %p177 = scmp.eq.s32.totalorder %s17, 0
      %p178 = por %p176, %p177
      %p179 = scmp.ne.s32.totalorder %s168, %s171
      %p180 = scmp.eq.s32.totalorder %s22, 1
      %p181 = por %p179, %p180
      %p182 = scmp.ne.s32.totalorder %s171, %s172
      %p183 = scmp.eq.s32.totalorder %s22, 0
      %p184 = por %p182, %p183
      %p185 = scmp.ne.s32.totalorder %s171, %s172
      %p186 = scmp.eq.s32.totalorder %s23, 1
      %p187 = por %p185, %p186
      %p189 = scmp.ne.s32.totalorder %s172, %s188
      %p190 = scmp.eq.s32.totalorder %s23, 0
      %p191 = por %p189, %p190
      %s192 = ssub.s32 %s17, %s24
      %p193 = scmp.eq.s32.totalorder %s192, 0
      %s195 = sadd.s32 %s194, 1
      %s196 = scalar_select %p193, %s194, %s195
      %p199 = pneg %p193
      %p200 = scmp.eq.s32.totalorder %s17, 1
      %p201 = por %p199, %p200
      %p202 = scmp.ne.s32.totalorder %s194, %s197
      %p203 = scmp.eq.s32.totalorder %s17, 0
      %p204 = por %p202, %p203
      %p205 = scmp.ne.s32.totalorder %s194, %s197
      %p206 = scmp.eq.s32.totalorder %s22, 1
      %p207 = por %p205, %p206
      %p208 = scmp.ne.s32.totalorder %s197, %s198
      %p209 = scmp.eq.s32.totalorder %s22, 0
      %p210 = por %p208, %p209
      %p211 = scmp.ne.s32.totalorder %s197, %s198
      %p212 = scmp.eq.s32.totalorder %s23, 1
      %p213 = por %p211, %p212
      %p215 = scmp.ne.s32.totalorder %s198, %s214
      %p216 = scmp.eq.s32.totalorder %s23, 0
      %p217 = por %p215, %p216
      %s218 = ssub.s32 %s17, %s24
      %p219 = scmp.eq.s32.totalorder %s218, 0
      %s221 = sadd.s32 %s220, 1
      %s222 = scalar_select %p219, %s220, %s221
      %p225 = pneg %p219
      %p226 = scmp.eq.s32.totalorder %s17, 1
      %p227 = por %p225, %p226
      %p228 = scmp.ne.s32.totalorder %s220, %s223
      %p229 = scmp.eq.s32.totalorder %s17, 0
      %p230 = por %p228, %p229
      %p231 = scmp.ne.s32.totalorder %s220, %s223
      %p232 = scmp.eq.s32.totalorder %s22, 1
      %p233 = por %p231, %p232
      %p234 = scmp.ne.s32.totalorder %s223, %s224
      %p235 = scmp.eq.s32.totalorder %s22, 0
      %p236 = por %p234, %p235
      %p237 = scmp.ne.s32.totalorder %s223, %s224
      %p238 = scmp.eq.s32.totalorder %s23, 1
      %p239 = por %p237, %p238
      %p241 = scmp.ne.s32.totalorder %s224, %s240
      %p242 = scmp.eq.s32.totalorder %s23, 0
      %p243 = por %p241, %p242
      %p244 = scmp.le.s32.totalorder 1, %s17
      %p245 = scmp.lt.s32.totalorder %s17, 3
      %p246 = pnand %p244, %p245
      %p247 = pneg %p246
      // Predicated region
      $region9: #{my_conformer_forward.8} parent=5 // pred_check
        _
      $region10: #{my_conformer_forward.8} parent=5 // pred_check_branch
        %249 = sbr.rel (%p246) target = $region12
      $region11: #{my_conformer_forward.8} parent=5 // pred_region
        %s250 = ssub.s32 %s17, 1
        // Predicated region
        $region13: #{my_conformer_forward.8} parent=11 // pred_check
          %p251 = pneg %p116
        $region14: #{my_conformer_forward.8} parent=11 // pred_check_branch
          %253 = sbr.rel (%p251) target = $region16
        $region15: #{my_conformer_forward.8} parent=11 // pred_region
          _
        $region16: #{my_conformer_forward.8} parent=11 // pred_fallthru
          _
        // Predicated region
        $region17: #{my_conformer_forward.8} parent=11 // pred_check
          %p254 = pneg %p137
        $region18: #{my_conformer_forward.8} parent=11 // pred_check_branch
          %256 = sbr.rel (%p254) target = $region20
        $region19: #{my_conformer_forward.8} parent=11 // pred_region
          %s258 = ssub.s32 1024, 1024
          %259 = vsyncadd [#allocation3], %s258
          %s260 = sshll.u32 [#allocation2], 4
          %s261 = int_to_ptr.vmem [resolvable:$true] %s260
          %266 = dma.hbm_to_vmem [thread:$0]  %s4, 1024, %s261, [#allocation3], 64, 64, 4
        $region20: #{my_conformer_forward.8} parent=11 // pred_fallthru
          _
        // Predicated region
        $region21: #{my_conformer_forward.8} parent=11 // pred_check
          %p267 = pneg %p158
        $region22: #{my_conformer_forward.8} parent=11 // pred_check_branch
          %269 = sbr.rel (%p267) target = $region24
        $region23: #{my_conformer_forward.8} parent=11 // pred_region
          %s271 = ssub.s32 16, 16
          %272 = vsyncadd [#allocation5], %s271
          %s274 = sshll.u32 [#allocation4], 4
          %s275 = int_to_ptr.vmem [resolvable:$true] %s274
          %277 = dma.hbm_to_vmem [thread:$0]  %s5, 16, %s275, [#allocation5]
        $region24: #{my_conformer_forward.8} parent=11 // pred_fallthru
          _
      $region12: #{my_conformer_forward.8} parent=5 // pred_fallthru
        _
      %p278 = scmp.lt.s32.totalorder %s17, 2
      // Predicated region
      $region25: #{my_conformer_forward.8} parent=5 // pred_check
        %p279 = pneg %p278
      $region26: #{my_conformer_forward.8} parent=5 // pred_check_branch
        %281 = sbr.rel (%p279) target = $region28
      $region27: #{my_conformer_forward.8} parent=5 // pred_region
        // Predicated region
        $region29: #{my_conformer_forward.8} parent=27 // pred_check
          %p282 = pneg %p37
        $region30: #{my_conformer_forward.8} parent=27 // pred_check_branch
          %284 = sbr.rel (%p282) target = $region32
        $region31: #{my_conformer_forward.8} parent=27 // pred_region
          %p285 = scmp.lt.s32.totalorder %s17, 1
          %s286 = scalar_select %p285, %s17, 1
          %s287 = smul.addr %s286, 8
          %s288 = smul.addr %s287, 4
          %s289 = scalar_lea.vmem %s0, %s288
        $region32: #{my_conformer_forward.8} parent=27 // pred_fallthru
          _
        // Predicated region
        $region33: #{my_conformer_forward.8} parent=27 // pred_check
          %p290 = pneg %p63
        $region34: #{my_conformer_forward.8} parent=27 // pred_check_branch
          %292 = sbr.rel (%p290) target = $region36
        $region35: #{my_conformer_forward.8} parent=27 // pred_region
          %p293 = scmp.lt.s32.totalorder %s17, 1
          %s294 = scalar_select %p293, %s17, 1
          %s295 = smul.addr %s294, 8
          %s296 = smul.addr %s295, 4
          %s297 = scalar_lea.vmem %s1, %s296
        $region36: #{my_conformer_forward.8} parent=27 // pred_fallthru
          _
        // Predicated region
        $region37: #{my_conformer_forward.8} parent=27 // pred_check
          %p298 = pneg %p89
        $region38: #{my_conformer_forward.8} parent=27 // pred_check_branch
          %300 = sbr.rel (%p298) target = $region40
        $region39: #{my_conformer_forward.8} parent=27 // pred_region
          %p301 = scmp.lt.s32.totalorder %s17, 1
          %s302 = scalar_select %p301, %s17, 1
          %s303 = smul.addr %s302, 8
          %s304 = smul.addr %s303, 4
          %s305 = scalar_lea.vmem %s2, %s304
        $region40: #{my_conformer_forward.8} parent=27 // pred_fallthru
          _
        // Predicated region
        $region41: #{my_conformer_forward.8} parent=27 // pred_check
          %p306 = pneg %p178
        $region42: #{my_conformer_forward.8} parent=27 // pred_check_branch
          %308 = sbr.rel (%p306) target = $region44
        $region43: #{my_conformer_forward.8} parent=27 // pred_region
          %p309 = scmp.lt.s32.totalorder %s17, 1
          %s310 = scalar_select %p309, %s17, 1
          %s311 = smul.addr %s310, 2
          %s312 = smul.addr %s311, 4
          %s313 = scalar_lea.vmem %s6, %s312
        $region44: #{my_conformer_forward.8} parent=27 // pred_fallthru
          _
      $region28: #{my_conformer_forward.8} parent=5 // pred_fallthru
        _
      %p314 = scmp.le.s32.totalorder 1, %s17
      %p315 = scmp.lt.s32.totalorder %s17, 3
      %p316 = pnand %p314, %p315
      %p317 = pneg %p316
      // Predicated region
      $region45: #{my_conformer_forward.8} parent=5 // pred_check
        _
      $region46: #{my_conformer_forward.8} parent=5 // pred_check_branch
        %319 = sbr.rel (%p316) target = $region48
      $region47: #{my_conformer_forward.8} parent=5 // pred_region
        %s320 = ssub.s32 %s17, 1
        // Predicated region
        $region49: #{my_conformer_forward.8} parent=47 // pred_check
          %p321 = pneg %p137
        $region50: #{my_conformer_forward.8} parent=47 // pred_check_branch
          %323 = sbr.rel (%p321) target = $region52
        $region51: #{my_conformer_forward.8} parent=47 // pred_region
          %324 = dma.done [#allocation3], 1024
        $region52: #{my_conformer_forward.8} parent=47 // pred_fallthru
          _
        // Predicated region
        $region53: #{my_conformer_forward.8} parent=47 // pred_check
          %p325 = pneg %p158
        $region54: #{my_conformer_forward.8} parent=47 // pred_check_branch
          %327 = sbr.rel (%p325) target = $region56
        $region55: #{my_conformer_forward.8} parent=47 // pred_region
          %328 = dma.done [#allocation5], 16
        $region56: #{my_conformer_forward.8} parent=47 // pred_fallthru
          _
        %p329 = scmp.lt.s32.totalorder %s22, 1
        %s330 = scalar_select %p329, %s22, 1
        %s331 = smul.addr %s330, 8
        %s332 = smul.addr %s331, 4
        %s333 = scalar_lea.vmem %s0, %s332
        %p334 = pneg %p43
        %p335 = pneg %p40
        %p336 = scmp.lt.s32.totalorder %s22, 1
        %s337 = scalar_select %p336, %s22, 1
        %s338 = smul.addr %s337, 8
        %s339 = smul.addr %s338, 4
        %s340 = scalar_lea.vmem %s1, %s339
        %p341 = pneg %p69
        %p342 = pneg %p66
        %p343 = scmp.lt.s32.totalorder %s22, 1
        %s344 = scalar_select %p343, %s22, 1
        %s345 = smul.addr %s344, 8
        %s346 = smul.addr %s345, 4
        %s347 = scalar_lea.vmem %s2, %s346
        %p348 = pneg %p95
        %p349 = pneg %p92
        %p350 = pneg %p116
        %p351 = pneg %p113
        %p352 = pneg %p137
        %p353 = pneg %p134
        %p354 = pneg %p158
        %p355 = pneg %p155
        %p356 = scmp.lt.s32.totalorder %s22, 1
        %s357 = scalar_select %p356, %s22, 1
        %s358 = smul.addr %s357, 2
        %s359 = smul.addr %s358, 4
        %s360 = scalar_lea.vmem %s6, %s359
        %p361 = pneg %p184
        %p362 = pneg %p181
        %p363 = pneg %p210
        %p364 = pneg %p207
        %p365 = scmp.lt.s32.totalorder %s22, 1
        %s366 = scalar_select %p365, %s22, 1
        %s367 = smul.addr %s366, 2
        %s368 = smul.addr %s367, 4
        %s369 = scalar_lea.vmem %s7, %s368
        %p370 = pneg %p236
        %p371 = pneg %p233
        %p372 = scmp.lt.s32.totalorder %s22, 1
        %s373 = scalar_select %p372, %s22, 1
        %s374 = smul.addr %s373, 8
        %s375 = smul.addr %s374, 4
        %s376 = scalar_lea.vmem %s8, %s375
        %p377 = scmp.lt.s32.totalorder %s22, 1
        %s378 = scalar_select %p377, %s22, 1
        %s379 = smul.addr %s378, 8
        %s380 = smul.addr %s379, 4
        %s381 = scalar_lea.vmem %s0, %s380
        %p382 = scmp.lt.s32.totalorder %s22, 1
        %s383 = scalar_select %p382, %s22, 1
        %s384 = smul.addr %s383, 8
        %s385 = smul.addr %s384, 4
        %s386 = scalar_lea.vmem %s1, %s385
        %p387 = scmp.lt.s32.totalorder %s22, 1
        %s388 = scalar_select %p387, %s22, 1
        %s389 = smul.addr %s388, 8
        %s390 = smul.addr %s389, 4
        %s391 = scalar_lea.vmem %s2, %s390
        %p392 = scmp.lt.s32.totalorder %s22, 1
        %s393 = scalar_select %p392, %s22, 1
        %s394 = smul.addr %s393, 2
        %s395 = smul.addr %s394, 4
        %s396 = scalar_lea.vmem %s6, %s395
        %p397 = scmp.lt.s32.totalorder %s22, 1
        %s398 = scalar_select %p397, %s22, 1
        %s399 = smul.addr %s398, 2
        %s400 = smul.addr %s399, 4
        %s401 = scalar_lea.vmem %s7, %s400
        %p402 = scmp.lt.s32.totalorder %s22, 1
        %s403 = scalar_select %p402, %s22, 1
        %s404 = smul.addr %s403, 8
        %s405 = smul.addr %s404, 4
        %s406 = scalar_lea.vmem %s8, %s405
        %v408 = vld [vmem:[%s381] sm:$0xf]
        %v409 = vld [vmem:[%s381 + $0x4] sm:$0x1]
        %v410 = vld [vmem:[%s386] sm:$0xf]
        %v411 = vld [vmem:[%s386 + $0x4] sm:$0x1]
        %v412 = vld [vmem:[%s391] sm:$0xf]
        %v413 = vld [vmem:[%s391 + $0x4] sm:$0x1]
        %v414 = vld [vmem:[%s3] sm:$0xf]
        %v415 = vld [vmem:[%s3 + $0x4] sm:$0xf]
        %v416 = vld [vmem:[%s3 + $0x8] sm:$0xf]
        %v417 = vld [vmem:[%s3 + $0xc] sm:$0xf]
        %v420 = vunpack.c.l.b16 %v408
        %v421 = vunpack.c.l.b16 %v409
        %v422 = vpack.c.b16 %v421, %v420
        %v427 = vunpack.c.l.b16 %v414
        %v428 = vunpack.c.l.b16 %v415
        %v429 = vunpack.c.l.b16 %v416
        %v430 = vunpack.c.l.b16 %v417
        %v431 = vpack.c.b16 %v428, %v427
        %v432 = vpack.c.b16 %v430, %v429
        %vm435 = vcmask 261120
        %v437 = vsel %vm435, %v422, 0
        %439 = vmatprep.subr.bf16.mxu0 0
        %440 = vmatpush1.bf16.msra.mxu0 %v431
        %441 = vmatprep.subr.bf16.mxu0 0
        %442 = vmatpush1.bf16.msra.mxu0 %v432
        %443 = vmatprep.subr.bf16.mxu0 0
        %444 = vmatpush1.bf16.msra.mxu0 0
        %445 = vmatprep.subr.bf16.mxu0 0
        %446 = vmatpush1.bf16.msra.mxu0 0
        %447 = vmatprep.subr.bf16.mxu0 0
        %448 = vmatpush1.bf16.msra.mxu0 0
        %449 = vmatprep.subr.bf16.mxu0 0
        %450 = vmatpush1.bf16.msra.mxu0 0
        %451 = vmatprep.subr.bf16.mxu0 0
        %452 = vmatpush1.bf16.msra.mxu0 0
        %453 = vmatprep.subr.bf16.mxu0 0
        %454 = vmatpush1.bf16.msra.mxu0 0
        %455 = vmatprep.subr.bf16.mxu0 0
        %456 = vmatpush1.bf16.msra.mxu0 0
        %457 = vmatprep.subr.bf16.mxu0 0
        %458 = vmatpush1.bf16.msra.mxu0 0
        %459 = vmatprep.subr.bf16.mxu0 0
        %460 = vmatpush1.bf16.msra.mxu0 0
        %461 = vmatprep.subr.bf16.mxu0 0
        %462 = vmatpush1.bf16.msra.mxu0 0
        %463 = vmatprep.subr.bf16.mxu0 0
        %464 = vmatpush1.bf16.msra.mxu0 0
        %465 = vmatprep.subr.bf16.mxu0 0
        %466 = vmatpush1.bf16.msra.mxu0 0
        %467 = vmatprep.subr.bf16.mxu0 0
        %468 = vmatpush1.bf16.msra.mxu0 0
        %469 = vmatprep.subr.bf16.mxu0 0
        %470 = vmatpush1.bf16.msra.mxu0 0
        %471 = vmatprep.mubr.bf16.mxu0 0
        %472 = vmatmul.mubr.bf16.gmra.mrb[0].mxu0 %v437
        %v473 = vpop.f32.mrb[0].mxu0
        %v474 = vadd.f32 0.0, %v473
        %v475 = vpop.f32.mrb[0].mxu0
        %v476 = vpop.f32.mrb[0].mxu0
        %v477 = vadd.f32 0.0, %v476
        %v478 = vpop.f32.mrb[0].mxu0
        %479 = vdwg.mxu0
        %s481 = sor.u32 256, 120
        %482 = vrot.lane.b32.xlu0 %v474, %s481
        %v483 = vpop.permute.xlu0 %482
        %485 = vrot.lane.b32.xlu0 %v477, 256
        %v486 = vpop.permute.xlu0 %485
        %v489 = vunpack.c.l.b16 %v410
        %v490 = vunpack.c.l.b16 %v411
        %v491 = vpack.c.b16 %v490, %v489
        %v493 = vsel %vm435, %v491, 0
        %495 = vmatprep.subr.bf16.mxu0 0
        %496 = vmatpush1.bf16.xpose.msra.mxu0 %v493
        %497 = vmatprep.subr.bf16.mxu0 0
        %498 = vmatpush1.bf16.xpose.msra.mxu0 0
        %499 = vmatprep.subr.bf16.mxu0 0
        %500 = vmatpush1.bf16.xpose.msra.mxu0 0
        %501 = vmatprep.subr.bf16.mxu0 0
        %502 = vmatpush1.bf16.xpose.msra.mxu0 0
        %503 = vmatprep.subr.bf16.mxu0 0
        %504 = vmatpush1.bf16.xpose.msra.mxu0 0
        %505 = vmatprep.subr.bf16.mxu0 0
        %506 = vmatpush1.bf16.xpose.msra.mxu0 0
        %507 = vmatprep.subr.bf16.mxu0 0
        %508 = vmatpush1.bf16.xpose.msra.mxu0 0
        %509 = vmatprep.subr.bf16.mxu0 0
        %510 = vmatpush1.bf16.xpose.msra.mxu0 0
        %511 = vmatprep.subr.bf16.mxu0 0
        %512 = vmatpush1.bf16.xpose.msra.mxu0 0
        %513 = vmatprep.subr.bf16.mxu0 0
        %514 = vmatpush1.bf16.xpose.msra.mxu0 0
        %515 = vmatprep.subr.bf16.mxu0 0
        %516 = vmatpush1.bf16.xpose.msra.mxu0 0
        %517 = vmatprep.subr.bf16.mxu0 0
        %518 = vmatpush1.bf16.xpose.msra.mxu0 0
        %519 = vmatprep.subr.bf16.mxu0 0
        %520 = vmatpush1.bf16.xpose.msra.mxu0 0
        %521 = vmatprep.subr.bf16.mxu0 0
        %522 = vmatpush1.bf16.xpose.msra.mxu0 0
        %523 = vmatprep.subr.bf16.mxu0 0
        %524 = vmatpush1.bf16.xpose.msra.mxu0 0
        %525 = vmatprep.subr.bf16.mxu0 0
        %526 = vmatpush1.bf16.xpose.msra.mxu0 0
        %527 = vmatprep.mubr.bf16.mxu0 0
        %528 = vmatmul.mubr.bf16.gmra.mrb[0].mxu0 %v437
        %v529 = vpop.f32.mrb[0].mxu0
        %v530 = vadd.f32 %v483, %v529
        %v531 = vpop.f32.mrb[0].mxu0
        %v532 = vpop.f32.mrb[0].mxu0
        %v533 = vadd.f32 %v486, %v532
        %v534 = vpop.f32.mrb[0].mxu0
        %535 = vdwg.mxu0
        %v536 = vmul.f32 %v530, 0.17677669
        %v537 = vmul.f32 %v533, 0.17677669
        %vm538 = vcmask 72704
        %v539 = vsel %vm538, %v536, -inf
        %540 = vmax.xlane.f32.xlu0 %v539
        %v541 = vpop.xlane.xlu0 %540
        %vm542 = vcmask 65536
        %v543 = vsel %vm542, %v537, -inf
        %544 = vmax.xlane.f32.xlu0 %v543
        %v545 = vpop.xlane.xlu0 %544
        %v546 = vsub.f32 %v536, %v541
        %v547 = vsub.f32 %v537, %v545
        %v548 = vmul.f32 %v546, 1.442695
        %v549 = vpow.pop %v548
        %v550 = vmul.f32 %v547, 1.442695
        %v551 = vpow.pop %v550
        %v552 = vsel %vm538, %v549, 0.0
        %553 = vadd.xlane.f32.xlu0 %v552
        %v554 = vpop.xlane.xlu0 %553
        %v555 = vsel %vm542, %v551, 0.0
        %556 = vadd.xlane.f32.xlu0 %v555
        %v557 = vpop.xlane.xlu0 %556
        %v558 = vrcp.pop %v554
        %v559 = vrcp.pop %v557
        %v560 = vmul.f32 %v549, %v558
        %v561 = vmul.f32 %v551, %v559
        %v562 = vpack.c.bf16 %v561, %v560
        %v564 = vunpack.c.l.b16 %v562
        %v565 = vunpack.c.h.b16 %v562
        %v566 = vpack.c.b16 %v564, %v564
        %v567 = vpack.c.b16 %v565, %v565
        %vm570 = vcmask 68608
        %571 = vst.msk [vmem:[%s406] sm:$0xf] %vm570, %v566
        %vm572 = vcmask 65536
        %vm573 = vsmask.f32 256
        %vm574 = vmand %vm572, %vm573
        %v575 = vld [vmem:[%s406 + $0x4] sm:$0x1]
        %v576 = vsel %vm574, %v567, %v575
        %577 = vst [vmem:[%s406 + $0x4] sm:$0x1] %v576
        %v580 = vunpack.c.l.b16 %v412
        %v581 = vunpack.c.l.b16 %v413
        %v582 = vpack.c.b16 %v581, %v580
        %v584 = vsel %vm538, %v562, 0
        %vm586 = vcmask 1043456
        %vm587 = vcmask 1044480
        %v588 = vsel %vm586, 4294967295, 65535
        %v589 = vsel %vm587, %v588, 0
        %v591 = vand.u32 %v582, %v589
        %593 = vmatprep.subr.bf16.mxu0 0
        %594 = vmatpush1.bf16.msra.mxu0 %v591
        %595 = vmatprep.subr.bf16.mxu0 0
        %596 = vmatpush1.bf16.msra.mxu0 0
        %597 = vmatprep.subr.bf16.mxu0 0
        %598 = vmatpush1.bf16.msra.mxu0 0
        %599 = vmatprep.subr.bf16.mxu0 0
        %600 = vmatpush1.bf16.msra.mxu0 0
        %601 = vmatprep.subr.bf16.mxu0 0
        %602 = vmatpush1.bf16.msra.mxu0 0
        %603 = vmatprep.subr.bf16.mxu0 0
        %604 = vmatpush1.bf16.msra.mxu0 0
        %605 = vmatprep.subr.bf16.mxu0 0
        %606 = vmatpush1.bf16.msra.mxu0 0
        %607 = vmatprep.subr.bf16.mxu0 0
        %608 = vmatpush1.bf16.msra.mxu0 0
        %609 = vmatprep.subr.bf16.mxu0 0
        %610 = vmatpush1.bf16.msra.mxu0 0
        %611 = vmatprep.subr.bf16.mxu0 0
        %612 = vmatpush1.bf16.msra.mxu0 0
        %613 = vmatprep.subr.bf16.mxu0 0
        %614 = vmatpush1.bf16.msra.mxu0 0
        %615 = vmatprep.subr.bf16.mxu0 0
        %616 = vmatpush1.bf16.msra.mxu0 0
        %617 = vmatprep.subr.bf16.mxu0 0
        %618 = vmatpush1.bf16.msra.mxu0 0
        %619 = vmatprep.subr.bf16.mxu0 0
        %620 = vmatpush1.bf16.msra.mxu0 0
        %621 = vmatprep.subr.bf16.mxu0 0
        %622 = vmatpush1.bf16.msra.mxu0 0
        %623 = vmatprep.subr.bf16.mxu0 0
        %624 = vmatpush1.bf16.msra.mxu0 0
        %625 = vmatprep.mubr.bf16.mxu0 0
        %626 = vmatmul.mubr.bf16.gmra.mrb[0].mxu0 %v584
        %v627 = vpop.f32.mrb[0].mxu0
        %v628 = vadd.f32 0.0, %v627
        %v629 = vpop.f32.mrb[0].mxu0
        %v630 = vpop.f32.mrb[0].mxu0
        %v631 = vadd.f32 0.0, %v630
        %v632 = vpop.f32.mrb[0].mxu0
        %633 = vdwg.mxu0
        %s634 = scalar_lea.vmem %s381, 8
        %v635 = vld [vmem:[%s634] sm:$0xf]
        %v636 = vld [vmem:[%s634 + $0x4] sm:$0x1]
        %s637 = scalar_lea.vmem %s386, 8
        %v638 = vld [vmem:[%s637] sm:$0xf]
        %v639 = vld [vmem:[%s637 + $0x4] sm:$0x1]
        %s640 = scalar_lea.vmem %s391, 8
        %v641 = vld [vmem:[%s640] sm:$0xf]
        %v642 = vld [vmem:[%s640 + $0x4] sm:$0x1]
        %v643 = vld [vmem:[%s3] sm:$0xf]
        %v644 = vld [vmem:[%s3 + $0x4] sm:$0xf]
        %v645 = vld [vmem:[%s3 + $0x8] sm:$0xf]
        %v646 = vld [vmem:[%s3 + $0xc] sm:$0xf]
        %v649 = vunpack.c.l.b16 %v635
        %v650 = vunpack.c.l.b16 %v636
        %v651 = vpack.c.b16 %v650, %v649
        %v656 = vunpack.c.l.b16 %v643
        %v657 = vunpack.c.l.b16 %v644
        %v658 = vunpack.c.l.b16 %v645
        %v659 = vunpack.c.l.b16 %v646
        %v660 = vpack.c.b16 %v657, %v656
        %v661 = vpack.c.b16 %v659, %v658
        %v665 = vsel %vm435, %v651, 0
        %667 = vmatprep.subr.bf16.mxu0 0
        %668 = vmatpush1.bf16.msra.mxu0 %v660
        %669 = vmatprep.subr.bf16.mxu0 0
        %670 = vmatpush1.bf16.msra.mxu0 %v661
        %671 = vmatprep.subr.bf16.mxu0 0
        %672 = vmatpush1.bf16.msra.mxu0 0
        %673 = vmatprep.subr.bf16.mxu0 0
        %674 = vmatpush1.bf16.msra.mxu0 0
        %675 = vmatprep.subr.bf16.mxu0 0
        %676 = vmatpush1.bf16.msra.mxu0 0
        %677 = vmatprep.subr.bf16.mxu0 0
        %678 = vmatpush1.bf16.msra.mxu0 0
        %679 = vmatprep.subr.bf16.mxu0 0
        %680 = vmatpush1.bf16.msra.mxu0 0
        %681 = vmatprep.subr.bf16.mxu0 0
        %682 = vmatpush1.bf16.msra.mxu0 0
        %683 = vmatprep.subr.bf16.mxu0 0
        %684 = vmatpush1.bf16.msra.mxu0 0
        %685 = vmatprep.subr.bf16.mxu0 0
        %686 = vmatpush1.bf16.msra.mxu0 0
        %687 = vmatprep.subr.bf16.mxu0 0
        %688 = vmatpush1.bf16.msra.mxu0 0
        %689 = vmatprep.subr.bf16.mxu0 0
        %690 = vmatpush1.bf16.msra.mxu0 0
        %691 = vmatprep.subr.bf16.mxu0 0
        %692 = vmatpush1.bf16.msra.mxu0 0
        %693 = vmatprep.subr.bf16.mxu0 0
        %694 = vmatpush1.bf16.msra.mxu0 0
        %695 = vmatprep.subr.bf16.mxu0 0
        %696 = vmatpush1.bf16.msra.mxu0 0
        %697 = vmatprep.subr.bf16.mxu0 0
        %698 = vmatpush1.bf16.msra.mxu0 0
        %699 = vmatprep.mubr.bf16.mxu0 0
        %700 = vmatmul.mubr.bf16.gmra.mrb[0].mxu0 %v665
        %v701 = vpop.f32.mrb[0].mxu0
        %v702 = vadd.f32 0.0, %v701
        %v703 = vpop.f32.mrb[0].mxu0
        %v704 = vpop.f32.mrb[0].mxu0
        %v705 = vadd.f32 0.0, %v704
        %v706 = vpop.f32.mrb[0].mxu0
        %707 = vdwg.mxu0
        %s709 = sor.u32 256, 120
        %710 = vrot.lane.b32.xlu0 %v702, %s709
        %v711 = vpop.permute.xlu0 %710
        %713 = vrot.lane.b32.xlu0 %v705, 256
        %v714 = vpop.permute.xlu0 %713
        %v717 = vunpack.c.l.b16 %v638
        %v718 = vunpack.c.l.b16 %v639
        %v719 = vpack.c.b16 %v718, %v717
        %v721 = vsel %vm435, %v719, 0
        %723 = vmatprep.subr.bf16.mxu0 0
        %724 = vmatpush1.bf16.xpose.msra.mxu0 %v721
        %725 = vmatprep.subr.bf16.mxu0 0
        %726 = vmatpush1.bf16.xpose.msra.mxu0 0
        %727 = vmatprep.subr.bf16.mxu0 0
        %728 = vmatpush1.bf16.xpose.msra.mxu0 0
        %729 = vmatprep.subr.bf16.mxu0 0
        %730 = vmatpush1.bf16.xpose.msra.mxu0 0
        %731 = vmatprep.subr.bf16.mxu0 0
        %732 = vmatpush1.bf16.xpose.msra.mxu0 0
        %733 = vmatprep.subr.bf16.mxu0 0
        %734 = vmatpush1.bf16.xpose.msra.mxu0 0
        %735 = vmatprep.subr.bf16.mxu0 0
        %736 = vmatpush1.bf16.xpose.msra.mxu0 0
        %737 = vmatprep.subr.bf16.mxu0 0
        %738 = vmatpush1.bf16.xpose.msra.mxu0 0
        %739 = vmatprep.subr.bf16.mxu0 0
        %740 = vmatpush1.bf16.xpose.msra.mxu0 0
        %741 = vmatprep.subr.bf16.mxu0 0
        %742 = vmatpush1.bf16.xpose.msra.mxu0 0
        %743 = vmatprep.subr.bf16.mxu0 0
        %744 = vmatpush1.bf16.xpose.msra.mxu0 0
        %745 = vmatprep.subr.bf16.mxu0 0
        %746 = vmatpush1.bf16.xpose.msra.mxu0 0
        %747 = vmatprep.subr.bf16.mxu0 0
        %748 = vmatpush1.bf16.xpose.msra.mxu0 0
        %749 = vmatprep.subr.bf16.mxu0 0
        %750 = vmatpush1.bf16.xpose.msra.mxu0 0
        %751 = vmatprep.subr.bf16.mxu0 0
        %752 = vmatpush1.bf16.xpose.msra.mxu0 0
        %753 = vmatprep.subr.bf16.mxu0 0
        %754 = vmatpush1.bf16.xpose.msra.mxu0 0
        %755 = vmatprep.mubr.bf16.mxu0 0
        %756 = vmatmul.mubr.bf16.gmra.mrb[0].mxu0 %v665
        %v757 = vpop.f32.mrb[0].mxu0
        %v758 = vadd.f32 %v711, %v757
        %v759 = vpop.f32.mrb[0].mxu0
        %v760 = vpop.f32.mrb[0].mxu0
        %v761 = vadd.f32 %v714, %v760
        %v762 = vpop.f32.mrb[0].mxu0
        %763 = vdwg.mxu0
        %v764 = vmul.f32 %v758, 0.17677669
        %v765 = vmul.f32 %v761, 0.17677669
        %v766 = vsel %vm538, %v764, -inf
        %767 = vmax.xlane.f32.xlu0 %v766
        %v768 = vpop.xlane.xlu0 %767
        %v769 = vsel %vm542, %v765, -inf
        %770 = vmax.xlane.f32.xlu0 %v769
        %v771 = vpop.xlane.xlu0 %770
        %v772 = vsub.f32 %v764, %v768
        %v773 = vsub.f32 %v765, %v771
        %v774 = vmul.f32 %v772, 1.442695
        %v775 = vpow.pop %v774
        %v776 = vmul.f32 %v773, 1.442695
        %v777 = vpow.pop %v776
        %v778 = vsel %vm538, %v775, 0.0
        %779 = vadd.xlane.f32.xlu0 %v778
        %v780 = vpop.xlane.xlu0 %779
        %v781 = vsel %vm542, %v777, 0.0
        %782 = vadd.xlane.f32.xlu0 %v781
        %v783 = vpop.xlane.xlu0 %782
        %v784 = vrcp.pop %v780
        %v785 = vrcp.pop %v783
        %v786 = vmul.f32 %v775, %v784
        %v787 = vmul.f32 %v777, %v785
        %v788 = vpack.c.bf16 %v787, %v786
        %v790 = vunpack.c.l.b16 %v788
        %v791 = vunpack.c.h.b16 %v788
        %v792 = vpack.c.b16 %v790, %v790
        %v793 = vpack.c.b16 %v791, %v791
        %s796 = scalar_lea.vmem %s406, 8
        %797 = vst.msk [vmem:[%s796] sm:$0xf] %vm570, %v792
        %v798 = vld [vmem:[%s796 + $0x4] sm:$0x1]
        %v799 = vsel %vm574, %v793, %v798
        %800 = vst [vmem:[%s796 + $0x4] sm:$0x1] %v799
        %v803 = vunpack.c.l.b16 %v641
        %v804 = vunpack.c.l.b16 %v642
        %v805 = vpack.c.b16 %v804, %v803
        %v807 = vsel %vm538, %v788, 0
        %v810 = vand.u32 %v805, %v589
        %812 = vmatprep.subr.bf16.mxu0 0
        %813 = vmatpush1.bf16.msra.mxu0 %v810
        %814 = vmatprep.subr.bf16.mxu0 0
        %815 = vmatpush1.bf16.msra.mxu0 0
        %816 = vmatprep.subr.bf16.mxu0 0
        %817 = vmatpush1.bf16.msra.mxu0 0
        %818 = vmatprep.subr.bf16.mxu0 0
        %819 = vmatpush1.bf16.msra.mxu0 0
        %820 = vmatprep.subr.bf16.mxu0 0
        %821 = vmatpush1.bf16.msra.mxu0 0
        %822 = vmatprep.subr.bf16.mxu0 0
        %823 = vmatpush1.bf16.msra.mxu0 0
        %824 = vmatprep.subr.bf16.mxu0 0
        %825 = vmatpush1.bf16.msra.mxu0 0
        %826 = vmatprep.subr.bf16.mxu0 0
        %827 = vmatpush1.bf16.msra.mxu0 0
        %828 = vmatprep.subr.bf16.mxu0 0
        %829 = vmatpush1.bf16.msra.mxu0 0
        %830 = vmatprep.subr.bf16.mxu0 0
        %831 = vmatpush1.bf16.msra.mxu0 0
        %832 = vmatprep.subr.bf16.mxu0 0
        %833 = vmatpush1.bf16.msra.mxu0 0
        %834 = vmatprep.subr.bf16.mxu0 0
        %835 = vmatpush1.bf16.msra.mxu0 0
        %836 = vmatprep.subr.bf16.mxu0 0
        %837 = vmatpush1.bf16.msra.mxu0 0
        %838 = vmatprep.subr.bf16.mxu0 0
        %839 = vmatpush1.bf16.msra.mxu0 0
        %840 = vmatprep.subr.bf16.mxu0 0
        %841 = vmatpush1.bf16.msra.mxu0 0
        %842 = vmatprep.subr.bf16.mxu0 0
        %843 = vmatpush1.bf16.msra.mxu0 0
        %844 = vmatprep.mubr.bf16.mxu0 0
        %845 = vmatmul.mubr.bf16.gmra.mrb[0].mxu0 %v807
        %v846 = vpop.f32.mrb[0].mxu0
        %v847 = vadd.f32 0.0, %v846
        %v848 = vpop.f32.mrb[0].mxu0
        %v849 = vpop.f32.mrb[0].mxu0
        %v850 = vadd.f32 0.0, %v849
        %v851 = vpop.f32.mrb[0].mxu0
        %852 = vdwg.mxu0
        %s853 = scalar_lea.vmem %s381, 16
        %v854 = vld [vmem:[%s853] sm:$0xf]
        %v855 = vld [vmem:[%s853 + $0x4] sm:$0x1]
        %s856 = scalar_lea.vmem %s386, 16
        %v857 = vld [vmem:[%s856] sm:$0xf]
        %v858 = vld [vmem:[%s856 + $0x4] sm:$0x1]
        %s859 = scalar_lea.vmem %s391, 16
        %v860 = vld [vmem:[%s859] sm:$0xf]
        %v861 = vld [vmem:[%s859 + $0x4] sm:$0x1]
        %v862 = vld [vmem:[%s3] sm:$0xf]
        %v863 = vld [vmem:[%s3 + $0x4] sm:$0xf]
        %v864 = vld [vmem:[%s3 + $0x8] sm:$0xf]
        %v865 = vld [vmem:[%s3 + $0xc] sm:$0xf]
        %v868 = vunpack.c.l.b16 %v854
        %v869 = vunpack.c.l.b16 %v855
        %v870 = vpack.c.b16 %v869, %v868
        %v875 = vunpack.c.l.b16 %v862
        %v876 = vunpack.c.l.b16 %v863
        %v877 = vunpack.c.l.b16 %v864
        %v878 = vunpack.c.l.b16 %v865
        %v879 = vpack.c.b16 %v876, %v875
        %v880 = vpack.c.b16 %v878, %v877
        %v884 = vsel %vm435, %v870, 0
        %886 = vmatprep.subr.bf16.mxu0 0
        %887 = vmatpush1.bf16.msra.mxu0 %v879
        %888 = vmatprep.subr.bf16.mxu0 0
        %889 = vmatpush1.bf16.msra.mxu0 %v880
        %890 = vmatprep.subr.bf16.mxu0 0
        %891 = vmatpush1.bf16.msra.mxu0 0
        %892 = vmatprep.subr.bf16.mxu0 0
        %893 = vmatpush1.bf16.msra.mxu0 0
        %894 = vmatprep.subr.bf16.mxu0 0
        %895 = vmatpush1.bf16.msra.mxu0 0
        %896 = vmatprep.subr.bf16.mxu0 0
        %897 = vmatpush1.bf16.msra.mxu0 0
        %898 = vmatprep.subr.bf16.mxu0 0
        %899 = vmatpush1.bf16.msra.mxu0 0
        %900 = vmatprep.subr.bf16.mxu0 0
        %901 = vmatpush1.bf16.msra.mxu0 0
        %902 = vmatprep.subr.bf16.mxu0 0
        %903 = vmatpush1.bf16.msra.mxu0 0
        %904 = vmatprep.subr.bf16.mxu0 0
        %905 = vmatpush1.bf16.msra.mxu0 0
        %906 = vmatprep.subr.bf16.mxu0 0
        %907 = vmatpush1.bf16.msra.mxu0 0
        %908 = vmatprep.subr.bf16.mxu0 0
        %909 = vmatpush1.bf16.msra.mxu0 0
        %910 = vmatprep.subr.bf16.mxu0 0
        %911 = vmatpush1.bf16.msra.mxu0 0
        %912 = vmatprep.subr.bf16.mxu0 0
        %913 = vmatpush1.bf16.msra.mxu0 0
        %914 = vmatprep.subr.bf16.mxu0 0
        %915 = vmatpush1.bf16.msra.mxu0 0
        %916 = vmatprep.subr.bf16.mxu0 0
        %917 = vmatpush1.bf16.msra.mxu0 0
        %918 = vmatprep.mubr.bf16.mxu0 0
        %919 = vmatmul.mubr.bf16.gmra.mrb[0].mxu0 %v884
        %v920 = vpop.f32.mrb[0].mxu0
        %v921 = vadd.f32 0.0, %v920
        %v922 = vpop.f32.mrb[0].mxu0
        %v923 = vpop.f32.mrb[0].mxu0
        %v924 = vadd.f32 0.0, %v923
        %v925 = vpop.f32.mrb[0].mxu0
        %926 = vdwg.mxu0
        %s928 = sor.u32 256, 120
        %929 = vrot.lane.b32.xlu0 %v921, %s928
        %v930 = vpop.permute.xlu0 %929
        %932 = vrot.lane.b32.xlu0 %v924, 256
        %v933 = vpop.permute.xlu0 %932
        %v936 = vunpack.c.l.b16 %v857
        %v937 = vunpack.c.l.b16 %v858
        %v938 = vpack.c.b16 %v937, %v936
        %v940 = vsel %vm435, %v938, 0
        %942 = vmatprep.subr.bf16.mxu0 0
        %943 = vmatpush1.bf16.xpose.msra.mxu0 %v940
        %944 = vmatprep.subr.bf16.mxu0 0
        %945 = vmatpush1.bf16.xpose.msra.mxu0 0
        %946 = vmatprep.subr.bf16.mxu0 0
        %947 = vmatpush1.bf16.xpose.msra.mxu0 0
        %948 = vmatprep.subr.bf16.mxu0 0
        %949 = vmatpush1.bf16.xpose.msra.mxu0 0
        %950 = vmatprep.subr.bf16.mxu0 0
        %951 = vmatpush1.bf16.xpose.msra.mxu0 0
        %952 = vmatprep.subr.bf16.mxu0 0
        %953 = vmatpush1.bf16.xpose.msra.mxu0 0
        %954 = vmatprep.subr.bf16.mxu0 0
        %955 = vmatpush1.bf16.xpose.msra.mxu0 0
        %956 = vmatprep.subr.bf16.mxu0 0
        %957 = vmatpush1.bf16.xpose.msra.mxu0 0
        %958 = vmatprep.subr.bf16.mxu0 0
        %959 = vmatpush1.bf16.xpose.msra.mxu0 0
        %960 = vmatprep.subr.bf16.mxu0 0
        %961 = vmatpush1.bf16.xpose.msra.mxu0 0
        %962 = vmatprep.subr.bf16.mxu0 0
        %963 = vmatpush1.bf16.xpose.msra.mxu0 0
        %964 = vmatprep.subr.bf16.mxu0 0
        %965 = vmatpush1.bf16.xpose.msra.mxu0 0
        %966 = vmatprep.subr.bf16.mxu0 0
        %967 = vmatpush1.bf16.xpose.msra.mxu0 0
        %968 = vmatprep.subr.bf16.mxu0 0
        %969 = vmatpush1.bf16.xpose.msra.mxu0 0
        %970 = vmatprep.subr.bf16.mxu0 0
        %971 = vmatpush1.bf16.xpose.msra.mxu0 0
        %972 = vmatprep.subr.bf16.mxu0 0
        %973 = vmatpush1.bf16.xpose.msra.mxu0 0
        %974 = vmatprep.mubr.bf16.mxu0 0
        %975 = vmatmul.mubr.bf16.gmra.mrb[0].mxu0 %v884
        %v976 = vpop.f32.mrb[0].mxu0
        %v977 = vadd.f32 %v930, %v976
        %v978 = vpop.f32.mrb[0].mxu0
        %v979 = vpop.f32.mrb[0].mxu0
        %v980 = vadd.f32 %v933, %v979
        %v981 = vpop.f32.mrb[0].mxu0
        %982 = vdwg.mxu0
        %v983 = vmul.f32 %v977, 0.17677669
        %v984 = vmul.f32 %v980, 0.17677669
        %v985 = vsel %vm538, %v983, -inf
        %986 = vmax.xlane.f32.xlu0 %v985
        %v987 = vpop.xlane.xlu0 %986
        %v988 = vsel %vm542, %v984, -inf
        %989 = vmax.xlane.f32.xlu0 %v988
        %v990 = vpop.xlane.xlu0 %989
        %v991 = vsub.f32 %v983, %v987
        %v992 = vsub.f32 %v984, %v990
        %v993 = vmul.f32 %v991, 1.442695
        %v994 = vpow.pop %v993
        %v995 = vmul.f32 %v992, 1.442695
        %v996 = vpow.pop %v995
        %v997 = vsel %vm538, %v994, 0.0
        %998 = vadd.xlane.f32.xlu0 %v997
        %v999 = vpop.xlane.xlu0 %998
        %v1000 = vsel %vm542, %v996, 0.0
        %1001 = vadd.xlane.f32.xlu0 %v1000
        %v1002 = vpop.xlane.xlu0 %1001
        %v1003 = vrcp.pop %v999
        %v1004 = vrcp.pop %v1002
        %v1005 = vmul.f32 %v994, %v1003
        %v1006 = vmul.f32 %v996, %v1004
        %v1007 = vpack.c.bf16 %v1006, %v1005
        %v1009 = vunpack.c.l.b16 %v1007
        %v1010 = vunpack.c.h.b16 %v1007
        %v1011 = vpack.c.b16 %v1009, %v1009
        %v1012 = vpack.c.b16 %v1010, %v1010
        %s1015 = scalar_lea.vmem %s406, 16
        %1016 = vst.msk [vmem:[%s1015] sm:$0xf] %vm570, %v1011
        %v1017 = vld [vmem:[%s1015 + $0x4] sm:$0x1]
        %v1018 = vsel %vm574, %v1012, %v1017
        %1019 = vst [vmem:[%s1015 + $0x4] sm:$0x1] %v1018
        %v1022 = vunpack.c.l.b16 %v860
        %v1023 = vunpack.c.l.b16 %v861
        %v1024 = vpack.c.b16 %v1023, %v1022
        %v1026 = vsel %vm538, %v1007, 0
        %v1029 = vand.u32 %v1024, %v589
        %1031 = vmatprep.subr.bf16.mxu0 0
        %1032 = vmatpush1.bf16.msra.mxu0 %v1029
        %1033 = vmatprep.subr.bf16.mxu0 0
        %1034 = vmatpush1.bf16.msra.mxu0 0
        %1035 = vmatprep.subr.bf16.mxu0 0
        %1036 = vmatpush1.bf16.msra.mxu0 0
        %1037 = vmatprep.subr.bf16.mxu0 0
        %1038 = vmatpush1.bf16.msra.mxu0 0
        %1039 = vmatprep.subr.bf16.mxu0 0
        %1040 = vmatpush1.bf16.msra.mxu0 0
        %1041 = vmatprep.subr.bf16.mxu0 0
        %1042 = vmatpush1.bf16.msra.mxu0 0
        %1043 = vmatprep.subr.bf16.mxu0 0
        %1044 = vmatpush1.bf16.msra.mxu0 0
        %1045 = vmatprep.subr.bf16.mxu0 0
        %1046 = vmatpush1.bf16.msra.mxu0 0
        %1047 = vmatprep.subr.bf16.mxu0 0
        %1048 = vmatpush1.bf16.msra.mxu0 0
        %1049 = vmatprep.subr.bf16.mxu0 0
        %1050 = vmatpush1.bf16.msra.mxu0 0
        %1051 = vmatprep.subr.bf16.mxu0 0
        %1052 = vmatpush1.bf16.msra.mxu0 0
        %1053 = vmatprep.subr.bf16.mxu0 0
        %1054 = vmatpush1.bf16.msra.mxu0 0
        %1055 = vmatprep.subr.bf16.mxu0 0
        %1056 = vmatpush1.bf16.msra.mxu0 0
        %1057 = vmatprep.subr.bf16.mxu0 0
        %1058 = vmatpush1.bf16.msra.mxu0 0
        %1059 = vmatprep.subr.bf16.mxu0 0
        %1060 = vmatpush1.bf16.msra.mxu0 0
        %1061 = vmatprep.subr.bf16.mxu0 0
        %1062 = vmatpush1.bf16.msra.mxu0 0
        %1063 = vmatprep.mubr.bf16.mxu0 0
        %1064 = vmatmul.mubr.bf16.gmra.mrb[0].mxu0 %v1026
        %v1065 = vpop.f32.mrb[0].mxu0
        %v1066 = vadd.f32 0.0, %v1065
        %v1067 = vpop.f32.mrb[0].mxu0
        %v1068 = vpop.f32.mrb[0].mxu0
        %v1069 = vadd.f32 0.0, %v1068
        %v1070 = vpop.f32.mrb[0].mxu0
        %1071 = vdwg.mxu0
        %s1072 = scalar_lea.vmem %s381, 24
        %v1073 = vld [vmem:[%s1072] sm:$0xf]
        %v1074 = vld [vmem:[%s1072 + $0x4] sm:$0x1]
        %s1075 = scalar_lea.vmem %s386, 24
        %v1076 = vld [vmem:[%s1075] sm:$0xf]
        %v1077 = vld [vmem:[%s1075 + $0x4] sm:$0x1]
        %s1078 = scalar_lea.vmem %s391, 24
        %v1079 = vld [vmem:[%s1078] sm:$0xf]
        %v1080 = vld [vmem:[%s1078 + $0x4] sm:$0x1]
        %v1081 = vld [vmem:[%s3] sm:$0xf]
        %v1082 = vld [vmem:[%s3 + $0x4] sm:$0xf]
        %v1083 = vld [vmem:[%s3 + $0x8] sm:$0xf]
        %v1084 = vld [vmem:[%s3 + $0xc] sm:$0xf]
        %v1087 = vunpack.c.l.b16 %v1073
        %v1088 = vunpack.c.l.b16 %v1074
        %v1089 = vpack.c.b16 %v1088, %v1087
        %v1094 = vunpack.c.l.b16 %v1081
        %v1095 = vunpack.c.l.b16 %v1082
        %v1096 = vunpack.c.l.b16 %v1083
        %v1097 = vunpack.c.l.b16 %v1084
        %v1098 = vpack.c.b16 %v1095, %v1094
        %v1099 = vpack.c.b16 %v1097, %v1096
        %v1103 = vsel %vm435, %v1089, 0
        %1105 = vmatprep.subr.bf16.mxu0 0
        %1106 = vmatpush1.bf16.msra.mxu0 %v1098
        %1107 = vmatprep.subr.bf16.mxu0 0
        %1108 = vmatpush1.bf16.msra.mxu0 %v1099
        %1109 = vmatprep.subr.bf16.mxu0 0
        %1110 = vmatpush1.bf16.msra.mxu0 0
        %1111 = vmatprep.subr.bf16.mxu0 0
        %1112 = vmatpush1.bf16.msra.mxu0 0
        %1113 = vmatprep.subr.bf16.mxu0 0
        %1114 = vmatpush1.bf16.msra.mxu0 0
        %1115 = vmatprep.subr.bf16.mxu0 0
        %1116 = vmatpush1.bf16.msra.mxu0 0
        %1117 = vmatprep.subr.bf16.mxu0 0
        %1118 = vmatpush1.bf16.msra.mxu0 0
        %1119 = vmatprep.subr.bf16.mxu0 0
        %1120 = vmatpush1.bf16.msra.mxu0 0
        %1121 = vmatprep.subr.bf16.mxu0 0
        %1122 = vmatpush1.bf16.msra.mxu0 0
        %1123 = vmatprep.subr.bf16.mxu0 0
        %1124 = vmatpush1.bf16.msra.mxu0 0
        %1125 = vmatprep.subr.bf16.mxu0 0
        %1126 = vmatpush1.bf16.msra.mxu0 0
        %1127 = vmatprep.subr.bf16.mxu0 0
        %1128 = vmatpush1.bf16.msra.mxu0 0
        %1129 = vmatprep.subr.bf16.mxu0 0
        %1130 = vmatpush1.bf16.msra.mxu0 0
        %1131 = vmatprep.subr.bf16.mxu0 0
        %1132 = vmatpush1.bf16.msra.mxu0 0
        %1133 = vmatprep.subr.bf16.mxu0 0
        %1134 = vmatpush1.bf16.msra.mxu0 0
        %1135 = vmatprep.subr.bf16.mxu0 0
        %1136 = vmatpush1.bf16.msra.mxu0 0
        %1137 = vmatprep.mubr.bf16.mxu0 0
        %1138 = vmatmul.mubr.bf16.gmra.mrb[0].mxu0 %v1103
        %v1139 = vpop.f32.mrb[0].mxu0
        %v1140 = vadd.f32 0.0, %v1139
        %v1141 = vpop.f32.mrb[0].mxu0
        %v1142 = vpop.f32.mrb[0].mxu0
        %v1143 = vadd.f32 0.0, %v1142
        %v1144 = vpop.f32.mrb[0].mxu0
        %1145 = vdwg.mxu0
        %s1147 = sor.u32 256, 120
        %1148 = vrot.lane.b32.xlu0 %v1140, %s1147
        %v1149 = vpop.permute.xlu0 %1148
        %1151 = vrot.lane.b32.xlu0 %v1143, 256
        %v1152 = vpop.permute.xlu0 %1151
        %v1155 = vunpack.c.l.b16 %v1076
        %v1156 = vunpack.c.l.b16 %v1077
        %v1157 = vpack.c.b16 %v1156, %v1155
        %v1159 = vsel %vm435, %v1157, 0
        %1161 = vmatprep.subr.bf16.mxu0 0
        %1162 = vmatpush1.bf16.xpose.msra.mxu0 %v1159
        %1163 = vmatprep.subr.bf16.mxu0 0
        %1164 = vmatpush1.bf16.xpose.msra.mxu0 0
        %1165 = vmatprep.subr.bf16.mxu0 0
        %1166 = vmatpush1.bf16.xpose.msra.mxu0 0
        %1167 = vmatprep.subr.bf16.mxu0 0
        %1168 = vmatpush1.bf16.xpose.msra.mxu0 0
        %1169 = vmatprep.subr.bf16.mxu0 0
        %1170 = vmatpush1.bf16.xpose.msra.mxu0 0
        %1171 = vmatprep.subr.bf16.mxu0 0
        %1172 = vmatpush1.bf16.xpose.msra.mxu0 0
        %1173 = vmatprep.subr.bf16.mxu0 0
        %1174 = vmatpush1.bf16.xpose.msra.mxu0 0
        %1175 = vmatprep.subr.bf16.mxu0 0
        %1176 = vmatpush1.bf16.xpose.msra.mxu0 0
        %1177 = vmatprep.subr.bf16.mxu0 0
        %1178 = vmatpush1.bf16.xpose.msra.mxu0 0
        %1179 = vmatprep.subr.bf16.mxu0 0
        %1180 = vmatpush1.bf16.xpose.msra.mxu0 0
        %1181 = vmatprep.subr.bf16.mxu0 0
        %1182 = vmatpush1.bf16.xpose.msra.mxu0 0
        %1183 = vmatprep.subr.bf16.mxu0 0
        %1184 = vmatpush1.bf16.xpose.msra.mxu0 0
        %1185 = vmatprep.subr.bf16.mxu0 0
        %1186 = vmatpush1.bf16.xpose.msra.mxu0 0
        %1187 = vmatprep.subr.bf16.mxu0 0
        %1188 = vmatpush1.bf16.xpose.msra.mxu0 0
        %1189 = vmatprep.subr.bf16.mxu0 0
        %1190 = vmatpush1.bf16.xpose.msra.mxu0 0
        %1191 = vmatprep.subr.bf16.mxu0 0
        %1192 = vmatpush1.bf16.xpose.msra.mxu0 0
        %1193 = vmatprep.mubr.bf16.mxu0 0
        %1194 = vmatmul.mubr.bf16.gmra.mrb[0].mxu0 %v1103
        %v1195 = vpop.f32.mrb[0].mxu0
        %v1196 = vadd.f32 %v1149, %v1195
        %v1197 = vpop.f32.mrb[0].mxu0
        %v1198 = vpop.f32.mrb[0].mxu0
        %v1199 = vadd.f32 %v1152, %v1198
        %v1200 = vpop.f32.mrb[0].mxu0
        %1201 = vdwg.mxu0
        %v1202 = vmul.f32 %v1196, 0.17677669
        %v1203 = vmul.f32 %v1199, 0.17677669
        %v1204 = vsel %vm538, %v1202, -inf
        %1205 = vmax.xlane.f32.xlu0 %v1204
        %v1206 = vpop.xlane.xlu0 %1205
        %v1207 = vsel %vm542, %v1203, -inf
        %1208 = vmax.xlane.f32.xlu0 %v1207
        %v1209 = vpop.xlane.xlu0 %1208
        %v1210 = vsub.f32 %v1202, %v1206
        %v1211 = vsub.f32 %v1203, %v1209
        %v1212 = vmul.f32 %v1210, 1.442695
        %v1213 = vpow.pop %v1212
        %v1214 = vmul.f32 %v1211, 1.442695
        %v1215 = vpow.pop %v1214
        %v1216 = vsel %vm538, %v1213, 0.0
        %1217 = vadd.xlane.f32.xlu0 %v1216
        %v1218 = vpop.xlane.xlu0 %1217
        %v1219 = vsel %vm542, %v1215, 0.0
        %1220 = vadd.xlane.f32.xlu0 %v1219
        %v1221 = vpop.xlane.xlu0 %1220
        %v1222 = vrcp.pop %v1218
        %v1223 = vrcp.pop %v1221
        %v1224 = vmul.f32 %v1213, %v1222
        %v1225 = vmul.f32 %v1215, %v1223
        %v1226 = vpack.c.bf16 %v1225, %v1224
        %v1228 = vunpack.c.l.b16 %v1226
        %v1229 = vunpack.c.h.b16 %v1226
        %v1230 = vpack.c.b16 %v1228, %v1228
        %v1231 = vpack.c.b16 %v1229, %v1229
        %s1234 = scalar_lea.vmem %s406, 24
        %1235 = vst.msk [vmem:[%s1234] sm:$0xf] %vm570, %v1230
        %v1236 = vld [vmem:[%s1234 + $0x4] sm:$0x1]
        %v1237 = vsel %vm574, %v1231, %v1236
        %1238 = vst [vmem:[%s1234 + $0x4] sm:$0x1] %v1237
        %v1241 = vunpack.c.l.b16 %v1079
        %v1242 = vunpack.c.l.b16 %v1080
        %v1243 = vpack.c.b16 %v1242, %v1241
        %v1245 = vsel %vm538, %v1226, 0
        %v1248 = vand.u32 %v1243, %v589
        %1250 = vmatprep.subr.bf16.mxu0 0
        %1251 = vmatpush1.bf16.msra.mxu0 %v1248
        %1252 = vmatprep.subr.bf16.mxu0 0
        %1253 = vmatpush1.bf16.msra.mxu0 0
        %1254 = vmatprep.subr.bf16.mxu0 0
        %1255 = vmatpush1.bf16.msra.mxu0 0
        %1256 = vmatprep.subr.bf16.mxu0 0
        %1257 = vmatpush1.bf16.msra.mxu0 0
        %1258 = vmatprep.subr.bf16.mxu0 0
        %1259 = vmatpush1.bf16.msra.mxu0 0
        %1260 = vmatprep.subr.bf16.mxu0 0
        %1261 = vmatpush1.bf16.msra.mxu0 0
        %1262 = vmatprep.subr.bf16.mxu0 0
        %1263 = vmatpush1.bf16.msra.mxu0 0
        %1264 = vmatprep.subr.bf16.mxu0 0
        %1265 = vmatpush1.bf16.msra.mxu0 0
        %1266 = vmatprep.subr.bf16.mxu0 0
        %1267 = vmatpush1.bf16.msra.mxu0 0
        %1268 = vmatprep.subr.bf16.mxu0 0
        %1269 = vmatpush1.bf16.msra.mxu0 0
        %1270 = vmatprep.subr.bf16.mxu0 0
        %1271 = vmatpush1.bf16.msra.mxu0 0
        %1272 = vmatprep.subr.bf16.mxu0 0
        %1273 = vmatpush1.bf16.msra.mxu0 0
        %1274 = vmatprep.subr.bf16.mxu0 0
        %1275 = vmatpush1.bf16.msra.mxu0 0
        %1276 = vmatprep.subr.bf16.mxu0 0
        %1277 = vmatpush1.bf16.msra.mxu0 0
        %1278 = vmatprep.subr.bf16.mxu0 0
        %1279 = vmatpush1.bf16.msra.mxu0 0
        %1280 = vmatprep.subr.bf16.mxu0 0
        %1281 = vmatpush1.bf16.msra.mxu0 0
        %1282 = vmatprep.mubr.bf16.mxu0 0
        %1283 = vmatmul.mubr.bf16.gmra.mrb[0].mxu0 %v1245
        %v1284 = vpop.f32.mrb[0].mxu0
        %v1285 = vadd.f32 0.0, %v1284
        %v1286 = vpop.f32.mrb[0].mxu0
        %v1287 = vpop.f32.mrb[0].mxu0
        %v1288 = vadd.f32 0.0, %v1287
        %v1289 = vpop.f32.mrb[0].mxu0
        %1290 = vdwg.mxu0
        %1293 = vrot.lane.b32.xlu0 %v847, 32
        %v1294 = vpop.permute.xlu0 %1293
        %1295 = vrot.lane.b32.xlu0 %v850, 32
        %v1296 = vpop.permute.xlu0 %1295
        %1301 = vrot.lane.b32.xlu0 %v1066, 64
        %v1302 = vpop.permute.xlu0 %1301
        %1303 = vrot.lane.b32.xlu0 %v1069, 64
        %v1304 = vpop.permute.xlu0 %1303
        %1309 = vrot.lane.b32.xlu0 %v1285, 96
        %v1310 = vpop.permute.xlu0 %1309
        %1311 = vrot.lane.b32.xlu0 %v1288, 96
        %v1312 = vpop.permute.xlu0 %1311
        %v1315 = vsel %vm435, %v628, %v1294
        %v1316 = vsel %vm435, %v631, %v1296
        %vm1317 = vcmask 523264
        %v1318 = vsel %vm1317, %v1315, %v1302
        %v1319 = vsel %vm1317, %v1316, %v1304
        %vm1320 = vcmask 785408
        %v1321 = vsel %vm1320, %v1318, %v1310
        %v1322 = vsel %vm1320, %v1319, %v1312
        %v1323 = vpack.c.bf16 %v1322, %v1321
        %v1324 = vld [vmem:[#allocation2] sm:$0xf]
        %v1325 = vld [vmem:[#allocation2 + $0x4] sm:$0xf]
        %v1326 = vld [vmem:[#allocation2 + $0x8] sm:$0xf]
        %v1327 = vld [vmem:[#allocation2 + $0xc] sm:$0xf]
        %v1328 = vld [vmem:[#allocation2 + $0x10] sm:$0xf]
        %v1329 = vld [vmem:[#allocation2 + $0x14] sm:$0xf]
        %v1330 = vld [vmem:[#allocation2 + $0x18] sm:$0xf]
        %v1331 = vld [vmem:[#allocation2 + $0x1c] sm:$0xf]
        %v1332 = vld [vmem:[#allocation2 + $0x20] sm:$0xf]
        %v1333 = vld [vmem:[#allocation2 + $0x24] sm:$0xf]
        %v1334 = vld [vmem:[#allocation2 + $0x28] sm:$0xf]
        %v1335 = vld [vmem:[#allocation2 + $0x2c] sm:$0xf]
        %v1336 = vld [vmem:[#allocation2 + $0x30] sm:$0xf]
        %v1337 = vld [vmem:[#allocation2 + $0x34] sm:$0xf]
        %v1338 = vld [vmem:[#allocation2 + $0x38] sm:$0xf]
        %v1339 = vld [vmem:[#allocation2 + $0x3c] sm:$0xf]
        %v1340 = vld [vmem:[#allocation4] sm:$0x1]
        %v1342 = vlaneseq
        %v1343 = vshrl.u32 %v1342, 7
        %v1344 = vsub.s32 0, %v1343
        %v1345 = vrot.slane %v1340, %v1344
        %v1363 = vunpack.c.l.b16 %v1324
        %v1364 = vunpack.c.l.b16 %v1325
        %v1365 = vunpack.c.l.b16 %v1326
        %v1366 = vunpack.c.l.b16 %v1327
        %v1367 = vunpack.c.l.b16 %v1328
        %v1368 = vunpack.c.l.b16 %v1329
        %v1369 = vunpack.c.l.b16 %v1330
        %v1370 = vunpack.c.l.b16 %v1331
        %v1371 = vunpack.c.l.b16 %v1332
        %v1372 = vunpack.c.l.b16 %v1333
        %v1373 = vunpack.c.l.b16 %v1334
        %v1374 = vunpack.c.l.b16 %v1335
        %v1375 = vunpack.c.l.b16 %v1336
        %v1376 = vunpack.c.l.b16 %v1337
        %v1377 = vunpack.c.l.b16 %v1338
        %v1378 = vunpack.c.l.b16 %v1339
        %v1379 = vpack.c.b16 %v1364, %v1363
        %v1380 = vpack.c.b16 %v1366, %v1365
        %v1381 = vpack.c.b16 %v1368, %v1367
        %v1382 = vpack.c.b16 %v1370, %v1369
        %v1383 = vpack.c.b16 %v1372, %v1371
        %v1384 = vpack.c.b16 %v1374, %v1373
        %v1385 = vpack.c.b16 %v1376, %v1375
        %v1386 = vpack.c.b16 %v1378, %v1377
        %1395 = vmatprep.subr.bf16.mxu0 0
        %1396 = vmatpush1.bf16.msra.mxu0 %v1379
        %1397 = vmatprep.subr.bf16.mxu0 0
        %1398 = vmatpush1.bf16.msra.mxu0 %v1380
        %1399 = vmatprep.subr.bf16.mxu0 0
        %1400 = vmatpush1.bf16.msra.mxu0 %v1381
        %1401 = vmatprep.subr.bf16.mxu0 0
        %1402 = vmatpush1.bf16.msra.mxu0 %v1382
        %1403 = vmatprep.subr.bf16.mxu0 0
        %1404 = vmatpush1.bf16.msra.mxu0 %v1383
        %1405 = vmatprep.subr.bf16.mxu0 0
        %1406 = vmatpush1.bf16.msra.mxu0 %v1384
        %1407 = vmatprep.subr.bf16.mxu0 0
        %1408 = vmatpush1.bf16.msra.mxu0 %v1385
        %1409 = vmatprep.subr.bf16.mxu0 0
        %1410 = vmatpush1.bf16.msra.mxu0 %v1386
        %1411 = vmatprep.subr.bf16.mxu0 0
        %1412 = vmatpush1.bf16.msra.mxu0 0
        %1413 = vmatprep.subr.bf16.mxu0 0
        %1414 = vmatpush1.bf16.msra.mxu0 0
        %1415 = vmatprep.subr.bf16.mxu0 0
        %1416 = vmatpush1.bf16.msra.mxu0 0
        %1417 = vmatprep.subr.bf16.mxu0 0
        %1418 = vmatpush1.bf16.msra.mxu0 0
        %1419 = vmatprep.subr.bf16.mxu0 0
        %1420 = vmatpush1.bf16.msra.mxu0 0
        %1421 = vmatprep.subr.bf16.mxu0 0
        %1422 = vmatpush1.bf16.msra.mxu0 0
        %1423 = vmatprep.subr.bf16.mxu0 0
        %1424 = vmatpush1.bf16.msra.mxu0 0
        %1425 = vmatprep.subr.bf16.mxu0 0
        %1426 = vmatpush1.bf16.msra.mxu0 0
        %1427 = vmatprep.mubr.bf16.mxu0 0
        %1428 = vmatmul.mubr.bf16.gmra.mrb[0].mxu0 %v1323
        %v1429 = vpop.f32.mrb[0].mxu0
        %v1430 = vadd.f32 %v1345, %v1429
        %v1431 = vpop.f32.mrb[0].mxu0
        %v1432 = vpop.f32.mrb[0].mxu0
        %v1433 = vadd.f32 %v1345, %v1432
        %v1434 = vpop.f32.mrb[0].mxu0
        %1435 = vdwg.mxu0
        %v1436 = vld [vmem:[%s396] sm:$0xf]
        %v1437 = vld [vmem:[%s396 + $0x4] sm:$0x1]
        %v1438 = vunpack.c.l.bf16 %v1436
        %v1439 = vunpack.c.l.bf16 %v1437
        %v1440 = vadd.f32 %v1438, %v1430
        %v1441 = vadd.f32 %v1439, %v1433
        %v1442 = vpack.c.bf16 %v1441, %v1440
        %v1444 = vunpack.c.l.b16 %v1442
        %v1445 = vunpack.c.h.b16 %v1442
        %v1446 = vpack.c.b16 %v1444, %v1444
        %v1447 = vpack.c.b16 %v1445, %v1445
        %1450 = vst [vmem:[%s401] sm:$0xf] %v1446
        %vm1451 = vcmask 1040384
        %vm1452 = vmand %vm1451, %vm573
        %v1453 = vld [vmem:[%s401 + $0x4] sm:$0x1]
        %v1454 = vsel %vm1452, %v1447, %v1453
        %1455 = vst [vmem:[%s401 + $0x4] sm:$0x1] %v1454
        %p1456 = scmp.lt.s32.totalorder %s22, 1
        %s1457 = scalar_select %p1456, %s22, 1
        %s1458 = smul.addr %s1457, 2
        %s1459 = smul.addr %s1458, 4
        %s1460 = scalar_lea.vmem %s7, %s1459
        %p1461 = scmp.lt.s32.totalorder %s22, 1
        %s1462 = scalar_select %p1461, %s22, 1
        %s1463 = smul.addr %s1462, 8
        %s1464 = smul.addr %s1463, 4
        %s1465 = scalar_lea.vmem %s8, %s1464
        // Predicated region
        $region57: #{my_conformer_forward.8} parent=47 // pred_check
          %p1466 = pneg %p207
        $region58: #{my_conformer_forward.8} parent=47 // pred_check_branch
          %1468 = sbr.rel (%p1466) target = $region60
        $region59: #{my_conformer_forward.8} parent=47 // pred_region
          _
        $region60: #{my_conformer_forward.8} parent=47 // pred_fallthru
          _
        // Predicated region
        $region61: #{my_conformer_forward.8} parent=47 // pred_check
          %p1469 = pneg %p233
        $region62: #{my_conformer_forward.8} parent=47 // pred_check_branch
          %1471 = sbr.rel (%p1469) target = $region64
        $region63: #{my_conformer_forward.8} parent=47 // pred_region
          _
        $region64: #{my_conformer_forward.8} parent=47 // pred_fallthru
          _
      $region48: #{my_conformer_forward.8} parent=5 // pred_fallthru
        _
      %p1472 = scmp.le.s32.totalorder 2, %s17
      // Predicated region
      $region65: #{my_conformer_forward.8} parent=5 // pred_check
        %p1473 = pneg %p1472
      $region66: #{my_conformer_forward.8} parent=5 // pred_check_branch
        %1475 = sbr.rel (%p1473) target = $region68
      $region67: #{my_conformer_forward.8} parent=5 // pred_region
        %s1476 = ssub.s32 %s17, 2
        // Predicated region
        $region69: #{my_conformer_forward.8} parent=67 // pred_check
          %p1477 = pneg %p213
        $region70: #{my_conformer_forward.8} parent=67 // pred_check_branch
          %1479 = sbr.rel (%p1477) target = $region72
        $region71: #{my_conformer_forward.8} parent=67 // pred_region
          %p1480 = scmp.lt.s32.totalorder %s23, 1
          %s1481 = scalar_select %p1480, %s23, 1
          %s1482 = smul.addr %s1481, 2
          %s1483 = smul.addr %s1482, 4
          %s1484 = scalar_lea.vmem %s7, %s1483
        $region72: #{my_conformer_forward.8} parent=67 // pred_fallthru
          _
        // Predicated region
        $region73: #{my_conformer_forward.8} parent=67 // pred_check
          %p1485 = pneg %p239
        $region74: #{my_conformer_forward.8} parent=67 // pred_check_branch
          %1487 = sbr.rel (%p1485) target = $region76
        $region75: #{my_conformer_forward.8} parent=67 // pred_region
          %p1488 = scmp.lt.s32.totalorder %s23, 1
          %s1489 = scalar_select %p1488, %s23, 1
          %s1490 = smul.addr %s1489, 8
          %s1491 = smul.addr %s1490, 4
          %s1492 = scalar_lea.vmem %s8, %s1491
        $region76: #{my_conformer_forward.8} parent=67 // pred_fallthru
          _
      $region68: #{my_conformer_forward.8} parent=5 // pred_fallthru
        _
    $region6: #{my_conformer_forward.8} parent=1 // loop_footer
      %s21 = sadd.s32 1, %s17
    $region7: #{my_conformer_forward.8} parent=1 // loop_footer_branch
      %16 = sbr.rel target = $region3
    $region8: #{my_conformer_forward.8} parent=1 // loop_exit
      _
    %1493 = vsyncpa [#allocation3], 1
    %s1494 = scalar_lea.sflag [#allocation3], 1
    %1495 = vsyncpa %s1494, 1
    %1496 = vsyncpa [#allocation5], 1

// kernel: my_conformer_forward.11
$region0: #{my_conformer_forward.11}
  #allocation0 [shape = 'u32[]', space=smem, size = 0x4, offset = 0x4, fixed_abs, tag = 'smem constant byte address 0x4 - core index']
  #allocation1 [shape = 'u32[144,128]{1,0:T(1,128)}', space=vmem, size = 0x12000, scoped, tag = 'internal scratch']
  %s0 = inlined_call_operand.vmem [shape: bf16[2,128], index: 0, kind: input, shape index: {}]
  %s1 = inlined_call_operand.vmem [shape: f32[128,2], index: 1, kind: input, shape index: {}]
  %s2 = inlined_call_operand.hbm [shape: f32[1,2], index: 2, kind: input, shape index: {}]
  %s3 = inlined_call_operand.hbm [shape: f32[2,2], index: 3, kind: output, shape index: {}]
  %s4 = sld [smem:[#allocation0]]
  $region26: #{my_conformer_forward.11} parent=0
    _
  %s6 = ssub.s32 1, %s4
  %s7 = scalar_select 0, %s6, %s4
  $region1: #{my_conformer_forward.11} parent=0
    #allocation2 [shape = 'u8[512]{0}', space=vmem, size = 0x400, scoped, tag = 'input window, operand 2, single buffered']
    #allocation3 [shape = 's32[1]{0}', space=sflag, size = 0x4, scoped, tag = 'scoped memory for my_conformer_forward.11']
    #allocation4 [shape = 's32[1]{0}', space=sflag, size = 0x4, scoped, tag = 'scoped memory for my_conformer_forward.11']
    #allocation5 [shape = 'u8[1024]{0}', space=vmem, size = 0x400, scoped, tag = 'output window, operand 0, single buffered']
    %8 = vsyncpa [#allocation3], 0
    %9 = vsyncpa [#allocation4], 0
    // Predicated region
    $region2: #{my_conformer_forward.11} parent=1 // pred_check
      _
    $region3: #{my_conformer_forward.11} parent=1 // pred_check_branch
      %11 = sbr.rel (0) target = $region5
    $region4: #{my_conformer_forward.11} parent=1 // pred_region
      _
    $region5: #{my_conformer_forward.11} parent=1 // pred_fallthru
      _
    // Predicated region
    $region6: #{my_conformer_forward.11} parent=1 // pred_check
      _
    $region7: #{my_conformer_forward.11} parent=1 // pred_check_branch
      %13 = sbr.rel (0) target = $region9
    $region8: #{my_conformer_forward.11} parent=1 // pred_region
      _
    $region9: #{my_conformer_forward.11} parent=1 // pred_fallthru
      _
    // Predicated region
    $region10: #{my_conformer_forward.11} parent=1 // pred_check
      _
    $region11: #{my_conformer_forward.11} parent=1 // pred_check_branch
      %15 = sbr.rel (0) target = $region13
    $region12: #{my_conformer_forward.11} parent=1 // pred_region
      %s17 = ssub.s32 16, 16
      %18 = vsyncadd [#allocation3], %s17
      %s20 = sshll.u32 [#allocation2], 4
      %s21 = int_to_ptr.vmem [resolvable:$true] %s20
      %23 = dma.hbm_to_vmem [thread:$0]  %s2, 16, %s21, [#allocation3]
    $region13: #{my_conformer_forward.11} parent=1 // pred_fallthru
      _
    // Predicated region
    $region14: #{my_conformer_forward.11} parent=1 // pred_check
      _
    $region15: #{my_conformer_forward.11} parent=1 // pred_check_branch
      %25 = sbr.rel (0) target = $region17
    $region16: #{my_conformer_forward.11} parent=1 // pred_region
      %26 = dma.done [#allocation3], 16
    $region17: #{my_conformer_forward.11} parent=1 // pred_fallthru
      _
    %v27 = vld [vmem:[%s0] sm:$0x1]
    %v28 = vunpack.c.l.bf16 %v27
    %v29 = vld [vmem:[%s1] sm:$0xff]
    %v30 = vld [vmem:[%s1 + $0x8] sm:$0xff]
    %v31 = vld [vmem:[%s1 + $0x10] sm:$0xff]
    %v32 = vld [vmem:[%s1 + $0x18] sm:$0xff]
    %v33 = vld [vmem:[%s1 + $0x20] sm:$0xff]
    %v34 = vld [vmem:[%s1 + $0x28] sm:$0xff]
    %v35 = vld [vmem:[%s1 + $0x30] sm:$0xff]
    %v36 = vld [vmem:[%s1 + $0x38] sm:$0xff]
    %v37 = vld [vmem:[%s1 + $0x40] sm:$0xff]
    %v38 = vld [vmem:[%s1 + $0x48] sm:$0xff]
    %v39 = vld [vmem:[%s1 + $0x50] sm:$0xff]
    %v40 = vld [vmem:[%s1 + $0x58] sm:$0xff]
    %v41 = vld [vmem:[%s1 + $0x60] sm:$0xff]
    %v42 = vld [vmem:[%s1 + $0x68] sm:$0xff]
    %v43 = vld [vmem:[%s1 + $0x70] sm:$0xff]
    %v44 = vld [vmem:[%s1 + $0x78] sm:$0xff]
    %v45 = vld [vmem:[#allocation2] sm:$0x1]
    %v47 = vlaneseq
    %v48 = vshrl.u32 %v47, 7
    %v49 = vsub.s32 0, %v48
    %v50 = vrot.slane %v45, %v49
    %52 = vmatprep.subr.mxu0 0.0
    %53 = vmatpush1.msra.mxu0 %v29
    %54 = vmatprep.subr.mxu0 0.0
    %55 = vmatpush1.msra.mxu0 %v30
    %56 = vmatprep.subr.mxu0 0.0
    %57 = vmatpush1.msra.mxu0 %v31
    %58 = vmatprep.subr.mxu0 0.0
    %59 = vmatpush1.msra.mxu0 %v32
    %60 = vmatprep.subr.mxu0 0.0
    %61 = vmatpush1.msra.mxu0 %v33
    %62 = vmatprep.subr.mxu0 0.0
    %63 = vmatpush1.msra.mxu0 %v34
    %64 = vmatprep.subr.mxu0 0.0
    %65 = vmatpush1.msra.mxu0 %v35
    %66 = vmatprep.subr.mxu0 0.0
    %67 = vmatpush1.msra.mxu0 %v36
    %68 = vmatprep.subr.mxu0 0.0
    %69 = vmatpush1.msra.mxu0 %v37
    %70 = vmatprep.subr.mxu0 0.0
    %71 = vmatpush1.msra.mxu0 %v38
    %72 = vmatprep.subr.mxu0 0.0
    %73 = vmatpush1.msra.mxu0 %v39
    %74 = vmatprep.subr.mxu0 0.0
    %75 = vmatpush1.msra.mxu0 %v40
    %76 = vmatprep.subr.mxu0 0.0
    %77 = vmatpush1.msra.mxu0 %v41
    %78 = vmatprep.subr.mxu0 0.0
    %79 = vmatpush1.msra.mxu0 %v42
    %80 = vmatprep.subr.mxu0 0.0
    %81 = vmatpush1.msra.mxu0 %v43
    %82 = vmatprep.subr.mxu0 0.0
    %83 = vmatpush1.msra.mxu0 %v44
    %84 = vmatprep.subr.mxu0 0.0
    %85 = vmatpush1.msra.mxu0 0.0
    %86 = vmatprep.subr.mxu0 0.0
    %87 = vmatpush1.msra.mxu0 0.0
    %88 = vmatprep.subr.mxu0 0.0
    %89 = vmatpush1.msra.mxu0 0.0
    %90 = vmatprep.subr.mxu0 0.0
    %91 = vmatpush1.msra.mxu0 0.0
    %92 = vmatprep.subr.mxu0 0.0
    %93 = vmatpush1.msra.mxu0 0.0
    %94 = vmatprep.subr.mxu0 0.0
    %95 = vmatpush1.msra.mxu0 0.0
    %96 = vmatprep.subr.mxu0 0.0
    %97 = vmatpush1.msra.mxu0 0.0
    %98 = vmatprep.subr.mxu0 0.0
    %99 = vmatpush1.msra.mxu0 0.0
    %100 = vmatprep.subr.mxu0 0.0
    %101 = vmatpush1.msra.mxu0 0.0
    %102 = vmatprep.subr.mxu0 0.0
    %103 = vmatpush1.msra.mxu0 0.0
    %104 = vmatprep.subr.mxu0 0.0
    %105 = vmatpush1.msra.mxu0 0.0
    %106 = vmatprep.subr.mxu0 0.0
    %107 = vmatpush1.msra.mxu0 0.0
    %108 = vmatprep.subr.mxu0 0.0
    %109 = vmatpush1.msra.mxu0 0.0
    %110 = vmatprep.subr.mxu0 0.0
    %111 = vmatpush1.msra.mxu0 0.0
    %112 = vmatprep.subr.mxu0 0.0
    %113 = vmatpush1.msra.mxu0 0.0
    %114 = vmatprep.subr.mxu0 0.0
    %115 = vmatpush1.msra.mxu0 0.0
    %116 = vmatprep.mubr.f32.mxu0 0.0
    %117 = vmatmul.mubr.f32.gmra.mrb[0].mxu0 %v28
    %v118 = vpop.f32.mrb[0].mxu0
    %v119 = vadd.f32 %v50, %v118
    %v120 = vpop.f32.mrb[0].mxu0
    %121 = vdwg.mxu0
    %vm122 = vcmask 9216
    %123 = vst.msk [vmem:[#allocation5] sm:$0x3] %vm122, %v119
    // Predicated region
    $region18: #{my_conformer_forward.11} parent=1 // pred_check
      _
    $region19: #{my_conformer_forward.11} parent=1 // pred_check_branch
      %125 = sbr.rel (0) target = $region21
    $region20: #{my_conformer_forward.11} parent=1 // pred_region
      %s127 = ssub.s32 32, 32
      %128 = vsyncadd [#allocation4], %s127
      %s130 = sshll.u32 [#allocation5], 4
      %s131 = int_to_ptr.vmem [resolvable:$true] %s130
      %133 = dma.vmem_to_hbm [thread:$0]  %s131, 32, %s3, [#allocation4]
    $region21: #{my_conformer_forward.11} parent=1 // pred_fallthru
      _
    // Predicated region
    $region22: #{my_conformer_forward.11} parent=1 // pred_check
      _
    $region23: #{my_conformer_forward.11} parent=1 // pred_check_branch
      %135 = sbr.rel (0) target = $region25
    $region24: #{my_conformer_forward.11} parent=1 // pred_region
      %136 = dma.done [#allocation4], 32
    $region25: #{my_conformer_forward.11} parent=1 // pred_fallthru
      _
    %137 = vsyncpa [#allocation3], 1
    %138 = vsyncpa [#allocation4], 1

// kernel: my_conformer_forward.10
$region0: #{my_conformer_forward.10}
  #allocation0 [shape = 'u32[]', space=smem, size = 0x4, offset = 0x4, fixed_abs, tag = 'smem constant byte address 0x4 - core index']
  #allocation1 [shape = 'u32[144,128]{1,0:T(1,128)}', space=vmem, size = 0x12000, scoped, tag = 'internal scratch']
  %s0 = inlined_call_operand.vmem [shape: bf16[18,128], index: 0, kind: input, shape index: {}]
  %s1 = inlined_call_operand.hbm [shape: f32[1,128], index: 1, kind: input, shape index: {}]
  %s2 = inlined_call_operand.hbm [shape: f32[1,128], index: 2, kind: input, shape index: {}]
  %s3 = inlined_call_operand.hbm [shape: bf16[128,512], index: 3, kind: input, shape index: {}]
  %s4 = inlined_call_operand.hbm [shape: f32[1,512], index: 4, kind: input, shape index: {}]
  %s5 = inlined_call_operand.hbm [shape: bf16[512,128], index: 5, kind: input, shape index: {}]
  %s6 = inlined_call_operand.hbm [shape: f32[1,128], index: 6, kind: input, shape index: {}]
  %s7 = inlined_call_operand.hbm [shape: f32[1,128], index: 7, kind: input, shape index: {}]
  %s8 = inlined_call_operand.hbm [shape: f32[1,128], index: 8, kind: input, shape index: {}]
  %s9 = inlined_call_operand.vmem [shape: bf16[18,128], index: 9, kind: output, shape index: {}]
  %s10 = sld [smem:[#allocation0]]
  $region145: #{my_conformer_forward.10} parent=0
    _
  %s12 = ssub.s32 1, %s10
  %s13 = scalar_select 0, %s12, %s10
  $region1: #{my_conformer_forward.10} parent=0
    #allocation2 [shape = 'u8[512]{0}', space=vmem, size = 0x400, scoped, tag = 'input window, operand 1, single buffered']
    #allocation3 [shape = 's32[2]{0}', space=sflag, size = 0x8, scoped, tag = 'scoped memory for my_conformer_forward.10']
    #allocation4 [shape = 'u8[512]{0}', space=vmem, size = 0x400, scoped, tag = 'input window, operand 2, single buffered']
    #allocation5 [shape = 's32[1]{0}', space=sflag, size = 0x4, scoped, tag = 'scoped memory for my_conformer_forward.10']
    #allocation6 [shape = 'u8[131072]{0}', space=vmem, size = 0x20000, scoped, tag = 'input window, operand 3, single buffered']
    #allocation7 [shape = 'u8[2048]{0}', space=vmem, size = 0x800, scoped, tag = 'input window, operand 4, single buffered']
    #allocation8 [shape = 's32[1]{0}', space=sflag, size = 0x4, scoped, tag = 'scoped memory for my_conformer_forward.10']
    #allocation9 [shape = 'u8[131072]{0}', space=vmem, size = 0x20000, scoped, tag = 'input window, operand 5, single buffered']
    #allocation10 [shape = 'u8[512]{0}', space=vmem, size = 0x400, scoped, tag = 'input window, operand 6, single buffered']
    #allocation11 [shape = 's32[1]{0}', space=sflag, size = 0x4, scoped, tag = 'scoped memory for my_conformer_forward.10']
    #allocation12 [shape = 'u8[512]{0}', space=vmem, size = 0x400, scoped, tag = 'input window, operand 7, single buffered']
    #allocation13 [shape = 'u8[512]{0}', space=vmem, size = 0x400, scoped, tag = 'input window, operand 8, single buffered']
    #allocation14 [shape = 's32[1]{0}', space=sflag, size = 0x4, scoped, tag = 'scoped memory for my_conformer_forward.10']
    #allocation15 [shape = 'u8[8192]{0}', space=vmem, size = 0x2000, scoped, tag = 'output window, operand 0']
    %14 = vsyncpa [#allocation3], 0
    %15 = vsyncpa [#allocation5], 0
    %16 = vsyncpa [#allocation8], 0
    %17 = vsyncpa [#allocation11], 0
    %18 = vsyncpa [#allocation14], 0
    loop: start=0, step=1, limit=4
    $region2: #{my_conformer_forward.10} parent=1 // loop_pre_header
      _
    $region3: #{my_conformer_forward.10} parent=1 // loop_header
      %s20 = sphi 0, %s24
      %p21 = scmp.ge.s32.totalorder %s20, 4
      %s30 = sphi 0, %s32
      %s33 = sphi 0, %s30
      %s34 = sphi 0, %s33
      %s50 = sphi 0, %s34
      %s54 = sphi 0, %s54
      %s56 = sphi 0, %s54
      %s57 = sphi 0, %s56
      %s71 = sphi 0, %s57
      %s75 = sphi 0, %s75
      %s77 = sphi 0, %s75
      %s78 = sphi 0, %s77
      %s92 = sphi 0, %s78
      %s96 = sphi 0, %s96
      %s98 = sphi 0, %s96
      %s99 = sphi 0, %s98
      %s113 = sphi 0, %s99
      %s117 = sphi 0, %s117
      %s119 = sphi 0, %s117
      %s120 = sphi 0, %s119
      %s134 = sphi 0, %s120
      %s138 = sphi 0, %s138
      %s140 = sphi 0, %s138
      %s141 = sphi 0, %s140
      %s155 = sphi 0, %s141
      %s159 = sphi 0, %s159
      %s161 = sphi 0, %s159
      %s162 = sphi 0, %s161
      %s176 = sphi 0, %s162
      %s180 = sphi 0, %s180
      %s182 = sphi 0, %s180
      %s183 = sphi 0, %s182
      %s197 = sphi 0, %s183
      %s201 = sphi 0, %s201
      %s203 = sphi 0, %s201
      %s204 = sphi 0, %s203
      %s218 = sphi 0, %s204
      %s224 = sphi 0, %s226
      %s227 = sphi 0, %s224
      %s228 = sphi 0, %s227
      %s244 = sphi 0, %s228
    $region4: #{my_conformer_forward.10} parent=1 // loop_header_branch
      %23 = sbr.rel (%p21) target = $region8
    $region5: #{my_conformer_forward.10} parent=1 // loop_body
      %s25 = ssub.s32 %s20, 1
      %s26 = ssub.s32 %s20, 2
      %s27 = sadd.s32 %s20, 1
      %s28 = ssub.s32 %s20, %s27
      %p29 = scmp.eq.s32.totalorder %s28, 0
      %s31 = sadd.s32 %s30, 1
      %s32 = scalar_select %p29, %s30, %s31
      %p35 = pneg %p29
      %p36 = scmp.eq.s32.totalorder %s20, 1
      %p37 = por %p35, %p36
      %p38 = scmp.ne.s32.totalorder %s30, %s33
      %p39 = scmp.eq.s32.totalorder %s20, 0
      %p40 = por %p38, %p39
      %p41 = scmp.ne.s32.totalorder %s30, %s33
      %p42 = scmp.eq.s32.totalorder %s25, 1
      %p43 = por %p41, %p42
      %p44 = scmp.ne.s32.totalorder %s33, %s34
      %p45 = scmp.eq.s32.totalorder %s25, 0
      %p46 = por %p44, %p45
      %p47 = scmp.ne.s32.totalorder %s33, %s34
      %p48 = scmp.eq.s32.totalorder %s26, 1
      %p49 = por %p47, %p48
      %p51 = scmp.ne.s32.totalorder %s34, %s50
      %p52 = scmp.eq.s32.totalorder %s26, 0
      %p53 = por %p51, %p52
      %s55 = sadd.s32 %s54, 1
      %p58 = scmp.eq.s32.totalorder %s20, 1
      %p59 = scmp.ne.s32.totalorder %s54, %s56
      %p60 = scmp.eq.s32.totalorder %s20, 0
      %p61 = por %p59, %p60
      %p62 = scmp.ne.s32.totalorder %s54, %s56
      %p63 = scmp.eq.s32.totalorder %s25, 1
      %p64 = por %p62, %p63
      %p65 = scmp.ne.s32.totalorder %s56, %s57
      %p66 = scmp.eq.s32.totalorder %s25, 0
      %p67 = por %p65, %p66
      %p68 = scmp.ne.s32.totalorder %s56, %s57
      %p69 = scmp.eq.s32.totalorder %s26, 1
      %p70 = por %p68, %p69
      %p72 = scmp.ne.s32.totalorder %s57, %s71
      %p73 = scmp.eq.s32.totalorder %s26, 0
      %p74 = por %p72, %p73
      %s76 = sadd.s32 %s75, 1
      %p79 = scmp.eq.s32.totalorder %s20, 1
      %p80 = scmp.ne.s32.totalorder %s75, %s77
      %p81 = scmp.eq.s32.totalorder %s20, 0
      %p82 = por %p80, %p81
      %p83 = scmp.ne.s32.totalorder %s75, %s77
      %p84 = scmp.eq.s32.totalorder %s25, 1
      %p85 = por %p83, %p84
      %p86 = scmp.ne.s32.totalorder %s77, %s78
      %p87 = scmp.eq.s32.totalorder %s25, 0
      %p88 = por %p86, %p87
      %p89 = scmp.ne.s32.totalorder %s77, %s78
      %p90 = scmp.eq.s32.totalorder %s26, 1
      %p91 = por %p89, %p90
      %p93 = scmp.ne.s32.totalorder %s78, %s92
      %p94 = scmp.eq.s32.totalorder %s26, 0
      %p95 = por %p93, %p94
      %s97 = sadd.s32 %s96, 1
      %p100 = scmp.eq.s32.totalorder %s20, 1
      %p101 = scmp.ne.s32.totalorder %s96, %s98
      %p102 = scmp.eq.s32.totalorder %s20, 0
      %p103 = por %p101, %p102
      %p104 = scmp.ne.s32.totalorder %s96, %s98
      %p105 = scmp.eq.s32.totalorder %s25, 1
      %p106 = por %p104, %p105
      %p107 = scmp.ne.s32.totalorder %s98, %s99
      %p108 = scmp.eq.s32.totalorder %s25, 0
      %p109 = por %p107, %p108
      %p110 = scmp.ne.s32.totalorder %s98, %s99
      %p111 = scmp.eq.s32.totalorder %s26, 1
      %p112 = por %p110, %p111
      %p114 = scmp.ne.s32.totalorder %s99, %s113
      %p115 = scmp.eq.s32.totalorder %s26, 0
      %p116 = por %p114, %p115
      %s118 = sadd.s32 %s117, 1
      %p121 = scmp.eq.s32.totalorder %s20, 1
      %p122 = scmp.ne.s32.totalorder %s117, %s119
      %p123 = scmp.eq.s32.totalorder %s20, 0
      %p124 = por %p122, %p123
      %p125 = scmp.ne.s32.totalorder %s117, %s119
      %p126 = scmp.eq.s32.totalorder %s25, 1
      %p127 = por %p125, %p126
      %p128 = scmp.ne.s32.totalorder %s119, %s120
      %p129 = scmp.eq.s32.totalorder %s25, 0
      %p130 = por %p128, %p129
      %p131 = scmp.ne.s32.totalorder %s119, %s120
      %p132 = scmp.eq.s32.totalorder %s26, 1
      %p133 = por %p131, %p132
      %p135 = scmp.ne.s32.totalorder %s120, %s134
      %p136 = scmp.eq.s32.totalorder %s26, 0
      %p137 = por %p135, %p136
      %s139 = sadd.s32 %s138, 1
      %p142 = scmp.eq.s32.totalorder %s20, 1
      %p143 = scmp.ne.s32.totalorder %s138, %s140
      %p144 = scmp.eq.s32.totalorder %s20, 0
      %p145 = por %p143, %p144
      %p146 = scmp.ne.s32.totalorder %s138, %s140
      %p147 = scmp.eq.s32.totalorder %s25, 1
      %p148 = por %p146, %p147
      %p149 = scmp.ne.s32.totalorder %s140, %s141
      %p150 = scmp.eq.s32.totalorder %s25, 0
      %p151 = por %p149, %p150
      %p152 = scmp.ne.s32.totalorder %s140, %s141
      %p153 = scmp.eq.s32.totalorder %s26, 1
      %p154 = por %p152, %p153
      %p156 = scmp.ne.s32.totalorder %s141, %s155
      %p157 = scmp.eq.s32.totalorder %s26, 0
      %p158 = por %p156, %p157
      %s160 = sadd.s32 %s159, 1
      %p163 = scmp.eq.s32.totalorder %s20, 1
      %p164 = scmp.ne.s32.totalorder %s159, %s161
      %p165 = scmp.eq.s32.totalorder %s20, 0
      %p166 = por %p164, %p165
      %p167 = scmp.ne.s32.totalorder %s159, %s161
      %p168 = scmp.eq.s32.totalorder %s25, 1
      %p169 = por %p167, %p168
      %p170 = scmp.ne.s32.totalorder %s161, %s162
      %p171 = scmp.eq.s32.totalorder %s25, 0
      %p172 = por %p170, %p171
      %p173 = scmp.ne.s32.totalorder %s161, %s162
      %p174 = scmp.eq.s32.totalorder %s26, 1
      %p175 = por %p173, %p174
      %p177 = scmp.ne.s32.totalorder %s162, %s176
      %p178 = scmp.eq.s32.totalorder %s26, 0
      %p179 = por %p177, %p178
      %s181 = sadd.s32 %s180, 1
      %p184 = scmp.eq.s32.totalorder %s20, 1
      %p185 = scmp.ne.s32.totalorder %s180, %s182
      %p186 = scmp.eq.s32.totalorder %s20, 0
      %p187 = por %p185, %p186
      %p188 = scmp.ne.s32.totalorder %s180, %s182
      %p189 = scmp.eq.s32.totalorder %s25, 1
      %p190 = por %p188, %p189
      %p191 = scmp.ne.s32.totalorder %s182, %s183
      %p192 = scmp.eq.s32.totalorder %s25, 0
      %p193 = por %p191, %p192
      %p194 = scmp.ne.s32.totalorder %s182, %s183
      %p195 = scmp.eq.s32.totalorder %s26, 1
      %p196 = por %p194, %p195
      %p198 = scmp.ne.s32.totalorder %s183, %s197
      %p199 = scmp.eq.s32.totalorder %s26, 0
      %p200 = por %p198, %p199
      %s202 = sadd.s32 %s201, 1
      %p205 = scmp.eq.s32.totalorder %s20, 1
      %p206 = scmp.ne.s32.totalorder %s201, %s203
      %p207 = scmp.eq.s32.totalorder %s20, 0
      %p208 = por %p206, %p207
      %p209 = scmp.ne.s32.totalorder %s201, %s203
      %p210 = scmp.eq.s32.totalorder %s25, 1
      %p211 = por %p209, %p210
      %p212 = scmp.ne.s32.totalorder %s203, %s204
      %p213 = scmp.eq.s32.totalorder %s25, 0
      %p214 = por %p212, %p213
      %p215 = scmp.ne.s32.totalorder %s203, %s204
      %p216 = scmp.eq.s32.totalorder %s26, 1
      %p217 = por %p215, %p216
      %p219 = scmp.ne.s32.totalorder %s204, %s218
      %p220 = scmp.eq.s32.totalorder %s26, 0
      %p221 = por %p219, %p220
      %s222 = ssub.s32 %s20, %s27
      %p223 = scmp.eq.s32.totalorder %s222, 0
      %s225 = sadd.s32 %s224, 1
      %s226 = scalar_select %p223, %s224, %s225
      %p229 = pneg %p223
      %p230 = scmp.eq.s32.totalorder %s20, 1
      %p231 = por %p229, %p230
      %p232 = scmp.ne.s32.totalorder %s224, %s227
      %p233 = scmp.eq.s32.totalorder %s20, 0
      %p234 = por %p232, %p233
      %p235 = scmp.ne.s32.totalorder %s224, %s227
      %p236 = scmp.eq.s32.totalorder %s25, 1
      %p237 = por %p235, %p236
      %p238 = scmp.ne.s32.totalorder %s227, %s228
      %p239 = scmp.eq.s32.totalorder %s25, 0
      %p240 = por %p238, %p239
      %p241 = scmp.ne.s32.totalorder %s227, %s228
      %p242 = scmp.eq.s32.totalorder %s26, 1
      %p243 = por %p241, %p242
      %p245 = scmp.ne.s32.totalorder %s228, %s244
      %p246 = scmp.eq.s32.totalorder %s26, 0
      %p247 = por %p245, %p246
      %p248 = scmp.le.s32.totalorder 1, %s20
      %p249 = scmp.lt.s32.totalorder %s20, 3
      %p250 = pnand %p248, %p249
      %p251 = pneg %p250
      // Predicated region
      $region9: #{my_conformer_forward.10} parent=5 // pred_check
        _
      $region10: #{my_conformer_forward.10} parent=5 // pred_check_branch
        %253 = sbr.rel (%p250) target = $region12
      $region11: #{my_conformer_forward.10} parent=5 // pred_region
        %s254 = ssub.s32 %s20, 1
        // Predicated region
        $region13: #{my_conformer_forward.10} parent=11 // pred_check
          %p255 = pneg %p67
        $region14: #{my_conformer_forward.10} parent=11 // pred_check_branch
          %257 = sbr.rel (%p255) target = $region16
        $region15: #{my_conformer_forward.10} parent=11 // pred_region
          %s259 = ssub.s32 16, 16
          %260 = vsyncadd [#allocation3], %s259
          %s262 = sshll.u32 [#allocation2], 4
          %s263 = int_to_ptr.vmem [resolvable:$true] %s262
          %265 = dma.hbm_to_vmem [thread:$0]  %s1, 16, %s263, [#allocation3]
        $region16: #{my_conformer_forward.10} parent=11 // pred_fallthru
          _
        // Predicated region
        $region17: #{my_conformer_forward.10} parent=11 // pred_check
          %p266 = pneg %p88
        $region18: #{my_conformer_forward.10} parent=11 // pred_check_branch
          %268 = sbr.rel (%p266) target = $region20
        $region19: #{my_conformer_forward.10} parent=11 // pred_region
          %s270 = ssub.s32 16, 16
          %271 = vsyncadd [#allocation5], %s270
          %s273 = sshll.u32 [#allocation4], 4
          %s274 = int_to_ptr.vmem [resolvable:$true] %s273
          %276 = dma.hbm_to_vmem [thread:$0]  %s2, 16, %s274, [#allocation5]
        $region20: #{my_conformer_forward.10} parent=11 // pred_fallthru
          _
        // Predicated region
        $region21: #{my_conformer_forward.10} parent=11 // pred_check
          %p277 = pneg %p109
        $region22: #{my_conformer_forward.10} parent=11 // pred_check_branch
          %279 = sbr.rel (%p277) target = $region24
        $region23: #{my_conformer_forward.10} parent=11 // pred_region
          %s281 = ssub.s32 4096, 4096
          %282 = vsyncadd [#allocation5], %s281
          %s283 = sshll.u32 [#allocation6], 4
          %s284 = int_to_ptr.vmem [resolvable:$true] %s283
          %289 = dma.hbm_to_vmem [thread:$0]  %s3, 4096, %s284, [#allocation5], 256, 256, 16
        $region24: #{my_conformer_forward.10} parent=11 // pred_fallthru
          _
        // Predicated region
        $region25: #{my_conformer_forward.10} parent=11 // pred_check
          %p290 = pneg %p130
        $region26: #{my_conformer_forward.10} parent=11 // pred_check_branch
          %292 = sbr.rel (%p290) target = $region28
        $region27: #{my_conformer_forward.10} parent=11 // pred_region
          %s294 = ssub.s32 64, 64
          %295 = vsyncadd [#allocation8], %s294
          %s297 = sshll.u32 [#allocation7], 4
          %s298 = int_to_ptr.vmem [resolvable:$true] %s297
          %300 = dma.hbm_to_vmem [thread:$0]  %s4, 64, %s298, [#allocation8]
        $region28: #{my_conformer_forward.10} parent=11 // pred_fallthru
          _
        // Predicated region
        $region29: #{my_conformer_forward.10} parent=11 // pred_check
          %p301 = pneg %p151
        $region30: #{my_conformer_forward.10} parent=11 // pred_check_branch
          %303 = sbr.rel (%p301) target = $region32
        $region31: #{my_conformer_forward.10} parent=11 // pred_region
          %s305 = ssub.s32 4096, 4096
          %306 = vsyncadd [#allocation8], %s305
          %s307 = sshll.u32 [#allocation9], 4
          %s308 = int_to_ptr.vmem [resolvable:$true] %s307
          %313 = dma.hbm_to_vmem [thread:$0]  %s5, 4096, %s308, [#allocation8], 64, 64, 4
        $region32: #{my_conformer_forward.10} parent=11 // pred_fallthru
          _
        // Predicated region
        $region33: #{my_conformer_forward.10} parent=11 // pred_check
          %p314 = pneg %p172
        $region34: #{my_conformer_forward.10} parent=11 // pred_check_branch
          %316 = sbr.rel (%p314) target = $region36
        $region35: #{my_conformer_forward.10} parent=11 // pred_region
          %s318 = ssub.s32 16, 16
          %319 = vsyncadd [#allocation11], %s318
          %s321 = sshll.u32 [#allocation10], 4
          %s322 = int_to_ptr.vmem [resolvable:$true] %s321
          %324 = dma.hbm_to_vmem [thread:$0]  %s6, 16, %s322, [#allocation11]
        $region36: #{my_conformer_forward.10} parent=11 // pred_fallthru
          _
        // Predicated region
        $region37: #{my_conformer_forward.10} parent=11 // pred_check
          %p325 = pneg %p193
        $region38: #{my_conformer_forward.10} parent=11 // pred_check_branch
          %327 = sbr.rel (%p325) target = $region40
        $region39: #{my_conformer_forward.10} parent=11 // pred_region
          %s329 = ssub.s32 16, 16
          %330 = vsyncadd [#allocation11], %s329
          %s332 = sshll.u32 [#allocation12], 4
          %s333 = int_to_ptr.vmem [resolvable:$true] %s332
          %335 = dma.hbm_to_vmem [thread:$0]  %s7, 16, %s333, [#allocation11]
        $region40: #{my_conformer_forward.10} parent=11 // pred_fallthru
          _
        // Predicated region
        $region41: #{my_conformer_forward.10} parent=11 // pred_check
          %p336 = pneg %p214
        $region42: #{my_conformer_forward.10} parent=11 // pred_check_branch
          %338 = sbr.rel (%p336) target = $region44
        $region43: #{my_conformer_forward.10} parent=11 // pred_region
          %s340 = ssub.s32 16, 16
          %341 = vsyncadd [#allocation14], %s340
          %s343 = sshll.u32 [#allocation13], 4
          %s344 = int_to_ptr.vmem [resolvable:$true] %s343
          %346 = dma.hbm_to_vmem [thread:$0]  %s8, 16, %s344, [#allocation14]
        $region44: #{my_conformer_forward.10} parent=11 // pred_fallthru
          _
      $region12: #{my_conformer_forward.10} parent=5 // pred_fallthru
        _
      %p347 = scmp.lt.s32.totalorder %s20, 2
      // Predicated region
      $region45: #{my_conformer_forward.10} parent=5 // pred_check
        %p348 = pneg %p347
      $region46: #{my_conformer_forward.10} parent=5 // pred_check_branch
        %350 = sbr.rel (%p348) target = $region48
      $region47: #{my_conformer_forward.10} parent=5 // pred_region
        // Predicated region
        $region49: #{my_conformer_forward.10} parent=47 // pred_check
          %p351 = pneg %p40
        $region50: #{my_conformer_forward.10} parent=47 // pred_check_branch
          %353 = sbr.rel (%p351) target = $region52
        $region51: #{my_conformer_forward.10} parent=47 // pred_region
          %s354 = smul.u32 2, %s20
          %s355 = ssub.s32 3, %s354
          %p356 = scmp.lt.s32.totalorder %s355, 2
          %s357 = scalar_select %p356, %s355, 2
          %s358 = smul.u32 64, %s357
          %p359 = scmp.lt.s32.totalorder %s354, 2
          %s360 = scalar_select %p359, %s354, 2
          %s361 = smul.addr %s360, 4
          %s362 = scalar_lea.vmem %s0, %s361
          %s363 = smul.u32 2, %s20
          %s364 = ssub.s32 3, %s363
          %p365 = scmp.lt.s32.totalorder %s364, 2
          %s366 = scalar_select %p365, %s364, 2
          %s367 = smul.u32 64, %s366
        $region52: #{my_conformer_forward.10} parent=47 // pred_fallthru
          _
      $region48: #{my_conformer_forward.10} parent=5 // pred_fallthru
        _
      %p368 = scmp.le.s32.totalorder 1, %s20
      %p369 = scmp.lt.s32.totalorder %s20, 3
      %p370 = pnand %p368, %p369
      %p371 = pneg %p370
      // Predicated region
      $region53: #{my_conformer_forward.10} parent=5 // pred_check
        _
      $region54: #{my_conformer_forward.10} parent=5 // pred_check_branch
        %373 = sbr.rel (%p370) target = $region56
      $region55: #{my_conformer_forward.10} parent=5 // pred_region
        %s374 = ssub.s32 %s20, 1
        // Predicated region
        $region57: #{my_conformer_forward.10} parent=55 // pred_check
          %p375 = pneg %p67
        $region58: #{my_conformer_forward.10} parent=55 // pred_check_branch
          %377 = sbr.rel (%p375) target = $region60
        $region59: #{my_conformer_forward.10} parent=55 // pred_region
          %378 = dma.done [#allocation3], 16
        $region60: #{my_conformer_forward.10} parent=55 // pred_fallthru
          _
        // Predicated region
        $region61: #{my_conformer_forward.10} parent=55 // pred_check
          %p379 = pneg %p88
        $region62: #{my_conformer_forward.10} parent=55 // pred_check_branch
          %381 = sbr.rel (%p379) target = $region64
        $region63: #{my_conformer_forward.10} parent=55 // pred_region
          %382 = dma.done [#allocation5], 16
        $region64: #{my_conformer_forward.10} parent=55 // pred_fallthru
          _
        // Predicated region
        $region65: #{my_conformer_forward.10} parent=55 // pred_check
          %p383 = pneg %p109
        $region66: #{my_conformer_forward.10} parent=55 // pred_check_branch
          %385 = sbr.rel (%p383) target = $region68
        $region67: #{my_conformer_forward.10} parent=55 // pred_region
          %386 = dma.done [#allocation5], 4096
        $region68: #{my_conformer_forward.10} parent=55 // pred_fallthru
          _
        // Predicated region
        $region69: #{my_conformer_forward.10} parent=55 // pred_check
          %p387 = pneg %p130
        $region70: #{my_conformer_forward.10} parent=55 // pred_check_branch
          %389 = sbr.rel (%p387) target = $region72
        $region71: #{my_conformer_forward.10} parent=55 // pred_region
          %390 = dma.done [#allocation8], 64
        $region72: #{my_conformer_forward.10} parent=55 // pred_fallthru
          _
        // Predicated region
        $region73: #{my_conformer_forward.10} parent=55 // pred_check
          %p391 = pneg %p151
        $region74: #{my_conformer_forward.10} parent=55 // pred_check_branch
          %393 = sbr.rel (%p391) target = $region76
        $region75: #{my_conformer_forward.10} parent=55 // pred_region
          %394 = dma.done [#allocation8], 4096
        $region76: #{my_conformer_forward.10} parent=55 // pred_fallthru
          _
        // Predicated region
        $region77: #{my_conformer_forward.10} parent=55 // pred_check
          %p395 = pneg %p172
        $region78: #{my_conformer_forward.10} parent=55 // pred_check_branch
          %397 = sbr.rel (%p395) target = $region80
        $region79: #{my_conformer_forward.10} parent=55 // pred_region
          %398 = dma.done [#allocation11], 16
        $region80: #{my_conformer_forward.10} parent=55 // pred_fallthru
          _
        // Predicated region
        $region81: #{my_conformer_forward.10} parent=55 // pred_check
          %p399 = pneg %p193
        $region82: #{my_conformer_forward.10} parent=55 // pred_check_branch
          %401 = sbr.rel (%p399) target = $region84
        $region83: #{my_conformer_forward.10} parent=55 // pred_region
          %402 = dma.done [#allocation11], 16
        $region84: #{my_conformer_forward.10} parent=55 // pred_fallthru
          _
        // Predicated region
        $region85: #{my_conformer_forward.10} parent=55 // pred_check
          %p403 = pneg %p214
        $region86: #{my_conformer_forward.10} parent=55 // pred_check_branch
          %405 = sbr.rel (%p403) target = $region88
        $region87: #{my_conformer_forward.10} parent=55 // pred_region
          %406 = dma.done [#allocation14], 16
        $region88: #{my_conformer_forward.10} parent=55 // pred_fallthru
          _
        %s407 = smul.u32 2, %s25
        %s408 = ssub.s32 3, %s407
        %p409 = scmp.lt.s32.totalorder %s408, 2
        %s410 = scalar_select %p409, %s408, 2
        %s411 = smul.u32 64, %s410
        %p412 = scmp.lt.s32.totalorder %s407, 2
        %s413 = scalar_select %p412, %s407, 2
        %s414 = smul.addr %s413, 4
        %s415 = scalar_lea.vmem %s0, %s414
        %p416 = pneg %p46
        %p417 = pneg %p43
        %p418 = pneg %p67
        %p419 = pneg %p64
        %p420 = pneg %p88
        %p421 = pneg %p85
        %p422 = pneg %p109
        %p423 = pneg %p106
        %p424 = pneg %p130
        %p425 = pneg %p127
        %p426 = pneg %p151
        %p427 = pneg %p148
        %p428 = pneg %p172
        %p429 = pneg %p169
        %p430 = pneg %p193
        %p431 = pneg %p190
        %p432 = pneg %p214
        %p433 = pneg %p211
        %p434 = pneg %p240
        %p435 = pneg %p237
        %s436 = sand.u32 %s227, 1
        %s437 = sand.u32 %s227, 1
        %s438 = smul.addr %s437, 8
        %s439 = scalar_lea.vmem [#allocation15], %s438
        %s440 = smul.u32 2, %s25
        %s441 = ssub.s32 3, %s440
        %p442 = scmp.lt.s32.totalorder %s441, 2
        %s443 = scalar_select %p442, %s441, 2
        %s444 = smul.u32 64, %s443
        %p445 = scmp.lt.s32.totalorder %s440, 2
        %s446 = scalar_select %p445, %s440, 2
        %s447 = smul.addr %s446, 4
        %s448 = scalar_lea.vmem %s0, %s447
        %s449 = smul.u32 2, %s25
        %s450 = ssub.s32 3, %s449
        %p451 = scmp.lt.s32.totalorder %s450, 2
        %s452 = scalar_select %p451, %s450, 2
        %s453 = smul.u32 64, %s452
        %s454 = smul.u32 2, %s25
        %s455 = ssub.s32 3, %s454
        %p456 = scmp.lt.s32.totalorder %s455, 2
        %s457 = scalar_select %p456, %s455, 2
        %s458 = smul.u32 64, %s457
        %v460 = vld [vmem:[%s448] sm:$0xf]
        %v461 = vld [vmem:[%s448 + $0x4] sm:$0xf]
        %v462 = vunpack.c.l.bf16 %v460
        %v463 = vunpack.c.l.bf16 %v461
        %v464 = vld [vmem:[#allocation2] sm:$0x1]
        %v465 = vld [vmem:[#allocation4] sm:$0x1]
        %466 = vadd.xlane.f32.xlu0 %v462
        %v467 = vpop.xlane.xlu0 %466
        %468 = vadd.xlane.f32.xlu0 %v463
        %v469 = vpop.xlane.xlu0 %468
        %v470 = vrcp.pop 128.0
        %v471 = vmul.f32 %v467, %v470
        %v472 = vmul.f32 %v469, %v470
        %v473 = vsub.f32 %v462, %v471
        %v474 = vsub.f32 %v463, %v472
        %v475 = vmul.f32 %v473, %v473
        %v476 = vmul.f32 %v474, %v474
        %477 = vadd.xlane.f32.xlu0 %v475
        %v478 = vpop.xlane.xlu0 %477
        %479 = vadd.xlane.f32.xlu0 %v476
        %v480 = vpop.xlane.xlu0 %479
        %v481 = vmul.f32 %v478, %v470
        %v482 = vmul.f32 %v480, %v470
        %v483 = vadd.f32 %v481, 1e-05
        %v484 = vadd.f32 %v482, 1e-05
        %v485 = vrsqrt.pop %v483
        %v486 = vrsqrt.pop %v484
        %v487 = vmul.f32 %v473, %v485
        %v488 = vmul.f32 %v474, %v486
        %v490 = vlaneseq
        %v491 = vshrl.u32 %v490, 7
        %v492 = vsub.s32 0, %v491
        %v493 = vrot.slane %v464, %v492
        %v495 = vmul.f32 %v487, %v493
        %v496 = vmul.f32 %v488, %v493
        %v498 = vlaneseq
        %v499 = vshrl.u32 %v498, 7
        %v500 = vsub.s32 0, %v499
        %v501 = vrot.slane %v465, %v500
        %v503 = vadd.f32 %v495, %v501
        %v504 = vadd.f32 %v496, %v501
        %v505 = vpack.c.bf16 %v504, %v503
        %v506 = vld [vmem:[#allocation6] sm:$0xff]
        %v507 = vld [vmem:[#allocation6 + $0x8] sm:$0xff]
        %v508 = vld [vmem:[#allocation6 + $0x10] sm:$0xff]
        %v509 = vld [vmem:[#allocation6 + $0x18] sm:$0xff]
        %v510 = vld [vmem:[#allocation6 + $0x20] sm:$0xff]
        %v511 = vld [vmem:[#allocation6 + $0x28] sm:$0xff]
        %v512 = vld [vmem:[#allocation6 + $0x30] sm:$0xff]
        %v513 = vld [vmem:[#allocation6 + $0x38] sm:$0xff]
        %v514 = vld [vmem:[#allocation6 + $0x40] sm:$0xff]
        %v515 = vld [vmem:[#allocation6 + $0x48] sm:$0xff]
        %v516 = vld [vmem:[#allocation6 + $0x50] sm:$0xff]
        %v517 = vld [vmem:[#allocation6 + $0x58] sm:$0xff]
        %v518 = vld [vmem:[#allocation6 + $0x60] sm:$0xff]
        %v519 = vld [vmem:[#allocation6 + $0x68] sm:$0xff]
        %v520 = vld [vmem:[#allocation6 + $0x70] sm:$0xff]
        %v521 = vld [vmem:[#allocation6 + $0x78] sm:$0xff]
        %v522 = vld [vmem:[#allocation6 + $0x80] sm:$0xff]
        %v523 = vld [vmem:[#allocation6 + $0x88] sm:$0xff]
        %v524 = vld [vmem:[#allocation6 + $0x90] sm:$0xff]
        %v525 = vld [vmem:[#allocation6 + $0x98] sm:$0xff]
        %v526 = vld [vmem:[#allocation6 + $0xa0] sm:$0xff]
        %v527 = vld [vmem:[#allocation6 + $0xa8] sm:$0xff]
        %v528 = vld [vmem:[#allocation6 + $0xb0] sm:$0xff]
        %v529 = vld [vmem:[#allocation6 + $0xb8] sm:$0xff]
        %v530 = vld [vmem:[#allocation6 + $0xc0] sm:$0xff]
        %v531 = vld [vmem:[#allocation6 + $0xc8] sm:$0xff]
        %v532 = vld [vmem:[#allocation6 + $0xd0] sm:$0xff]
        %v533 = vld [vmem:[#allocation6 + $0xd8] sm:$0xff]
        %v534 = vld [vmem:[#allocation6 + $0xe0] sm:$0xff]
        %v535 = vld [vmem:[#allocation6 + $0xe8] sm:$0xff]
        %v536 = vld [vmem:[#allocation6 + $0xf0] sm:$0xff]
        %v537 = vld [vmem:[#allocation6 + $0xf8] sm:$0xff]
        %v538 = vld [vmem:[#allocation7] sm:$0xf]
        %v540 = vlaneseq
        %v541 = vshrl.u32 %v540, 7
        %v542 = vsub.s32 0, %v541
        %v543 = vrot.slane %v538, %v542
        %v544 = vlaneseq
        %v545 = vshrl.u32 %v544, 7
        %v546 = vsub.s32 1, %v545
        %v547 = vrot.slane %v538, %v546
        %v548 = vlaneseq
        %v549 = vshrl.u32 %v548, 7
        %v550 = vsub.s32 2, %v549
        %v551 = vrot.slane %v538, %v550
        %v552 = vlaneseq
        %v553 = vshrl.u32 %v552, 7
        %v554 = vsub.s32 3, %v553
        %v555 = vrot.slane %v538, %v554
        %v592 = vunpack.c.l.b16 %v506
        %v593 = vunpack.c.h.b16 %v506
        %v594 = vunpack.c.l.b16 %v507
        %v595 = vunpack.c.h.b16 %v507
        %v596 = vunpack.c.l.b16 %v508
        %v597 = vunpack.c.h.b16 %v508
        %v598 = vunpack.c.l.b16 %v509
        %v599 = vunpack.c.h.b16 %v509
        %v600 = vunpack.c.l.b16 %v510
        %v601 = vunpack.c.h.b16 %v510
        %v602 = vunpack.c.l.b16 %v511
        %v603 = vunpack.c.h.b16 %v511
        %v604 = vunpack.c.l.b16 %v512
        %v605 = vunpack.c.h.b16 %v512
        %v606 = vunpack.c.l.b16 %v513
        %v607 = vunpack.c.h.b16 %v513
        %v608 = vunpack.c.l.b16 %v514
        %v609 = vunpack.c.h.b16 %v514
        %v610 = vunpack.c.l.b16 %v515
        %v611 = vunpack.c.h.b16 %v515
        %v612 = vunpack.c.l.b16 %v516
        %v613 = vunpack.c.h.b16 %v516
        %v614 = vunpack.c.l.b16 %v517
        %v615 = vunpack.c.h.b16 %v517
        %v616 = vunpack.c.l.b16 %v518
        %v617 = vunpack.c.h.b16 %v518
        %v618 = vunpack.c.l.b16 %v519
        %v619 = vunpack.c.h.b16 %v519
        %v620 = vunpack.c.l.b16 %v520
        %v621 = vunpack.c.h.b16 %v520
        %v622 = vunpack.c.l.b16 %v521
        %v623 = vunpack.c.h.b16 %v521
        %v624 = vunpack.c.l.b16 %v522
        %v625 = vunpack.c.h.b16 %v522
        %v626 = vunpack.c.l.b16 %v523
        %v627 = vunpack.c.h.b16 %v523
        %v628 = vunpack.c.l.b16 %v524
        %v629 = vunpack.c.h.b16 %v524
        %v630 = vunpack.c.l.b16 %v525
        %v631 = vunpack.c.h.b16 %v525
        %v632 = vunpack.c.l.b16 %v526
        %v633 = vunpack.c.h.b16 %v526
        %v634 = vunpack.c.l.b16 %v527
        %v635 = vunpack.c.h.b16 %v527
        %v636 = vunpack.c.l.b16 %v528
        %v637 = vunpack.c.h.b16 %v528
        %v638 = vunpack.c.l.b16 %v529
        %v639 = vunpack.c.h.b16 %v529
        %v640 = vunpack.c.l.b16 %v530
        %v641 = vunpack.c.h.b16 %v530
        %v642 = vunpack.c.l.b16 %v531
        %v643 = vunpack.c.h.b16 %v531
        %v644 = vunpack.c.l.b16 %v532
        %v645 = vunpack.c.h.b16 %v532
        %v646 = vunpack.c.l.b16 %v533
        %v647 = vunpack.c.h.b16 %v533
        %v648 = vunpack.c.l.b16 %v534
        %v649 = vunpack.c.h.b16 %v534
        %v650 = vunpack.c.l.b16 %v535
        %v651 = vunpack.c.h.b16 %v535
        %v652 = vunpack.c.l.b16 %v536
        %v653 = vunpack.c.h.b16 %v536
        %v654 = vunpack.c.l.b16 %v537
        %v655 = vunpack.c.h.b16 %v537
        %v656 = vpack.c.b16 %v596, %v592
        %v657 = vpack.c.b16 %v597, %v593
        %v658 = vpack.c.b16 %v598, %v594
        %v659 = vpack.c.b16 %v599, %v595
        %v660 = vpack.c.b16 %v604, %v600
        %v661 = vpack.c.b16 %v605, %v601
        %v662 = vpack.c.b16 %v606, %v602
        %v663 = vpack.c.b16 %v607, %v603
        %v664 = vpack.c.b16 %v612, %v608
        %v665 = vpack.c.b16 %v613, %v609
        %v666 = vpack.c.b16 %v614, %v610
        %v667 = vpack.c.b16 %v615, %v611
        %v668 = vpack.c.b16 %v620, %v616
        %v669 = vpack.c.b16 %v621, %v617
        %v670 = vpack.c.b16 %v622, %v618
        %v671 = vpack.c.b16 %v623, %v619
        %v672 = vpack.c.b16 %v628, %v624
        %v673 = vpack.c.b16 %v629, %v625
        %v674 = vpack.c.b16 %v630, %v626
        %v675 = vpack.c.b16 %v631, %v627
        %v676 = vpack.c.b16 %v636, %v632
        %v677 = vpack.c.b16 %v637, %v633
        %v678 = vpack.c.b16 %v638, %v634
        %v679 = vpack.c.b16 %v639, %v635
        %v680 = vpack.c.b16 %v644, %v640
        %v681 = vpack.c.b16 %v645, %v641
        %v682 = vpack.c.b16 %v646, %v642
        %v683 = vpack.c.b16 %v647, %v643
        %v684 = vpack.c.b16 %v652, %v648
        %v685 = vpack.c.b16 %v653, %v649
        %v686 = vpack.c.b16 %v654, %v650
        %v687 = vpack.c.b16 %v655, %v651
        %720 = vmatprep.subr.bf16.mxu0 %v657
        %721 = vmatpush1.bf16.msra.mxu0 %v656
        %722 = vmatprep.subr.bf16.mxu0 %v661
        %723 = vmatpush1.bf16.msra.mxu0 %v660
        %724 = vmatprep.subr.bf16.mxu0 %v665
        %725 = vmatpush1.bf16.msra.mxu0 %v664
        %726 = vmatprep.subr.bf16.mxu0 %v669
        %727 = vmatpush1.bf16.msra.mxu0 %v668
        %728 = vmatprep.subr.bf16.mxu0 %v673
        %729 = vmatpush1.bf16.msra.mxu0 %v672
        %730 = vmatprep.subr.bf16.mxu0 %v677
        %731 = vmatpush1.bf16.msra.mxu0 %v676
        %732 = vmatprep.subr.bf16.mxu0 %v681
        %733 = vmatpush1.bf16.msra.mxu0 %v680
        %734 = vmatprep.subr.bf16.mxu0 %v685
        %735 = vmatpush1.bf16.msra.mxu0 %v684
        %736 = vmatprep.subr.bf16.mxu0 0
        %737 = vmatpush1.bf16.msra.mxu0 0
        %738 = vmatprep.subr.bf16.mxu0 0
        %739 = vmatpush1.bf16.msra.mxu0 0
        %740 = vmatprep.subr.bf16.mxu0 0
        %741 = vmatpush1.bf16.msra.mxu0 0
        %742 = vmatprep.subr.bf16.mxu0 0
        %743 = vmatpush1.bf16.msra.mxu0 0
        %744 = vmatprep.subr.bf16.mxu0 0
        %745 = vmatpush1.bf16.msra.mxu0 0
        %746 = vmatprep.subr.bf16.mxu0 0
        %747 = vmatpush1.bf16.msra.mxu0 0
        %748 = vmatprep.subr.bf16.mxu0 0
        %749 = vmatpush1.bf16.msra.mxu0 0
        %750 = vmatprep.subr.bf16.mxu0 0
        %751 = vmatpush1.bf16.msra.mxu0 0
        %752 = vmatprep.mubr.bf16.mxu0 0
        %753 = vmatmul.mubr.bf16.gmra.mrb[0].mxu0 %v505
        %v754 = vpop.f32.mrb[0].mxu0
        %v755 = vadd.f32 %v543, %v754
        %v756 = vpop.f32.mrb[0].mxu0
        %v757 = vadd.f32 %v547, %v756
        %v758 = vpop.f32.mrb[0].mxu0
        %v759 = vadd.f32 %v543, %v758
        %v760 = vpop.f32.mrb[0].mxu0
        %v761 = vadd.f32 %v547, %v760
        %762 = vdwg.mxu0
        %763 = vmatprep.subr.bf16.mxu0 %v659
        %764 = vmatpush1.bf16.msra.mxu0 %v658
        %765 = vmatprep.subr.bf16.mxu0 %v663
        %766 = vmatpush1.bf16.msra.mxu0 %v662
        %767 = vmatprep.subr.bf16.mxu0 %v667
        %768 = vmatpush1.bf16.msra.mxu0 %v666
        %769 = vmatprep.subr.bf16.mxu0 %v671
        %770 = vmatpush1.bf16.msra.mxu0 %v670
        %771 = vmatprep.subr.bf16.mxu0 %v675
        %772 = vmatpush1.bf16.msra.mxu0 %v674
        %773 = vmatprep.subr.bf16.mxu0 %v679
        %774 = vmatpush1.bf16.msra.mxu0 %v678
        %775 = vmatprep.subr.bf16.mxu0 %v683
        %776 = vmatpush1.bf16.msra.mxu0 %v682
        %777 = vmatprep.subr.bf16.mxu0 %v687
        %778 = vmatpush1.bf16.msra.mxu0 %v686
        %779 = vmatprep.subr.bf16.mxu0 0
        %780 = vmatpush1.bf16.msra.mxu0 0
        %781 = vmatprep.subr.bf16.mxu0 0
        %782 = vmatpush1.bf16.msra.mxu0 0
        %783 = vmatprep.subr.bf16.mxu0 0
        %784 = vmatpush1.bf16.msra.mxu0 0
        %785 = vmatprep.subr.bf16.mxu0 0
        %786 = vmatpush1.bf16.msra.mxu0 0
        %787 = vmatprep.subr.bf16.mxu0 0
        %788 = vmatpush1.bf16.msra.mxu0 0
        %789 = vmatprep.subr.bf16.mxu0 0
        %790 = vmatpush1.bf16.msra.mxu0 0
        %791 = vmatprep.subr.bf16.mxu0 0
        %792 = vmatpush1.bf16.msra.mxu0 0
        %793 = vmatprep.subr.bf16.mxu0 0
        %794 = vmatpush1.bf16.msra.mxu0 0
        %795 = vmatprep.mubr.bf16.mxu0 0
        %796 = vmatmul.mubr.bf16.gmra.mrb[0].mxu0 %v505
        %v797 = vpop.f32.mrb[0].mxu0
        %v798 = vadd.f32 %v551, %v797
        %v799 = vpop.f32.mrb[0].mxu0
        %v800 = vadd.f32 %v555, %v799
        %v801 = vpop.f32.mrb[0].mxu0
        %v802 = vadd.f32 %v551, %v801
        %v803 = vpop.f32.mrb[0].mxu0
        %v804 = vadd.f32 %v555, %v803
        %805 = vdwg.mxu0
        %v806 = vxor.u32 %v755, 2147483648
        %v807 = vxor.u32 %v757, 2147483648
        %v808 = vxor.u32 %v798, 2147483648
        %v809 = vxor.u32 %v800, 2147483648
        %v810 = vxor.u32 %v759, 2147483648
        %v811 = vxor.u32 %v761, 2147483648
        %v812 = vxor.u32 %v802, 2147483648
        %v813 = vxor.u32 %v804, 2147483648
        %v814 = vmul.f32 %v806, 1.442695
        %v815 = vpow.pop %v814
        %v816 = vmul.f32 %v807, 1.442695
        %v817 = vpow.pop %v816
        %v818 = vmul.f32 %v808, 1.442695
        %v819 = vpow.pop %v818
        %v820 = vmul.f32 %v809, 1.442695
        %v821 = vpow.pop %v820
        %v822 = vmul.f32 %v810, 1.442695
        %v823 = vpow.pop %v822
        %v824 = vmul.f32 %v811, 1.442695
        %v825 = vpow.pop %v824
        %v826 = vmul.f32 %v812, 1.442695
        %v827 = vpow.pop %v826
        %v828 = vmul.f32 %v813, 1.442695
        %v829 = vpow.pop %v828
        %v830 = vadd.f32 %v815, 1.0
        %v831 = vadd.f32 %v817, 1.0
        %v832 = vadd.f32 %v819, 1.0
        %v833 = vadd.f32 %v821, 1.0
        %v834 = vadd.f32 %v823, 1.0
        %v835 = vadd.f32 %v825, 1.0
        %v836 = vadd.f32 %v827, 1.0
        %v837 = vadd.f32 %v829, 1.0
        %v838 = vrcp.pop %v830
        %v839 = vmul.f32 1.0, %v838
        %v840 = vrcp.pop %v831
        %v841 = vmul.f32 1.0, %v840
        %v842 = vrcp.pop %v832
        %v843 = vmul.f32 1.0, %v842
        %v844 = vrcp.pop %v833
        %v845 = vmul.f32 1.0, %v844
        %v846 = vrcp.pop %v834
        %v847 = vmul.f32 1.0, %v846
        %v848 = vrcp.pop %v835
        %v849 = vmul.f32 1.0, %v848
        %v850 = vrcp.pop %v836
        %v851 = vmul.f32 1.0, %v850
        %v852 = vrcp.pop %v837
        %v853 = vmul.f32 1.0, %v852
        %v854 = vmul.f32 %v755, %v839
        %v855 = vmul.f32 %v757, %v841
        %v856 = vmul.f32 %v798, %v843
        %v857 = vmul.f32 %v800, %v845
        %v858 = vmul.f32 %v759, %v847
        %v859 = vmul.f32 %v761, %v849
        %v860 = vmul.f32 %v802, %v851
        %v861 = vmul.f32 %v804, %v853
        %v862 = vpack.c.bf16 %v858, %v854
        %v863 = vpack.c.bf16 %v859, %v855
        %v864 = vpack.c.bf16 %v860, %v856
        %v865 = vpack.c.bf16 %v861, %v857
        %v866 = vld [vmem:[#allocation9] sm:$0xf]
        %v867 = vld [vmem:[#allocation9 + $0x4] sm:$0xf]
        %v868 = vld [vmem:[#allocation9 + $0x8] sm:$0xf]
        %v869 = vld [vmem:[#allocation9 + $0xc] sm:$0xf]
        %v870 = vld [vmem:[#allocation9 + $0x10] sm:$0xf]
        %v871 = vld [vmem:[#allocation9 + $0x14] sm:$0xf]
        %v872 = vld [vmem:[#allocation9 + $0x18] sm:$0xf]
        %v873 = vld [vmem:[#allocation9 + $0x1c] sm:$0xf]
        %v874 = vld [vmem:[#allocation9 + $0x20] sm:$0xf]
        %v875 = vld [vmem:[#allocation9 + $0x24] sm:$0xf]
        %v876 = vld [vmem:[#allocation9 + $0x28] sm:$0xf]
        %v877 = vld [vmem:[#allocation9 + $0x2c] sm:$0xf]
        %v878 = vld [vmem:[#allocation9 + $0x30] sm:$0xf]
        %v879 = vld [vmem:[#allocation9 + $0x34] sm:$0xf]
        %v880 = vld [vmem:[#allocation9 + $0x38] sm:$0xf]
        %v881 = vld [vmem:[#allocation9 + $0x3c] sm:$0xf]
        %v882 = vld [vmem:[#allocation9 + $0x40] sm:$0xf]
        %v883 = vld [vmem:[#allocation9 + $0x44] sm:$0xf]
        %v884 = vld [vmem:[#allocation9 + $0x48] sm:$0xf]
        %v885 = vld [vmem:[#allocation9 + $0x4c] sm:$0xf]
        %v886 = vld [vmem:[#allocation9 + $0x50] sm:$0xf]
        %v887 = vld [vmem:[#allocation9 + $0x54] sm:$0xf]
        %v888 = vld [vmem:[#allocation9 + $0x58] sm:$0xf]
        %v889 = vld [vmem:[#allocation9 + $0x5c] sm:$0xf]
        %v890 = vld [vmem:[#allocation9 + $0x60] sm:$0xf]
        %v891 = vld [vmem:[#allocation9 + $0x64] sm:$0xf]
        %v892 = vld [vmem:[#allocation9 + $0x68] sm:$0xf]
        %v893 = vld [vmem:[#allocation9 + $0x6c] sm:$0xf]
        %v894 = vld [vmem:[#allocation9 + $0x70] sm:$0xf]
        %v895 = vld [vmem:[#allocation9 + $0x74] sm:$0xf]
        %v896 = vld [vmem:[#allocation9 + $0x78] sm:$0xf]
        %v897 = vld [vmem:[#allocation9 + $0x7c] sm:$0xf]
        %v898 = vld [vmem:[#allocation9 + $0x80] sm:$0xf]
        %v899 = vld [vmem:[#allocation9 + $0x84] sm:$0xf]
        %v900 = vld [vmem:[#allocation9 + $0x88] sm:$0xf]
        %v901 = vld [vmem:[#allocation9 + $0x8c] sm:$0xf]
        %v902 = vld [vmem:[#allocation9 + $0x90] sm:$0xf]
        %v903 = vld [vmem:[#allocation9 + $0x94] sm:$0xf]
        %v904 = vld [vmem:[#allocation9 + $0x98] sm:$0xf]
        %v905 = vld [vmem:[#allocation9 + $0x9c] sm:$0xf]
        %v906 = vld [vmem:[#allocation9 + $0xa0] sm:$0xf]
        %v907 = vld [vmem:[#allocation9 + $0xa4] sm:$0xf]
        %v908 = vld [vmem:[#allocation9 + $0xa8] sm:$0xf]
        %v909 = vld [vmem:[#allocation9 + $0xac] sm:$0xf]
        %v910 = vld [vmem:[#allocation9 + $0xb0] sm:$0xf]
        %v911 = vld [vmem:[#allocation9 + $0xb4] sm:$0xf]
        %v912 = vld [vmem:[#allocation9 + $0xb8] sm:$0xf]
        %v913 = vld [vmem:[#allocation9 + $0xbc] sm:$0xf]
        %v914 = vld [vmem:[#allocation9 + $0xc0] sm:$0xf]
        %v915 = vld [vmem:[#allocation9 + $0xc4] sm:$0xf]
        %v916 = vld [vmem:[#allocation9 + $0xc8] sm:$0xf]
        %v917 = vld [vmem:[#allocation9 + $0xcc] sm:$0xf]
        %v918 = vld [vmem:[#allocation9 + $0xd0] sm:$0xf]
        %v919 = vld [vmem:[#allocation9 + $0xd4] sm:$0xf]
        %v920 = vld [vmem:[#allocation9 + $0xd8] sm:$0xf]
        %v921 = vld [vmem:[#allocation9 + $0xdc] sm:$0xf]
        %v922 = vld [vmem:[#allocation9 + $0xe0] sm:$0xf]
        %v923 = vld [vmem:[#allocation9 + $0xe4] sm:$0xf]
        %v924 = vld [vmem:[#allocation9 + $0xe8] sm:$0xf]
        %v925 = vld [vmem:[#allocation9 + $0xec] sm:$0xf]
        %v926 = vld [vmem:[#allocation9 + $0xf0] sm:$0xf]
        %v927 = vld [vmem:[#allocation9 + $0xf4] sm:$0xf]
        %v928 = vld [vmem:[#allocation9 + $0xf8] sm:$0xf]
        %v929 = vld [vmem:[#allocation9 + $0xfc] sm:$0xf]
        %v930 = vld [vmem:[#allocation10] sm:$0x1]
        %v932 = vlaneseq
        %v933 = vshrl.u32 %v932, 7
        %v934 = vsub.s32 0, %v933
        %v935 = vrot.slane %v930, %v934
        %v1001 = vunpack.c.l.b16 %v866
        %v1002 = vunpack.c.l.b16 %v867
        %v1003 = vunpack.c.l.b16 %v868
        %v1004 = vunpack.c.l.b16 %v869
        %v1005 = vunpack.c.l.b16 %v870
        %v1006 = vunpack.c.l.b16 %v871
        %v1007 = vunpack.c.l.b16 %v872
        %v1008 = vunpack.c.l.b16 %v873
        %v1009 = vunpack.c.l.b16 %v874
        %v1010 = vunpack.c.l.b16 %v875
        %v1011 = vunpack.c.l.b16 %v876
        %v1012 = vunpack.c.l.b16 %v877
        %v1013 = vunpack.c.l.b16 %v878
        %v1014 = vunpack.c.l.b16 %v879
        %v1015 = vunpack.c.l.b16 %v880
        %v1016 = vunpack.c.l.b16 %v881
        %v1017 = vunpack.c.l.b16 %v882
        %v1018 = vunpack.c.l.b16 %v883
        %v1019 = vunpack.c.l.b16 %v884
        %v1020 = vunpack.c.l.b16 %v885
        %v1021 = vunpack.c.l.b16 %v886
        %v1022 = vunpack.c.l.b16 %v887
        %v1023 = vunpack.c.l.b16 %v888
        %v1024 = vunpack.c.l.b16 %v889
        %v1025 = vunpack.c.l.b16 %v890
        %v1026 = vunpack.c.l.b16 %v891
        %v1027 = vunpack.c.l.b16 %v892
        %v1028 = vunpack.c.l.b16 %v893
        %v1029 = vunpack.c.l.b16 %v894
        %v1030 = vunpack.c.l.b16 %v895
        %v1031 = vunpack.c.l.b16 %v896
        %v1032 = vunpack.c.l.b16 %v897
        %v1033 = vunpack.c.l.b16 %v898
        %v1034 = vunpack.c.l.b16 %v899
        %v1035 = vunpack.c.l.b16 %v900
        %v1036 = vunpack.c.l.b16 %v901
        %v1037 = vunpack.c.l.b16 %v902
        %v1038 = vunpack.c.l.b16 %v903
        %v1039 = vunpack.c.l.b16 %v904
        %v1040 = vunpack.c.l.b16 %v905
        %v1041 = vunpack.c.l.b16 %v906
        %v1042 = vunpack.c.l.b16 %v907
        %v1043 = vunpack.c.l.b16 %v908
        %v1044 = vunpack.c.l.b16 %v909
        %v1045 = vunpack.c.l.b16 %v910
        %v1046 = vunpack.c.l.b16 %v911
        %v1047 = vunpack.c.l.b16 %v912
        %v1048 = vunpack.c.l.b16 %v913
        %v1049 = vunpack.c.l.b16 %v914
        %v1050 = vunpack.c.l.b16 %v915
        %v1051 = vunpack.c.l.b16 %v916
        %v1052 = vunpack.c.l.b16 %v917
        %v1053 = vunpack.c.l.b16 %v918
        %v1054 = vunpack.c.l.b16 %v919
        %v1055 = vunpack.c.l.b16 %v920
        %v1056 = vunpack.c.l.b16 %v921
        %v1057 = vunpack.c.l.b16 %v922
        %v1058 = vunpack.c.l.b16 %v923
        %v1059 = vunpack.c.l.b16 %v924
        %v1060 = vunpack.c.l.b16 %v925
        %v1061 = vunpack.c.l.b16 %v926
        %v1062 = vunpack.c.l.b16 %v927
        %v1063 = vunpack.c.l.b16 %v928
        %v1064 = vunpack.c.l.b16 %v929
        %v1065 = vpack.c.b16 %v1002, %v1001
        %v1066 = vpack.c.b16 %v1004, %v1003
        %v1067 = vpack.c.b16 %v1006, %v1005
        %v1068 = vpack.c.b16 %v1008, %v1007
        %v1069 = vpack.c.b16 %v1010, %v1009
        %v1070 = vpack.c.b16 %v1012, %v1011
        %v1071 = vpack.c.b16 %v1014, %v1013
        %v1072 = vpack.c.b16 %v1016, %v1015
        %v1073 = vpack.c.b16 %v1018, %v1017
        %v1074 = vpack.c.b16 %v1020, %v1019
        %v1075 = vpack.c.b16 %v1022, %v1021
        %v1076 = vpack.c.b16 %v1024, %v1023
        %v1077 = vpack.c.b16 %v1026, %v1025
        %v1078 = vpack.c.b16 %v1028, %v1027
        %v1079 = vpack.c.b16 %v1030, %v1029
        %v1080 = vpack.c.b16 %v1032, %v1031
        %v1081 = vpack.c.b16 %v1034, %v1033
        %v1082 = vpack.c.b16 %v1036, %v1035
        %v1083 = vpack.c.b16 %v1038, %v1037
        %v1084 = vpack.c.b16 %v1040, %v1039
        %v1085 = vpack.c.b16 %v1042, %v1041
        %v1086 = vpack.c.b16 %v1044, %v1043
        %v1087 = vpack.c.b16 %v1046, %v1045
        %v1088 = vpack.c.b16 %v1048, %v1047
        %v1089 = vpack.c.b16 %v1050, %v1049
        %v1090 = vpack.c.b16 %v1052, %v1051
        %v1091 = vpack.c.b16 %v1054, %v1053
        %v1092 = vpack.c.b16 %v1056, %v1055
        %v1093 = vpack.c.b16 %v1058, %v1057
        %v1094 = vpack.c.b16 %v1060, %v1059
        %v1095 = vpack.c.b16 %v1062, %v1061
        %v1096 = vpack.c.b16 %v1064, %v1063
        %1129 = vmatprep.subr.bf16.mxu0 0
        %1130 = vmatpush1.bf16.msra.mxu0 %v1065
        %1131 = vmatprep.subr.bf16.mxu0 0
        %1132 = vmatpush1.bf16.msra.mxu0 %v1066
        %1133 = vmatprep.subr.bf16.mxu0 0
        %1134 = vmatpush1.bf16.msra.mxu0 %v1067
        %1135 = vmatprep.subr.bf16.mxu0 0
        %1136 = vmatpush1.bf16.msra.mxu0 %v1068
        %1137 = vmatprep.subr.bf16.mxu0 0
        %1138 = vmatpush1.bf16.msra.mxu0 %v1069
        %1139 = vmatprep.subr.bf16.mxu0 0
        %1140 = vmatpush1.bf16.msra.mxu0 %v1070
        %1141 = vmatprep.subr.bf16.mxu0 0
        %1142 = vmatpush1.bf16.msra.mxu0 %v1071
        %1143 = vmatprep.subr.bf16.mxu0 0
        %1144 = vmatpush1.bf16.msra.mxu0 %v1072
        %1145 = vmatprep.subr.bf16.mxu0 0
        %1146 = vmatpush1.bf16.msra.mxu0 %v1073
        %1147 = vmatprep.subr.bf16.mxu0 0
        %1148 = vmatpush1.bf16.msra.mxu0 %v1074
        %1149 = vmatprep.subr.bf16.mxu0 0
        %1150 = vmatpush1.bf16.msra.mxu0 %v1075
        %1151 = vmatprep.subr.bf16.mxu0 0
        %1152 = vmatpush1.bf16.msra.mxu0 %v1076
        %1153 = vmatprep.subr.bf16.mxu0 0
        %1154 = vmatpush1.bf16.msra.mxu0 %v1077
        %1155 = vmatprep.subr.bf16.mxu0 0
        %1156 = vmatpush1.bf16.msra.mxu0 %v1078
        %1157 = vmatprep.subr.bf16.mxu0 0
        %1158 = vmatpush1.bf16.msra.mxu0 %v1079
        %1159 = vmatprep.subr.bf16.mxu0 0
        %1160 = vmatpush1.bf16.msra.mxu0 %v1080
        %1161 = vmatprep.mubr.bf16.mxu0 %v863
        %1162 = vmatmul.mubr.bf16.gmra.mrb[0].mxu0 %v862
        %v1163 = vpop.f32.mrb[0].mxu0
        %v1164 = vadd.f32 %v935, %v1163
        %v1165 = vpop.f32.mrb[0].mxu0
        %v1166 = vpop.f32.mrb[0].mxu0
        %v1167 = vadd.f32 %v935, %v1166
        %v1168 = vpop.f32.mrb[0].mxu0
        %1169 = vdwg.mxu0
        %1170 = vmatprep.subr.bf16.mxu0 0
        %1171 = vmatpush1.bf16.msra.mxu0 %v1081
        %1172 = vmatprep.subr.bf16.mxu0 0
        %1173 = vmatpush1.bf16.msra.mxu0 %v1082
        %1174 = vmatprep.subr.bf16.mxu0 0
        %1175 = vmatpush1.bf16.msra.mxu0 %v1083
        %1176 = vmatprep.subr.bf16.mxu0 0
        %1177 = vmatpush1.bf16.msra.mxu0 %v1084
        %1178 = vmatprep.subr.bf16.mxu0 0
        %1179 = vmatpush1.bf16.msra.mxu0 %v1085
        %1180 = vmatprep.subr.bf16.mxu0 0
        %1181 = vmatpush1.bf16.msra.mxu0 %v1086
        %1182 = vmatprep.subr.bf16.mxu0 0
        %1183 = vmatpush1.bf16.msra.mxu0 %v1087
        %1184 = vmatprep.subr.bf16.mxu0 0
        %1185 = vmatpush1.bf16.msra.mxu0 %v1088
        %1186 = vmatprep.subr.bf16.mxu0 0
        %1187 = vmatpush1.bf16.msra.mxu0 %v1089
        %1188 = vmatprep.subr.bf16.mxu0 0
        %1189 = vmatpush1.bf16.msra.mxu0 %v1090
        %1190 = vmatprep.subr.bf16.mxu0 0
        %1191 = vmatpush1.bf16.msra.mxu0 %v1091
        %1192 = vmatprep.subr.bf16.mxu0 0
        %1193 = vmatpush1.bf16.msra.mxu0 %v1092
        %1194 = vmatprep.subr.bf16.mxu0 0
        %1195 = vmatpush1.bf16.msra.mxu0 %v1093
        %1196 = vmatprep.subr.bf16.mxu0 0
        %1197 = vmatpush1.bf16.msra.mxu0 %v1094
        %1198 = vmatprep.subr.bf16.mxu0 0
        %1199 = vmatpush1.bf16.msra.mxu0 %v1095
        %1200 = vmatprep.subr.bf16.mxu0 0
        %1201 = vmatpush1.bf16.msra.mxu0 %v1096
        %1202 = vmatprep.mubr.bf16.mxu0 %v865
        %1203 = vmatmul.mubr.bf16.gmra.mrb[0].mxu0 %v864
        %v1204 = vpop.f32.mrb[0].mxu0
        %v1205 = vadd.f32 %v1164, %v1204
        %v1206 = vpop.f32.mrb[0].mxu0
        %v1207 = vpop.f32.mrb[0].mxu0
        %v1208 = vadd.f32 %v1167, %v1207
        %v1209 = vpop.f32.mrb[0].mxu0
        %1210 = vdwg.mxu0
        %v1211 = vmul.f32 %v1205, 0.5
        %v1212 = vmul.f32 %v1208, 0.5
        %v1213 = vadd.f32 %v462, %v1211
        %v1214 = vadd.f32 %v463, %v1212
        %v1215 = vld [vmem:[#allocation12] sm:$0x1]
        %v1216 = vld [vmem:[#allocation13] sm:$0x1]
        %1217 = vadd.xlane.f32.xlu0 %v1213
        %v1218 = vpop.xlane.xlu0 %1217
        %1219 = vadd.xlane.f32.xlu0 %v1214
        %v1220 = vpop.xlane.xlu0 %1219
        %v1221 = vmul.f32 %v1218, %v470
        %v1222 = vmul.f32 %v1220, %v470
        %v1223 = vsub.f32 %v1213, %v1221
        %v1224 = vsub.f32 %v1214, %v1222
        %v1225 = vmul.f32 %v1223, %v1223
        %v1226 = vmul.f32 %v1224, %v1224
        %1227 = vadd.xlane.f32.xlu0 %v1225
        %v1228 = vpop.xlane.xlu0 %1227
        %1229 = vadd.xlane.f32.xlu0 %v1226
        %v1230 = vpop.xlane.xlu0 %1229
        %v1231 = vmul.f32 %v1228, %v470
        %v1232 = vmul.f32 %v1230, %v470
        %v1233 = vadd.f32 %v1231, 1e-05
        %v1234 = vadd.f32 %v1232, 1e-05
        %v1235 = vrsqrt.pop %v1233
        %v1236 = vrsqrt.pop %v1234
        %v1237 = vmul.f32 %v1223, %v1235
        %v1238 = vmul.f32 %v1224, %v1236
        %v1240 = vlaneseq
        %v1241 = vshrl.u32 %v1240, 7
        %v1242 = vsub.s32 0, %v1241
        %v1243 = vrot.slane %v1215, %v1242
        %v1245 = vmul.f32 %v1237, %v1243
        %v1246 = vmul.f32 %v1238, %v1243
        %v1248 = vlaneseq
        %v1249 = vshrl.u32 %v1248, 7
        %v1250 = vsub.s32 0, %v1249
        %v1251 = vrot.slane %v1216, %v1250
        %v1253 = vadd.f32 %v1245, %v1251
        %v1254 = vadd.f32 %v1246, %v1251
        %v1255 = vpack.c.bf16 %v1254, %v1253
        %v1257 = vunpack.c.l.b16 %v1255
        %v1258 = vunpack.c.h.b16 %v1255
        %v1259 = vpack.c.b16 %v1257, %v1257
        %v1260 = vpack.c.b16 %v1258, %v1258
        %1263 = vst [vmem:[%s439] sm:$0xf] %v1259
        %1264 = vst [vmem:[%s439 + $0x4] sm:$0xf] %v1260
        %s1265 = sand.u32 %s227, 1
        %s1266 = sand.u32 %s227, 1
        %s1267 = smul.addr %s1266, 8
        %s1268 = scalar_lea.vmem [#allocation15], %s1267
        // Predicated region
        $region89: #{my_conformer_forward.10} parent=55 // pred_check
          %p1269 = pneg %p237
        $region90: #{my_conformer_forward.10} parent=55 // pred_check_branch
          %1271 = sbr.rel (%p1269) target = $region92
        $region91: #{my_conformer_forward.10} parent=55 // pred_region
          %s1272 = smul.u32 2, %s25
          %s1273 = ssub.s32 3, %s1272
          %p1274 = scmp.lt.s32.totalorder %s1273, 2
          %s1275 = scalar_select %p1274, %s1273, 2
          %s1276 = smul.u32 64, %s1275
          %p1277 = scmp.ne.s32.totalorder 0, %s1276
          %s1278 = smul.addr %s1272, 4
          %s1279 = scalar_lea.vmem %s9, %s1278
          // Predicated region
          $region93: #{my_conformer_forward.10} parent=91 // pred_check
            %p1280 = pneg %p1277
          $region94: #{my_conformer_forward.10} parent=91 // pred_check_branch
            %1282 = sbr.rel (%p1280) target = $region96
          $region95: #{my_conformer_forward.10} parent=91 // pred_region
            // Predicated region
            $region97: #{my_conformer_forward.10} parent=95 // pred_check
              _
            $region98: #{my_conformer_forward.10} parent=95 // pred_check_branch
              %1284 = sbr.rel target = $region100
            $region99: #{my_conformer_forward.10} parent=95 // pred_region
              // Predicated region
              $region119: #{my_conformer_forward.10} parent=99 // pred_check
                _
              $region120: #{my_conformer_forward.10} parent=99 // pred_check_branch
                %1335 = sbr.rel (0) target = $region122
              $region121: #{my_conformer_forward.10} parent=99 // pred_region
                %s1337 = sshrl.u32 %s1275, 1
                // While loop
                $region123: #{my_conformer_forward.10} parent=121 // loop_pre_header
                  _
                $region124: #{my_conformer_forward.10} parent=121 // loop_header
                  %s1339 = sphi 0, %s1341
                  %p1340 = scmp.ge.s32.totalorder %s1339, %s1337
                  %s1344 = sphi 0, %s1353
                  %s1345 = sphi %s1268, %s1356
                  %s1346 = sphi %s1279, %s1357
                $region125: #{my_conformer_forward.10} parent=121 // loop_header_branch
                  %1343 = sbr.rel (%p1340) target = $region129
                $region126: #{my_conformer_forward.10} parent=121 // loop_body
                  %v1347 = vld [vmem:[%s1345] sm:$0xf]
                  %1348 = vst [vmem:[%s1346] sm:$0xf] %v1347
                  %v1349 = vld [vmem:[%s1345 + $0x4] sm:$0xf]
                  %1350 = vst [vmem:[%s1346 + $0x4] sm:$0xf] %v1349
                  %s1351 = sadd.s32 1, %s1344
                  %p1352 = scmp.ge.s32.totalorder %s1351, %s1337
                  %s1353 = scalar_select %p1352, 0, %s1351
                  %s1354 = smul.u32 %s1353, 8
                  %s1355 = smul.u32 %s1353, 8
                  %s1356 = scalar_lea.vmem %s1268, %s1354 [#allocation15]
                  %s1357 = scalar_lea.vmem %s1279, %s1355
                $region127: #{my_conformer_forward.10} parent=121 // loop_footer
                  %s1341 = sadd.s32 %s1339, 1
                $region128: #{my_conformer_forward.10} parent=121 // loop_footer_branch
                  %1338 = sbr.rel target = $region124
                $region129: #{my_conformer_forward.10} parent=121 // loop_exit
                  _
                %s1358 = sshrl.u32 %s1275, 1
                %s1359 = sand.u32 %s1275, 1
                %s1360 = smul.u32 %s1358, 2
                %s1361 = smul.u32 4, %s1360
                %s1362 = scalar_lea.vmem %s1268, %s1361 [#allocation15]
                %s1363 = smul.u32 4, %s1360
                %s1364 = scalar_lea.vmem %s1279, %s1363
                // While loop
                $region130: #{my_conformer_forward.10} parent=121 // loop_pre_header
                  _
                $region131: #{my_conformer_forward.10} parent=121 // loop_header
                  %s1366 = sphi 0, %s1368
                  %p1367 = scmp.ge.s32.totalorder %s1366, %s1359
                  %s1371 = sphi 0, %s1378
                  %s1372 = sphi %s1362, %s1381
                  %s1373 = sphi %s1364, %s1382
                $region132: #{my_conformer_forward.10} parent=121 // loop_header_branch
                  %1370 = sbr.rel (%p1367) target = $region136
                $region133: #{my_conformer_forward.10} parent=121 // loop_body
                  %v1374 = vld [vmem:[%s1372] sm:$0xf]
                  %1375 = vst [vmem:[%s1373] sm:$0xf] %v1374
                  %s1376 = sadd.s32 1, %s1371
                  %p1377 = scmp.ge.s32.totalorder %s1376, %s1359
                  %s1378 = scalar_select %p1377, 0, %s1376
                  %s1379 = smul.u32 %s1378, 4
                  %s1380 = smul.u32 %s1378, 4
                  %s1381 = scalar_lea.vmem %s1362, %s1379 [#allocation15]
                  %s1382 = scalar_lea.vmem %s1364, %s1380
                $region134: #{my_conformer_forward.10} parent=121 // loop_footer
                  %s1368 = sadd.s32 %s1366, 1
                $region135: #{my_conformer_forward.10} parent=121 // loop_footer_branch
                  %1365 = sbr.rel target = $region131
                $region136: #{my_conformer_forward.10} parent=121 // loop_exit
                  _
              $region122: #{my_conformer_forward.10} parent=99 // pred_fallthru
                _
            $region100: #{my_conformer_forward.10} parent=95 // pred_fallthru
              _
            // Predicated region
            $region101: #{my_conformer_forward.10} parent=95 // pred_check
              _
            $region102: #{my_conformer_forward.10} parent=95 // pred_check_branch
              %1286 = sbr.rel (0) target = $region104
            $region103: #{my_conformer_forward.10} parent=95 // pred_region
              %s1288 = sshrl.u32 %s1275, 1
              // While loop
              $region105: #{my_conformer_forward.10} parent=103 // loop_pre_header
                _
              $region106: #{my_conformer_forward.10} parent=103 // loop_header
                %s1290 = sphi 0, %s1292
                %p1291 = scmp.ge.s32.totalorder %s1290, %s1288
                %s1295 = sphi 0, %s1304
                %s1296 = sphi %s1268, %s1307
                %s1297 = sphi %s1279, %s1308
              $region107: #{my_conformer_forward.10} parent=103 // loop_header_branch
                %1294 = sbr.rel (%p1291) target = $region111
              $region108: #{my_conformer_forward.10} parent=103 // loop_body
                %v1298 = vld [vmem:[%s1296] sm:$0xf]
                %1299 = vst [vmem:[%s1297] sm:$0xf] %v1298
                %v1300 = vld [vmem:[%s1296 + $0x4] sm:$0xf]
                %1301 = vst [vmem:[%s1297 + $0x4] sm:$0xf] %v1300
                %s1302 = sadd.s32 1, %s1295
                %p1303 = scmp.ge.s32.totalorder %s1302, %s1288
                %s1304 = scalar_select %p1303, 0, %s1302
                %s1305 = smul.u32 %s1304, 8
                %s1306 = smul.u32 %s1304, 8
                %s1307 = scalar_lea.vmem %s1268, %s1305 [#allocation15]
                %s1308 = scalar_lea.vmem %s1279, %s1306
              $region109: #{my_conformer_forward.10} parent=103 // loop_footer
                %s1292 = sadd.s32 %s1290, 1
              $region110: #{my_conformer_forward.10} parent=103 // loop_footer_branch
                %1289 = sbr.rel target = $region106
              $region111: #{my_conformer_forward.10} parent=103 // loop_exit
                _
              %s1309 = sshrl.u32 %s1275, 1
              %s1310 = sand.u32 %s1275, 1
              %s1311 = smul.u32 %s1309, 2
              %s1312 = smul.u32 4, %s1311
              %s1313 = scalar_lea.vmem %s1268, %s1312 [#allocation15]
              %s1314 = smul.u32 4, %s1311
              %s1315 = scalar_lea.vmem %s1279, %s1314
              // While loop
              $region112: #{my_conformer_forward.10} parent=103 // loop_pre_header
                _
              $region113: #{my_conformer_forward.10} parent=103 // loop_header
                %s1317 = sphi 0, %s1319
                %p1318 = scmp.ge.s32.totalorder %s1317, %s1310
                %s1322 = sphi 0, %s1329
                %s1323 = sphi %s1313, %s1332
                %s1324 = sphi %s1315, %s1333
              $region114: #{my_conformer_forward.10} parent=103 // loop_header_branch
                %1321 = sbr.rel (%p1318) target = $region118
              $region115: #{my_conformer_forward.10} parent=103 // loop_body
                %v1325 = vld [vmem:[%s1323] sm:$0xf]
                %1326 = vst [vmem:[%s1324] sm:$0xf] %v1325
                %s1327 = sadd.s32 1, %s1322
                %p1328 = scmp.ge.s32.totalorder %s1327, %s1310
                %s1329 = scalar_select %p1328, 0, %s1327
                %s1330 = smul.u32 %s1329, 4
                %s1331 = smul.u32 %s1329, 4
                %s1332 = scalar_lea.vmem %s1313, %s1330 [#allocation15]
                %s1333 = scalar_lea.vmem %s1315, %s1331
              $region116: #{my_conformer_forward.10} parent=103 // loop_footer
                %s1319 = sadd.s32 %s1317, 1
              $region117: #{my_conformer_forward.10} parent=103 // loop_footer_branch
                %1316 = sbr.rel target = $region113
              $region118: #{my_conformer_forward.10} parent=103 // loop_exit
                _
            $region104: #{my_conformer_forward.10} parent=95 // pred_fallthru
              _
          $region96: #{my_conformer_forward.10} parent=91 // pred_fallthru
            _
          %1383 = vnop
        $region92: #{my_conformer_forward.10} parent=55 // pred_fallthru
          _
      $region56: #{my_conformer_forward.10} parent=5 // pred_fallthru
        _
      %p1384 = scmp.le.s32.totalorder 2, %s20
      // Predicated region
      $region137: #{my_conformer_forward.10} parent=5 // pred_check
        %p1385 = pneg %p1384
      $region138: #{my_conformer_forward.10} parent=5 // pred_check_branch
        %1387 = sbr.rel (%p1385) target = $region140
      $region139: #{my_conformer_forward.10} parent=5 // pred_region
        %s1388 = ssub.s32 %s20, 2
        // Predicated region
        $region141: #{my_conformer_forward.10} parent=139 // pred_check
          %p1389 = pneg %p243
        $region142: #{my_conformer_forward.10} parent=139 // pred_check_branch
          %1391 = sbr.rel (%p1389) target = $region144
        $region143: #{my_conformer_forward.10} parent=139 // pred_region
          %s1392 = sand.u32 %s228, 1
          %s1393 = sand.u32 %s228, 1
          %s1394 = smul.addr %s1393, 8
          %s1395 = scalar_lea.vmem [#allocation15], %s1394
        $region144: #{my_conformer_forward.10} parent=139 // pred_fallthru
          _
      $region140: #{my_conformer_forward.10} parent=5 // pred_fallthru
        _
    $region6: #{my_conformer_forward.10} parent=1 // loop_footer
      %s24 = sadd.s32 1, %s20
    $region7: #{my_conformer_forward.10} parent=1 // loop_footer_branch
      %19 = sbr.rel target = $region3
    $region8: #{my_conformer_forward.10} parent=1 // loop_exit
      _
    %1396 = vsyncpa [#allocation3], 1
    %s1397 = scalar_lea.sflag [#allocation3], 1
    %1398 = vsyncpa %s1397, 1
    %1399 = vsyncpa [#allocation5], 1
    %1400 = vsyncpa [#allocation8], 1
    %1401 = vsyncpa [#allocation11], 1
    %1402 = vsyncpa [#allocation14], 1

// kernel: my_conformer_forward.9
$region0: #{my_conformer_forward.9}
  #allocation0 [shape = 'u32[]', space=smem, size = 0x4, offset = 0x4, fixed_abs, tag = 'smem constant byte address 0x4 - core index']
  #allocation1 [shape = 'u32[144,128]{1,0:T(1,128)}', space=vmem, size = 0x12000, scoped, tag = 'internal scratch']
  #allocation2 [shape = 'f32[24,256]{1,0:T(8,128)}', space=vmem, size = 0x6000, scoped, tag = 'scratch operand']
  %s0 = inlined_call_operand.vmem [shape: bf16[2,9,128], index: 0, kind: input, shape index: {}]
  %s1 = inlined_call_operand.hbm [shape: f32[1,128], index: 1, kind: input, shape index: {}]
  %s2 = inlined_call_operand.hbm [shape: f32[1,128], index: 2, kind: input, shape index: {}]
  %s3 = inlined_call_operand.hbm [shape: bf16[128,512], index: 3, kind: input, shape index: {}]
  %s4 = inlined_call_operand.hbm [shape: f32[1,512], index: 4, kind: input, shape index: {}]
  %s5 = inlined_call_operand.hbm [shape: f32[16,256], index: 5, kind: input, shape index: {}]
  %s6 = inlined_call_operand.hbm [shape: f32[1,256], index: 6, kind: input, shape index: {}]
  %s7 = inlined_call_operand.vmem [shape: f32[1,256], index: 7, kind: input, shape index: {}]
  %s8 = inlined_call_operand.vmem [shape: f32[1,256], index: 8, kind: input, shape index: {}]
  %s9 = inlined_call_operand.hbm [shape: bf16[256,128], index: 9, kind: input, shape index: {}]
  %s10 = inlined_call_operand.hbm [shape: f32[1,128], index: 10, kind: input, shape index: {}]
  %s11 = inlined_call_operand.vmem [shape: bf16[2,9,128], index: 11, kind: output, shape index: {}]
  %s12 = sld [smem:[#allocation0]]
  $region109: #{my_conformer_forward.9} parent=0
    _
  %s14 = ssub.s32 1, %s12
  %s15 = scalar_select 0, %s14, %s12
  $region1: #{my_conformer_forward.9} parent=0
    #allocation3 [shape = 'u8[512]{0}', space=vmem, size = 0x400, scoped, tag = 'input window, operand 1, single buffered']
    #allocation4 [shape = 's32[2]{0}', space=sflag, size = 0x8, scoped, tag = 'scoped memory for my_conformer_forward.9']
    #allocation5 [shape = 'u8[512]{0}', space=vmem, size = 0x400, scoped, tag = 'input window, operand 2, single buffered']
    #allocation6 [shape = 's32[1]{0}', space=sflag, size = 0x4, scoped, tag = 'scoped memory for my_conformer_forward.9']
    #allocation7 [shape = 'u8[131072]{0}', space=vmem, size = 0x20000, scoped, tag = 'input window, operand 3, single buffered']
    #allocation8 [shape = 'u8[2048]{0}', space=vmem, size = 0x800, scoped, tag = 'input window, operand 4, single buffered']
    #allocation9 [shape = 's32[1]{0}', space=sflag, size = 0x4, scoped, tag = 'scoped memory for my_conformer_forward.9']
    #allocation10 [shape = 'u8[16384]{0}', space=vmem, size = 0x4000, scoped, tag = 'input window, operand 5, single buffered']
    #allocation11 [shape = 'u8[1024]{0}', space=vmem, size = 0x400, scoped, tag = 'input window, operand 6, single buffered']
    #allocation12 [shape = 's32[1]{0}', space=sflag, size = 0x4, scoped, tag = 'scoped memory for my_conformer_forward.9']
    #allocation13 [shape = 'u8[65536]{0}', space=vmem, size = 0x10000, scoped, tag = 'input window, operand 9, single buffered']
    #allocation14 [shape = 'u8[512]{0}', space=vmem, size = 0x400, scoped, tag = 'input window, operand 10, single buffered']
    #allocation15 [shape = 's32[1]{0}', space=sflag, size = 0x4, scoped, tag = 'scoped memory for my_conformer_forward.9']
    %16 = vsyncpa [#allocation4], 0
    %17 = vsyncpa [#allocation6], 0
    %18 = vsyncpa [#allocation9], 0
    %19 = vsyncpa [#allocation12], 0
    %20 = vsyncpa [#allocation15], 0
    loop: start=0, step=1, limit=4
    $region2: #{my_conformer_forward.9} parent=1 // loop_pre_header
      _
    $region3: #{my_conformer_forward.9} parent=1 // loop_header
      %s22 = sphi 0, %s26
      %p23 = scmp.ge.s32.totalorder %s22, 4
      %s32 = sphi 0, %s34
      %s35 = sphi 0, %s32
      %s36 = sphi 0, %s35
      %s52 = sphi 0, %s36
      %s56 = sphi 0, %s56
      %s58 = sphi 0, %s56
      %s59 = sphi 0, %s58
      %s73 = sphi 0, %s59
      %s77 = sphi 0, %s77
      %s79 = sphi 0, %s77
      %s80 = sphi 0, %s79
      %s94 = sphi 0, %s80
      %s98 = sphi 0, %s98
      %s100 = sphi 0, %s98
      %s101 = sphi 0, %s100
      %s115 = sphi 0, %s101
      %s119 = sphi 0, %s119
      %s121 = sphi 0, %s119
      %s122 = sphi 0, %s121
      %s136 = sphi 0, %s122
      %s140 = sphi 0, %s140
      %s142 = sphi 0, %s140
      %s143 = sphi 0, %s142
      %s157 = sphi 0, %s143
      %s161 = sphi 0, %s161
      %s163 = sphi 0, %s161
      %s164 = sphi 0, %s163
      %s178 = sphi 0, %s164
      %s182 = sphi 0, %s182
      %s184 = sphi 0, %s182
      %s185 = sphi 0, %s184
      %s199 = sphi 0, %s185
      %s203 = sphi 0, %s203
      %s205 = sphi 0, %s203
      %s206 = sphi 0, %s205
      %s220 = sphi 0, %s206
      %s224 = sphi 0, %s224
      %s226 = sphi 0, %s224
      %s227 = sphi 0, %s226
      %s241 = sphi 0, %s227
      %s245 = sphi 0, %s245
      %s247 = sphi 0, %s245
      %s248 = sphi 0, %s247
      %s262 = sphi 0, %s248
      %s268 = sphi 0, %s270
      %s271 = sphi 0, %s268
      %s272 = sphi 0, %s271
      %s288 = sphi 0, %s272
    $region4: #{my_conformer_forward.9} parent=1 // loop_header_branch
      %25 = sbr.rel (%p23) target = $region8
    $region5: #{my_conformer_forward.9} parent=1 // loop_body
      %s27 = ssub.s32 %s22, 1
      %s28 = ssub.s32 %s22, 2
      %s29 = sadd.s32 %s22, 1
      %s30 = ssub.s32 %s22, %s29
      %p31 = scmp.eq.s32.totalorder %s30, 0
      %s33 = sadd.s32 %s32, 1
      %s34 = scalar_select %p31, %s32, %s33
      %p37 = pneg %p31
      %p38 = scmp.eq.s32.totalorder %s22, 1
      %p39 = por %p37, %p38
      %p40 = scmp.ne.s32.totalorder %s32, %s35
      %p41 = scmp.eq.s32.totalorder %s22, 0
      %p42 = por %p40, %p41
      %p43 = scmp.ne.s32.totalorder %s32, %s35
      %p44 = scmp.eq.s32.totalorder %s27, 1
      %p45 = por %p43, %p44
      %p46 = scmp.ne.s32.totalorder %s35, %s36
      %p47 = scmp.eq.s32.totalorder %s27, 0
      %p48 = por %p46, %p47
      %p49 = scmp.ne.s32.totalorder %s35, %s36
      %p50 = scmp.eq.s32.totalorder %s28, 1
      %p51 = por %p49, %p50
      %p53 = scmp.ne.s32.totalorder %s36, %s52
      %p54 = scmp.eq.s32.totalorder %s28, 0
      %p55 = por %p53, %p54
      %s57 = sadd.s32 %s56, 1
      %p60 = scmp.eq.s32.totalorder %s22, 1
      %p61 = scmp.ne.s32.totalorder %s56, %s58
      %p62 = scmp.eq.s32.totalorder %s22, 0
      %p63 = por %p61, %p62
      %p64 = scmp.ne.s32.totalorder %s56, %s58
      %p65 = scmp.eq.s32.totalorder %s27, 1
      %p66 = por %p64, %p65
      %p67 = scmp.ne.s32.totalorder %s58, %s59
      %p68 = scmp.eq.s32.totalorder %s27, 0
      %p69 = por %p67, %p68
      %p70 = scmp.ne.s32.totalorder %s58, %s59
      %p71 = scmp.eq.s32.totalorder %s28, 1
      %p72 = por %p70, %p71
      %p74 = scmp.ne.s32.totalorder %s59, %s73
      %p75 = scmp.eq.s32.totalorder %s28, 0
      %p76 = por %p74, %p75
      %s78 = sadd.s32 %s77, 1
      %p81 = scmp.eq.s32.totalorder %s22, 1
      %p82 = scmp.ne.s32.totalorder %s77, %s79
      %p83 = scmp.eq.s32.totalorder %s22, 0
      %p84 = por %p82, %p83
      %p85 = scmp.ne.s32.totalorder %s77, %s79
      %p86 = scmp.eq.s32.totalorder %s27, 1
      %p87 = por %p85, %p86
      %p88 = scmp.ne.s32.totalorder %s79, %s80
      %p89 = scmp.eq.s32.totalorder %s27, 0
      %p90 = por %p88, %p89
      %p91 = scmp.ne.s32.totalorder %s79, %s80
      %p92 = scmp.eq.s32.totalorder %s28, 1
      %p93 = por %p91, %p92
      %p95 = scmp.ne.s32.totalorder %s80, %s94
      %p96 = scmp.eq.s32.totalorder %s28, 0
      %p97 = por %p95, %p96
      %s99 = sadd.s32 %s98, 1
      %p102 = scmp.eq.s32.totalorder %s22, 1
      %p103 = scmp.ne.s32.totalorder %s98, %s100
      %p104 = scmp.eq.s32.totalorder %s22, 0
      %p105 = por %p103, %p104
      %p106 = scmp.ne.s32.totalorder %s98, %s100
      %p107 = scmp.eq.s32.totalorder %s27, 1
      %p108 = por %p106, %p107
      %p109 = scmp.ne.s32.totalorder %s100, %s101
      %p110 = scmp.eq.s32.totalorder %s27, 0
      %p111 = por %p109, %p110
      %p112 = scmp.ne.s32.totalorder %s100, %s101
      %p113 = scmp.eq.s32.totalorder %s28, 1
      %p114 = por %p112, %p113
      %p116 = scmp.ne.s32.totalorder %s101, %s115
      %p117 = scmp.eq.s32.totalorder %s28, 0
      %p118 = por %p116, %p117
      %s120 = sadd.s32 %s119, 1
      %p123 = scmp.eq.s32.totalorder %s22, 1
      %p124 = scmp.ne.s32.totalorder %s119, %s121
      %p125 = scmp.eq.s32.totalorder %s22, 0
      %p126 = por %p124, %p125
      %p127 = scmp.ne.s32.totalorder %s119, %s121
      %p128 = scmp.eq.s32.totalorder %s27, 1
      %p129 = por %p127, %p128
      %p130 = scmp.ne.s32.totalorder %s121, %s122
      %p131 = scmp.eq.s32.totalorder %s27, 0
      %p132 = por %p130, %p131
      %p133 = scmp.ne.s32.totalorder %s121, %s122
      %p134 = scmp.eq.s32.totalorder %s28, 1
      %p135 = por %p133, %p134
      %p137 = scmp.ne.s32.totalorder %s122, %s136
      %p138 = scmp.eq.s32.totalorder %s28, 0
      %p139 = por %p137, %p138
      %s141 = sadd.s32 %s140, 1
      %p144 = scmp.eq.s32.totalorder %s22, 1
      %p145 = scmp.ne.s32.totalorder %s140, %s142
      %p146 = scmp.eq.s32.totalorder %s22, 0
      %p147 = por %p145, %p146
      %p148 = scmp.ne.s32.totalorder %s140, %s142
      %p149 = scmp.eq.s32.totalorder %s27, 1
      %p150 = por %p148, %p149
      %p151 = scmp.ne.s32.totalorder %s142, %s143
      %p152 = scmp.eq.s32.totalorder %s27, 0
      %p153 = por %p151, %p152
      %p154 = scmp.ne.s32.totalorder %s142, %s143
      %p155 = scmp.eq.s32.totalorder %s28, 1
      %p156 = por %p154, %p155
      %p158 = scmp.ne.s32.totalorder %s143, %s157
      %p159 = scmp.eq.s32.totalorder %s28, 0
      %p160 = por %p158, %p159
      %s162 = sadd.s32 %s161, 1
      %p165 = scmp.eq.s32.totalorder %s22, 1
      %p166 = scmp.ne.s32.totalorder %s161, %s163
      %p167 = scmp.eq.s32.totalorder %s22, 0
      %p168 = por %p166, %p167
      %p169 = scmp.ne.s32.totalorder %s161, %s163
      %p170 = scmp.eq.s32.totalorder %s27, 1
      %p171 = por %p169, %p170
      %p172 = scmp.ne.s32.totalorder %s163, %s164
      %p173 = scmp.eq.s32.totalorder %s27, 0
      %p174 = por %p172, %p173
      %p175 = scmp.ne.s32.totalorder %s163, %s164
      %p176 = scmp.eq.s32.totalorder %s28, 1
      %p177 = por %p175, %p176
      %p179 = scmp.ne.s32.totalorder %s164, %s178
      %p180 = scmp.eq.s32.totalorder %s28, 0
      %p181 = por %p179, %p180
      %s183 = sadd.s32 %s182, 1
      %p186 = scmp.eq.s32.totalorder %s22, 1
      %p187 = scmp.ne.s32.totalorder %s182, %s184
      %p188 = scmp.eq.s32.totalorder %s22, 0
      %p189 = por %p187, %p188
      %p190 = scmp.ne.s32.totalorder %s182, %s184
      %p191 = scmp.eq.s32.totalorder %s27, 1
      %p192 = por %p190, %p191
      %p193 = scmp.ne.s32.totalorder %s184, %s185
      %p194 = scmp.eq.s32.totalorder %s27, 0
      %p195 = por %p193, %p194
      %p196 = scmp.ne.s32.totalorder %s184, %s185
      %p197 = scmp.eq.s32.totalorder %s28, 1
      %p198 = por %p196, %p197
      %p200 = scmp.ne.s32.totalorder %s185, %s199
      %p201 = scmp.eq.s32.totalorder %s28, 0
      %p202 = por %p200, %p201
      %s204 = sadd.s32 %s203, 1
      %p207 = scmp.eq.s32.totalorder %s22, 1
      %p208 = scmp.ne.s32.totalorder %s203, %s205
      %p209 = scmp.eq.s32.totalorder %s22, 0
      %p210 = por %p208, %p209
      %p211 = scmp.ne.s32.totalorder %s203, %s205
      %p212 = scmp.eq.s32.totalorder %s27, 1
      %p213 = por %p211, %p212
      %p214 = scmp.ne.s32.totalorder %s205, %s206
      %p215 = scmp.eq.s32.totalorder %s27, 0
      %p216 = por %p214, %p215
      %p217 = scmp.ne.s32.totalorder %s205, %s206
      %p218 = scmp.eq.s32.totalorder %s28, 1
      %p219 = por %p217, %p218
      %p221 = scmp.ne.s32.totalorder %s206, %s220
      %p222 = scmp.eq.s32.totalorder %s28, 0
      %p223 = por %p221, %p222
      %s225 = sadd.s32 %s224, 1
      %p228 = scmp.eq.s32.totalorder %s22, 1
      %p229 = scmp.ne.s32.totalorder %s224, %s226
      %p230 = scmp.eq.s32.totalorder %s22, 0
      %p231 = por %p229, %p230
      %p232 = scmp.ne.s32.totalorder %s224, %s226
      %p233 = scmp.eq.s32.totalorder %s27, 1
      %p234 = por %p232, %p233
      %p235 = scmp.ne.s32.totalorder %s226, %s227
      %p236 = scmp.eq.s32.totalorder %s27, 0
      %p237 = por %p235, %p236
      %p238 = scmp.ne.s32.totalorder %s226, %s227
      %p239 = scmp.eq.s32.totalorder %s28, 1
      %p240 = por %p238, %p239
      %p242 = scmp.ne.s32.totalorder %s227, %s241
      %p243 = scmp.eq.s32.totalorder %s28, 0
      %p244 = por %p242, %p243
      %s246 = sadd.s32 %s245, 1
      %p249 = scmp.eq.s32.totalorder %s22, 1
      %p250 = scmp.ne.s32.totalorder %s245, %s247
      %p251 = scmp.eq.s32.totalorder %s22, 0
      %p252 = por %p250, %p251
      %p253 = scmp.ne.s32.totalorder %s245, %s247
      %p254 = scmp.eq.s32.totalorder %s27, 1
      %p255 = por %p253, %p254
      %p256 = scmp.ne.s32.totalorder %s247, %s248
      %p257 = scmp.eq.s32.totalorder %s27, 0
      %p258 = por %p256, %p257
      %p259 = scmp.ne.s32.totalorder %s247, %s248
      %p260 = scmp.eq.s32.totalorder %s28, 1
      %p261 = por %p259, %p260
      %p263 = scmp.ne.s32.totalorder %s248, %s262
      %p264 = scmp.eq.s32.totalorder %s28, 0
      %p265 = por %p263, %p264
      %s266 = ssub.s32 %s22, %s29
      %p267 = scmp.eq.s32.totalorder %s266, 0
      %s269 = sadd.s32 %s268, 1
      %s270 = scalar_select %p267, %s268, %s269
      %p273 = pneg %p267
      %p274 = scmp.eq.s32.totalorder %s22, 1
      %p275 = por %p273, %p274
      %p276 = scmp.ne.s32.totalorder %s268, %s271
      %p277 = scmp.eq.s32.totalorder %s22, 0
      %p278 = por %p276, %p277
      %p279 = scmp.ne.s32.totalorder %s268, %s271
      %p280 = scmp.eq.s32.totalorder %s27, 1
      %p281 = por %p279, %p280
      %p282 = scmp.ne.s32.totalorder %s271, %s272
      %p283 = scmp.eq.s32.totalorder %s27, 0
      %p284 = por %p282, %p283
      %p285 = scmp.ne.s32.totalorder %s271, %s272
      %p286 = scmp.eq.s32.totalorder %s28, 1
      %p287 = por %p285, %p286
      %p289 = scmp.ne.s32.totalorder %s272, %s288
      %p290 = scmp.eq.s32.totalorder %s28, 0
      %p291 = por %p289, %p290
      %p292 = scmp.le.s32.totalorder 1, %s22
      %p293 = scmp.lt.s32.totalorder %s22, 3
      %p294 = pnand %p292, %p293
      %p295 = pneg %p294
      // Predicated region
      $region9: #{my_conformer_forward.9} parent=5 // pred_check
        _
      $region10: #{my_conformer_forward.9} parent=5 // pred_check_branch
        %297 = sbr.rel (%p294) target = $region12
      $region11: #{my_conformer_forward.9} parent=5 // pred_region
        %s298 = ssub.s32 %s22, 1
        // Predicated region
        $region13: #{my_conformer_forward.9} parent=11 // pred_check
          %p299 = pneg %p69
        $region14: #{my_conformer_forward.9} parent=11 // pred_check_branch
          %301 = sbr.rel (%p299) target = $region16
        $region15: #{my_conformer_forward.9} parent=11 // pred_region
          %s303 = ssub.s32 16, 16
          %304 = vsyncadd [#allocation4], %s303
          %s306 = sshll.u32 [#allocation3], 4
          %s307 = int_to_ptr.vmem [resolvable:$true] %s306
          %309 = dma.hbm_to_vmem [thread:$0]  %s1, 16, %s307, [#allocation4]
        $region16: #{my_conformer_forward.9} parent=11 // pred_fallthru
          _
        // Predicated region
        $region17: #{my_conformer_forward.9} parent=11 // pred_check
          %p310 = pneg %p90
        $region18: #{my_conformer_forward.9} parent=11 // pred_check_branch
          %312 = sbr.rel (%p310) target = $region20
        $region19: #{my_conformer_forward.9} parent=11 // pred_region
          %s314 = ssub.s32 16, 16
          %315 = vsyncadd [#allocation6], %s314
          %s317 = sshll.u32 [#allocation5], 4
          %s318 = int_to_ptr.vmem [resolvable:$true] %s317
          %320 = dma.hbm_to_vmem [thread:$0]  %s2, 16, %s318, [#allocation6]
        $region20: #{my_conformer_forward.9} parent=11 // pred_fallthru
          _
        // Predicated region
        $region21: #{my_conformer_forward.9} parent=11 // pred_check
          %p321 = pneg %p111
        $region22: #{my_conformer_forward.9} parent=11 // pred_check_branch
          %323 = sbr.rel (%p321) target = $region24
        $region23: #{my_conformer_forward.9} parent=11 // pred_region
          %s325 = ssub.s32 4096, 4096
          %326 = vsyncadd [#allocation6], %s325
          %s327 = sshll.u32 [#allocation7], 4
          %s328 = int_to_ptr.vmem [resolvable:$true] %s327
          %333 = dma.hbm_to_vmem [thread:$0]  %s3, 4096, %s328, [#allocation6], 256, 256, 16
        $region24: #{my_conformer_forward.9} parent=11 // pred_fallthru
          _
        // Predicated region
        $region25: #{my_conformer_forward.9} parent=11 // pred_check
          %p334 = pneg %p132
        $region26: #{my_conformer_forward.9} parent=11 // pred_check_branch
          %336 = sbr.rel (%p334) target = $region28
        $region27: #{my_conformer_forward.9} parent=11 // pred_region
          %s338 = ssub.s32 64, 64
          %339 = vsyncadd [#allocation9], %s338
          %s341 = sshll.u32 [#allocation8], 4
          %s342 = int_to_ptr.vmem [resolvable:$true] %s341
          %344 = dma.hbm_to_vmem [thread:$0]  %s4, 64, %s342, [#allocation9]
        $region28: #{my_conformer_forward.9} parent=11 // pred_fallthru
          _
        // Predicated region
        $region29: #{my_conformer_forward.9} parent=11 // pred_check
          %p345 = pneg %p153
        $region30: #{my_conformer_forward.9} parent=11 // pred_check_branch
          %347 = sbr.rel (%p345) target = $region32
        $region31: #{my_conformer_forward.9} parent=11 // pred_region
          %s349 = ssub.s32 512, 512
          %350 = vsyncadd [#allocation9], %s349
          %s351 = sshll.u32 [#allocation10], 4
          %s352 = int_to_ptr.vmem [resolvable:$true] %s351
          %357 = dma.hbm_to_vmem [thread:$0]  %s5, 512, %s352, [#allocation9], 256, 256, 16
        $region32: #{my_conformer_forward.9} parent=11 // pred_fallthru
          _
        // Predicated region
        $region33: #{my_conformer_forward.9} parent=11 // pred_check
          %p358 = pneg %p174
        $region34: #{my_conformer_forward.9} parent=11 // pred_check_branch
          %360 = sbr.rel (%p358) target = $region36
        $region35: #{my_conformer_forward.9} parent=11 // pred_region
          %s362 = ssub.s32 32, 32
          %363 = vsyncadd [#allocation12], %s362
          %s365 = sshll.u32 [#allocation11], 4
          %s366 = int_to_ptr.vmem [resolvable:$true] %s365
          %368 = dma.hbm_to_vmem [thread:$0]  %s6, 32, %s366, [#allocation12]
        $region36: #{my_conformer_forward.9} parent=11 // pred_fallthru
          _
        // Predicated region
        $region37: #{my_conformer_forward.9} parent=11 // pred_check
          %p369 = pneg %p195
        $region38: #{my_conformer_forward.9} parent=11 // pred_check_branch
          %371 = sbr.rel (%p369) target = $region40
        $region39: #{my_conformer_forward.9} parent=11 // pred_region
          _
        $region40: #{my_conformer_forward.9} parent=11 // pred_fallthru
          _
        // Predicated region
        $region41: #{my_conformer_forward.9} parent=11 // pred_check
          %p372 = pneg %p216
        $region42: #{my_conformer_forward.9} parent=11 // pred_check_branch
          %374 = sbr.rel (%p372) target = $region44
        $region43: #{my_conformer_forward.9} parent=11 // pred_region
          _
        $region44: #{my_conformer_forward.9} parent=11 // pred_fallthru
          _
        // Predicated region
        $region45: #{my_conformer_forward.9} parent=11 // pred_check
          %p375 = pneg %p237
        $region46: #{my_conformer_forward.9} parent=11 // pred_check_branch
          %377 = sbr.rel (%p375) target = $region48
        $region47: #{my_conformer_forward.9} parent=11 // pred_region
          %s379 = ssub.s32 2048, 2048
          %380 = vsyncadd [#allocation12], %s379
          %s381 = sshll.u32 [#allocation13], 4
          %s382 = int_to_ptr.vmem [resolvable:$true] %s381
          %387 = dma.hbm_to_vmem [thread:$0]  %s9, 2048, %s382, [#allocation12], 64, 64, 4
        $region48: #{my_conformer_forward.9} parent=11 // pred_fallthru
          _
        // Predicated region
        $region49: #{my_conformer_forward.9} parent=11 // pred_check
          %p388 = pneg %p258
        $region50: #{my_conformer_forward.9} parent=11 // pred_check_branch
          %390 = sbr.rel (%p388) target = $region52
        $region51: #{my_conformer_forward.9} parent=11 // pred_region
          %s392 = ssub.s32 16, 16
          %393 = vsyncadd [#allocation15], %s392
          %s395 = sshll.u32 [#allocation14], 4
          %s396 = int_to_ptr.vmem [resolvable:$true] %s395
          %398 = dma.hbm_to_vmem [thread:$0]  %s10, 16, %s396, [#allocation15]
        $region52: #{my_conformer_forward.9} parent=11 // pred_fallthru
          _
      $region12: #{my_conformer_forward.9} parent=5 // pred_fallthru
        _
      %p399 = scmp.lt.s32.totalorder %s22, 2
      // Predicated region
      $region53: #{my_conformer_forward.9} parent=5 // pred_check
        %p400 = pneg %p399
      $region54: #{my_conformer_forward.9} parent=5 // pred_check_branch
        %402 = sbr.rel (%p400) target = $region56
      $region55: #{my_conformer_forward.9} parent=5 // pred_region
        // Predicated region
        $region57: #{my_conformer_forward.9} parent=55 // pred_check
          %p403 = pneg %p42
        $region58: #{my_conformer_forward.9} parent=55 // pred_check_branch
          %405 = sbr.rel (%p403) target = $region60
        $region59: #{my_conformer_forward.9} parent=55 // pred_region
          %p406 = scmp.lt.s32.totalorder %s22, 1
          %s407 = scalar_select %p406, %s22, 1
          %s408 = smul.addr %s407, 2
          %s409 = smul.addr %s408, 4
          %s410 = scalar_lea.vmem %s0, %s409
        $region60: #{my_conformer_forward.9} parent=55 // pred_fallthru
          _
      $region56: #{my_conformer_forward.9} parent=5 // pred_fallthru
        _
      %p411 = scmp.le.s32.totalorder 1, %s22
      %p412 = scmp.lt.s32.totalorder %s22, 3
      %p413 = pnand %p411, %p412
      %p414 = pneg %p413
      // Predicated region
      $region61: #{my_conformer_forward.9} parent=5 // pred_check
        _
      $region62: #{my_conformer_forward.9} parent=5 // pred_check_branch
        %416 = sbr.rel (%p413) target = $region64
      $region63: #{my_conformer_forward.9} parent=5 // pred_region
        %s417 = ssub.s32 %s22, 1
        // Predicated region
        $region65: #{my_conformer_forward.9} parent=63 // pred_check
          %p418 = pneg %p69
        $region66: #{my_conformer_forward.9} parent=63 // pred_check_branch
          %420 = sbr.rel (%p418) target = $region68
        $region67: #{my_conformer_forward.9} parent=63 // pred_region
          %421 = dma.done [#allocation4], 16
        $region68: #{my_conformer_forward.9} parent=63 // pred_fallthru
          _
        // Predicated region
        $region69: #{my_conformer_forward.9} parent=63 // pred_check
          %p422 = pneg %p90
        $region70: #{my_conformer_forward.9} parent=63 // pred_check_branch
          %424 = sbr.rel (%p422) target = $region72
        $region71: #{my_conformer_forward.9} parent=63 // pred_region
          %425 = dma.done [#allocation6], 16
        $region72: #{my_conformer_forward.9} parent=63 // pred_fallthru
          _
        // Predicated region
        $region73: #{my_conformer_forward.9} parent=63 // pred_check
          %p426 = pneg %p111
        $region74: #{my_conformer_forward.9} parent=63 // pred_check_branch
          %428 = sbr.rel (%p426) target = $region76
        $region75: #{my_conformer_forward.9} parent=63 // pred_region
          %429 = dma.done [#allocation6], 4096
        $region76: #{my_conformer_forward.9} parent=63 // pred_fallthru
          _
        // Predicated region
        $region77: #{my_conformer_forward.9} parent=63 // pred_check
          %p430 = pneg %p132
        $region78: #{my_conformer_forward.9} parent=63 // pred_check_branch
          %432 = sbr.rel (%p430) target = $region80
        $region79: #{my_conformer_forward.9} parent=63 // pred_region
          %433 = dma.done [#allocation9], 64
        $region80: #{my_conformer_forward.9} parent=63 // pred_fallthru
          _
        // Predicated region
        $region81: #{my_conformer_forward.9} parent=63 // pred_check
          %p434 = pneg %p153
        $region82: #{my_conformer_forward.9} parent=63 // pred_check_branch
          %436 = sbr.rel (%p434) target = $region84
        $region83: #{my_conformer_forward.9} parent=63 // pred_region
          %437 = dma.done [#allocation9], 512
        $region84: #{my_conformer_forward.9} parent=63 // pred_fallthru
          _
        // Predicated region
        $region85: #{my_conformer_forward.9} parent=63 // pred_check
          %p438 = pneg %p174
        $region86: #{my_conformer_forward.9} parent=63 // pred_check_branch
          %440 = sbr.rel (%p438) target = $region88
        $region87: #{my_conformer_forward.9} parent=63 // pred_region
          %441 = dma.done [#allocation12], 32
        $region88: #{my_conformer_forward.9} parent=63 // pred_fallthru
          _
        // Predicated region
        $region89: #{my_conformer_forward.9} parent=63 // pred_check
          %p442 = pneg %p237
        $region90: #{my_conformer_forward.9} parent=63 // pred_check_branch
          %444 = sbr.rel (%p442) target = $region92
        $region91: #{my_conformer_forward.9} parent=63 // pred_region
          %445 = dma.done [#allocation12], 2048
        $region92: #{my_conformer_forward.9} parent=63 // pred_fallthru
          _
        // Predicated region
        $region93: #{my_conformer_forward.9} parent=63 // pred_check
          %p446 = pneg %p258
        $region94: #{my_conformer_forward.9} parent=63 // pred_check_branch
          %448 = sbr.rel (%p446) target = $region96
        $region95: #{my_conformer_forward.9} parent=63 // pred_region
          %449 = dma.done [#allocation15], 16
        $region96: #{my_conformer_forward.9} parent=63 // pred_fallthru
          _
        %p450 = scmp.lt.s32.totalorder %s27, 1
        %s451 = scalar_select %p450, %s27, 1
        %s452 = smul.addr %s451, 2
        %s453 = smul.addr %s452, 4
        %s454 = scalar_lea.vmem %s0, %s453
        %p455 = pneg %p48
        %p456 = pneg %p45
        %p457 = pneg %p69
        %p458 = pneg %p66
        %p459 = pneg %p90
        %p460 = pneg %p87
        %p461 = pneg %p111
        %p462 = pneg %p108
        %p463 = pneg %p132
        %p464 = pneg %p129
        %p465 = pneg %p153
        %p466 = pneg %p150
        %p467 = pneg %p174
        %p468 = pneg %p171
        %p469 = pneg %p195
        %p470 = pneg %p192
        %p471 = pneg %p216
        %p472 = pneg %p213
        %p473 = pneg %p237
        %p474 = pneg %p234
        %p475 = pneg %p258
        %p476 = pneg %p255
        %p477 = pneg %p284
        %p478 = pneg %p281
        %p479 = scmp.lt.s32.totalorder %s27, 1
        %s480 = scalar_select %p479, %s27, 1
        %s481 = smul.addr %s480, 2
        %s482 = smul.addr %s481, 4
        %s483 = scalar_lea.vmem %s11, %s482
        %p484 = scmp.lt.s32.totalorder %s27, 1
        %s485 = scalar_select %p484, %s27, 1
        %s486 = smul.addr %s485, 2
        %s487 = smul.addr %s486, 4
        %s488 = scalar_lea.vmem %s0, %s487
        %p489 = scmp.lt.s32.totalorder %s27, 1
        %s490 = scalar_select %p489, %s27, 1
        %s491 = smul.addr %s490, 2
        %s492 = smul.addr %s491, 4
        %s493 = scalar_lea.vmem %s11, %s492
        %v495 = vld [vmem:[%s488] sm:$0xf]
        %v496 = vld [vmem:[%s488 + $0x4] sm:$0x1]
        %v497 = vunpack.c.l.bf16 %v495
        %v498 = vunpack.c.l.bf16 %v496
        %v499 = vld [vmem:[#allocation3] sm:$0x1]
        %v500 = vld [vmem:[#allocation5] sm:$0x1]
        %501 = vadd.xlane.f32.xlu0 %v497
        %v502 = vpop.xlane.xlu0 %501
        %vm503 = vcmask 1040384
        %v504 = vsel %vm503, %v498, 0.0
        %505 = vadd.xlane.f32.xlu0 %v504
        %v506 = vpop.xlane.xlu0 %505
        %v507 = vrcp.pop 128.0
        %v508 = vmul.f32 %v502, %v507
        %v509 = vmul.f32 %v506, %v507
        %v510 = vsub.f32 %v497, %v508
        %v511 = vsub.f32 %v498, %v509
        %v512 = vmul.f32 %v510, %v510
        %v513 = vmul.f32 %v511, %v511
        %514 = vadd.xlane.f32.xlu0 %v512
        %v515 = vpop.xlane.xlu0 %514
        %v516 = vsel %vm503, %v513, 0.0
        %517 = vadd.xlane.f32.xlu0 %v516
        %v518 = vpop.xlane.xlu0 %517
        %v519 = vmul.f32 %v515, %v507
        %v520 = vmul.f32 %v518, %v507
        %v521 = vadd.f32 %v519, 1e-05
        %v522 = vadd.f32 %v520, 1e-05
        %v523 = vrsqrt.pop %v521
        %v524 = vrsqrt.pop %v522
        %v525 = vmul.f32 %v510, %v523
        %v526 = vmul.f32 %v511, %v524
        %v528 = vlaneseq
        %v529 = vshrl.u32 %v528, 7
        %v530 = vsub.s32 0, %v529
        %v531 = vrot.slane %v499, %v530
        %v533 = vmul.f32 %v525, %v531
        %v534 = vmul.f32 %v526, %v531
        %v536 = vlaneseq
        %v537 = vshrl.u32 %v536, 7
        %v538 = vsub.s32 0, %v537
        %v539 = vrot.slane %v500, %v538
        %v541 = vadd.f32 %v533, %v539
        %v542 = vadd.f32 %v534, %v539
        %v543 = vpack.c.bf16 %v542, %v541
        %v544 = vld [vmem:[#allocation7] sm:$0xff]
        %v545 = vld [vmem:[#allocation7 + $0x8] sm:$0xff]
        %v546 = vld [vmem:[#allocation7 + $0x10] sm:$0xff]
        %v547 = vld [vmem:[#allocation7 + $0x18] sm:$0xff]
        %v548 = vld [vmem:[#allocation7 + $0x20] sm:$0xff]
        %v549 = vld [vmem:[#allocation7 + $0x28] sm:$0xff]
        %v550 = vld [vmem:[#allocation7 + $0x30] sm:$0xff]
        %v551 = vld [vmem:[#allocation7 + $0x38] sm:$0xff]
        %v552 = vld [vmem:[#allocation7 + $0x40] sm:$0xff]
        %v553 = vld [vmem:[#allocation7 + $0x48] sm:$0xff]
        %v554 = vld [vmem:[#allocation7 + $0x50] sm:$0xff]
        %v555 = vld [vmem:[#allocation7 + $0x58] sm:$0xff]
        %v556 = vld [vmem:[#allocation7 + $0x60] sm:$0xff]
        %v557 = vld [vmem:[#allocation7 + $0x68] sm:$0xff]
        %v558 = vld [vmem:[#allocation7 + $0x70] sm:$0xff]
        %v559 = vld [vmem:[#allocation7 + $0x78] sm:$0xff]
        %v560 = vld [vmem:[#allocation7 + $0x80] sm:$0xff]
        %v561 = vld [vmem:[#allocation7 + $0x88] sm:$0xff]
        %v562 = vld [vmem:[#allocation7 + $0x90] sm:$0xff]
        %v563 = vld [vmem:[#allocation7 + $0x98] sm:$0xff]
        %v564 = vld [vmem:[#allocation7 + $0xa0] sm:$0xff]
        %v565 = vld [vmem:[#allocation7 + $0xa8] sm:$0xff]
        %v566 = vld [vmem:[#allocation7 + $0xb0] sm:$0xff]
        %v567 = vld [vmem:[#allocation7 + $0xb8] sm:$0xff]
        %v568 = vld [vmem:[#allocation7 + $0xc0] sm:$0xff]
        %v569 = vld [vmem:[#allocation7 + $0xc8] sm:$0xff]
        %v570 = vld [vmem:[#allocation7 + $0xd0] sm:$0xff]
        %v571 = vld [vmem:[#allocation7 + $0xd8] sm:$0xff]
        %v572 = vld [vmem:[#allocation7 + $0xe0] sm:$0xff]
        %v573 = vld [vmem:[#allocation7 + $0xe8] sm:$0xff]
        %v574 = vld [vmem:[#allocation7 + $0xf0] sm:$0xff]
        %v575 = vld [vmem:[#allocation7 + $0xf8] sm:$0xff]
        %v576 = vld [vmem:[#allocation8] sm:$0xf]
        %v578 = vlaneseq
        %v579 = vshrl.u32 %v578, 7
        %v580 = vsub.s32 0, %v579
        %v581 = vrot.slane %v576, %v580
        %v582 = vlaneseq
        %v583 = vshrl.u32 %v582, 7
        %v584 = vsub.s32 1, %v583
        %v585 = vrot.slane %v576, %v584
        %v586 = vlaneseq
        %v587 = vshrl.u32 %v586, 7
        %v588 = vsub.s32 2, %v587
        %v589 = vrot.slane %v576, %v588
        %v590 = vlaneseq
        %v591 = vshrl.u32 %v590, 7
        %v592 = vsub.s32 3, %v591
        %v593 = vrot.slane %v576, %v592
        %v630 = vunpack.c.l.b16 %v544
        %v631 = vunpack.c.h.b16 %v544
        %v632 = vunpack.c.l.b16 %v545
        %v633 = vunpack.c.h.b16 %v545
        %v634 = vunpack.c.l.b16 %v546
        %v635 = vunpack.c.h.b16 %v546
        %v636 = vunpack.c.l.b16 %v547
        %v637 = vunpack.c.h.b16 %v547
        %v638 = vunpack.c.l.b16 %v548
        %v639 = vunpack.c.h.b16 %v548
        %v640 = vunpack.c.l.b16 %v549
        %v641 = vunpack.c.h.b16 %v549
        %v642 = vunpack.c.l.b16 %v550
        %v643 = vunpack.c.h.b16 %v550
        %v644 = vunpack.c.l.b16 %v551
        %v645 = vunpack.c.h.b16 %v551
        %v646 = vunpack.c.l.b16 %v552
        %v647 = vunpack.c.h.b16 %v552
        %v648 = vunpack.c.l.b16 %v553
        %v649 = vunpack.c.h.b16 %v553
        %v650 = vunpack.c.l.b16 %v554
        %v651 = vunpack.c.h.b16 %v554
        %v652 = vunpack.c.l.b16 %v555
        %v653 = vunpack.c.h.b16 %v555
        %v654 = vunpack.c.l.b16 %v556
        %v655 = vunpack.c.h.b16 %v556
        %v656 = vunpack.c.l.b16 %v557
        %v657 = vunpack.c.h.b16 %v557
        %v658 = vunpack.c.l.b16 %v558
        %v659 = vunpack.c.h.b16 %v558
        %v660 = vunpack.c.l.b16 %v559
        %v661 = vunpack.c.h.b16 %v559
        %v662 = vunpack.c.l.b16 %v560
        %v663 = vunpack.c.h.b16 %v560
        %v664 = vunpack.c.l.b16 %v561
        %v665 = vunpack.c.h.b16 %v561
        %v666 = vunpack.c.l.b16 %v562
        %v667 = vunpack.c.h.b16 %v562
        %v668 = vunpack.c.l.b16 %v563
        %v669 = vunpack.c.h.b16 %v563
        %v670 = vunpack.c.l.b16 %v564
        %v671 = vunpack.c.h.b16 %v564
        %v672 = vunpack.c.l.b16 %v565
        %v673 = vunpack.c.h.b16 %v565
        %v674 = vunpack.c.l.b16 %v566
        %v675 = vunpack.c.h.b16 %v566
        %v676 = vunpack.c.l.b16 %v567
        %v677 = vunpack.c.h.b16 %v567
        %v678 = vunpack.c.l.b16 %v568
        %v679 = vunpack.c.h.b16 %v568
        %v680 = vunpack.c.l.b16 %v569
        %v681 = vunpack.c.h.b16 %v569
        %v682 = vunpack.c.l.b16 %v570
        %v683 = vunpack.c.h.b16 %v570
        %v684 = vunpack.c.l.b16 %v571
        %v685 = vunpack.c.h.b16 %v571
        %v686 = vunpack.c.l.b16 %v572
        %v687 = vunpack.c.h.b16 %v572
        %v688 = vunpack.c.l.b16 %v573
        %v689 = vunpack.c.h.b16 %v573
        %v690 = vunpack.c.l.b16 %v574
        %v691 = vunpack.c.h.b16 %v574
        %v692 = vunpack.c.l.b16 %v575
        %v693 = vunpack.c.h.b16 %v575
        %v694 = vpack.c.b16 %v634, %v630
        %v695 = vpack.c.b16 %v635, %v631
        %v696 = vpack.c.b16 %v636, %v632
        %v697 = vpack.c.b16 %v637, %v633
        %v698 = vpack.c.b16 %v642, %v638
        %v699 = vpack.c.b16 %v643, %v639
        %v700 = vpack.c.b16 %v644, %v640
        %v701 = vpack.c.b16 %v645, %v641
        %v702 = vpack.c.b16 %v650, %v646
        %v703 = vpack.c.b16 %v651, %v647
        %v704 = vpack.c.b16 %v652, %v648
        %v705 = vpack.c.b16 %v653, %v649
        %v706 = vpack.c.b16 %v658, %v654
        %v707 = vpack.c.b16 %v659, %v655
        %v708 = vpack.c.b16 %v660, %v656
        %v709 = vpack.c.b16 %v661, %v657
        %v710 = vpack.c.b16 %v666, %v662
        %v711 = vpack.c.b16 %v667, %v663
        %v712 = vpack.c.b16 %v668, %v664
        %v713 = vpack.c.b16 %v669, %v665
        %v714 = vpack.c.b16 %v674, %v670
        %v715 = vpack.c.b16 %v675, %v671
        %v716 = vpack.c.b16 %v676, %v672
        %v717 = vpack.c.b16 %v677, %v673
        %v718 = vpack.c.b16 %v682, %v678
        %v719 = vpack.c.b16 %v683, %v679
        %v720 = vpack.c.b16 %v684, %v680
        %v721 = vpack.c.b16 %v685, %v681
        %v722 = vpack.c.b16 %v690, %v686
        %v723 = vpack.c.b16 %v691, %v687
        %v724 = vpack.c.b16 %v692, %v688
        %v725 = vpack.c.b16 %v693, %v689
        %758 = vmatprep.subr.bf16.mxu0 %v695
        %759 = vmatpush1.bf16.msra.mxu0 %v694
        %760 = vmatprep.subr.bf16.mxu0 %v699
        %761 = vmatpush1.bf16.msra.mxu0 %v698
        %762 = vmatprep.subr.bf16.mxu0 %v703
        %763 = vmatpush1.bf16.msra.mxu0 %v702
        %764 = vmatprep.subr.bf16.mxu0 %v707
        %765 = vmatpush1.bf16.msra.mxu0 %v706
        %766 = vmatprep.subr.bf16.mxu0 %v711
        %767 = vmatpush1.bf16.msra.mxu0 %v710
        %768 = vmatprep.subr.bf16.mxu0 %v715
        %769 = vmatpush1.bf16.msra.mxu0 %v714
        %770 = vmatprep.subr.bf16.mxu0 %v719
        %771 = vmatpush1.bf16.msra.mxu0 %v718
        %772 = vmatprep.subr.bf16.mxu0 %v723
        %773 = vmatpush1.bf16.msra.mxu0 %v722
        %774 = vmatprep.subr.bf16.mxu0 0
        %775 = vmatpush1.bf16.msra.mxu0 0
        %776 = vmatprep.subr.bf16.mxu0 0
        %777 = vmatpush1.bf16.msra.mxu0 0
        %778 = vmatprep.subr.bf16.mxu0 0
        %779 = vmatpush1.bf16.msra.mxu0 0
        %780 = vmatprep.subr.bf16.mxu0 0
        %781 = vmatpush1.bf16.msra.mxu0 0
        %782 = vmatprep.subr.bf16.mxu0 0
        %783 = vmatpush1.bf16.msra.mxu0 0
        %784 = vmatprep.subr.bf16.mxu0 0
        %785 = vmatpush1.bf16.msra.mxu0 0
        %786 = vmatprep.subr.bf16.mxu0 0
        %787 = vmatpush1.bf16.msra.mxu0 0
        %788 = vmatprep.subr.bf16.mxu0 0
        %789 = vmatpush1.bf16.msra.mxu0 0
        %790 = vmatprep.mubr.bf16.mxu0 0
        %791 = vmatmul.mubr.bf16.gmra.mrb[0].mxu0 %v543
        %v792 = vpop.f32.mrb[0].mxu0
        %v793 = vadd.f32 %v581, %v792
        %v794 = vpop.f32.mrb[0].mxu0
        %v795 = vadd.f32 %v585, %v794
        %v796 = vpop.f32.mrb[0].mxu0
        %v797 = vadd.f32 %v581, %v796
        %v798 = vpop.f32.mrb[0].mxu0
        %v799 = vadd.f32 %v585, %v798
        %800 = vdwg.mxu0
        %801 = vmatprep.subr.bf16.mxu0 %v697
        %802 = vmatpush1.bf16.msra.mxu0 %v696
        %803 = vmatprep.subr.bf16.mxu0 %v701
        %804 = vmatpush1.bf16.msra.mxu0 %v700
        %805 = vmatprep.subr.bf16.mxu0 %v705
        %806 = vmatpush1.bf16.msra.mxu0 %v704
        %807 = vmatprep.subr.bf16.mxu0 %v709
        %808 = vmatpush1.bf16.msra.mxu0 %v708
        %809 = vmatprep.subr.bf16.mxu0 %v713
        %810 = vmatpush1.bf16.msra.mxu0 %v712
        %811 = vmatprep.subr.bf16.mxu0 %v717
        %812 = vmatpush1.bf16.msra.mxu0 %v716
        %813 = vmatprep.subr.bf16.mxu0 %v721
        %814 = vmatpush1.bf16.msra.mxu0 %v720
        %815 = vmatprep.subr.bf16.mxu0 %v725
        %816 = vmatpush1.bf16.msra.mxu0 %v724
        %817 = vmatprep.subr.bf16.mxu0 0
        %818 = vmatpush1.bf16.msra.mxu0 0
        %819 = vmatprep.subr.bf16.mxu0 0
        %820 = vmatpush1.bf16.msra.mxu0 0
        %821 = vmatprep.subr.bf16.mxu0 0
        %822 = vmatpush1.bf16.msra.mxu0 0
        %823 = vmatprep.subr.bf16.mxu0 0
        %824 = vmatpush1.bf16.msra.mxu0 0
        %825 = vmatprep.subr.bf16.mxu0 0
        %826 = vmatpush1.bf16.msra.mxu0 0
        %827 = vmatprep.subr.bf16.mxu0 0
        %828 = vmatpush1.bf16.msra.mxu0 0
        %829 = vmatprep.subr.bf16.mxu0 0
        %830 = vmatpush1.bf16.msra.mxu0 0
        %831 = vmatprep.subr.bf16.mxu0 0
        %832 = vmatpush1.bf16.msra.mxu0 0
        %833 = vmatprep.mubr.bf16.mxu0 0
        %834 = vmatmul.mubr.bf16.gmra.mrb[0].mxu0 %v543
        %v835 = vpop.f32.mrb[0].mxu0
        %v836 = vadd.f32 %v589, %v835
        %v837 = vpop.f32.mrb[0].mxu0
        %v838 = vadd.f32 %v593, %v837
        %v839 = vpop.f32.mrb[0].mxu0
        %v840 = vadd.f32 %v589, %v839
        %v841 = vpop.f32.mrb[0].mxu0
        %v842 = vadd.f32 %v593, %v841
        %843 = vdwg.mxu0
        %v844 = vxor.u32 %v836, 2147483648
        %v845 = vxor.u32 %v838, 2147483648
        %v846 = vxor.u32 %v840, 2147483648
        %v847 = vxor.u32 %v842, 2147483648
        %v848 = vmul.f32 %v844, 1.442695
        %v849 = vpow.pop %v848
        %v850 = vmul.f32 %v845, 1.442695
        %v851 = vpow.pop %v850
        %v852 = vmul.f32 %v846, 1.442695
        %v853 = vpow.pop %v852
        %v854 = vmul.f32 %v847, 1.442695
        %v855 = vpow.pop %v854
        %v856 = vadd.f32 %v849, 1.0
        %v857 = vadd.f32 %v851, 1.0
        %v858 = vadd.f32 %v853, 1.0
        %v859 = vadd.f32 %v855, 1.0
        %v860 = vrcp.pop %v856
        %v861 = vmul.f32 1.0, %v860
        %v862 = vrcp.pop %v857
        %v863 = vmul.f32 1.0, %v862
        %v864 = vrcp.pop %v858
        %v865 = vmul.f32 1.0, %v864
        %v866 = vrcp.pop %v859
        %v867 = vmul.f32 1.0, %v866
        %v868 = vmul.f32 %v793, %v861
        %v869 = vmul.f32 %v795, %v863
        %v870 = vmul.f32 %v797, %v865
        %v871 = vmul.f32 %v799, %v867
        %872 = vst [vmem:[#allocation2] sm:$0xff] 0.0
        %873 = vst [vmem:[#allocation2 + $0x8] sm:$0xff] 0.0
        %874 = vst [vmem:[#allocation2 + $0x20] sm:$0xfe] 0.0
        %875 = vst [vmem:[#allocation2 + $0x28] sm:$0xfe] 0.0
        %876 = vst [vmem:[#allocation2 + $0x10] sm:$0xff] %v868
        %877 = vst [vmem:[#allocation2 + $0x18] sm:$0xff] %v869
        %878 = vst [vmem:[#allocation2 + $0x20] sm:$0x1] %v870
        %879 = vst [vmem:[#allocation2 + $0x28] sm:$0x1] %v871
        %v880 = vld [vmem:[#allocation10] sm:$0xff]
        %v881 = vld [vmem:[#allocation10 + $0x8] sm:$0xff]
        %v882 = vld [vmem:[#allocation10 + $0x10] sm:$0xff]
        %v883 = vld [vmem:[#allocation10 + $0x18] sm:$0xff]
        %v884 = vld [vmem:[#allocation2] sm:$0xff]
        %v885 = vld [vmem:[#allocation2 + $0x8] sm:$0xff]
        %v886 = vld [vmem:[#allocation2 + $0x10] sm:$0x1]
        %v887 = vld [vmem:[#allocation2 + $0x18] sm:$0x1]
        %v888 = vlaneseq
        %v889 = vshrl.u32 %v888, 7
        %v890 = vsub.s32 0, %v889
        %v891 = vrot.slane %v880, %v890
        %v892 = vlaneseq
        %v893 = vshrl.u32 %v892, 7
        %v894 = vsub.s32 0, %v893
        %v895 = vrot.slane %v881, %v894
        %v896 = vmul.f32 %v884, %v891
        %v897 = vmul.f32 %v885, %v895
        %v898 = vmul.f32 %v886, %v891
        %v899 = vmul.f32 %v887, %v895
        %v900 = vadd.f32 %v896, 0.0
        %v901 = vadd.f32 %v897, 0.0
        %v902 = vadd.f32 %v898, 0.0
        %v903 = vadd.f32 %v899, 0.0
        %v904 = vld [vmem:[#allocation2] sm:$0xfe]
        %v905 = vld [vmem:[#allocation2 + $0x8] sm:$0xfe]
        %v906 = vld [vmem:[#allocation2 + $0x10] sm:$0x3]
        %v907 = vld [vmem:[#allocation2 + $0x18] sm:$0x3]
        %v908 = vlaneseq
        %v909 = vshrl.u32 %v908, 7
        %v910 = vsub.s32 1, %v909
        %v911 = vrot.slane %v880, %v910
        %v912 = vlaneseq
        %v913 = vshrl.u32 %v912, 7
        %v914 = vsub.s32 1, %v913
        %v915 = vrot.slane %v881, %v914
        %v916 = vmul.f32 %v904, %v911
        %v917 = vmul.f32 %v905, %v915
        %v918 = vmul.f32 %v906, %v911
        %v919 = vmul.f32 %v907, %v915
        %vm924 = vcmask 1046528
        %v925 = vrot.slane %v916, 1
        %v926 = vrot.slane %v918, 1
        %v927 = vsel %vm924, %v925, %v926
        %v928 = vrot.slane %v917, 1
        %v929 = vrot.slane %v919, 1
        %v930 = vsel %vm924, %v928, %v929
        %v935 = vadd.f32 %v900, %v927
        %v936 = vadd.f32 %v901, %v930
        %v937 = vadd.f32 %v902, %v926
        %v938 = vadd.f32 %v903, %v929
        %v939 = vld [vmem:[#allocation2] sm:$0xfc]
        %v940 = vld [vmem:[#allocation2 + $0x8] sm:$0xfc]
        %v941 = vld [vmem:[#allocation2 + $0x10] sm:$0x7]
        %v942 = vld [vmem:[#allocation2 + $0x18] sm:$0x7]
        %v943 = vlaneseq
        %v944 = vshrl.u32 %v943, 7
        %v945 = vsub.s32 2, %v944
        %v946 = vrot.slane %v880, %v945
        %v947 = vlaneseq
        %v948 = vshrl.u32 %v947, 7
        %v949 = vsub.s32 2, %v948
        %v950 = vrot.slane %v881, %v949
        %v951 = vmul.f32 %v939, %v946
        %v952 = vmul.f32 %v940, %v950
        %v953 = vmul.f32 %v941, %v946
        %v954 = vmul.f32 %v942, %v950
        %vm959 = vcmask 1045504
        %v960 = vrot.slane %v951, 2
        %v961 = vrot.slane %v953, 2
        %v962 = vsel %vm959, %v960, %v961
        %v963 = vrot.slane %v952, 2
        %v964 = vrot.slane %v954, 2
        %v965 = vsel %vm959, %v963, %v964
        %v970 = vadd.f32 %v935, %v962
        %v971 = vadd.f32 %v936, %v965
        %v972 = vadd.f32 %v937, %v961
        %v973 = vadd.f32 %v938, %v964
        %v974 = vld [vmem:[#allocation2] sm:$0xf8]
        %v975 = vld [vmem:[#allocation2 + $0x8] sm:$0xf8]
        %v976 = vld [vmem:[#allocation2 + $0x10] sm:$0xf]
        %v977 = vld [vmem:[#allocation2 + $0x18] sm:$0xf]
        %v978 = vlaneseq
        %v979 = vshrl.u32 %v978, 7
        %v980 = vsub.s32 3, %v979
        %v981 = vrot.slane %v880, %v980
        %v982 = vlaneseq
        %v983 = vshrl.u32 %v982, 7
        %v984 = vsub.s32 3, %v983
        %v985 = vrot.slane %v881, %v984
        %v986 = vmul.f32 %v974, %v981
        %v987 = vmul.f32 %v975, %v985
        %v988 = vmul.f32 %v976, %v981
        %v989 = vmul.f32 %v977, %v985
        %vm994 = vcmask 1044480
        %v995 = vrot.slane %v986, 3
        %v996 = vrot.slane %v988, 3
        %v997 = vsel %vm994, %v995, %v996
        %v998 = vrot.slane %v987, 3
        %v999 = vrot.slane %v989, 3
        %v1000 = vsel %vm994, %v998, %v999
        %v1005 = vadd.f32 %v970, %v997
        %v1006 = vadd.f32 %v971, %v1000
        %v1007 = vadd.f32 %v972, %v996
        %v1008 = vadd.f32 %v973, %v999
        %v1009 = vld [vmem:[#allocation2] sm:$0xf0]
        %v1010 = vld [vmem:[#allocation2 + $0x8] sm:$0xf0]
        %v1011 = vld [vmem:[#allocation2 + $0x10] sm:$0x1f]
        %v1012 = vld [vmem:[#allocation2 + $0x18] sm:$0x1f]
        %v1013 = vlaneseq
        %v1014 = vshrl.u32 %v1013, 7
        %v1015 = vsub.s32 4, %v1014
        %v1016 = vrot.slane %v880, %v1015
        %v1017 = vlaneseq
        %v1018 = vshrl.u32 %v1017, 7
        %v1019 = vsub.s32 4, %v1018
        %v1020 = vrot.slane %v881, %v1019
        %v1021 = vmul.f32 %v1009, %v1016
        %v1022 = vmul.f32 %v1010, %v1020
        %v1023 = vmul.f32 %v1011, %v1016
        %v1024 = vmul.f32 %v1012, %v1020
        %vm1029 = vcmask 1043456
        %v1030 = vrot.slane %v1021, 4
        %v1031 = vrot.slane %v1023, 4
        %v1032 = vsel %vm1029, %v1030, %v1031
        %v1033 = vrot.slane %v1022, 4
        %v1034 = vrot.slane %v1024, 4
        %v1035 = vsel %vm1029, %v1033, %v1034
        %v1040 = vadd.f32 %v1005, %v1032
        %v1041 = vadd.f32 %v1006, %v1035
        %v1042 = vadd.f32 %v1007, %v1031
        %v1043 = vadd.f32 %v1008, %v1034
        %v1044 = vld [vmem:[#allocation2] sm:$0xe0]
        %v1045 = vld [vmem:[#allocation2 + $0x8] sm:$0xe0]
        %v1046 = vld [vmem:[#allocation2 + $0x10] sm:$0x3f]
        %v1047 = vld [vmem:[#allocation2 + $0x18] sm:$0x3f]
        %v1048 = vlaneseq
        %v1049 = vshrl.u32 %v1048, 7
        %v1050 = vsub.s32 5, %v1049
        %v1051 = vrot.slane %v880, %v1050
        %v1052 = vlaneseq
        %v1053 = vshrl.u32 %v1052, 7
        %v1054 = vsub.s32 5, %v1053
        %v1055 = vrot.slane %v881, %v1054
        %v1056 = vmul.f32 %v1044, %v1051
        %v1057 = vmul.f32 %v1045, %v1055
        %v1058 = vmul.f32 %v1046, %v1051
        %v1059 = vmul.f32 %v1047, %v1055
        %vm1064 = vcmask 1042432
        %v1065 = vrot.slane %v1056, 5
        %v1066 = vrot.slane %v1058, 5
        %v1067 = vsel %vm1064, %v1065, %v1066
        %v1068 = vrot.slane %v1057, 5
        %v1069 = vrot.slane %v1059, 5
        %v1070 = vsel %vm1064, %v1068, %v1069
        %v1075 = vadd.f32 %v1040, %v1067
        %v1076 = vadd.f32 %v1041, %v1070
        %v1077 = vadd.f32 %v1042, %v1066
        %v1078 = vadd.f32 %v1043, %v1069
        %v1079 = vld [vmem:[#allocation2] sm:$0xc0]
        %v1080 = vld [vmem:[#allocation2 + $0x8] sm:$0xc0]
        %v1081 = vld [vmem:[#allocation2 + $0x10] sm:$0x7f]
        %v1082 = vld [vmem:[#allocation2 + $0x18] sm:$0x7f]
        %v1083 = vlaneseq
        %v1084 = vshrl.u32 %v1083, 7
        %v1085 = vsub.s32 6, %v1084
        %v1086 = vrot.slane %v880, %v1085
        %v1087 = vlaneseq
        %v1088 = vshrl.u32 %v1087, 7
        %v1089 = vsub.s32 6, %v1088
        %v1090 = vrot.slane %v881, %v1089
        %v1091 = vmul.f32 %v1079, %v1086
        %v1092 = vmul.f32 %v1080, %v1090
        %v1093 = vmul.f32 %v1081, %v1086
        %v1094 = vmul.f32 %v1082, %v1090
        %vm1099 = vcmask 1041408
        %v1100 = vrot.slane %v1091, 6
        %v1101 = vrot.slane %v1093, 6
        %v1102 = vsel %vm1099, %v1100, %v1101
        %v1103 = vrot.slane %v1092, 6
        %v1104 = vrot.slane %v1094, 6
        %v1105 = vsel %vm1099, %v1103, %v1104
        %v1110 = vadd.f32 %v1075, %v1102
        %v1111 = vadd.f32 %v1076, %v1105
        %v1112 = vadd.f32 %v1077, %v1101
        %v1113 = vadd.f32 %v1078, %v1104
        %v1114 = vld [vmem:[#allocation2] sm:$0x80]
        %v1115 = vld [vmem:[#allocation2 + $0x8] sm:$0x80]
        %v1116 = vld [vmem:[#allocation2 + $0x10] sm:$0xff]
        %v1117 = vld [vmem:[#allocation2 + $0x18] sm:$0xff]
        %v1118 = vlaneseq
        %v1119 = vshrl.u32 %v1118, 7
        %v1120 = vsub.s32 7, %v1119
        %v1121 = vrot.slane %v880, %v1120
        %v1122 = vlaneseq
        %v1123 = vshrl.u32 %v1122, 7
        %v1124 = vsub.s32 7, %v1123
        %v1125 = vrot.slane %v881, %v1124
        %v1126 = vmul.f32 %v1114, %v1121
        %v1127 = vmul.f32 %v1115, %v1125
        %v1128 = vmul.f32 %v1116, %v1121
        %v1129 = vmul.f32 %v1117, %v1125
        %v1134 = vrot.slane %v1126, 7
        %v1135 = vrot.slane %v1128, 7
        %v1136 = vsel %vm503, %v1134, %v1135
        %v1137 = vrot.slane %v1127, 7
        %v1138 = vrot.slane %v1129, 7
        %v1139 = vsel %vm503, %v1137, %v1138
        %v1144 = vadd.f32 %v1110, %v1136
        %v1145 = vadd.f32 %v1111, %v1139
        %v1146 = vadd.f32 %v1112, %v1135
        %v1147 = vadd.f32 %v1113, %v1138
        %v1148 = vld [vmem:[#allocation2 + $0x10] sm:$0xff]
        %v1149 = vld [vmem:[#allocation2 + $0x18] sm:$0xff]
        %v1150 = vld [vmem:[#allocation2 + $0x20] sm:$0x1]
        %v1151 = vld [vmem:[#allocation2 + $0x28] sm:$0x1]
        %v1152 = vlaneseq
        %v1153 = vshrl.u32 %v1152, 7
        %v1154 = vsub.s32 0, %v1153
        %v1155 = vrot.slane %v882, %v1154
        %v1156 = vlaneseq
        %v1157 = vshrl.u32 %v1156, 7
        %v1158 = vsub.s32 0, %v1157
        %v1159 = vrot.slane %v883, %v1158
        %v1160 = vmul.f32 %v1148, %v1155
        %v1161 = vmul.f32 %v1149, %v1159
        %v1162 = vmul.f32 %v1150, %v1155
        %v1163 = vmul.f32 %v1151, %v1159
        %v1164 = vadd.f32 %v1144, %v1160
        %v1165 = vadd.f32 %v1145, %v1161
        %v1166 = vadd.f32 %v1146, %v1162
        %v1167 = vadd.f32 %v1147, %v1163
        %v1168 = vld [vmem:[#allocation2 + $0x10] sm:$0xfe]
        %v1169 = vld [vmem:[#allocation2 + $0x18] sm:$0xfe]
        %v1170 = vld [vmem:[#allocation2 + $0x20] sm:$0x3]
        %v1171 = vld [vmem:[#allocation2 + $0x28] sm:$0x3]
        %v1172 = vlaneseq
        %v1173 = vshrl.u32 %v1172, 7
        %v1174 = vsub.s32 1, %v1173
        %v1175 = vrot.slane %v882, %v1174
        %v1176 = vlaneseq
        %v1177 = vshrl.u32 %v1176, 7
        %v1178 = vsub.s32 1, %v1177
        %v1179 = vrot.slane %v883, %v1178
        %v1180 = vmul.f32 %v1168, %v1175
        %v1181 = vmul.f32 %v1169, %v1179
        %v1182 = vmul.f32 %v1170, %v1175
        %v1183 = vmul.f32 %v1171, %v1179
        %v1188 = vrot.slane %v1180, 1
        %v1189 = vrot.slane %v1182, 1
        %v1190 = vsel %vm924, %v1188, %v1189
        %v1191 = vrot.slane %v1181, 1
        %v1192 = vrot.slane %v1183, 1
        %v1193 = vsel %vm924, %v1191, %v1192
        %v1198 = vadd.f32 %v1164, %v1190
        %v1199 = vadd.f32 %v1165, %v1193
        %v1200 = vadd.f32 %v1166, %v1189
        %v1201 = vadd.f32 %v1167, %v1192
        %v1202 = vld [vmem:[#allocation2 + $0x10] sm:$0xfc]
        %v1203 = vld [vmem:[#allocation2 + $0x18] sm:$0xfc]
        %v1204 = vld [vmem:[#allocation2 + $0x20] sm:$0x7]
        %v1205 = vld [vmem:[#allocation2 + $0x28] sm:$0x7]
        %v1206 = vlaneseq
        %v1207 = vshrl.u32 %v1206, 7
        %v1208 = vsub.s32 2, %v1207
        %v1209 = vrot.slane %v882, %v1208
        %v1210 = vlaneseq
        %v1211 = vshrl.u32 %v1210, 7
        %v1212 = vsub.s32 2, %v1211
        %v1213 = vrot.slane %v883, %v1212
        %v1214 = vmul.f32 %v1202, %v1209
        %v1215 = vmul.f32 %v1203, %v1213
        %v1216 = vmul.f32 %v1204, %v1209
        %v1217 = vmul.f32 %v1205, %v1213
        %v1222 = vrot.slane %v1214, 2
        %v1223 = vrot.slane %v1216, 2
        %v1224 = vsel %vm959, %v1222, %v1223
        %v1225 = vrot.slane %v1215, 2
        %v1226 = vrot.slane %v1217, 2
        %v1227 = vsel %vm959, %v1225, %v1226
        %v1232 = vadd.f32 %v1198, %v1224
        %v1233 = vadd.f32 %v1199, %v1227
        %v1234 = vadd.f32 %v1200, %v1223
        %v1235 = vadd.f32 %v1201, %v1226
        %v1236 = vld [vmem:[#allocation2 + $0x10] sm:$0xf8]
        %v1237 = vld [vmem:[#allocation2 + $0x18] sm:$0xf8]
        %v1238 = vld [vmem:[#allocation2 + $0x20] sm:$0xf]
        %v1239 = vld [vmem:[#allocation2 + $0x28] sm:$0xf]
        %v1240 = vlaneseq
        %v1241 = vshrl.u32 %v1240, 7
        %v1242 = vsub.s32 3, %v1241
        %v1243 = vrot.slane %v882, %v1242
        %v1244 = vlaneseq
        %v1245 = vshrl.u32 %v1244, 7
        %v1246 = vsub.s32 3, %v1245
        %v1247 = vrot.slane %v883, %v1246
        %v1248 = vmul.f32 %v1236, %v1243
        %v1249 = vmul.f32 %v1237, %v1247
        %v1250 = vmul.f32 %v1238, %v1243
        %v1251 = vmul.f32 %v1239, %v1247
        %v1256 = vrot.slane %v1248, 3
        %v1257 = vrot.slane %v1250, 3
        %v1258 = vsel %vm994, %v1256, %v1257
        %v1259 = vrot.slane %v1249, 3
        %v1260 = vrot.slane %v1251, 3
        %v1261 = vsel %vm994, %v1259, %v1260
        %v1266 = vadd.f32 %v1232, %v1258
        %v1267 = vadd.f32 %v1233, %v1261
        %v1268 = vadd.f32 %v1234, %v1257
        %v1269 = vadd.f32 %v1235, %v1260
        %v1270 = vld [vmem:[#allocation2 + $0x10] sm:$0xf0]
        %v1271 = vld [vmem:[#allocation2 + $0x18] sm:$0xf0]
        %v1272 = vld [vmem:[#allocation2 + $0x20] sm:$0x1f]
        %v1273 = vld [vmem:[#allocation2 + $0x28] sm:$0x1f]
        %v1274 = vlaneseq
        %v1275 = vshrl.u32 %v1274, 7
        %v1276 = vsub.s32 4, %v1275
        %v1277 = vrot.slane %v882, %v1276
        %v1278 = vlaneseq
        %v1279 = vshrl.u32 %v1278, 7
        %v1280 = vsub.s32 4, %v1279
        %v1281 = vrot.slane %v883, %v1280
        %v1282 = vmul.f32 %v1270, %v1277
        %v1283 = vmul.f32 %v1271, %v1281
        %v1284 = vmul.f32 %v1272, %v1277
        %v1285 = vmul.f32 %v1273, %v1281
        %v1290 = vrot.slane %v1282, 4
        %v1291 = vrot.slane %v1284, 4
        %v1292 = vsel %vm1029, %v1290, %v1291
        %v1293 = vrot.slane %v1283, 4
        %v1294 = vrot.slane %v1285, 4
        %v1295 = vsel %vm1029, %v1293, %v1294
        %v1300 = vadd.f32 %v1266, %v1292
        %v1301 = vadd.f32 %v1267, %v1295
        %v1302 = vadd.f32 %v1268, %v1291
        %v1303 = vadd.f32 %v1269, %v1294
        %v1304 = vld [vmem:[#allocation2 + $0x10] sm:$0xe0]
        %v1305 = vld [vmem:[#allocation2 + $0x18] sm:$0xe0]
        %v1306 = vld [vmem:[#allocation2 + $0x20] sm:$0x3f]
        %v1307 = vld [vmem:[#allocation2 + $0x28] sm:$0x3f]
        %v1308 = vlaneseq
        %v1309 = vshrl.u32 %v1308, 7
        %v1310 = vsub.s32 5, %v1309
        %v1311 = vrot.slane %v882, %v1310
        %v1312 = vlaneseq
        %v1313 = vshrl.u32 %v1312, 7
        %v1314 = vsub.s32 5, %v1313
        %v1315 = vrot.slane %v883, %v1314
        %v1316 = vmul.f32 %v1304, %v1311
        %v1317 = vmul.f32 %v1305, %v1315
        %v1318 = vmul.f32 %v1306, %v1311
        %v1319 = vmul.f32 %v1307, %v1315
        %v1324 = vrot.slane %v1316, 5
        %v1325 = vrot.slane %v1318, 5
        %v1326 = vsel %vm1064, %v1324, %v1325
        %v1327 = vrot.slane %v1317, 5
        %v1328 = vrot.slane %v1319, 5
        %v1329 = vsel %vm1064, %v1327, %v1328
        %v1334 = vadd.f32 %v1300, %v1326
        %v1335 = vadd.f32 %v1301, %v1329
        %v1336 = vadd.f32 %v1302, %v1325
        %v1337 = vadd.f32 %v1303, %v1328
        %v1338 = vld [vmem:[#allocation2 + $0x10] sm:$0xc0]
        %v1339 = vld [vmem:[#allocation2 + $0x18] sm:$0xc0]
        %v1340 = vld [vmem:[#allocation2 + $0x20] sm:$0x7f]
        %v1341 = vld [vmem:[#allocation2 + $0x28] sm:$0x7f]
        %v1342 = vlaneseq
        %v1343 = vshrl.u32 %v1342, 7
        %v1344 = vsub.s32 6, %v1343
        %v1345 = vrot.slane %v882, %v1344
        %v1346 = vlaneseq
        %v1347 = vshrl.u32 %v1346, 7
        %v1348 = vsub.s32 6, %v1347
        %v1349 = vrot.slane %v883, %v1348
        %v1350 = vmul.f32 %v1338, %v1345
        %v1351 = vmul.f32 %v1339, %v1349
        %v1352 = vmul.f32 %v1340, %v1345
        %v1353 = vmul.f32 %v1341, %v1349
        %v1358 = vrot.slane %v1350, 6
        %v1359 = vrot.slane %v1352, 6
        %v1360 = vsel %vm1099, %v1358, %v1359
        %v1361 = vrot.slane %v1351, 6
        %v1362 = vrot.slane %v1353, 6
        %v1363 = vsel %vm1099, %v1361, %v1362
        %v1368 = vadd.f32 %v1334, %v1360
        %v1369 = vadd.f32 %v1335, %v1363
        %v1370 = vadd.f32 %v1336, %v1359
        %v1371 = vadd.f32 %v1337, %v1362
        %v1372 = vld [vmem:[#allocation2 + $0x10] sm:$0x80]
        %v1373 = vld [vmem:[#allocation2 + $0x18] sm:$0x80]
        %v1374 = vld [vmem:[#allocation2 + $0x20] sm:$0xff]
        %v1375 = vld [vmem:[#allocation2 + $0x28] sm:$0xff]
        %v1376 = vlaneseq
        %v1377 = vshrl.u32 %v1376, 7
        %v1378 = vsub.s32 7, %v1377
        %v1379 = vrot.slane %v882, %v1378
        %v1380 = vlaneseq
        %v1381 = vshrl.u32 %v1380, 7
        %v1382 = vsub.s32 7, %v1381
        %v1383 = vrot.slane %v883, %v1382
        %v1384 = vmul.f32 %v1372, %v1379
        %v1385 = vmul.f32 %v1373, %v1383
        %v1386 = vmul.f32 %v1374, %v1379
        %v1387 = vmul.f32 %v1375, %v1383
        %v1392 = vrot.slane %v1384, 7
        %v1393 = vrot.slane %v1386, 7
        %v1394 = vsel %vm503, %v1392, %v1393
        %v1395 = vrot.slane %v1385, 7
        %v1396 = vrot.slane %v1387, 7
        %v1397 = vsel %vm503, %v1395, %v1396
        %v1402 = vadd.f32 %v1368, %v1394
        %v1403 = vadd.f32 %v1369, %v1397
        %v1404 = vadd.f32 %v1370, %v1393
        %v1405 = vadd.f32 %v1371, %v1396
        %v1406 = vld [vmem:[#allocation11] sm:$0x3]
        %v1408 = vlaneseq
        %v1409 = vshrl.u32 %v1408, 7
        %v1410 = vsub.s32 0, %v1409
        %v1411 = vrot.slane %v1406, %v1410
        %v1412 = vlaneseq
        %v1413 = vshrl.u32 %v1412, 7
        %v1414 = vsub.s32 1, %v1413
        %v1415 = vrot.slane %v1406, %v1414
        %v1418 = vadd.f32 %v1402, %v1411
        %v1419 = vadd.f32 %v1403, %v1415
        %v1420 = vadd.f32 %v1404, %v1411
        %v1421 = vadd.f32 %v1405, %v1415
        %v1422 = vld [vmem:[%s7] sm:$0x3]
        %v1424 = vlaneseq
        %v1425 = vshrl.u32 %v1424, 7
        %v1426 = vsub.s32 0, %v1425
        %v1427 = vrot.slane %v1422, %v1426
        %v1428 = vlaneseq
        %v1429 = vshrl.u32 %v1428, 7
        %v1430 = vsub.s32 1, %v1429
        %v1431 = vrot.slane %v1422, %v1430
        %v1434 = vmul.f32 %v1418, %v1427
        %v1435 = vmul.f32 %v1419, %v1431
        %v1436 = vmul.f32 %v1420, %v1427
        %v1437 = vmul.f32 %v1421, %v1431
        %v1438 = vld [vmem:[%s8] sm:$0x3]
        %v1440 = vlaneseq
        %v1441 = vshrl.u32 %v1440, 7
        %v1442 = vsub.s32 0, %v1441
        %v1443 = vrot.slane %v1438, %v1442
        %v1444 = vlaneseq
        %v1445 = vshrl.u32 %v1444, 7
        %v1446 = vsub.s32 1, %v1445
        %v1447 = vrot.slane %v1438, %v1446
        %v1450 = vadd.f32 %v1434, %v1443
        %v1451 = vadd.f32 %v1435, %v1447
        %v1452 = vadd.f32 %v1436, %v1443
        %v1453 = vadd.f32 %v1437, %v1447
        %v1454 = vxor.u32 %v1450, 2147483648
        %v1455 = vxor.u32 %v1451, 2147483648
        %v1456 = vxor.u32 %v1452, 2147483648
        %v1457 = vxor.u32 %v1453, 2147483648
        %v1458 = vmul.f32 %v1454, 1.442695
        %v1459 = vpow.pop %v1458
        %v1460 = vmul.f32 %v1455, 1.442695
        %v1461 = vpow.pop %v1460
        %v1462 = vmul.f32 %v1456, 1.442695
        %v1463 = vpow.pop %v1462
        %v1464 = vmul.f32 %v1457, 1.442695
        %v1465 = vpow.pop %v1464
        %v1466 = vadd.f32 %v1459, 1.0
        %v1467 = vadd.f32 %v1461, 1.0
        %v1468 = vadd.f32 %v1463, 1.0
        %v1469 = vadd.f32 %v1465, 1.0
        %v1470 = vrcp.pop %v1466
        %v1471 = vmul.f32 1.0, %v1470
        %v1472 = vrcp.pop %v1467
        %v1473 = vmul.f32 1.0, %v1472
        %v1474 = vrcp.pop %v1468
        %v1475 = vmul.f32 1.0, %v1474
        %v1476 = vrcp.pop %v1469
        %v1477 = vmul.f32 1.0, %v1476
        %v1478 = vmul.f32 %v1450, %v1471
        %v1479 = vmul.f32 %v1451, %v1473
        %v1480 = vmul.f32 %v1452, %v1475
        %v1481 = vmul.f32 %v1453, %v1477
        %v1482 = vpack.c.bf16 %v1480, %v1478
        %v1483 = vpack.c.bf16 %v1481, %v1479
        %v1484 = vld [vmem:[#allocation13] sm:$0xf]
        %v1485 = vld [vmem:[#allocation13 + $0x4] sm:$0xf]
        %v1486 = vld [vmem:[#allocation13 + $0x8] sm:$0xf]
        %v1487 = vld [vmem:[#allocation13 + $0xc] sm:$0xf]
        %v1488 = vld [vmem:[#allocation13 + $0x10] sm:$0xf]
        %v1489 = vld [vmem:[#allocation13 + $0x14] sm:$0xf]
        %v1490 = vld [vmem:[#allocation13 + $0x18] sm:$0xf]
        %v1491 = vld [vmem:[#allocation13 + $0x1c] sm:$0xf]
        %v1492 = vld [vmem:[#allocation13 + $0x20] sm:$0xf]
        %v1493 = vld [vmem:[#allocation13 + $0x24] sm:$0xf]
        %v1494 = vld [vmem:[#allocation13 + $0x28] sm:$0xf]
        %v1495 = vld [vmem:[#allocation13 + $0x2c] sm:$0xf]
        %v1496 = vld [vmem:[#allocation13 + $0x30] sm:$0xf]
        %v1497 = vld [vmem:[#allocation13 + $0x34] sm:$0xf]
        %v1498 = vld [vmem:[#allocation13 + $0x38] sm:$0xf]
        %v1499 = vld [vmem:[#allocation13 + $0x3c] sm:$0xf]
        %v1500 = vld [vmem:[#allocation13 + $0x40] sm:$0xf]
        %v1501 = vld [vmem:[#allocation13 + $0x44] sm:$0xf]
        %v1502 = vld [vmem:[#allocation13 + $0x48] sm:$0xf]
        %v1503 = vld [vmem:[#allocation13 + $0x4c] sm:$0xf]
        %v1504 = vld [vmem:[#allocation13 + $0x50] sm:$0xf]
        %v1505 = vld [vmem:[#allocation13 + $0x54] sm:$0xf]
        %v1506 = vld [vmem:[#allocation13 + $0x58] sm:$0xf]
        %v1507 = vld [vmem:[#allocation13 + $0x5c] sm:$0xf]
        %v1508 = vld [vmem:[#allocation13 + $0x60] sm:$0xf]
        %v1509 = vld [vmem:[#allocation13 + $0x64] sm:$0xf]
        %v1510 = vld [vmem:[#allocation13 + $0x68] sm:$0xf]
        %v1511 = vld [vmem:[#allocation13 + $0x6c] sm:$0xf]
        %v1512 = vld [vmem:[#allocation13 + $0x70] sm:$0xf]
        %v1513 = vld [vmem:[#allocation13 + $0x74] sm:$0xf]
        %v1514 = vld [vmem:[#allocation13 + $0x78] sm:$0xf]
        %v1515 = vld [vmem:[#allocation13 + $0x7c] sm:$0xf]
        %v1516 = vld [vmem:[#allocation14] sm:$0x1]
        %v1518 = vlaneseq
        %v1519 = vshrl.u32 %v1518, 7
        %v1520 = vsub.s32 0, %v1519
        %v1521 = vrot.slane %v1516, %v1520
        %v1555 = vunpack.c.l.b16 %v1484
        %v1556 = vunpack.c.l.b16 %v1485
        %v1557 = vunpack.c.l.b16 %v1486
        %v1558 = vunpack.c.l.b16 %v1487
        %v1559 = vunpack.c.l.b16 %v1488
        %v1560 = vunpack.c.l.b16 %v1489
        %v1561 = vunpack.c.l.b16 %v1490
        %v1562 = vunpack.c.l.b16 %v1491
        %v1563 = vunpack.c.l.b16 %v1492
        %v1564 = vunpack.c.l.b16 %v1493
        %v1565 = vunpack.c.l.b16 %v1494
        %v1566 = vunpack.c.l.b16 %v1495
        %v1567 = vunpack.c.l.b16 %v1496
        %v1568 = vunpack.c.l.b16 %v1497
        %v1569 = vunpack.c.l.b16 %v1498
        %v1570 = vunpack.c.l.b16 %v1499
        %v1571 = vunpack.c.l.b16 %v1500
        %v1572 = vunpack.c.l.b16 %v1501
        %v1573 = vunpack.c.l.b16 %v1502
        %v1574 = vunpack.c.l.b16 %v1503
        %v1575 = vunpack.c.l.b16 %v1504
        %v1576 = vunpack.c.l.b16 %v1505
        %v1577 = vunpack.c.l.b16 %v1506
        %v1578 = vunpack.c.l.b16 %v1507
        %v1579 = vunpack.c.l.b16 %v1508
        %v1580 = vunpack.c.l.b16 %v1509
        %v1581 = vunpack.c.l.b16 %v1510
        %v1582 = vunpack.c.l.b16 %v1511
        %v1583 = vunpack.c.l.b16 %v1512
        %v1584 = vunpack.c.l.b16 %v1513
        %v1585 = vunpack.c.l.b16 %v1514
        %v1586 = vunpack.c.l.b16 %v1515
        %v1587 = vpack.c.b16 %v1556, %v1555
        %v1588 = vpack.c.b16 %v1558, %v1557
        %v1589 = vpack.c.b16 %v1560, %v1559
        %v1590 = vpack.c.b16 %v1562, %v1561
        %v1591 = vpack.c.b16 %v1564, %v1563
        %v1592 = vpack.c.b16 %v1566, %v1565
        %v1593 = vpack.c.b16 %v1568, %v1567
        %v1594 = vpack.c.b16 %v1570, %v1569
        %v1595 = vpack.c.b16 %v1572, %v1571
        %v1596 = vpack.c.b16 %v1574, %v1573
        %v1597 = vpack.c.b16 %v1576, %v1575
        %v1598 = vpack.c.b16 %v1578, %v1577
        %v1599 = vpack.c.b16 %v1580, %v1579
        %v1600 = vpack.c.b16 %v1582, %v1581
        %v1601 = vpack.c.b16 %v1584, %v1583
        %v1602 = vpack.c.b16 %v1586, %v1585
        %1619 = vmatprep.subr.bf16.mxu0 0
        %1620 = vmatpush1.bf16.msra.mxu0 %v1587
        %1621 = vmatprep.subr.bf16.mxu0 0
        %1622 = vmatpush1.bf16.msra.mxu0 %v1588
        %1623 = vmatprep.subr.bf16.mxu0 0
        %1624 = vmatpush1.bf16.msra.mxu0 %v1589
        %1625 = vmatprep.subr.bf16.mxu0 0
        %1626 = vmatpush1.bf16.msra.mxu0 %v1590
        %1627 = vmatprep.subr.bf16.mxu0 0
        %1628 = vmatpush1.bf16.msra.mxu0 %v1591
        %1629 = vmatprep.subr.bf16.mxu0 0
        %1630 = vmatpush1.bf16.msra.mxu0 %v1592
        %1631 = vmatprep.subr.bf16.mxu0 0
        %1632 = vmatpush1.bf16.msra.mxu0 %v1593
        %1633 = vmatprep.subr.bf16.mxu0 0
        %1634 = vmatpush1.bf16.msra.mxu0 %v1594
        %1635 = vmatprep.subr.bf16.mxu0 0
        %1636 = vmatpush1.bf16.msra.mxu0 %v1595
        %1637 = vmatprep.subr.bf16.mxu0 0
        %1638 = vmatpush1.bf16.msra.mxu0 %v1596
        %1639 = vmatprep.subr.bf16.mxu0 0
        %1640 = vmatpush1.bf16.msra.mxu0 %v1597
        %1641 = vmatprep.subr.bf16.mxu0 0
        %1642 = vmatpush1.bf16.msra.mxu0 %v1598
        %1643 = vmatprep.subr.bf16.mxu0 0
        %1644 = vmatpush1.bf16.msra.mxu0 %v1599
        %1645 = vmatprep.subr.bf16.mxu0 0
        %1646 = vmatpush1.bf16.msra.mxu0 %v1600
        %1647 = vmatprep.subr.bf16.mxu0 0
        %1648 = vmatpush1.bf16.msra.mxu0 %v1601
        %1649 = vmatprep.subr.bf16.mxu0 0
        %1650 = vmatpush1.bf16.msra.mxu0 %v1602
        %1651 = vmatprep.mubr.bf16.mxu0 %v1483
        %1652 = vmatmul.mubr.bf16.gmra.mrb[0].mxu0 %v1482
        %v1653 = vpop.f32.mrb[0].mxu0
        %v1654 = vadd.f32 %v1521, %v1653
        %v1655 = vpop.f32.mrb[0].mxu0
        %v1656 = vpop.f32.mrb[0].mxu0
        %v1657 = vadd.f32 %v1521, %v1656
        %v1658 = vpop.f32.mrb[0].mxu0
        %1659 = vdwg.mxu0
        %v1660 = vadd.f32 %v497, %v1654
        %v1661 = vadd.f32 %v498, %v1657
        %v1662 = vpack.c.bf16 %v1661, %v1660
        %v1664 = vunpack.c.l.b16 %v1662
        %v1665 = vunpack.c.h.b16 %v1662
        %v1666 = vpack.c.b16 %v1664, %v1664
        %v1667 = vpack.c.b16 %v1665, %v1665
        %1670 = vst [vmem:[%s493] sm:$0xf] %v1666
        %vm1671 = vcmask 1040384
        %vm1672 = vsmask.f32 256
        %vm1673 = vmand %vm1671, %vm1672
        %v1674 = vld [vmem:[%s493 + $0x4] sm:$0x1]
        %v1675 = vsel %vm1673, %v1667, %v1674
        %1676 = vst [vmem:[%s493 + $0x4] sm:$0x1] %v1675
        %p1677 = scmp.lt.s32.totalorder %s27, 1
        %s1678 = scalar_select %p1677, %s27, 1
        %s1679 = smul.addr %s1678, 2
        %s1680 = smul.addr %s1679, 4
        %s1681 = scalar_lea.vmem %s11, %s1680
        // Predicated region
        $region97: #{my_conformer_forward.9} parent=63 // pred_check
          %p1682 = pneg %p281
        $region98: #{my_conformer_forward.9} parent=63 // pred_check_branch
          %1684 = sbr.rel (%p1682) target = $region100
        $region99: #{my_conformer_forward.9} parent=63 // pred_region
          _
        $region100: #{my_conformer_forward.9} parent=63 // pred_fallthru
          _
      $region64: #{my_conformer_forward.9} parent=5 // pred_fallthru
        _
      %p1685 = scmp.le.s32.totalorder 2, %s22
      // Predicated region
      $region101: #{my_conformer_forward.9} parent=5 // pred_check
        %p1686 = pneg %p1685
      $region102: #{my_conformer_forward.9} parent=5 // pred_check_branch
        %1688 = sbr.rel (%p1686) target = $region104
      $region103: #{my_conformer_forward.9} parent=5 // pred_region
        %s1689 = ssub.s32 %s22, 2
        // Predicated region
        $region105: #{my_conformer_forward.9} parent=103 // pred_check
          %p1690 = pneg %p287
        $region106: #{my_conformer_forward.9} parent=103 // pred_check_branch
          %1692 = sbr.rel (%p1690) target = $region108
        $region107: #{my_conformer_forward.9} parent=103 // pred_region
          %p1693 = scmp.lt.s32.totalorder %s28, 1
          %s1694 = scalar_select %p1693, %s28, 1
          %s1695 = smul.addr %s1694, 2
          %s1696 = smul.addr %s1695, 4
          %s1697 = scalar_lea.vmem %s11, %s1696
        $region108: #{my_conformer_forward.9} parent=103 // pred_fallthru
          _
      $region104: #{my_conformer_forward.9} parent=5 // pred_fallthru
        _
    $region6: #{my_conformer_forward.9} parent=1 // loop_footer
      %s26 = sadd.s32 1, %s22
    $region7: #{my_conformer_forward.9} parent=1 // loop_footer_branch
      %21 = sbr.rel target = $region3
    $region8: #{my_conformer_forward.9} parent=1 // loop_exit
      _
    %1698 = vsyncpa [#allocation4], 1
    %s1699 = scalar_lea.sflag [#allocation4], 1
    %1700 = vsyncpa %s1699, 1
    %1701 = vsyncpa [#allocation6], 1
    %1702 = vsyncpa [#allocation9], 1
    %1703 = vsyncpa [#allocation12], 1
    %1704 = vsyncpa [#allocation15], 1

</llo_original>
